<compile_context>
chip_gen: v6e
topology: v6e:2x2x1
jax: 0.10.0
libtpu: 0.0.40
codegen_flags: <defaults>
</compile_context>

<pallas_src>
import functools

import numpy as np

import jax
import jax.numpy as jnp
from jax import lax
from jax.experimental import pallas as pl
from jax.experimental.pallas import tpu as pltpu

LANE = 128
F32 = jnp.float32


# --------------------------------------------------------------------------
# Kernel 1: fused conv1+ReLU+pool1+conv2+ReLU+pool2
#
# Input rows are (sample, g, t) on the 8x8 space-to-depth grid, lanes are the
# 16 (h%4, w%4) phase components x 3 input channels (48 lanes).  Shifting the
# rows by {0,1,8,9} (conv1) / {0,1,2,8,9,10,16,17,18} (conv2) and multiplying
# by a rearranged weight matrix evaluates the 5x5 conv at the positions of all
# four 2x2-pooling phases at once; a lane-group max then performs the pool.
# --------------------------------------------------------------------------

def _conv_stack_kernel(x_ref, g1_ref, b1_ref, g2_ref, b2_ref, o_ref, *, n_rows):
    N = n_rows
    x = x_ref[...]                                                # (N, 48)
    x_ext = jnp.concatenate([x, jnp.zeros((16, x.shape[1]), x.dtype)], axis=0)

    # conv1 (all 4 pooling phases x 4 parity components in one matmul)
    s1 = jnp.concatenate([x_ext[sh:sh + N, :] for sh in (0, 1, 8, 9)], axis=1)   # (N, 192)
    h1 = jnp.dot(s1, g1_ref[...], preferred_element_type=jnp.float32,
                 precision=lax.Precision.HIGHEST)                                # (N, 96)
    h1 = jnp.maximum(h1 + b1_ref[...], 0.0)

    # pool1 = max over the 4 pooling phases of each parity component
    p1 = []
    for ab in range(4):
        base = ab * 24
        p1.append(jnp.maximum(
            jnp.maximum(h1[:, base:base + 6], h1[:, base + 6:base + 12]),
            jnp.maximum(h1[:, base + 12:base + 18], h1[:, base + 18:base + 24])))
    p1c = jnp.concatenate(p1, axis=1)                                            # (N, 24)

    # conv2 (same trick, one level down)
    p1e = jnp.concatenate([p1c, jnp.zeros((24, p1c.shape[1]), p1c.dtype)], axis=0)
    shifts2 = tuple(di * 8 + dj for di in range(3) for dj in range(3))
    s2 = jnp.concatenate([p1e[sh:sh + N, :] for sh in shifts2], axis=1)          # (N, 216)
    h2 = jnp.dot(s2, g2_ref[...], preferred_element_type=jnp.float32,
                 precision=lax.Precision.HIGHEST)                                # (N, 64)
    h2 = jnp.maximum(h2 + b2_ref[...], 0.0)

    # pool2 = max over the 4 pooling phases -> 16 compact output channels
    o_ref[...] = jnp.maximum(jnp.maximum(h2[:, 0:16], h2[:, 16:32]),
                             jnp.maximum(h2[:, 32:48], h2[:, 48:64]))


def conv_stack(x_cat, g1, b1t, g2, b2t, *, tb):
    rows = x_cat.shape[0]                 # B * 64
    n = tb * 64
    grid = (rows // n,)
    flops = 2 * rows * (192 * 96 + 216 * 64)
    bytes_accessed = 4 * (rows * 48 + 192 * 96 + 96 + 216 * 64 + 64 + rows * 16)
    return pl.pallas_call(
        functools.partial(_conv_stack_kernel, n_rows=n),
        out_shape=jax.ShapeDtypeStruct((rows, 16), F32),
        grid=grid,
        in_specs=[
            pl.BlockSpec((n, 48), lambda m: (m, 0)),
            pl.BlockSpec((192, 96), lambda m: (0, 0)),
            pl.BlockSpec((1, 96), lambda m: (0, 0)),
            pl.BlockSpec((216, 64), lambda m: (0, 0)),
            pl.BlockSpec((1, 64), lambda m: (0, 0)),
        ],
        out_specs=pl.BlockSpec((n, 16), lambda m: (m, 0)),
        compiler_params=pltpu.CompilerParams(dimension_semantics=("parallel",)),
        cost_estimate=pl.CostEstimate(flops=flops, transcendentals=0,
                                      bytes_accessed=bytes_accessed),
    )(x_cat, g1, b1t, g2, b2t)


# --------------------------------------------------------------------------
# Kernel 2: FC head (fc1+ReLU, fc2+ReLU, fc3) + masked log-softmax
# --------------------------------------------------------------------------

def _mlp_head_kernel(x_ref, w1_ref, b1_ref, w2_ref, b2_ref, w3_ref, b3_ref, o_ref,
                     *, num_classes):
    prec = lax.Precision.HIGHEST
    x = x_ref[...]
    h1 = jnp.maximum(jnp.dot(x, w1_ref[...], preferred_element_type=jnp.float32,
                             precision=prec) + b1_ref[...], 0.0)
    h2 = jnp.maximum(jnp.dot(h1, w2_ref[...], preferred_element_type=jnp.float32,
                             precision=prec) + b2_ref[...], 0.0)
    logits = jnp.dot(h2, w3_ref[...], preferred_element_type=jnp.float32,
                     precision=prec) + b3_ref[...]
    lane = lax.broadcasted_iota(jnp.int32, logits.shape, 1)
    valid = lane < num_classes
    logits = jnp.where(valid, logits, jnp.float32(-1e30))
    m = jnp.max(logits, axis=1, keepdims=True)
    s = logits - m
    denom = jnp.sum(jnp.where(valid, jnp.exp(s), 0.0), axis=1, keepdims=True)
    o_ref[...] = s - jnp.log(denom)


def mlp_head(x, w1p, b1p, w2p, b2p, w3p, b3p, *, num_classes, batch_tile=512):
    B, Din = x.shape
    D1, D2, D3 = w1p.shape[1], w2p.shape[1], w3p.shape[1]
    TB = B if B <= batch_tile else batch_tile
    grid = (pl.cdiv(B, TB),)
    flops = 2 * B * (400 * 120 + 120 * 84 + 84 * 10)        # useful (unpadded) work
    bytes_accessed = 4 * (B * Din + Din * D1 + D1 * D2 + D2 * D3 + B * D3)
    out = pl.pallas_call(
        functools.partial(_mlp_head_kernel, num_classes=num_classes),
        out_shape=jax.ShapeDtypeStruct((B, D3), F32),
        grid=grid,
        in_specs=[
            pl.BlockSpec((TB, Din), lambda m: (m, 0)),
            pl.BlockSpec((Din, D1), lambda m: (0, 0)),
            pl.BlockSpec((1, D1), lambda m: (0, 0)),
            pl.BlockSpec((D1, D2), lambda m: (0, 0)),
            pl.BlockSpec((1, D2), lambda m: (0, 0)),
            pl.BlockSpec((D2, D3), lambda m: (0, 0)),
            pl.BlockSpec((1, D3), lambda m: (0, 0)),
        ],
        out_specs=pl.BlockSpec((TB, D3), lambda m: (m, 0)),
        compiler_params=pltpu.CompilerParams(dimension_semantics=("parallel",)),
        cost_estimate=pl.CostEstimate(flops=flops, transcendentals=B * 10,
                                      bytes_accessed=bytes_accessed),
    )(x, w1p, b1p, w2p, b2p, w3p, b3p)
    return out[:, :num_classes]


# --------------------------------------------------------------------------
# Weight rearrangement (wrapper-side, tiny tensors)
# --------------------------------------------------------------------------

def _build_g1(w_conv1):
    """conv1 (6,3,5,5) -> (192, 96): rows = shift-slot(4) x component(16) x cin(3),
    cols = (parity A,B)x(pool phase X,Y) x oc(6)."""
    w_t = jnp.transpose(w_conv1, (2, 3, 1, 0))                  # (i, j, c, oc)
    ii, jj, cc, oo, rows, cols = [], [], [], [], [], []
    for A in range(2):
        for Bp in range(2):
            for X in range(2):
                for Y in range(2):
                    col_base = ((A * 2 + Bp) * 4 + (X * 2 + Y)) * 6
                    for i in range(5):
                        vr = 2 * A + X + i
                        alpha, di = vr % 4, vr // 4
                        for j in range(5):
                            vc = 2 * Bp + Y + j
                            beta, dj = vc % 4, vc // 4
                            row_base = (di * 2 + dj) * 48 + (alpha * 4 + beta) * 3
                            for c in range(3):
                                for oc in range(6):
                                    ii.append(i); jj.append(j)
                                    cc.append(c); oo.append(oc)
                                    rows.append(row_base + c)
                                    cols.append(col_base + oc)
    vals = w_t[np.array(ii), np.array(jj), np.array(cc), np.array(oo)]
    return jnp.zeros((192, 96), F32).at[np.array(rows), np.array(cols)].set(vals)


def _build_g2(w_conv2):
    """conv2 (16,6,5,5) -> (216, 64): rows = shift-slot(9) x parity comp(4) x cin(6),
    cols = pool phase(4) x oc(16)."""
    w_t = jnp.transpose(w_conv2, (2, 3, 1, 0))                  # (i, j, ch, oc)
    ii, jj, cc, oo, rows, cols = [], [], [], [], [], []
    for U in range(2):
        for V in range(2):
            col_base = (U * 2 + V) * 16
            for i in range(5):
                vr = U + i
                A, di = vr % 2, vr // 2
                for j in range(5):
                    vc = V + j
                    Bp, dj = vc % 2, vc // 2
                    row_base = (di * 3 + dj) * 24 + (A * 2 + Bp) * 6
                    for ch in range(6):
                        for oc in range(16):
                            ii.append(i); jj.append(j)
                            cc.append(ch); oo.append(oc)
                            rows.append(row_base + ch)
                            cols.append(col_base + oc)
    vals = w_t[np.array(ii), np.array(jj), np.array(cc), np.array(oo)]
    return jnp.zeros((216, 64), F32).at[np.array(rows), np.array(cols)].set(vals)


def _build_fc_weights(params):
    # Fold torch's CHW flatten order and the polyphase (8x8 grid, valid 5x5)
    # row order of the conv-stack output into fc1's rows.
    w1r = params["w_fc1"].reshape(120, 16, 5, 5)                # (d, oc, a, b)
    w1e = jnp.zeros((8, 8, 16, 120), F32)
    w1e = w1e.at[:5, :5, :, :].set(jnp.transpose(w1r, (2, 3, 1, 0)))
    w1p = jnp.pad(w1e.reshape(1024, 120), ((0, 0), (0, LANE - 120)))
    b1p = jnp.pad(params["b_fc1"].reshape(1, -1), ((0, 0), (0, LANE - 120)))
    w2p = jnp.pad(params["w_fc2"].T, ((0, LANE - 120), (0, LANE - 84)))
    b2p = jnp.pad(params["b_fc2"].reshape(1, -1), ((0, 0), (0, LANE - 84)))
    w3p = jnp.pad(params["w_fc3"].T, ((0, LANE - 84), (0, LANE - 10)))
    b3p = jnp.pad(params["b_fc3"].reshape(1, -1), ((0, 0), (0, LANE - 10)))
    return w1p, b1p, w2p, b2p, w3p, b3p


def _pick_batch_tile(B):
    for tb in (8, 4, 2, 1):                 # keep >= 2 parallel grid steps when B >= 2
        if B % tb == 0 and B // tb >= 2:
            return tb
    return B                                # B == 1


# --------------------------------------------------------------------------
# Forward pass
# --------------------------------------------------------------------------

def lenet5_forward(x_nchw, params):
    B = x_nchw.shape[0]
    # one-time space-to-depth(4) repack of the tiny input (12 KB/sample);
    # rows = (b, h//4, w//4), lanes = (h%4, w%4, c) -> 48 lanes.
    x = jnp.transpose(x_nchw, (0, 2, 3, 1))
    x = x.reshape(B, 8, 4, 8, 4, 3).transpose(0, 1, 3, 2, 4, 5).reshape(B * 64, 48)

    g1 = _build_g1(params["w_conv1"])
    b1t = jnp.tile(params["b_conv1"], 16).reshape(1, 96)
    g2 = _build_g2(params["w_conv2"])
    b2t = jnp.tile(params["b_conv2"], 4).reshape(1, 64)

    tb = _pick_batch_tile(B)
    p2 = conv_stack(x, g1, b1t, g2, b2t, tb=tb)                 # (B*64, 16)

    feat = p2.reshape(B, 1024)                                  # contiguous reshape
    w1p, b1p, w2p, b2p, w3p, b3p = _build_fc_weights(params)
    return mlp_head(feat, w1p, b1p, w2p, b2p, w3p, b3p, num_classes=10)   # (B, 10)


# --------------------------------------------------------------------------
# Parameters + pure-JAX reference (correctness check)
# --------------------------------------------------------------------------

def init_params(key):
    ks = jax.random.split(key, 10)

    def u(k, shape, fan_in):
        bound = 1.0 / jnp.sqrt(jnp.float32(fan_in))
        return jax.random.uniform(k, shape, F32, -bound, bound)

    return dict(
        w_conv1=u(ks[0], (6, 3, 5, 5), 3 * 25),
        b_conv1=u(ks[1], (6,), 3 * 25),
        w_conv2=u(ks[2], (16, 6, 5, 5), 6 * 25),
        b_conv2=u(ks[3], (16,), 6 * 25),
        w_fc1=u(ks[4], (120, 400), 400),    # torch Linear: (out, in)
        b_fc1=u(ks[5], (120,), 400),
        w_fc2=u(ks[6], (84, 120), 120),
        b_fc2=u(ks[7], (84,), 120),
        w_fc3=u(ks[8], (10, 84), 84),
        b_fc3=u(ks[9], (10,), 84),
    )


def lenet5_reference(x, params):
    prec = lax.Precision.HIGHEST
    y = lax.conv_general_dilated(x, params["w_conv1"], (1, 1), "VALID",
                                 dimension_numbers=("NCHW", "OIHW", "NCHW"),
                                 precision=prec)
    y = jax.nn.relu(y + params["b_conv1"][None, :, None, None])
    y = lax.reduce_window(y, -jnp.inf, lax.max, (1, 1, 2, 2), (1, 1, 2, 2), "VALID")
    y = lax.conv_general_dilated(y, params["w_conv2"], (1, 1), "VALID",
                                 dimension_numbers=("NCHW", "OIHW", "NCHW"),
                                 precision=prec)
    y = jax.nn.relu(y + params["b_conv2"][None, :, None, None])
    y = lax.reduce_window(y, -jnp.inf, lax.max, (1, 1, 2, 2), (1, 1, 2, 2), "VALID")
    y = y.reshape(y.shape[0], -1)
    y = jax.nn.relu(jnp.dot(y, params["w_fc1"].T, precision=prec) + params["b_fc1"])
    y = jax.nn.relu(jnp.dot(y, params["w_fc2"].T, precision=prec) + params["b_fc2"])
    y = jnp.dot(y, params["w_fc3"].T, precision=prec) + params["b_fc3"]
    return jax.nn.log_softmax(y, axis=1)


if __name__ == "__main__":
    key = jax.random.PRNGKey(0)
    k_x, k_p = jax.random.split(key)
    B = 2
    x = jax.random.normal(k_x, (B, 3, 32, 32), F32)   # LeNet5 expects 3x32x32
    params = init_params(k_p)

    fwd = jax.jit(lenet5_forward)
    out = jax.block_until_ready(fwd(x, params))
    ref = jax.block_until_ready(lenet5_reference(x, params))

    assert out.shape == (B, 10), out.shape
    assert jnp.allclose(out, ref, atol=2e-4, rtol=2e-4), "mismatch vs reference"
    print("KERNEL_OK")
</pallas_src>

<mosaic_0001>
module attributes {stable_mosaic.version = 11 : i64} {
  func.func @_conv_stack_kernel(%arg0: i32, %arg1: memref<64x48xf32, #tpu.memory_space<vmem>>, %arg2: memref<192x96xf32, #tpu.memory_space<vmem>>, %arg3: memref<1x96xf32, #tpu.memory_space<vmem>>, %arg4: memref<216x64xf32, #tpu.memory_space<vmem>>, %arg5: memref<1x64xf32, #tpu.memory_space<vmem>>, %arg6: memref<64x16xf32, #tpu.memory_space<vmem>>) attributes {dimension_semantics = [#tpu.dimension_semantics<parallel>], iteration_bounds = array<i64: 2>, scalar_prefetch = 0 : i64, scratch_operands = 0 : i64, tpu.core_type = #tpu.core_type<tc>, window_params = [{transform_indices = @transform_0, window_bounds = array<i64: 64, 48>}, {pipeline_mode = #tpu.pipeline_mode<synchronous>, transform_indices = @transform_1, window_bounds = array<i64: 192, 96>}, {pipeline_mode = #tpu.pipeline_mode<synchronous>, transform_indices = @transform_2, window_bounds = array<i64: 1, 96>}, {pipeline_mode = #tpu.pipeline_mode<synchronous>, transform_indices = @transform_3, window_bounds = array<i64: 216, 64>}, {pipeline_mode = #tpu.pipeline_mode<synchronous>, transform_indices = @transform_4, window_bounds = array<i64: 1, 64>}, {transform_indices = @transform_5, window_bounds = array<i64: 64, 16>}]} {
    %c0 = arith.constant 0 : index
    %c0_0 = arith.constant 0 : index
    %0 = vector.load %arg1[%c0, %c0_0] : memref<64x48xf32, #tpu.memory_space<vmem>>, vector<64x48xf32>
    %cst = arith.constant 0.000000e+00 : f32
    %1 = vector.broadcast %cst : f32 to vector<16x48xf32>
    %2 = tpu.concatenate %0, %1 in 0 : vector<64x48xf32>, vector<16x48xf32> -> vector<80x48xf32>
    %3 = vector.extract_strided_slice %2 {offsets = [0, 0], sizes = [64, 48], strides = [1, 1]} : vector<80x48xf32> to vector<64x48xf32>
    %4 = vector.extract_strided_slice %2 {offsets = [1, 0], sizes = [64, 48], strides = [1, 1]} : vector<80x48xf32> to vector<64x48xf32>
    %5 = vector.extract_strided_slice %2 {offsets = [8, 0], sizes = [64, 48], strides = [1, 1]} : vector<80x48xf32> to vector<64x48xf32>
    %6 = vector.extract_strided_slice %2 {offsets = [9, 0], sizes = [64, 48], strides = [1, 1]} : vector<80x48xf32> to vector<64x48xf32>
    %7 = tpu.concatenate %3, %4, %5, %6 in 1 : vector<64x48xf32>, vector<64x48xf32>, vector<64x48xf32>, vector<64x48xf32> -> vector<64x192xf32>
    %c0_1 = arith.constant 0 : index
    %c0_2 = arith.constant 0 : index
    %8 = vector.load %arg2[%c0_1, %c0_2] : memref<192x96xf32, #tpu.memory_space<vmem>>, vector<192x96xf32>
    %cst_3 = arith.constant dense<0.000000e+00> : vector<64x96xf32>
    %9 = tpu.matmul %7, %8, %cst_3 {dimension_numbers = #tpu.dot_dimension_numbers<[1], [0], [0], [1], [0, 0, 1, 1], [], []>, precision = #tpu.contract_precision<fp32>} : vector<64x192xf32>, vector<192x96xf32>, vector<64x96xf32> -> vector<64x96xf32>
    %c0_4 = arith.constant 0 : index
    %c0_5 = arith.constant 0 : index
    %10 = vector.load %arg3[%c0_4, %c0_5] : memref<1x96xf32, #tpu.memory_space<vmem>>, vector<1x96xf32>
    %11 = vector.broadcast %10 : vector<1x96xf32> to vector<64x96xf32>
    %12 = arith.addf %9, %11 : vector<64x96xf32>
    %cst_6 = arith.constant 0.000000e+00 : f32
    %13 = vector.broadcast %cst_6 : f32 to vector<64x96xf32>
    %14 = arith.maximumf %12, %13 : vector<64x96xf32>
    %15 = vector.extract_strided_slice %14 {offsets = [0, 0], sizes = [64, 6], strides = [1, 1]} : vector<64x96xf32> to vector<64x6xf32>
    %16 = vector.extract_strided_slice %14 {offsets = [0, 6], sizes = [64, 6], strides = [1, 1]} : vector<64x96xf32> to vector<64x6xf32>
    %17 = arith.maximumf %15, %16 : vector<64x6xf32>
    %18 = vector.extract_strided_slice %14 {offsets = [0, 12], sizes = [64, 6], strides = [1, 1]} : vector<64x96xf32> to vector<64x6xf32>
    %19 = vector.extract_strided_slice %14 {offsets = [0, 18], sizes = [64, 6], strides = [1, 1]} : vector<64x96xf32> to vector<64x6xf32>
    %20 = arith.maximumf %18, %19 : vector<64x6xf32>
    %21 = arith.maximumf %17, %20 : vector<64x6xf32>
    %22 = vector.extract_strided_slice %14 {offsets = [0, 24], sizes = [64, 6], strides = [1, 1]} : vector<64x96xf32> to vector<64x6xf32>
    %23 = vector.extract_strided_slice %14 {offsets = [0, 30], sizes = [64, 6], strides = [1, 1]} : vector<64x96xf32> to vector<64x6xf32>
    %24 = arith.maximumf %22, %23 : vector<64x6xf32>
    %25 = vector.extract_strided_slice %14 {offsets = [0, 36], sizes = [64, 6], strides = [1, 1]} : vector<64x96xf32> to vector<64x6xf32>
    %26 = vector.extract_strided_slice %14 {offsets = [0, 42], sizes = [64, 6], strides = [1, 1]} : vector<64x96xf32> to vector<64x6xf32>
    %27 = arith.maximumf %25, %26 : vector<64x6xf32>
    %28 = arith.maximumf %24, %27 : vector<64x6xf32>
    %29 = vector.extract_strided_slice %14 {offsets = [0, 48], sizes = [64, 6], strides = [1, 1]} : vector<64x96xf32> to vector<64x6xf32>
    %30 = vector.extract_strided_slice %14 {offsets = [0, 54], sizes = [64, 6], strides = [1, 1]} : vector<64x96xf32> to vector<64x6xf32>
    %31 = arith.maximumf %29, %30 : vector<64x6xf32>
    %32 = vector.extract_strided_slice %14 {offsets = [0, 60], sizes = [64, 6], strides = [1, 1]} : vector<64x96xf32> to vector<64x6xf32>
    %33 = vector.extract_strided_slice %14 {offsets = [0, 66], sizes = [64, 6], strides = [1, 1]} : vector<64x96xf32> to vector<64x6xf32>
    %34 = arith.maximumf %32, %33 : vector<64x6xf32>
    %35 = arith.maximumf %31, %34 : vector<64x6xf32>
    %36 = vector.extract_strided_slice %14 {offsets = [0, 72], sizes = [64, 6], strides = [1, 1]} : vector<64x96xf32> to vector<64x6xf32>
    %37 = vector.extract_strided_slice %14 {offsets = [0, 78], sizes = [64, 6], strides = [1, 1]} : vector<64x96xf32> to vector<64x6xf32>
    %38 = arith.maximumf %36, %37 : vector<64x6xf32>
    %39 = vector.extract_strided_slice %14 {offsets = [0, 84], sizes = [64, 6], strides = [1, 1]} : vector<64x96xf32> to vector<64x6xf32>
    %40 = vector.extract_strided_slice %14 {offsets = [0, 90], sizes = [64, 6], strides = [1, 1]} : vector<64x96xf32> to vector<64x6xf32>
    %41 = arith.maximumf %39, %40 : vector<64x6xf32>
    %42 = arith.maximumf %38, %41 : vector<64x6xf32>
    %43 = tpu.concatenate %21, %28, %35, %42 in 1 : vector<64x6xf32>, vector<64x6xf32>, vector<64x6xf32>, vector<64x6xf32> -> vector<64x24xf32>
    %cst_7 = arith.constant 0.000000e+00 : f32
    %44 = vector.broadcast %cst_7 : f32 to vector<24x24xf32>
    %45 = tpu.concatenate %43, %44 in 0 : vector<64x24xf32>, vector<24x24xf32> -> vector<88x24xf32>
    %46 = vector.extract_strided_slice %45 {offsets = [0, 0], sizes = [64, 24], strides = [1, 1]} : vector<88x24xf32> to vector<64x24xf32>
    %47 = vector.extract_strided_slice %45 {offsets = [1, 0], sizes = [64, 24], strides = [1, 1]} : vector<88x24xf32> to vector<64x24xf32>
    %48 = vector.extract_strided_slice %45 {offsets = [2, 0], sizes = [64, 24], strides = [1, 1]} : vector<88x24xf32> to vector<64x24xf32>
    %49 = vector.extract_strided_slice %45 {offsets = [8, 0], sizes = [64, 24], strides = [1, 1]} : vector<88x24xf32> to vector<64x24xf32>
    %50 = vector.extract_strided_slice %45 {offsets = [9, 0], sizes = [64, 24], strides = [1, 1]} : vector<88x24xf32> to vector<64x24xf32>
    %51 = vector.extract_strided_slice %45 {offsets = [10, 0], sizes = [64, 24], strides = [1, 1]} : vector<88x24xf32> to vector<64x24xf32>
    %52 = vector.extract_strided_slice %45 {offsets = [16, 0], sizes = [64, 24], strides = [1, 1]} : vector<88x24xf32> to vector<64x24xf32>
    %53 = vector.extract_strided_slice %45 {offsets = [17, 0], sizes = [64, 24], strides = [1, 1]} : vector<88x24xf32> to vector<64x24xf32>
    %54 = vector.extract_strided_slice %45 {offsets = [18, 0], sizes = [64, 24], strides = [1, 1]} : vector<88x24xf32> to vector<64x24xf32>
    %55 = tpu.concatenate %46, %47, %48, %49, %50, %51, %52, %53, %54 in 1 : vector<64x24xf32>, vector<64x24xf32>, vector<64x24xf32>, vector<64x24xf32>, vector<64x24xf32>, vector<64x24xf32>, vector<64x24xf32>, vector<64x24xf32>, vector<64x24xf32> -> vector<64x216xf32>
    %c0_8 = arith.constant 0 : index
    %c0_9 = arith.constant 0 : index
    %56 = vector.load %arg4[%c0_8, %c0_9] : memref<216x64xf32, #tpu.memory_space<vmem>>, vector<216x64xf32>
    %cst_10 = arith.constant dense<0.000000e+00> : vector<64x64xf32>
    %57 = tpu.matmul %55, %56, %cst_10 {dimension_numbers = #tpu.dot_dimension_numbers<[1], [0], [0], [1], [0, 0, 1, 1], [], []>, precision = #tpu.contract_precision<fp32>} : vector<64x216xf32>, vector<216x64xf32>, vector<64x64xf32> -> vector<64x64xf32>
    %c0_11 = arith.constant 0 : index
    %c0_12 = arith.constant 0 : index
    %58 = vector.load %arg5[%c0_11, %c0_12] : memref<1x64xf32, #tpu.memory_space<vmem>>, vector<1x64xf32>
    %59 = vector.broadcast %58 : vector<1x64xf32> to vector<64x64xf32>
    %60 = arith.addf %57, %59 : vector<64x64xf32>
    %cst_13 = arith.constant 0.000000e+00 : f32
    %61 = vector.broadcast %cst_13 : f32 to vector<64x64xf32>
    %62 = arith.maximumf %60, %61 : vector<64x64xf32>
    %63 = vector.extract_strided_slice %62 {offsets = [0, 0], sizes = [64, 16], strides = [1, 1]} : vector<64x64xf32> to vector<64x16xf32>
    %64 = vector.extract_strided_slice %62 {offsets = [0, 16], sizes = [64, 16], strides = [1, 1]} : vector<64x64xf32> to vector<64x16xf32>
    %65 = arith.maximumf %63, %64 : vector<64x16xf32>
    %66 = vector.extract_strided_slice %62 {offsets = [0, 32], sizes = [64, 16], strides = [1, 1]} : vector<64x64xf32> to vector<64x16xf32>
    %67 = vector.extract_strided_slice %62 {offsets = [0, 48], sizes = [64, 16], strides = [1, 1]} : vector<64x64xf32> to vector<64x16xf32>
    %68 = arith.maximumf %66, %67 : vector<64x16xf32>
    %69 = arith.maximumf %65, %68 : vector<64x16xf32>
    %c0_14 = arith.constant 0 : index
    %c0_15 = arith.constant 0 : index
    %70 = vector.load %arg6[%c0_14, %c0_15] : memref<64x16xf32, #tpu.memory_space<vmem>>, vector<64x16xf32>
    tpu.vector_store %arg6[%c0_14, %c0_15], %69 {strides = array<i32>} : memref<64x16xf32, #tpu.memory_space<vmem>>, vector<64x16xf32>,
    return
  }
  func.func @transform_0(%arg0: i32) -> (i32, i32) {
    %c0_i32 = arith.constant 0 : i32
    %c0_i32_0 = arith.constant 0 : i32
    return %arg0, %c0_i32 : i32, i32
  }
  func.func @transform_1(%arg0: i32) -> (i32, i32) {
    %c0_i32 = arith.constant 0 : i32
    %c0_i32_0 = arith.constant 0 : i32
    %c0_i32_1 = arith.constant 0 : i32
    return %c0_i32, %c0_i32_0 : i32, i32
  }
  func.func @transform_2(%arg0: i32) -> (i32, i32) {
    %c0_i32 = arith.constant 0 : i32
    %c0_i32_0 = arith.constant 0 : i32
    %c0_i32_1 = arith.constant 0 : i32
    return %c0_i32, %c0_i32_0 : i32, i32
  }
  func.func @transform_3(%arg0: i32) -> (i32, i32) {
    %c0_i32 = arith.constant 0 : i32
    %c0_i32_0 = arith.constant 0 : i32
    %c0_i32_1 = arith.constant 0 : i32
    return %c0_i32, %c0_i32_0 : i32, i32
  }
  func.func @transform_4(%arg0: i32) -> (i32, i32) {
    %c0_i32 = arith.constant 0 : i32
    %c0_i32_0 = arith.constant 0 : i32
    %c0_i32_1 = arith.constant 0 : i32
    return %c0_i32, %c0_i32_0 : i32, i32
  }
  func.func @transform_5(%arg0: i32) -> (i32, i32) {
    %c0_i32 = arith.constant 0 : i32
    %c0_i32_0 = arith.constant 0 : i32
    return %arg0, %c0_i32 : i32, i32
  }
}

module attributes {stable_mosaic.version = 11 : i64} {
  func.func @_mlp_head_kernel(%arg0: i32, %arg1: memref<2x1024xf32, #tpu.memory_space<vmem>>, %arg2: memref<1024x128xf32, #tpu.memory_space<vmem>>, %arg3: memref<1x128xf32, #tpu.memory_space<vmem>>, %arg4: memref<128x128xf32, #tpu.memory_space<vmem>>, %arg5: memref<1x128xf32, #tpu.memory_space<vmem>>, %arg6: memref<128x128xf32, #tpu.memory_space<vmem>>, %arg7: memref<1x128xf32, #tpu.memory_space<vmem>>, %arg8: memref<2x128xf32, #tpu.memory_space<vmem>>) attributes {dimension_semantics = [#tpu.dimension_semantics<parallel>], iteration_bounds = array<i64: 1>, scalar_prefetch = 0 : i64, scratch_operands = 0 : i64, tpu.core_type = #tpu.core_type<tc>, window_params = [{transform_indices = @transform_0, window_bounds = array<i64: 2, 1024>}, {pipeline_mode = #tpu.pipeline_mode<synchronous>, transform_indices = @transform_1, window_bounds = array<i64: 1024, 128>}, {pipeline_mode = #tpu.pipeline_mode<synchronous>, transform_indices = @transform_2, window_bounds = array<i64: 1, 128>}, {pipeline_mode = #tpu.pipeline_mode<synchronous>, transform_indices = @transform_3, window_bounds = array<i64: 128, 128>}, {pipeline_mode = #tpu.pipeline_mode<synchronous>, transform_indices = @transform_4, window_bounds = array<i64: 1, 128>}, {pipeline_mode = #tpu.pipeline_mode<synchronous>, transform_indices = @transform_5, window_bounds = array<i64: 128, 128>}, {pipeline_mode = #tpu.pipeline_mode<synchronous>, transform_indices = @transform_6, window_bounds = array<i64: 1, 128>}, {transform_indices = @transform_7, window_bounds = array<i64: 2, 128>}]} {
    %c0 = arith.constant 0 : index
    %c0_0 = arith.constant 0 : index
    %0 = vector.load %arg1[%c0, %c0_0] : memref<2x1024xf32, #tpu.memory_space<vmem>>, vector<2x1024xf32>
    %c0_1 = arith.constant 0 : index
    %c0_2 = arith.constant 0 : index
    %1 = vector.load %arg2[%c0_1, %c0_2] : memref<1024x128xf32, #tpu.memory_space<vmem>>, vector<1024x128xf32>
    %cst = arith.constant dense<0.000000e+00> : vector<2x128xf32>
    %2 = tpu.matmul %0, %1, %cst {dimension_numbers = #tpu.dot_dimension_numbers<[1], [0], [0], [1], [0, 0, 1, 1], [], []>, precision = #tpu.contract_precision<fp32>} : vector<2x1024xf32>, vector<1024x128xf32>, vector<2x128xf32> -> vector<2x128xf32>
    %c0_3 = arith.constant 0 : index
    %c0_4 = arith.constant 0 : index
    %3 = vector.load %arg3[%c0_3, %c0_4] : memref<1x128xf32, #tpu.memory_space<vmem>>, vector<1x128xf32>
    %4 = vector.broadcast %3 : vector<1x128xf32> to vector<2x128xf32>
    %5 = arith.addf %2, %4 : vector<2x128xf32>
    %cst_5 = arith.constant 0.000000e+00 : f32
    %6 = vector.broadcast %cst_5 : f32 to vector<2x128xf32>
    %7 = arith.maximumf %5, %6 : vector<2x128xf32>
    %c0_6 = arith.constant 0 : index
    %c0_7 = arith.constant 0 : index
    %8 = vector.load %arg4[%c0_6, %c0_7] : memref<128x128xf32, #tpu.memory_space<vmem>>, vector<128x128xf32>
    %cst_8 = arith.constant dense<0.000000e+00> : vector<2x128xf32>
    %9 = tpu.matmul %7, %8, %cst_8 {dimension_numbers = #tpu.dot_dimension_numbers<[1], [0], [0], [1], [0, 0, 1, 1], [], []>, precision = #tpu.contract_precision<fp32>} : vector<2x128xf32>, vector<128x128xf32>, vector<2x128xf32> -> vector<2x128xf32>
    %c0_9 = arith.constant 0 : index
    %c0_10 = arith.constant 0 : index
    %10 = vector.load %arg5[%c0_9, %c0_10] : memref<1x128xf32, #tpu.memory_space<vmem>>, vector<1x128xf32>
    %11 = vector.broadcast %10 : vector<1x128xf32> to vector<2x128xf32>
    %12 = arith.addf %9, %11 : vector<2x128xf32>
    %cst_11 = arith.constant 0.000000e+00 : f32
    %13 = vector.broadcast %cst_11 : f32 to vector<2x128xf32>
    %14 = arith.maximumf %12, %13 : vector<2x128xf32>
    %c0_12 = arith.constant 0 : index
    %c0_13 = arith.constant 0 : index
    %15 = vector.load %arg6[%c0_12, %c0_13] : memref<128x128xf32, #tpu.memory_space<vmem>>, vector<128x128xf32>
    %cst_14 = arith.constant dense<0.000000e+00> : vector<2x128xf32>
    %16 = tpu.matmul %14, %15, %cst_14 {dimension_numbers = #tpu.dot_dimension_numbers<[1], [0], [0], [1], [0, 0, 1, 1], [], []>, precision = #tpu.contract_precision<fp32>} : vector<2x128xf32>, vector<128x128xf32>, vector<2x128xf32> -> vector<2x128xf32>
    %c0_15 = arith.constant 0 : index
    %c0_16 = arith.constant 0 : index
    %17 = vector.load %arg7[%c0_15, %c0_16] : memref<1x128xf32, #tpu.memory_space<vmem>>, vector<1x128xf32>
    %18 = vector.broadcast %17 : vector<1x128xf32> to vector<2x128xf32>
    %19 = arith.addf %16, %18 : vector<2x128xf32>
    %20 = tpu.iota {dimensions = array<i32: 1>} : vector<2x128xi32>
    %c10_i32 = arith.constant 10 : i32
    %21 = vector.broadcast %c10_i32 : i32 to vector<2x128xi32>
    %22 = arith.cmpi slt, %20, %21 : vector<2x128xi32>
    %cst_17 = arith.constant -1.000000e+30 : f32
    %23 = vector.broadcast %cst_17 : f32 to vector<2x128xf32>
    %24 = arith.select %22, %19, %23 : vector<2x128xi1>, vector<2x128xf32>
    %cst_18 = arith.constant dense<0xFF800000> : vector<2xf32>
    %25 = vector.multi_reduction <maximumf>, %24, %cst_18 [1] : vector<2x128xf32> to vector<2xf32>
    %26 = vector.shape_cast %25 : vector<2xf32> to vector<2x1xf32>
    %27 = vector.broadcast %26 : vector<2x1xf32> to vector<2x128xf32>
    %28 = arith.subf %24, %27 : vector<2x128xf32>
    %29 = math.exp %28 : vector<2x128xf32>
    %cst_19 = arith.constant 0.000000e+00 : f32
    %30 = vector.broadcast %cst_19 : f32 to vector<2x128xf32>
    %31 = arith.select %22, %29, %30 : vector<2x128xi1>, vector<2x128xf32>
    %cst_20 = arith.constant dense<0.000000e+00> : vector<2xf32>
    %32 = vector.multi_reduction <add>, %31, %cst_20 [1] : vector<2x128xf32> to vector<2xf32>
    %33 = vector.shape_cast %32 : vector<2xf32> to vector<2x1xf32>
    %34 = math.log %33 : vector<2x1xf32>
    %35 = vector.broadcast %34 : vector<2x1xf32> to vector<2x128xf32>
    %36 = arith.subf %28, %35 : vector<2x128xf32>
    %c0_21 = arith.constant 0 : index
    %c0_22 = arith.constant 0 : index
    %37 = vector.load %arg8[%c0_21, %c0_22] : memref<2x128xf32, #tpu.memory_space<vmem>>, vector<2x128xf32>
    tpu.vector_store %arg8[%c0_21, %c0_22], %36 {strides = array<i32>} : memref<2x128xf32, #tpu.memory_space<vmem>>, vector<2x128xf32>,
    return
  }
  func.func @transform_0(%arg0: i32) -> (i32, i32) {
    %c0_i32 = arith.constant 0 : i32
    %c0_i32_0 = arith.constant 0 : i32
    return %arg0, %c0_i32 : i32, i32
  }
  func.func @transform_1(%arg0: i32) -> (i32, i32) {
    %c0_i32 = arith.constant 0 : i32
    %c0_i32_0 = arith.constant 0 : i32
    %c0_i32_1 = arith.constant 0 : i32
    return %c0_i32, %c0_i32_0 : i32, i32
  }
  func.func @transform_2(%arg0: i32) -> (i32, i32) {
    %c0_i32 = arith.constant 0 : i32
    %c0_i32_0 = arith.constant 0 : i32
    %c0_i32_1 = arith.constant 0 : i32
    return %c0_i32, %c0_i32_0 : i32, i32
  }
  func.func @transform_3(%arg0: i32) -> (i32, i32) {
    %c0_i32 = arith.constant 0 : i32
    %c0_i32_0 = arith.constant 0 : i32
    %c0_i32_1 = arith.constant 0 : i32
    return %c0_i32, %c0_i32_0 : i32, i32
  }
  func.func @transform_4(%arg0: i32) -> (i32, i32) {
    %c0_i32 = arith.constant 0 : i32
    %c0_i32_0 = arith.constant 0 : i32
    %c0_i32_1 = arith.constant 0 : i32
    return %c0_i32, %c0_i32_0 : i32, i32
  }
  func.func @transform_5(%arg0: i32) -> (i32, i32) {
    %c0_i32 = arith.constant 0 : i32
    %c0_i32_0 = arith.constant 0 : i32
    %c0_i32_1 = arith.constant 0 : i32
    return %c0_i32, %c0_i32_0 : i32, i32
  }
  func.func @transform_6(%arg0: i32) -> (i32, i32) {
    %c0_i32 = arith.constant 0 : i32
    %c0_i32_0 = arith.constant 0 : i32
    %c0_i32_1 = arith.constant 0 : i32
    return %c0_i32, %c0_i32_0 : i32, i32
  }
  func.func @transform_7(%arg0: i32) -> (i32, i32) {
    %c0_i32 = arith.constant 0 : i32
    %c0_i32_0 = arith.constant 0 : i32
    return %arg0, %c0_i32 : i32, i32
  }
}

</mosaic_0001>

<llo_original>
// kernel: tile.13
$region0: #{tile.13}
  #allocation0 [shape = 's32[1]{0}', space=sflag, size = 0x4, scoped, tag = 'scoped memory for tile.13']
  %s0 = inlined_call_operand.vmem [shape: f32[6], index: 0, kind: input, shape index: {}]
  %s1 = inlined_call_operand.vmem [shape: f32[16,6], index: 1, kind: output, shape index: {}]
  // Predicated region
  $region2: #{tile.13} parent=0 // pred_check
    _
  $region3: #{tile.13} parent=0 // pred_check_branch
    %3 = sbr.rel (0) target = $region5
  $region4: #{tile.13} parent=0 // pred_region
    _
  $region5: #{tile.13} parent=0 // pred_fallthru
    _
  %v4 = vld [vmem:[%s0] ss:$0 sm:$0xff]
  %5 = vst [vmem:[%s1] sm:$0xff] %v4
  %s6 = scalar_lea.vmem %s1, 8
  %7 = vst [vmem:[%s6] sm:$0xff] %v4

// kernel: tile.14
$region0: #{tile.14}
  %s0 = inlined_call_operand.vmem [shape: f32[16,6], index: 0, kind: input, shape index: {}]
  %s1 = inlined_call_operand.vmem [shape: f32[1,96], index: 1, kind: output, shape index: {}]
  $region1: #{tile.14} parent=0
    #allocation0 [shape = 'u8[4096]{0}', space=vmem, size = 0x1000, scoped, tag = 'scoped mem for output reshape']
    %v2 = vld [vmem:[%s0] sm:$0x1]
    %vm3 = vcmask 48128
    %4 = vst.msk [vmem:[#allocation0] sm:$0x1] %vm3, %v2
    %s5 = scalar_lea.vmem %s0, 15
    %v6 = vld [vmem:[%s5] sm:$0x1]
    %7 = vrot.lane.b32.xlu0 %v6, 90
    %v8 = vpop.permute.xlu0 %7
    %vm9 = vcmask 786128
    %10 = vst.msk [vmem:[#allocation0] sm:$0x1] %vm9, %v8
    %s11 = scalar_lea.vmem %s0, 14
    %v12 = vld [vmem:[%s11] sm:$0x1]
    %13 = vrot.lane.b32.xlu0 %v12, 84
    %v14 = vpop.permute.xlu0 %13
    %vm15 = vcmask 736928
    %16 = vst.msk [vmem:[#allocation0] sm:$0x1] %vm15, %v14
    %s17 = scalar_lea.vmem %s0, 13
    %v18 = vld [vmem:[%s17] sm:$0x1]
    %19 = vrot.lane.b32.xlu0 %v18, 78
    %v20 = vpop.permute.xlu0 %19
    %vm21 = vcmask 687728
    %22 = vst.msk [vmem:[#allocation0] sm:$0x1] %vm21, %v20
    %s23 = scalar_lea.vmem %s0, 12
    %v24 = vld [vmem:[%s23] sm:$0x1]
    %25 = vrot.lane.b32.xlu0 %v24, 72
    %v26 = vpop.permute.xlu0 %25
    %vm27 = vcmask 638528
    %28 = vst.msk [vmem:[#allocation0] sm:$0x1] %vm27, %v26
    %s29 = scalar_lea.vmem %s0, 11
    %v30 = vld [vmem:[%s29] sm:$0x1]
    %31 = vrot.lane.b32.xlu0 %v30, 66
    %v32 = vpop.permute.xlu0 %31
    %vm33 = vcmask 589328
    %34 = vst.msk [vmem:[#allocation0] sm:$0x1] %vm33, %v32
    %s35 = scalar_lea.vmem %s0, 10
    %v36 = vld [vmem:[%s35] sm:$0x1]
    %37 = vrot.lane.b32.xlu0 %v36, 60
    %v38 = vpop.permute.xlu0 %37
    %vm39 = vcmask 540128
    %40 = vst.msk [vmem:[#allocation0] sm:$0x1] %vm39, %v38
    %s41 = scalar_lea.vmem %s0, 9
    %v42 = vld [vmem:[%s41] sm:$0x1]
    %43 = vrot.lane.b32.xlu0 %v42, 54
    %v44 = vpop.permute.xlu0 %43
    %vm45 = vcmask 490928
    %46 = vst.msk [vmem:[#allocation0] sm:$0x1] %vm45, %v44
    %s47 = scalar_lea.vmem %s0, 8
    %v48 = vld [vmem:[%s47] sm:$0x1]
    %49 = vrot.lane.b32.xlu0 %v48, 48
    %v50 = vpop.permute.xlu0 %49
    %vm51 = vcmask 441728
    %52 = vst.msk [vmem:[#allocation0] sm:$0x1] %vm51, %v50
    %s53 = scalar_lea.vmem %s0, 7
    %v54 = vld [vmem:[%s53] sm:$0x1]
    %55 = vrot.lane.b32.xlu0 %v54, 42
    %v56 = vpop.permute.xlu0 %55
    %vm57 = vcmask 392528
    %58 = vst.msk [vmem:[#allocation0] sm:$0x1] %vm57, %v56
    %s59 = scalar_lea.vmem %s0, 6
    %v60 = vld [vmem:[%s59] sm:$0x1]
    %61 = vrot.lane.b32.xlu0 %v60, 36
    %v62 = vpop.permute.xlu0 %61
    %vm63 = vcmask 343328
    %64 = vst.msk [vmem:[#allocation0] sm:$0x1] %vm63, %v62
    %s65 = scalar_lea.vmem %s0, 5
    %v66 = vld [vmem:[%s65] sm:$0x1]
    %67 = vrot.lane.b32.xlu0 %v66, 30
    %v68 = vpop.permute.xlu0 %67
    %vm69 = vcmask 294128
    %70 = vst.msk [vmem:[#allocation0] sm:$0x1] %vm69, %v68
    %s71 = scalar_lea.vmem %s0, 4
    %v72 = vld [vmem:[%s71] sm:$0x1]
    %73 = vrot.lane.b32.xlu0 %v72, 24
    %v74 = vpop.permute.xlu0 %73
    %vm75 = vcmask 244928
    %76 = vst.msk [vmem:[#allocation0] sm:$0x1] %vm75, %v74
    %s77 = scalar_lea.vmem %s0, 3
    %v78 = vld [vmem:[%s77] sm:$0x1]
    %79 = vrot.lane.b32.xlu0 %v78, 18
    %v80 = vpop.permute.xlu0 %79
    %vm81 = vcmask 195728
    %82 = vst.msk [vmem:[#allocation0] sm:$0x1] %vm81, %v80
    %s83 = scalar_lea.vmem %s0, 2
    %v84 = vld [vmem:[%s83] sm:$0x1]
    %85 = vrot.lane.b32.xlu0 %v84, 12
    %v86 = vpop.permute.xlu0 %85
    %vm87 = vcmask 146528
    %88 = vst.msk [vmem:[#allocation0] sm:$0x1] %vm87, %v86
    %s89 = scalar_lea.vmem %s0, 1
    %v90 = vld [vmem:[%s89] sm:$0x1]
    %91 = vrot.lane.b32.xlu0 %v90, 6
    %v92 = vpop.permute.xlu0 %91
    %vm93 = vcmask 97328
    %94 = vst.msk [vmem:[#allocation0] sm:$0x1] %vm93, %v92
    %s96 = sshll.u32 1, 1
    %s97 = ssub.s32 %s96, 1
    %v99 = vld [vmem:[#allocation0] sm:%s97]
    %s100 = sshll.u32 1, 1
    %s101 = ssub.s32 %s100, 1
    %102 = vst [vmem:[%s1] sm:%s101] %v99

// kernel: tile.18
$region0: #{tile.18}
  #allocation0 [shape = 's32[1]{0}', space=sflag, size = 0x4, scoped, tag = 'scoped memory for tile.18']
  %s0 = inlined_call_operand.vmem [shape: f32[16], index: 0, kind: input, shape index: {}]
  %s1 = inlined_call_operand.vmem [shape: f32[4,16], index: 1, kind: output, shape index: {}]
  // Predicated region
  $region2: #{tile.18} parent=0 // pred_check
    _
  $region3: #{tile.18} parent=0 // pred_check_branch
    %3 = sbr.rel (0) target = $region5
  $region4: #{tile.18} parent=0 // pred_region
    _
  $region5: #{tile.18} parent=0 // pred_fallthru
    _
  %v4 = vld [vmem:[%s0] ss:$0 sm:$0xff]
  %5 = vst [vmem:[%s1] sm:$0xf] %v4

// kernel: tile.19
$region0: #{tile.19}
  %s0 = inlined_call_operand.vmem [shape: f32[4,16], index: 0, kind: input, shape index: {}]
  %s1 = inlined_call_operand.vmem [shape: f32[1,64], index: 1, kind: output, shape index: {}]
  $region1: #{tile.19} parent=0
    #allocation0 [shape = 'u8[4096]{0}', space=vmem, size = 0x1000, scoped, tag = 'scoped mem for output reshape']
    #allocation1 [shape = 'u8[4096]{0}', space=vmem, size = 0x1000, scoped, tag = 'scoped mem for input reshape']
    %s3 = sshll.u32 1, 4
    %s4 = ssub.s32 %s3, 1
    %v5 = vld [vmem:[%s0] sm:%s4]
    %6 = vst [vmem:[#allocation1] sm:%s4] %v5
    %v7 = vld [vmem:[#allocation1] sm:$0x1]
    %vm8 = vcmask 130048
    %9 = vst.msk [vmem:[#allocation0] sm:$0x1] %vm8, %v7
    %s10 = scalar_lea.vmem [#allocation1], 3
    %v11 = vld [vmem:[%s10] sm:$0x1]
    %12 = vrot.lane.b32.xlu0 %v11, 48
    %v13 = vpop.permute.xlu0 %12
    %vm14 = vcmask 523648
    %15 = vst.msk [vmem:[#allocation0] sm:$0x1] %vm14, %v13
    %s16 = scalar_lea.vmem [#allocation1], 2
    %v17 = vld [vmem:[%s16] sm:$0x1]
    %18 = vrot.lane.b32.xlu0 %v17, 32
    %v19 = vpop.permute.xlu0 %18
    %vm20 = vcmask 392448
    %21 = vst.msk [vmem:[#allocation0] sm:$0x1] %vm20, %v19
    %s22 = scalar_lea.vmem [#allocation1], 1
    %v23 = vld [vmem:[%s22] sm:$0x1]
    %24 = vrot.lane.b32.xlu0 %v23, 16
    %v25 = vpop.permute.xlu0 %24
    %vm26 = vcmask 261248
    %27 = vst.msk [vmem:[#allocation0] sm:$0x1] %vm26, %v25
    %s29 = sshll.u32 1, 1
    %s30 = ssub.s32 %s29, 1
    %v32 = vld [vmem:[#allocation0] sm:%s30]
    %s33 = sshll.u32 1, 1
    %s34 = ssub.s32 %s33, 1
    %35 = vst [vmem:[%s1] sm:%s34] %v32

// kernel: lenet5_forward.2
$region0: #{lenet5_forward.2}
  #allocation0 [shape = 'u32[]', space=smem, size = 0x4, offset = 0x4, fixed_abs, tag = 'smem constant byte address 0x4 - core index']
  #allocation1 [shape = 'u32[144,128]{1,0:T(1,128)}', space=vmem, size = 0x12000, scoped, tag = 'internal scratch']
  %s0 = inlined_call_operand.vmem [shape: f32[128,48], index: 0, kind: input, shape index: {}]
  %s1 = inlined_call_operand.vmem [shape: f32[192,96], index: 1, kind: input, shape index: {}]
  %s2 = inlined_call_operand.vmem [shape: f32[1,96], index: 2, kind: input, shape index: {}]
  %s3 = inlined_call_operand.vmem [shape: f32[216,64], index: 3, kind: input, shape index: {}]
  %s4 = inlined_call_operand.vmem [shape: f32[1,64], index: 4, kind: input, shape index: {}]
  %s5 = inlined_call_operand.vmem [shape: f32[128,16], index: 5, kind: output, shape index: {}]
  %s6 = sld [smem:[#allocation0]]
  $region53: #{lenet5_forward.2} parent=0
    _
  %s8 = ssub.s32 1, %s6
  %s9 = scalar_select 0, %s8, %s6
  loop: start=0, step=1, limit=4
  $region2: #{lenet5_forward.2} parent=0 // loop_pre_header
    _
  $region3: #{lenet5_forward.2} parent=0 // loop_header
    %s11 = sphi 0, %s15
    %p12 = scmp.ge.s32.totalorder %s11, 4
    %s21 = sphi 0, %s23
    %s24 = sphi 0, %s21
    %s25 = sphi 0, %s24
    %s41 = sphi 0, %s25
    %s45 = sphi 0, %s45
    %s47 = sphi 0, %s45
    %s48 = sphi 0, %s47
    %s62 = sphi 0, %s48
    %s66 = sphi 0, %s66
    %s68 = sphi 0, %s66
    %s69 = sphi 0, %s68
    %s83 = sphi 0, %s69
    %s87 = sphi 0, %s87
    %s89 = sphi 0, %s87
    %s90 = sphi 0, %s89
    %s104 = sphi 0, %s90
    %s108 = sphi 0, %s108
    %s110 = sphi 0, %s108
    %s111 = sphi 0, %s110
    %s125 = sphi 0, %s111
    %s131 = sphi 0, %s133
    %s134 = sphi 0, %s131
    %s135 = sphi 0, %s134
    %s151 = sphi 0, %s135
  $region4: #{lenet5_forward.2} parent=0 // loop_header_branch
    %14 = sbr.rel (%p12) target = $region8
  $region5: #{lenet5_forward.2} parent=0 // loop_body
    %s16 = ssub.s32 %s11, 1
    %s17 = ssub.s32 %s11, 2
    %s18 = sadd.s32 %s11, 1
    %s19 = ssub.s32 %s11, %s18
    %p20 = scmp.eq.s32.totalorder %s19, 0
    %s22 = sadd.s32 %s21, 1
    %s23 = scalar_select %p20, %s21, %s22
    %p26 = pneg %p20
    %p27 = scmp.eq.s32.totalorder %s11, 1
    %p28 = por %p26, %p27
    %p29 = scmp.ne.s32.totalorder %s21, %s24
    %p30 = scmp.eq.s32.totalorder %s11, 0
    %p31 = por %p29, %p30
    %p32 = scmp.ne.s32.totalorder %s21, %s24
    %p33 = scmp.eq.s32.totalorder %s16, 1
    %p34 = por %p32, %p33
    %p35 = scmp.ne.s32.totalorder %s24, %s25
    %p36 = scmp.eq.s32.totalorder %s16, 0
    %p37 = por %p35, %p36
    %p38 = scmp.ne.s32.totalorder %s24, %s25
    %p39 = scmp.eq.s32.totalorder %s17, 1
    %p40 = por %p38, %p39
    %p42 = scmp.ne.s32.totalorder %s25, %s41
    %p43 = scmp.eq.s32.totalorder %s17, 0
    %p44 = por %p42, %p43
    %s46 = sadd.s32 %s45, 1
    %p49 = scmp.eq.s32.totalorder %s11, 1
    %p50 = scmp.ne.s32.totalorder %s45, %s47
    %p51 = scmp.eq.s32.totalorder %s11, 0
    %p52 = por %p50, %p51
    %p53 = scmp.ne.s32.totalorder %s45, %s47
    %p54 = scmp.eq.s32.totalorder %s16, 1
    %p55 = por %p53, %p54
    %p56 = scmp.ne.s32.totalorder %s47, %s48
    %p57 = scmp.eq.s32.totalorder %s16, 0
    %p58 = por %p56, %p57
    %p59 = scmp.ne.s32.totalorder %s47, %s48
    %p60 = scmp.eq.s32.totalorder %s17, 1
    %p61 = por %p59, %p60
    %p63 = scmp.ne.s32.totalorder %s48, %s62
    %p64 = scmp.eq.s32.totalorder %s17, 0
    %p65 = por %p63, %p64
    %s67 = sadd.s32 %s66, 1
    %p70 = scmp.eq.s32.totalorder %s11, 1
    %p71 = scmp.ne.s32.totalorder %s66, %s68
    %p72 = scmp.eq.s32.totalorder %s11, 0
    %p73 = por %p71, %p72
    %p74 = scmp.ne.s32.totalorder %s66, %s68
    %p75 = scmp.eq.s32.totalorder %s16, 1
    %p76 = por %p74, %p75
    %p77 = scmp.ne.s32.totalorder %s68, %s69
    %p78 = scmp.eq.s32.totalorder %s16, 0
    %p79 = por %p77, %p78
    %p80 = scmp.ne.s32.totalorder %s68, %s69
    %p81 = scmp.eq.s32.totalorder %s17, 1
    %p82 = por %p80, %p81
    %p84 = scmp.ne.s32.totalorder %s69, %s83
    %p85 = scmp.eq.s32.totalorder %s17, 0
    %p86 = por %p84, %p85
    %s88 = sadd.s32 %s87, 1
    %p91 = scmp.eq.s32.totalorder %s11, 1
    %p92 = scmp.ne.s32.totalorder %s87, %s89
    %p93 = scmp.eq.s32.totalorder %s11, 0
    %p94 = por %p92, %p93
    %p95 = scmp.ne.s32.totalorder %s87, %s89
    %p96 = scmp.eq.s32.totalorder %s16, 1
    %p97 = por %p95, %p96
    %p98 = scmp.ne.s32.totalorder %s89, %s90
    %p99 = scmp.eq.s32.totalorder %s16, 0
    %p100 = por %p98, %p99
    %p101 = scmp.ne.s32.totalorder %s89, %s90
    %p102 = scmp.eq.s32.totalorder %s17, 1
    %p103 = por %p101, %p102
    %p105 = scmp.ne.s32.totalorder %s90, %s104
    %p106 = scmp.eq.s32.totalorder %s17, 0
    %p107 = por %p105, %p106
    %s109 = sadd.s32 %s108, 1
    %p112 = scmp.eq.s32.totalorder %s11, 1
    %p113 = scmp.ne.s32.totalorder %s108, %s110
    %p114 = scmp.eq.s32.totalorder %s11, 0
    %p115 = por %p113, %p114
    %p116 = scmp.ne.s32.totalorder %s108, %s110
    %p117 = scmp.eq.s32.totalorder %s16, 1
    %p118 = por %p116, %p117
    %p119 = scmp.ne.s32.totalorder %s110, %s111
    %p120 = scmp.eq.s32.totalorder %s16, 0
    %p121 = por %p119, %p120
    %p122 = scmp.ne.s32.totalorder %s110, %s111
    %p123 = scmp.eq.s32.totalorder %s17, 1
    %p124 = por %p122, %p123
    %p126 = scmp.ne.s32.totalorder %s111, %s125
    %p127 = scmp.eq.s32.totalorder %s17, 0
    %p128 = por %p126, %p127
    %s129 = ssub.s32 %s11, %s18
    %p130 = scmp.eq.s32.totalorder %s129, 0
    %s132 = sadd.s32 %s131, 1
    %s133 = scalar_select %p130, %s131, %s132
    %p136 = pneg %p130
    %p137 = scmp.eq.s32.totalorder %s11, 1
    %p138 = por %p136, %p137
    %p139 = scmp.ne.s32.totalorder %s131, %s134
    %p140 = scmp.eq.s32.totalorder %s11, 0
    %p141 = por %p139, %p140
    %p142 = scmp.ne.s32.totalorder %s131, %s134
    %p143 = scmp.eq.s32.totalorder %s16, 1
    %p144 = por %p142, %p143
    %p145 = scmp.ne.s32.totalorder %s134, %s135
    %p146 = scmp.eq.s32.totalorder %s16, 0
    %p147 = por %p145, %p146
    %p148 = scmp.ne.s32.totalorder %s134, %s135
    %p149 = scmp.eq.s32.totalorder %s17, 1
    %p150 = por %p148, %p149
    %p152 = scmp.ne.s32.totalorder %s135, %s151
    %p153 = scmp.eq.s32.totalorder %s17, 0
    %p154 = por %p152, %p153
    %p155 = scmp.le.s32.totalorder 1, %s11
    %p156 = scmp.lt.s32.totalorder %s11, 3
    %p157 = pnand %p155, %p156
    %p158 = pneg %p157
    // Predicated region
    $region9: #{lenet5_forward.2} parent=5 // pred_check
      _
    $region10: #{lenet5_forward.2} parent=5 // pred_check_branch
      %160 = sbr.rel (%p157) target = $region12
    $region11: #{lenet5_forward.2} parent=5 // pred_region
      %s161 = ssub.s32 %s11, 1
      // Predicated region
      $region13: #{lenet5_forward.2} parent=11 // pred_check
        %p162 = pneg %p58
      $region14: #{lenet5_forward.2} parent=11 // pred_check_branch
        %164 = sbr.rel (%p162) target = $region16
      $region15: #{lenet5_forward.2} parent=11 // pred_region
        _
      $region16: #{lenet5_forward.2} parent=11 // pred_fallthru
        _
      // Predicated region
      $region17: #{lenet5_forward.2} parent=11 // pred_check
        %p165 = pneg %p79
      $region18: #{lenet5_forward.2} parent=11 // pred_check_branch
        %167 = sbr.rel (%p165) target = $region20
      $region19: #{lenet5_forward.2} parent=11 // pred_region
        _
      $region20: #{lenet5_forward.2} parent=11 // pred_fallthru
        _
      // Predicated region
      $region21: #{lenet5_forward.2} parent=11 // pred_check
        %p168 = pneg %p100
      $region22: #{lenet5_forward.2} parent=11 // pred_check_branch
        %170 = sbr.rel (%p168) target = $region24
      $region23: #{lenet5_forward.2} parent=11 // pred_region
        _
      $region24: #{lenet5_forward.2} parent=11 // pred_fallthru
        _
      // Predicated region
      $region25: #{lenet5_forward.2} parent=11 // pred_check
        %p171 = pneg %p121
      $region26: #{lenet5_forward.2} parent=11 // pred_check_branch
        %173 = sbr.rel (%p171) target = $region28
      $region27: #{lenet5_forward.2} parent=11 // pred_region
        _
      $region28: #{lenet5_forward.2} parent=11 // pred_fallthru
        _
    $region12: #{lenet5_forward.2} parent=5 // pred_fallthru
      _
    %p174 = scmp.lt.s32.totalorder %s11, 2
    // Predicated region
    $region29: #{lenet5_forward.2} parent=5 // pred_check
      %p175 = pneg %p174
    $region30: #{lenet5_forward.2} parent=5 // pred_check_branch
      %177 = sbr.rel (%p175) target = $region32
    $region31: #{lenet5_forward.2} parent=5 // pred_region
      // Predicated region
      $region33: #{lenet5_forward.2} parent=31 // pred_check
        %p178 = pneg %p31
      $region34: #{lenet5_forward.2} parent=31 // pred_check_branch
        %180 = sbr.rel (%p178) target = $region36
      $region35: #{lenet5_forward.2} parent=31 // pred_region
        %s181 = smul.u32 8, %s11
        %p182 = scmp.lt.s32.totalorder %s181, 15
        %s183 = scalar_select %p182, %s181, 15
        %s184 = smul.addr %s183, 8
        %s185 = scalar_lea.vmem %s0, %s184
        %s186 = smul.u32 8, %s11
      $region36: #{lenet5_forward.2} parent=31 // pred_fallthru
        _
    $region32: #{lenet5_forward.2} parent=5 // pred_fallthru
      _
    %p187 = scmp.le.s32.totalorder 1, %s11
    %p188 = scmp.lt.s32.totalorder %s11, 3
    %p189 = pnand %p187, %p188
    %p190 = pneg %p189
    // Predicated region
    $region37: #{lenet5_forward.2} parent=5 // pred_check
      _
    $region38: #{lenet5_forward.2} parent=5 // pred_check_branch
      %192 = sbr.rel (%p189) target = $region40
    $region39: #{lenet5_forward.2} parent=5 // pred_region
      %s193 = ssub.s32 %s11, 1
      %s194 = smul.u32 8, %s16
      %p195 = scmp.lt.s32.totalorder %s194, 15
      %s196 = scalar_select %p195, %s194, 15
      %s197 = smul.addr %s196, 8
      %s198 = scalar_lea.vmem %s0, %s197
      %p199 = pneg %p37
      %p200 = pneg %p34
      %p201 = pneg %p58
      %p202 = pneg %p55
      %p203 = pneg %p79
      %p204 = pneg %p76
      %p205 = pneg %p100
      %p206 = pneg %p97
      %p207 = pneg %p121
      %p208 = pneg %p118
      %p209 = pneg %p147
      %p210 = pneg %p144
      %s211 = smul.u32 8, %s16
      %p212 = scmp.lt.s32.totalorder %s211, 15
      %s213 = scalar_select %p212, %s211, 15
      %s214 = smul.addr %s213, 8
      %s215 = scalar_lea.vmem %s5, %s214
      %s216 = smul.u32 8, %s16
      %p217 = scmp.lt.s32.totalorder %s216, 15
      %s218 = scalar_select %p217, %s216, 15
      %s219 = smul.addr %s218, 8
      %s220 = scalar_lea.vmem %s0, %s219
      %s221 = smul.u32 8, %s16
      %s222 = smul.u32 8, %s16
      %p223 = scmp.lt.s32.totalorder %s222, 15
      %s224 = scalar_select %p223, %s222, 15
      %s225 = smul.addr %s224, 8
      %s226 = scalar_lea.vmem %s5, %s225
      %s227 = smul.u32 8, %s16
      %v228 = vld [vmem:[%s220] sm:$0xff]
      %v229 = vld [vmem:[%s220 + $0x8] sm:$0xff]
      %v230 = vld [vmem:[%s220 + $0x10] sm:$0xff]
      %v231 = vld [vmem:[%s220 + $0x18] sm:$0xff]
      %v232 = vld [vmem:[%s220 + $0x20] sm:$0xff]
      %v233 = vld [vmem:[%s220 + $0x28] sm:$0xff]
      %v234 = vld [vmem:[%s220 + $0x30] sm:$0xff]
      %v235 = vld [vmem:[%s220 + $0x38] sm:$0xff]
      %vm245 = vcmask 1046528
      %v246 = vrot.slane %v228, 1
      %v247 = vrot.slane %v229, 1
      %v248 = vsel %vm245, %v246, %v247
      %v249 = vrot.slane %v230, 1
      %v250 = vsel %vm245, %v247, %v249
      %v251 = vrot.slane %v231, 1
      %v252 = vsel %vm245, %v249, %v251
      %v253 = vrot.slane %v232, 1
      %v254 = vsel %vm245, %v251, %v253
      %v255 = vrot.slane %v233, 1
      %v256 = vsel %vm245, %v253, %v255
      %v257 = vrot.slane %v234, 1
      %v258 = vsel %vm245, %v255, %v257
      %v259 = vrot.slane %v235, 1
      %v260 = vsel %vm245, %v257, %v259
      %v261 = vrot.slane 0.0, 1
      %v262 = vsel %vm245, %v259, %v261
      %263 = vrot.lane.b32.xlu0 %v248, 48
      %v264 = vpop.permute.xlu0 %263
      %265 = vrot.lane.b32.xlu0 %v250, 48
      %v266 = vpop.permute.xlu0 %265
      %267 = vrot.lane.b32.xlu0 %v252, 48
      %v268 = vpop.permute.xlu0 %267
      %269 = vrot.lane.b32.xlu0 %v254, 48
      %v270 = vpop.permute.xlu0 %269
      %271 = vrot.lane.b32.xlu0 %v256, 48
      %v272 = vpop.permute.xlu0 %271
      %273 = vrot.lane.b32.xlu0 %v258, 48
      %v274 = vpop.permute.xlu0 %273
      %275 = vrot.lane.b32.xlu0 %v260, 48
      %v276 = vpop.permute.xlu0 %275
      %277 = vrot.lane.b32.xlu0 %v262, 48
      %v278 = vpop.permute.xlu0 %277
      %287 = vrot.lane.b32.xlu0 %v229, 96
      %v288 = vpop.permute.xlu0 %287
      %289 = vrot.lane.b32.xlu0 %v230, 96
      %v290 = vpop.permute.xlu0 %289
      %291 = vrot.lane.b32.xlu0 %v231, 96
      %v292 = vpop.permute.xlu0 %291
      %293 = vrot.lane.b32.xlu0 %v232, 96
      %v294 = vpop.permute.xlu0 %293
      %295 = vrot.lane.b32.xlu0 %v233, 96
      %v296 = vpop.permute.xlu0 %295
      %297 = vrot.lane.b32.xlu0 %v234, 96
      %v298 = vpop.permute.xlu0 %297
      %299 = vrot.lane.b32.xlu0 %v235, 96
      %v300 = vpop.permute.xlu0 %299
      %301 = vrot.lane.b32.xlu0 0.0, 96
      %v302 = vpop.permute.xlu0 %301
      %v311 = vsel %vm245, %v261, %v261
      %312 = vrot.lane.b32.xlu0 %v250, 16
      %v313 = vpop.permute.xlu0 %312
      %314 = vrot.lane.b32.xlu0 %v252, 16
      %v315 = vpop.permute.xlu0 %314
      %316 = vrot.lane.b32.xlu0 %v254, 16
      %v317 = vpop.permute.xlu0 %316
      %318 = vrot.lane.b32.xlu0 %v256, 16
      %v319 = vpop.permute.xlu0 %318
      %320 = vrot.lane.b32.xlu0 %v258, 16
      %v321 = vpop.permute.xlu0 %320
      %322 = vrot.lane.b32.xlu0 %v260, 16
      %v323 = vpop.permute.xlu0 %322
      %324 = vrot.lane.b32.xlu0 %v262, 16
      %v325 = vpop.permute.xlu0 %324
      %326 = vrot.lane.b32.xlu0 %v311, 16
      %v327 = vpop.permute.xlu0 %326
      %vm336 = vcmask 392192
      %v337 = vsel %vm336, %v228, %v264
      %v338 = vsel %vm336, %v229, %v266
      %v339 = vsel %vm336, %v230, %v268
      %v340 = vsel %vm336, %v231, %v270
      %v341 = vsel %vm336, %v232, %v272
      %v342 = vsel %vm336, %v233, %v274
      %v343 = vsel %vm336, %v234, %v276
      %v344 = vsel %vm336, %v235, %v278
      %vm345 = vcmask 785408
      %v346 = vsel %vm345, %v337, %v288
      %v347 = vsel %vm345, %v338, %v290
      %v348 = vsel %vm345, %v339, %v292
      %v349 = vsel %vm345, %v340, %v294
      %v350 = vsel %vm345, %v341, %v296
      %v351 = vsel %vm345, %v342, %v298
      %v352 = vsel %vm345, %v343, %v300
      %v353 = vsel %vm345, %v344, %v302
      %vm354 = vcmask 130048
      %v355 = vsel %vm354, %v288, %v313
      %v356 = vsel %vm354, %v290, %v315
      %v357 = vsel %vm354, %v292, %v317
      %v358 = vsel %vm354, %v294, %v319
      %v359 = vsel %vm354, %v296, %v321
      %v360 = vsel %vm354, %v298, %v323
      %v361 = vsel %vm354, %v300, %v325
      %v362 = vsel %vm354, %v302, %v327
      %v363 = vld [vmem:[%s1] sm:$0xff]
      %v364 = vld [vmem:[%s1 + $0x8] sm:$0xff]
      %v365 = vld [vmem:[%s1 + $0x10] sm:$0xff]
      %v366 = vld [vmem:[%s1 + $0x18] sm:$0xff]
      %v367 = vld [vmem:[%s1 + $0x20] sm:$0xff]
      %v368 = vld [vmem:[%s1 + $0x28] sm:$0xff]
      %v369 = vld [vmem:[%s1 + $0x30] sm:$0xff]
      %v370 = vld [vmem:[%s1 + $0x38] sm:$0xff]
      %v371 = vld [vmem:[%s1 + $0x40] sm:$0xff]
      %v372 = vld [vmem:[%s1 + $0x48] sm:$0xff]
      %v373 = vld [vmem:[%s1 + $0x50] sm:$0xff]
      %v374 = vld [vmem:[%s1 + $0x58] sm:$0xff]
      %v375 = vld [vmem:[%s1 + $0x60] sm:$0xff]
      %v376 = vld [vmem:[%s1 + $0x68] sm:$0xff]
      %v377 = vld [vmem:[%s1 + $0x70] sm:$0xff]
      %v378 = vld [vmem:[%s1 + $0x78] sm:$0xff]
      %v379 = vld [vmem:[%s1 + $0x80] sm:$0xff]
      %v380 = vld [vmem:[%s1 + $0x88] sm:$0xff]
      %v381 = vld [vmem:[%s1 + $0x90] sm:$0xff]
      %v382 = vld [vmem:[%s1 + $0x98] sm:$0xff]
      %v383 = vld [vmem:[%s1 + $0xa0] sm:$0xff]
      %v384 = vld [vmem:[%s1 + $0xa8] sm:$0xff]
      %v385 = vld [vmem:[%s1 + $0xb0] sm:$0xff]
      %v386 = vld [vmem:[%s1 + $0xb8] sm:$0xff]
      %v387 = vld [vmem:[%s2] sm:$0x1]
      %v389 = vlaneseq
      %v390 = vshrl.u32 %v389, 7
      %v391 = vsub.s32 0, %v390
      %v392 = vrot.slane %v387, %v391
      %vm394 = vcmask 523264
      %v396 = vsel %vm394, %v355, 0
      %v399 = vsel %vm394, %v356, 0
      %v402 = vsel %vm394, %v357, 0
      %v405 = vsel %vm394, %v358, 0
      %v408 = vsel %vm394, %v359, 0
      %v411 = vsel %vm394, %v360, 0
      %v414 = vsel %vm394, %v361, 0
      %v417 = vsel %vm394, %v362, 0
      %419 = vmatprep.subr.mxu0 0.0
      %v420 = vand.u32 %v378, 4294901760
      %421 = vmatpush1.msra.mxu0 %v420
      %422 = vmatprep.subr.mxu0 0.0
      %v423 = vand.u32 %v377, 4294901760
      %424 = vmatpush1.msra.mxu0 %v423
      %425 = vmatprep.subr.mxu0 0.0
      %v426 = vand.u32 %v376, 4294901760
      %427 = vmatpush1.msra.mxu0 %v426
      %428 = vmatprep.subr.mxu0 0.0
      %v429 = vand.u32 %v375, 4294901760
      %430 = vmatpush1.msra.mxu0 %v429
      %431 = vmatprep.subr.mxu0 0.0
      %v432 = vand.u32 %v374, 4294901760
      %433 = vmatpush1.msra.mxu0 %v432
      %434 = vmatprep.subr.mxu0 0.0
      %v435 = vand.u32 %v373, 4294901760
      %436 = vmatpush1.msra.mxu0 %v435
      %437 = vmatprep.subr.mxu0 0.0
      %v438 = vand.u32 %v372, 4294901760
      %439 = vmatpush1.msra.mxu0 %v438
      %440 = vmatprep.subr.mxu0 0.0
      %v441 = vand.u32 %v371, 4294901760
      %442 = vmatpush1.msra.mxu0 %v441
      %443 = vmatprep.subr.mxu0 0.0
      %v444 = vand.u32 %v370, 4294901760
      %445 = vmatpush1.msra.mxu0 %v444
      %446 = vmatprep.subr.mxu0 0.0
      %v447 = vand.u32 %v369, 4294901760
      %448 = vmatpush1.msra.mxu0 %v447
      %449 = vmatprep.subr.mxu0 0.0
      %v450 = vand.u32 %v368, 4294901760
      %451 = vmatpush1.msra.mxu0 %v450
      %452 = vmatprep.subr.mxu0 0.0
      %v453 = vand.u32 %v367, 4294901760
      %454 = vmatpush1.msra.mxu0 %v453
      %455 = vmatprep.subr.mxu0 0.0
      %v456 = vand.u32 %v366, 4294901760
      %457 = vmatpush1.msra.mxu0 %v456
      %458 = vmatprep.subr.mxu0 0.0
      %v459 = vand.u32 %v365, 4294901760
      %460 = vmatpush1.msra.mxu0 %v459
      %461 = vmatprep.subr.mxu0 0.0
      %v462 = vand.u32 %v364, 4294901760
      %463 = vmatpush1.msra.mxu0 %v462
      %464 = vmatprep.subr.mxu0 0.0
      %v465 = vand.u32 %v363, 4294901760
      %466 = vmatpush1.msra.mxu0 %v465
      %467 = vmatprep.subr.mxu0 0.0
      %468 = vmatpush2.msra.mxu0 0.0
      %469 = vmatprep.subr.mxu0 0.0
      %470 = vmatpush2.msra.mxu0 0.0
      %471 = vmatprep.subr.mxu0 0.0
      %472 = vmatpush2.msra.mxu0 0.0
      %473 = vmatprep.subr.mxu0 0.0
      %474 = vmatpush2.msra.mxu0 0.0
      %475 = vmatprep.subr.mxu0 0.0
      %476 = vmatpush2.msra.mxu0 0.0
      %477 = vmatprep.subr.mxu0 0.0
      %478 = vmatpush2.msra.mxu0 0.0
      %479 = vmatprep.subr.mxu0 0.0
      %480 = vmatpush2.msra.mxu0 0.0
      %481 = vmatprep.subr.mxu0 0.0
      %482 = vmatpush2.msra.mxu0 0.0
      %483 = vmatprep.subr.mxu0 0.0
      %v484 = vand.u32 %v386, 4294901760
      %485 = vmatpush2.msra.mxu0 %v484
      %486 = vmatprep.subr.mxu0 0.0
      %v487 = vand.u32 %v385, 4294901760
      %488 = vmatpush2.msra.mxu0 %v487
      %489 = vmatprep.subr.mxu0 0.0
      %v490 = vand.u32 %v384, 4294901760
      %491 = vmatpush2.msra.mxu0 %v490
      %492 = vmatprep.subr.mxu0 0.0
      %v493 = vand.u32 %v383, 4294901760
      %494 = vmatpush2.msra.mxu0 %v493
      %495 = vmatprep.subr.mxu0 0.0
      %v496 = vand.u32 %v382, 4294901760
      %497 = vmatpush2.msra.mxu0 %v496
      %498 = vmatprep.subr.mxu0 0.0
      %v499 = vand.u32 %v381, 4294901760
      %500 = vmatpush2.msra.mxu0 %v499
      %501 = vmatprep.subr.mxu0 0.0
      %v502 = vand.u32 %v380, 4294901760
      %503 = vmatpush2.msra.mxu0 %v502
      %504 = vmatprep.subr.mxu0 0.0
      %v505 = vand.u32 %v379, 4294901760
      %506 = vmatpush2.msra.mxu0 %v505
      %v507 = vand.u32 %v396, 4294901760
      %v508 = vsub.f32 %v396, %v507
      %v509 = vand.u32 %v508, 4294901760
      %v510 = vsub.f32 %v508, %v509
      %v511 = vand.u32 %v510, 4294901760
      %512 = vmatprep.mubr.f32.mxu0 %v511
      %v513 = vand.u32 %v346, 4294901760
      %v514 = vsub.f32 %v346, %v513
      %v515 = vand.u32 %v514, 4294901760
      %v516 = vsub.f32 %v514, %v515
      %v517 = vand.u32 %v516, 4294901760
      %518 = vmatmul.mubr.f32.gmra.mxu0 %v517
      %v519 = vpop.f32.mrf.mxu0
      %v520 = vadd.f32 %v392, %v519
      %v521 = vpop.f32.mrf.mxu0
      %v522 = vand.u32 %v399, 4294901760
      %v523 = vsub.f32 %v399, %v522
      %v524 = vand.u32 %v523, 4294901760
      %v525 = vsub.f32 %v523, %v524
      %v526 = vand.u32 %v525, 4294901760
      %527 = vmatprep.mubr.f32.mxu0 %v526
      %v528 = vand.u32 %v347, 4294901760
      %v529 = vsub.f32 %v347, %v528
      %v530 = vand.u32 %v529, 4294901760
      %v531 = vsub.f32 %v529, %v530
      %v532 = vand.u32 %v531, 4294901760
      %533 = vmatmul.mubr.f32.gmra.mxu0 %v532
      %v534 = vpop.f32.mrf.mxu0
      %v535 = vadd.f32 %v392, %v534
      %v536 = vpop.f32.mrf.mxu0
      %v537 = vand.u32 %v402, 4294901760
      %v538 = vsub.f32 %v402, %v537
      %v539 = vand.u32 %v538, 4294901760
      %v540 = vsub.f32 %v538, %v539
      %v541 = vand.u32 %v540, 4294901760
      %542 = vmatprep.mubr.f32.mxu0 %v541
      %v543 = vand.u32 %v348, 4294901760
      %v544 = vsub.f32 %v348, %v543
      %v545 = vand.u32 %v544, 4294901760
      %v546 = vsub.f32 %v544, %v545
      %v547 = vand.u32 %v546, 4294901760
      %548 = vmatmul.mubr.f32.gmra.mxu0 %v547
      %v549 = vpop.f32.mrf.mxu0
      %v550 = vadd.f32 %v392, %v549
      %v551 = vpop.f32.mrf.mxu0
      %v552 = vand.u32 %v405, 4294901760
      %v553 = vsub.f32 %v405, %v552
      %v554 = vand.u32 %v553, 4294901760
      %v555 = vsub.f32 %v553, %v554
      %v556 = vand.u32 %v555, 4294901760
      %557 = vmatprep.mubr.f32.mxu0 %v556
      %v558 = vand.u32 %v349, 4294901760
      %v559 = vsub.f32 %v349, %v558
      %v560 = vand.u32 %v559, 4294901760
      %v561 = vsub.f32 %v559, %v560
      %v562 = vand.u32 %v561, 4294901760
      %563 = vmatmul.mubr.f32.gmra.mxu0 %v562
      %v564 = vpop.f32.mrf.mxu0
      %v565 = vadd.f32 %v392, %v564
      %v566 = vpop.f32.mrf.mxu0
      %v567 = vand.u32 %v408, 4294901760
      %v568 = vsub.f32 %v408, %v567
      %v569 = vand.u32 %v568, 4294901760
      %v570 = vsub.f32 %v568, %v569
      %v571 = vand.u32 %v570, 4294901760
      %572 = vmatprep.mubr.f32.mxu0 %v571
      %v573 = vand.u32 %v350, 4294901760
      %v574 = vsub.f32 %v350, %v573
      %v575 = vand.u32 %v574, 4294901760
      %v576 = vsub.f32 %v574, %v575
      %v577 = vand.u32 %v576, 4294901760
      %578 = vmatmul.mubr.f32.gmra.mxu0 %v577
      %v579 = vpop.f32.mrf.mxu0
      %v580 = vadd.f32 %v392, %v579
      %v581 = vpop.f32.mrf.mxu0
      %v582 = vand.u32 %v411, 4294901760
      %v583 = vsub.f32 %v411, %v582
      %v584 = vand.u32 %v583, 4294901760
      %v585 = vsub.f32 %v583, %v584
      %v586 = vand.u32 %v585, 4294901760
      %587 = vmatprep.mubr.f32.mxu0 %v586
      %v588 = vand.u32 %v351, 4294901760
      %v589 = vsub.f32 %v351, %v588
      %v590 = vand.u32 %v589, 4294901760
      %v591 = vsub.f32 %v589, %v590
      %v592 = vand.u32 %v591, 4294901760
      %593 = vmatmul.mubr.f32.gmra.mxu0 %v592
      %v594 = vpop.f32.mrf.mxu0
      %v595 = vadd.f32 %v392, %v594
      %v596 = vpop.f32.mrf.mxu0
      %v597 = vand.u32 %v414, 4294901760
      %v598 = vsub.f32 %v414, %v597
      %v599 = vand.u32 %v598, 4294901760
      %v600 = vsub.f32 %v598, %v599
      %v601 = vand.u32 %v600, 4294901760
      %602 = vmatprep.mubr.f32.mxu0 %v601
      %v603 = vand.u32 %v352, 4294901760
      %v604 = vsub.f32 %v352, %v603
      %v605 = vand.u32 %v604, 4294901760
      %v606 = vsub.f32 %v604, %v605
      %v607 = vand.u32 %v606, 4294901760
      %608 = vmatmul.mubr.f32.gmra.mxu0 %v607
      %v609 = vpop.f32.mrf.mxu0
      %v610 = vadd.f32 %v392, %v609
      %v611 = vpop.f32.mrf.mxu0
      %v612 = vand.u32 %v417, 4294901760
      %v613 = vsub.f32 %v417, %v612
      %v614 = vand.u32 %v613, 4294901760
      %v615 = vsub.f32 %v613, %v614
      %v616 = vand.u32 %v615, 4294901760
      %617 = vmatprep.mubr.f32.mxu0 %v616
      %v618 = vand.u32 %v353, 4294901760
      %v619 = vsub.f32 %v353, %v618
      %v620 = vand.u32 %v619, 4294901760
      %v621 = vsub.f32 %v619, %v620
      %v622 = vand.u32 %v621, 4294901760
      %623 = vmatmul.mubr.f32.gmra.mxu0 %v622
      %v624 = vpop.f32.mrf.mxu0
      %v625 = vadd.f32 %v392, %v624
      %v626 = vpop.f32.mrf.mxu0
      %627 = vdwg.mxu0
      %628 = vmatprep.subr.mxu0 0.0
      %v629 = vand.u32 %v378, 4294901760
      %v630 = vsub.f32 %v378, %v629
      %v631 = vand.u32 %v630, 4294901760
      %v632 = vsub.f32 %v630, %v631
      %v633 = vand.u32 %v632, 4294901760
      %634 = vmatpush1.msra.mxu0 %v633
      %635 = vmatprep.subr.mxu0 0.0
      %v636 = vand.u32 %v377, 4294901760
      %v637 = vsub.f32 %v377, %v636
      %v638 = vand.u32 %v637, 4294901760
      %v639 = vsub.f32 %v637, %v638
      %v640 = vand.u32 %v639, 4294901760
      %641 = vmatpush1.msra.mxu0 %v640
      %642 = vmatprep.subr.mxu0 0.0
      %v643 = vand.u32 %v376, 4294901760
      %v644 = vsub.f32 %v376, %v643
      %v645 = vand.u32 %v644, 4294901760
      %v646 = vsub.f32 %v644, %v645
      %v647 = vand.u32 %v646, 4294901760
      %648 = vmatpush1.msra.mxu0 %v647
      %649 = vmatprep.subr.mxu0 0.0
      %v650 = vand.u32 %v375, 4294901760
      %v651 = vsub.f32 %v375, %v650
      %v652 = vand.u32 %v651, 4294901760
      %v653 = vsub.f32 %v651, %v652
      %v654 = vand.u32 %v653, 4294901760
      %655 = vmatpush1.msra.mxu0 %v654
      %656 = vmatprep.subr.mxu0 0.0
      %v657 = vand.u32 %v374, 4294901760
      %v658 = vsub.f32 %v374, %v657
      %v659 = vand.u32 %v658, 4294901760
      %v660 = vsub.f32 %v658, %v659
      %v661 = vand.u32 %v660, 4294901760
      %662 = vmatpush1.msra.mxu0 %v661
      %663 = vmatprep.subr.mxu0 0.0
      %v664 = vand.u32 %v373, 4294901760
      %v665 = vsub.f32 %v373, %v664
      %v666 = vand.u32 %v665, 4294901760
      %v667 = vsub.f32 %v665, %v666
      %v668 = vand.u32 %v667, 4294901760
      %669 = vmatpush1.msra.mxu0 %v668
      %670 = vmatprep.subr.mxu0 0.0
      %v671 = vand.u32 %v372, 4294901760
      %v672 = vsub.f32 %v372, %v671
      %v673 = vand.u32 %v672, 4294901760
      %v674 = vsub.f32 %v672, %v673
      %v675 = vand.u32 %v674, 4294901760
      %676 = vmatpush1.msra.mxu0 %v675
      %677 = vmatprep.subr.mxu0 0.0
      %v678 = vand.u32 %v371, 4294901760
      %v679 = vsub.f32 %v371, %v678
      %v680 = vand.u32 %v679, 4294901760
      %v681 = vsub.f32 %v679, %v680
      %v682 = vand.u32 %v681, 4294901760
      %683 = vmatpush1.msra.mxu0 %v682
      %684 = vmatprep.subr.mxu0 0.0
      %v685 = vand.u32 %v370, 4294901760
      %v686 = vsub.f32 %v370, %v685
      %v687 = vand.u32 %v686, 4294901760
      %v688 = vsub.f32 %v686, %v687
      %v689 = vand.u32 %v688, 4294901760
      %690 = vmatpush1.msra.mxu0 %v689
      %691 = vmatprep.subr.mxu0 0.0
      %v692 = vand.u32 %v369, 4294901760
      %v693 = vsub.f32 %v369, %v692
      %v694 = vand.u32 %v693, 4294901760
      %v695 = vsub.f32 %v693, %v694
      %v696 = vand.u32 %v695, 4294901760
      %697 = vmatpush1.msra.mxu0 %v696
      %698 = vmatprep.subr.mxu0 0.0
      %v699 = vand.u32 %v368, 4294901760
      %v700 = vsub.f32 %v368, %v699
      %v701 = vand.u32 %v700, 4294901760
      %v702 = vsub.f32 %v700, %v701
      %v703 = vand.u32 %v702, 4294901760
      %704 = vmatpush1.msra.mxu0 %v703
      %705 = vmatprep.subr.mxu0 0.0
      %v706 = vand.u32 %v367, 4294901760
      %v707 = vsub.f32 %v367, %v706
      %v708 = vand.u32 %v707, 4294901760
      %v709 = vsub.f32 %v707, %v708
      %v710 = vand.u32 %v709, 4294901760
      %711 = vmatpush1.msra.mxu0 %v710
      %712 = vmatprep.subr.mxu0 0.0
      %v713 = vand.u32 %v366, 4294901760
      %v714 = vsub.f32 %v366, %v713
      %v715 = vand.u32 %v714, 4294901760
      %v716 = vsub.f32 %v714, %v715
      %v717 = vand.u32 %v716, 4294901760
      %718 = vmatpush1.msra.mxu0 %v717
      %719 = vmatprep.subr.mxu0 0.0
      %v720 = vand.u32 %v365, 4294901760
      %v721 = vsub.f32 %v365, %v720
      %v722 = vand.u32 %v721, 4294901760
      %v723 = vsub.f32 %v721, %v722
      %v724 = vand.u32 %v723, 4294901760
      %725 = vmatpush1.msra.mxu0 %v724
      %726 = vmatprep.subr.mxu0 0.0
      %v727 = vand.u32 %v364, 4294901760
      %v728 = vsub.f32 %v364, %v727
      %v729 = vand.u32 %v728, 4294901760
      %v730 = vsub.f32 %v728, %v729
      %v731 = vand.u32 %v730, 4294901760
      %732 = vmatpush1.msra.mxu0 %v731
      %733 = vmatprep.subr.mxu0 0.0
      %v734 = vand.u32 %v363, 4294901760
      %v735 = vsub.f32 %v363, %v734
      %v736 = vand.u32 %v735, 4294901760
      %v737 = vsub.f32 %v735, %v736
      %v738 = vand.u32 %v737, 4294901760
      %739 = vmatpush1.msra.mxu0 %v738
      %740 = vmatprep.subr.mxu0 0.0
      %741 = vmatpush2.msra.mxu0 0.0
      %742 = vmatprep.subr.mxu0 0.0
      %743 = vmatpush2.msra.mxu0 0.0
      %744 = vmatprep.subr.mxu0 0.0
      %745 = vmatpush2.msra.mxu0 0.0
      %746 = vmatprep.subr.mxu0 0.0
      %747 = vmatpush2.msra.mxu0 0.0
      %748 = vmatprep.subr.mxu0 0.0
      %749 = vmatpush2.msra.mxu0 0.0
      %750 = vmatprep.subr.mxu0 0.0
      %751 = vmatpush2.msra.mxu0 0.0
      %752 = vmatprep.subr.mxu0 0.0
      %753 = vmatpush2.msra.mxu0 0.0
      %754 = vmatprep.subr.mxu0 0.0
      %755 = vmatpush2.msra.mxu0 0.0
      %756 = vmatprep.subr.mxu0 0.0
      %v757 = vand.u32 %v386, 4294901760
      %v758 = vsub.f32 %v386, %v757
      %v759 = vand.u32 %v758, 4294901760
      %v760 = vsub.f32 %v758, %v759
      %v761 = vand.u32 %v760, 4294901760
      %762 = vmatpush2.msra.mxu0 %v761
      %763 = vmatprep.subr.mxu0 0.0
      %v764 = vand.u32 %v385, 4294901760
      %v765 = vsub.f32 %v385, %v764
      %v766 = vand.u32 %v765, 4294901760
      %v767 = vsub.f32 %v765, %v766
      %v768 = vand.u32 %v767, 4294901760
      %769 = vmatpush2.msra.mxu0 %v768
      %770 = vmatprep.subr.mxu0 0.0
      %v771 = vand.u32 %v384, 4294901760
      %v772 = vsub.f32 %v384, %v771
      %v773 = vand.u32 %v772, 4294901760
      %v774 = vsub.f32 %v772, %v773
      %v775 = vand.u32 %v774, 4294901760
      %776 = vmatpush2.msra.mxu0 %v775
      %777 = vmatprep.subr.mxu0 0.0
      %v778 = vand.u32 %v383, 4294901760
      %v779 = vsub.f32 %v383, %v778
      %v780 = vand.u32 %v779, 4294901760
      %v781 = vsub.f32 %v779, %v780
      %v782 = vand.u32 %v781, 4294901760
      %783 = vmatpush2.msra.mxu0 %v782
      %784 = vmatprep.subr.mxu0 0.0
      %v785 = vand.u32 %v382, 4294901760
      %v786 = vsub.f32 %v382, %v785
      %v787 = vand.u32 %v786, 4294901760
      %v788 = vsub.f32 %v786, %v787
      %v789 = vand.u32 %v788, 4294901760
      %790 = vmatpush2.msra.mxu0 %v789
      %791 = vmatprep.subr.mxu0 0.0
      %v792 = vand.u32 %v381, 4294901760
      %v793 = vsub.f32 %v381, %v792
      %v794 = vand.u32 %v793, 4294901760
      %v795 = vsub.f32 %v793, %v794
      %v796 = vand.u32 %v795, 4294901760
      %797 = vmatpush2.msra.mxu0 %v796
      %798 = vmatprep.subr.mxu0 0.0
      %v799 = vand.u32 %v380, 4294901760
      %v800 = vsub.f32 %v380, %v799
      %v801 = vand.u32 %v800, 4294901760
      %v802 = vsub.f32 %v800, %v801
      %v803 = vand.u32 %v802, 4294901760
      %804 = vmatpush2.msra.mxu0 %v803
      %805 = vmatprep.subr.mxu0 0.0
      %v806 = vand.u32 %v379, 4294901760
      %v807 = vsub.f32 %v379, %v806
      %v808 = vand.u32 %v807, 4294901760
      %v809 = vsub.f32 %v807, %v808
      %v810 = vand.u32 %v809, 4294901760
      %811 = vmatpush2.msra.mxu0 %v810
      %v812 = vand.u32 %v396, 4294901760
      %813 = vmatprep.mubr.f32.mxu0 %v812
      %v814 = vand.u32 %v346, 4294901760
      %815 = vmatmul.mubr.f32.gmra.mxu0 %v814
      %v816 = vpop.f32.mrf.mxu0
      %v817 = vadd.f32 %v520, %v816
      %v818 = vpop.f32.mrf.mxu0
      %v819 = vand.u32 %v399, 4294901760
      %820 = vmatprep.mubr.f32.mxu0 %v819
      %v821 = vand.u32 %v347, 4294901760
      %822 = vmatmul.mubr.f32.gmra.mxu0 %v821
      %v823 = vpop.f32.mrf.mxu0
      %v824 = vadd.f32 %v535, %v823
      %v825 = vpop.f32.mrf.mxu0
      %v826 = vand.u32 %v402, 4294901760
      %827 = vmatprep.mubr.f32.mxu0 %v826
      %v828 = vand.u32 %v348, 4294901760
      %829 = vmatmul.mubr.f32.gmra.mxu0 %v828
      %v830 = vpop.f32.mrf.mxu0
      %v831 = vadd.f32 %v550, %v830
      %v832 = vpop.f32.mrf.mxu0
      %v833 = vand.u32 %v405, 4294901760
      %834 = vmatprep.mubr.f32.mxu0 %v833
      %v835 = vand.u32 %v349, 4294901760
      %836 = vmatmul.mubr.f32.gmra.mxu0 %v835
      %v837 = vpop.f32.mrf.mxu0
      %v838 = vadd.f32 %v565, %v837
      %v839 = vpop.f32.mrf.mxu0
      %v840 = vand.u32 %v408, 4294901760
      %841 = vmatprep.mubr.f32.mxu0 %v840
      %v842 = vand.u32 %v350, 4294901760
      %843 = vmatmul.mubr.f32.gmra.mxu0 %v842
      %v844 = vpop.f32.mrf.mxu0
      %v845 = vadd.f32 %v580, %v844
      %v846 = vpop.f32.mrf.mxu0
      %v847 = vand.u32 %v411, 4294901760
      %848 = vmatprep.mubr.f32.mxu0 %v847
      %v849 = vand.u32 %v351, 4294901760
      %850 = vmatmul.mubr.f32.gmra.mxu0 %v849
      %v851 = vpop.f32.mrf.mxu0
      %v852 = vadd.f32 %v595, %v851
      %v853 = vpop.f32.mrf.mxu0
      %v854 = vand.u32 %v414, 4294901760
      %855 = vmatprep.mubr.f32.mxu0 %v854
      %v856 = vand.u32 %v352, 4294901760
      %857 = vmatmul.mubr.f32.gmra.mxu0 %v856
      %v858 = vpop.f32.mrf.mxu0
      %v859 = vadd.f32 %v610, %v858
      %v860 = vpop.f32.mrf.mxu0
      %v861 = vand.u32 %v417, 4294901760
      %862 = vmatprep.mubr.f32.mxu0 %v861
      %v863 = vand.u32 %v353, 4294901760
      %864 = vmatmul.mubr.f32.gmra.mxu0 %v863
      %v865 = vpop.f32.mrf.mxu0
      %v866 = vadd.f32 %v625, %v865
      %v867 = vpop.f32.mrf.mxu0
      %868 = vdwg.mxu0
      %869 = vmatprep.subr.mxu0 0.0
      %v870 = vand.u32 %v378, 4294901760
      %v871 = vsub.f32 %v378, %v870
      %872 = vmatpush1.msra.mxu0 %v871
      %873 = vmatprep.subr.mxu0 0.0
      %v874 = vand.u32 %v377, 4294901760
      %v875 = vsub.f32 %v377, %v874
      %876 = vmatpush1.msra.mxu0 %v875
      %877 = vmatprep.subr.mxu0 0.0
      %v878 = vand.u32 %v376, 4294901760
      %v879 = vsub.f32 %v376, %v878
      %880 = vmatpush1.msra.mxu0 %v879
      %881 = vmatprep.subr.mxu0 0.0
      %v882 = vand.u32 %v375, 4294901760
      %v883 = vsub.f32 %v375, %v882
      %884 = vmatpush1.msra.mxu0 %v883
      %885 = vmatprep.subr.mxu0 0.0
      %v886 = vand.u32 %v374, 4294901760
      %v887 = vsub.f32 %v374, %v886
      %888 = vmatpush1.msra.mxu0 %v887
      %889 = vmatprep.subr.mxu0 0.0
      %v890 = vand.u32 %v373, 4294901760
      %v891 = vsub.f32 %v373, %v890
      %892 = vmatpush1.msra.mxu0 %v891
      %893 = vmatprep.subr.mxu0 0.0
      %v894 = vand.u32 %v372, 4294901760
      %v895 = vsub.f32 %v372, %v894
      %896 = vmatpush1.msra.mxu0 %v895
      %897 = vmatprep.subr.mxu0 0.0
      %v898 = vand.u32 %v371, 4294901760
      %v899 = vsub.f32 %v371, %v898
      %900 = vmatpush1.msra.mxu0 %v899
      %901 = vmatprep.subr.mxu0 0.0
      %v902 = vand.u32 %v370, 4294901760
      %v903 = vsub.f32 %v370, %v902
      %904 = vmatpush1.msra.mxu0 %v903
      %905 = vmatprep.subr.mxu0 0.0
      %v906 = vand.u32 %v369, 4294901760
      %v907 = vsub.f32 %v369, %v906
      %908 = vmatpush1.msra.mxu0 %v907
      %909 = vmatprep.subr.mxu0 0.0
      %v910 = vand.u32 %v368, 4294901760
      %v911 = vsub.f32 %v368, %v910
      %912 = vmatpush1.msra.mxu0 %v911
      %913 = vmatprep.subr.mxu0 0.0
      %v914 = vand.u32 %v367, 4294901760
      %v915 = vsub.f32 %v367, %v914
      %916 = vmatpush1.msra.mxu0 %v915
      %917 = vmatprep.subr.mxu0 0.0
      %v918 = vand.u32 %v366, 4294901760
      %v919 = vsub.f32 %v366, %v918
      %920 = vmatpush1.msra.mxu0 %v919
      %921 = vmatprep.subr.mxu0 0.0
      %v922 = vand.u32 %v365, 4294901760
      %v923 = vsub.f32 %v365, %v922
      %924 = vmatpush1.msra.mxu0 %v923
      %925 = vmatprep.subr.mxu0 0.0
      %v926 = vand.u32 %v364, 4294901760
      %v927 = vsub.f32 %v364, %v926
      %928 = vmatpush1.msra.mxu0 %v927
      %929 = vmatprep.subr.mxu0 0.0
      %v930 = vand.u32 %v363, 4294901760
      %v931 = vsub.f32 %v363, %v930
      %932 = vmatpush1.msra.mxu0 %v931
      %933 = vmatprep.subr.mxu0 0.0
      %934 = vmatpush2.msra.mxu0 0.0
      %935 = vmatprep.subr.mxu0 0.0
      %936 = vmatpush2.msra.mxu0 0.0
      %937 = vmatprep.subr.mxu0 0.0
      %938 = vmatpush2.msra.mxu0 0.0
      %939 = vmatprep.subr.mxu0 0.0
      %940 = vmatpush2.msra.mxu0 0.0
      %941 = vmatprep.subr.mxu0 0.0
      %942 = vmatpush2.msra.mxu0 0.0
      %943 = vmatprep.subr.mxu0 0.0
      %944 = vmatpush2.msra.mxu0 0.0
      %945 = vmatprep.subr.mxu0 0.0
      %946 = vmatpush2.msra.mxu0 0.0
      %947 = vmatprep.subr.mxu0 0.0
      %948 = vmatpush2.msra.mxu0 0.0
      %949 = vmatprep.subr.mxu0 0.0
      %v950 = vand.u32 %v386, 4294901760
      %v951 = vsub.f32 %v386, %v950
      %952 = vmatpush2.msra.mxu0 %v951
      %953 = vmatprep.subr.mxu0 0.0
      %v954 = vand.u32 %v385, 4294901760
      %v955 = vsub.f32 %v385, %v954
      %956 = vmatpush2.msra.mxu0 %v955
      %957 = vmatprep.subr.mxu0 0.0
      %v958 = vand.u32 %v384, 4294901760
      %v959 = vsub.f32 %v384, %v958
      %960 = vmatpush2.msra.mxu0 %v959
      %961 = vmatprep.subr.mxu0 0.0
      %v962 = vand.u32 %v383, 4294901760
      %v963 = vsub.f32 %v383, %v962
      %964 = vmatpush2.msra.mxu0 %v963
      %965 = vmatprep.subr.mxu0 0.0
      %v966 = vand.u32 %v382, 4294901760
      %v967 = vsub.f32 %v382, %v966
      %968 = vmatpush2.msra.mxu0 %v967
      %969 = vmatprep.subr.mxu0 0.0
      %v970 = vand.u32 %v381, 4294901760
      %v971 = vsub.f32 %v381, %v970
      %972 = vmatpush2.msra.mxu0 %v971
      %973 = vmatprep.subr.mxu0 0.0
      %v974 = vand.u32 %v380, 4294901760
      %v975 = vsub.f32 %v380, %v974
      %976 = vmatpush2.msra.mxu0 %v975
      %977 = vmatprep.subr.mxu0 0.0
      %v978 = vand.u32 %v379, 4294901760
      %v979 = vsub.f32 %v379, %v978
      %980 = vmatpush2.msra.mxu0 %v979
      %v981 = vand.u32 %v396, 4294901760
      %v982 = vsub.f32 %v396, %v981
      %983 = vmatprep.mubr.f32.mxu0 %v982
      %v984 = vand.u32 %v346, 4294901760
      %v985 = vsub.f32 %v346, %v984
      %986 = vmatmul.mubr.f32.gmra.mxu0 %v985
      %v987 = vpop.f32.mrf.mxu0
      %v988 = vadd.f32 %v817, %v987
      %v989 = vpop.f32.mrf.mxu0
      %v990 = vand.u32 %v399, 4294901760
      %v991 = vsub.f32 %v399, %v990
      %992 = vmatprep.mubr.f32.mxu0 %v991
      %v993 = vand.u32 %v347, 4294901760
      %v994 = vsub.f32 %v347, %v993
      %995 = vmatmul.mubr.f32.gmra.mxu0 %v994
      %v996 = vpop.f32.mrf.mxu0
      %v997 = vadd.f32 %v824, %v996
      %v998 = vpop.f32.mrf.mxu0
      %v999 = vand.u32 %v402, 4294901760
      %v1000 = vsub.f32 %v402, %v999
      %1001 = vmatprep.mubr.f32.mxu0 %v1000
      %v1002 = vand.u32 %v348, 4294901760
      %v1003 = vsub.f32 %v348, %v1002
      %1004 = vmatmul.mubr.f32.gmra.mxu0 %v1003
      %v1005 = vpop.f32.mrf.mxu0
      %v1006 = vadd.f32 %v831, %v1005
      %v1007 = vpop.f32.mrf.mxu0
      %v1008 = vand.u32 %v405, 4294901760
      %v1009 = vsub.f32 %v405, %v1008
      %1010 = vmatprep.mubr.f32.mxu0 %v1009
      %v1011 = vand.u32 %v349, 4294901760
      %v1012 = vsub.f32 %v349, %v1011
      %1013 = vmatmul.mubr.f32.gmra.mxu0 %v1012
      %v1014 = vpop.f32.mrf.mxu0
      %v1015 = vadd.f32 %v838, %v1014
      %v1016 = vpop.f32.mrf.mxu0
      %v1017 = vand.u32 %v408, 4294901760
      %v1018 = vsub.f32 %v408, %v1017
      %1019 = vmatprep.mubr.f32.mxu0 %v1018
      %v1020 = vand.u32 %v350, 4294901760
      %v1021 = vsub.f32 %v350, %v1020
      %1022 = vmatmul.mubr.f32.gmra.mxu0 %v1021
      %v1023 = vpop.f32.mrf.mxu0
      %v1024 = vadd.f32 %v845, %v1023
      %v1025 = vpop.f32.mrf.mxu0
      %v1026 = vand.u32 %v411, 4294901760
      %v1027 = vsub.f32 %v411, %v1026
      %1028 = vmatprep.mubr.f32.mxu0 %v1027
      %v1029 = vand.u32 %v351, 4294901760
      %v1030 = vsub.f32 %v351, %v1029
      %1031 = vmatmul.mubr.f32.gmra.mxu0 %v1030
      %v1032 = vpop.f32.mrf.mxu0
      %v1033 = vadd.f32 %v852, %v1032
      %v1034 = vpop.f32.mrf.mxu0
      %v1035 = vand.u32 %v414, 4294901760
      %v1036 = vsub.f32 %v414, %v1035
      %1037 = vmatprep.mubr.f32.mxu0 %v1036
      %v1038 = vand.u32 %v352, 4294901760
      %v1039 = vsub.f32 %v352, %v1038
      %1040 = vmatmul.mubr.f32.gmra.mxu0 %v1039
      %v1041 = vpop.f32.mrf.mxu0
      %v1042 = vadd.f32 %v859, %v1041
      %v1043 = vpop.f32.mrf.mxu0
      %v1044 = vand.u32 %v417, 4294901760
      %v1045 = vsub.f32 %v417, %v1044
      %1046 = vmatprep.mubr.f32.mxu0 %v1045
      %v1047 = vand.u32 %v353, 4294901760
      %v1048 = vsub.f32 %v353, %v1047
      %1049 = vmatmul.mubr.f32.gmra.mxu0 %v1048
      %v1050 = vpop.f32.mrf.mxu0
      %v1051 = vadd.f32 %v866, %v1050
      %v1052 = vpop.f32.mrf.mxu0
      %1053 = vdwg.mxu0
      %1054 = vmatprep.subr.mxu0 0.0
      %v1055 = vand.u32 %v378, 4294901760
      %1056 = vmatpush1.msra.mxu0 %v1055
      %1057 = vmatprep.subr.mxu0 0.0
      %v1058 = vand.u32 %v377, 4294901760
      %1059 = vmatpush1.msra.mxu0 %v1058
      %1060 = vmatprep.subr.mxu0 0.0
      %v1061 = vand.u32 %v376, 4294901760
      %1062 = vmatpush1.msra.mxu0 %v1061
      %1063 = vmatprep.subr.mxu0 0.0
      %v1064 = vand.u32 %v375, 4294901760
      %1065 = vmatpush1.msra.mxu0 %v1064
      %1066 = vmatprep.subr.mxu0 0.0
      %v1067 = vand.u32 %v374, 4294901760
      %1068 = vmatpush1.msra.mxu0 %v1067
      %1069 = vmatprep.subr.mxu0 0.0
      %v1070 = vand.u32 %v373, 4294901760
      %1071 = vmatpush1.msra.mxu0 %v1070
      %1072 = vmatprep.subr.mxu0 0.0
      %v1073 = vand.u32 %v372, 4294901760
      %1074 = vmatpush1.msra.mxu0 %v1073
      %1075 = vmatprep.subr.mxu0 0.0
      %v1076 = vand.u32 %v371, 4294901760
      %1077 = vmatpush1.msra.mxu0 %v1076
      %1078 = vmatprep.subr.mxu0 0.0
      %v1079 = vand.u32 %v370, 4294901760
      %1080 = vmatpush1.msra.mxu0 %v1079
      %1081 = vmatprep.subr.mxu0 0.0
      %v1082 = vand.u32 %v369, 4294901760
      %1083 = vmatpush1.msra.mxu0 %v1082
      %1084 = vmatprep.subr.mxu0 0.0
      %v1085 = vand.u32 %v368, 4294901760
      %1086 = vmatpush1.msra.mxu0 %v1085
      %1087 = vmatprep.subr.mxu0 0.0
      %v1088 = vand.u32 %v367, 4294901760
      %1089 = vmatpush1.msra.mxu0 %v1088
      %1090 = vmatprep.subr.mxu0 0.0
      %v1091 = vand.u32 %v366, 4294901760
      %1092 = vmatpush1.msra.mxu0 %v1091
      %1093 = vmatprep.subr.mxu0 0.0
      %v1094 = vand.u32 %v365, 4294901760
      %1095 = vmatpush1.msra.mxu0 %v1094
      %1096 = vmatprep.subr.mxu0 0.0
      %v1097 = vand.u32 %v364, 4294901760
      %1098 = vmatpush1.msra.mxu0 %v1097
      %1099 = vmatprep.subr.mxu0 0.0
      %v1100 = vand.u32 %v363, 4294901760
      %1101 = vmatpush1.msra.mxu0 %v1100
      %1102 = vmatprep.subr.mxu0 0.0
      %1103 = vmatpush2.msra.mxu0 0.0
      %1104 = vmatprep.subr.mxu0 0.0
      %1105 = vmatpush2.msra.mxu0 0.0
      %1106 = vmatprep.subr.mxu0 0.0
      %1107 = vmatpush2.msra.mxu0 0.0
      %1108 = vmatprep.subr.mxu0 0.0
      %1109 = vmatpush2.msra.mxu0 0.0
      %1110 = vmatprep.subr.mxu0 0.0
      %1111 = vmatpush2.msra.mxu0 0.0
      %1112 = vmatprep.subr.mxu0 0.0
      %1113 = vmatpush2.msra.mxu0 0.0
      %1114 = vmatprep.subr.mxu0 0.0
      %1115 = vmatpush2.msra.mxu0 0.0
      %1116 = vmatprep.subr.mxu0 0.0
      %1117 = vmatpush2.msra.mxu0 0.0
      %1118 = vmatprep.subr.mxu0 0.0
      %v1119 = vand.u32 %v386, 4294901760
      %1120 = vmatpush2.msra.mxu0 %v1119
      %1121 = vmatprep.subr.mxu0 0.0
      %v1122 = vand.u32 %v385, 4294901760
      %1123 = vmatpush2.msra.mxu0 %v1122
      %1124 = vmatprep.subr.mxu0 0.0
      %v1125 = vand.u32 %v384, 4294901760
      %1126 = vmatpush2.msra.mxu0 %v1125
      %1127 = vmatprep.subr.mxu0 0.0
      %v1128 = vand.u32 %v383, 4294901760
      %1129 = vmatpush2.msra.mxu0 %v1128
      %1130 = vmatprep.subr.mxu0 0.0
      %v1131 = vand.u32 %v382, 4294901760
      %1132 = vmatpush2.msra.mxu0 %v1131
      %1133 = vmatprep.subr.mxu0 0.0
      %v1134 = vand.u32 %v381, 4294901760
      %1135 = vmatpush2.msra.mxu0 %v1134
      %1136 = vmatprep.subr.mxu0 0.0
      %v1137 = vand.u32 %v380, 4294901760
      %1138 = vmatpush2.msra.mxu0 %v1137
      %1139 = vmatprep.subr.mxu0 0.0
      %v1140 = vand.u32 %v379, 4294901760
      %1141 = vmatpush2.msra.mxu0 %v1140
      %v1142 = vand.u32 %v396, 4294901760
      %v1143 = vsub.f32 %v396, %v1142
      %v1144 = vand.u32 %v1143, 4294901760
      %1145 = vmatprep.mubr.f32.mxu0 %v1144
      %v1146 = vand.u32 %v346, 4294901760
      %v1147 = vsub.f32 %v346, %v1146
      %v1148 = vand.u32 %v1147, 4294901760
      %1149 = vmatmul.mubr.f32.gmra.mxu0 %v1148
      %v1150 = vpop.f32.mrf.mxu0
      %v1151 = vadd.f32 %v988, %v1150
      %v1152 = vpop.f32.mrf.mxu0
      %v1153 = vand.u32 %v399, 4294901760
      %v1154 = vsub.f32 %v399, %v1153
      %v1155 = vand.u32 %v1154, 4294901760
      %1156 = vmatprep.mubr.f32.mxu0 %v1155
      %v1157 = vand.u32 %v347, 4294901760
      %v1158 = vsub.f32 %v347, %v1157
      %v1159 = vand.u32 %v1158, 4294901760
      %1160 = vmatmul.mubr.f32.gmra.mxu0 %v1159
      %v1161 = vpop.f32.mrf.mxu0
      %v1162 = vadd.f32 %v997, %v1161
      %v1163 = vpop.f32.mrf.mxu0
      %v1164 = vand.u32 %v402, 4294901760
      %v1165 = vsub.f32 %v402, %v1164
      %v1166 = vand.u32 %v1165, 4294901760
      %1167 = vmatprep.mubr.f32.mxu0 %v1166
      %v1168 = vand.u32 %v348, 4294901760
      %v1169 = vsub.f32 %v348, %v1168
      %v1170 = vand.u32 %v1169, 4294901760
      %1171 = vmatmul.mubr.f32.gmra.mxu0 %v1170
      %v1172 = vpop.f32.mrf.mxu0
      %v1173 = vadd.f32 %v1006, %v1172
      %v1174 = vpop.f32.mrf.mxu0
      %v1175 = vand.u32 %v405, 4294901760
      %v1176 = vsub.f32 %v405, %v1175
      %v1177 = vand.u32 %v1176, 4294901760
      %1178 = vmatprep.mubr.f32.mxu0 %v1177
      %v1179 = vand.u32 %v349, 4294901760
      %v1180 = vsub.f32 %v349, %v1179
      %v1181 = vand.u32 %v1180, 4294901760
      %1182 = vmatmul.mubr.f32.gmra.mxu0 %v1181
      %v1183 = vpop.f32.mrf.mxu0
      %v1184 = vadd.f32 %v1015, %v1183
      %v1185 = vpop.f32.mrf.mxu0
      %v1186 = vand.u32 %v408, 4294901760
      %v1187 = vsub.f32 %v408, %v1186
      %v1188 = vand.u32 %v1187, 4294901760
      %1189 = vmatprep.mubr.f32.mxu0 %v1188
      %v1190 = vand.u32 %v350, 4294901760
      %v1191 = vsub.f32 %v350, %v1190
      %v1192 = vand.u32 %v1191, 4294901760
      %1193 = vmatmul.mubr.f32.gmra.mxu0 %v1192
      %v1194 = vpop.f32.mrf.mxu0
      %v1195 = vadd.f32 %v1024, %v1194
      %v1196 = vpop.f32.mrf.mxu0
      %v1197 = vand.u32 %v411, 4294901760
      %v1198 = vsub.f32 %v411, %v1197
      %v1199 = vand.u32 %v1198, 4294901760
      %1200 = vmatprep.mubr.f32.mxu0 %v1199
      %v1201 = vand.u32 %v351, 4294901760
      %v1202 = vsub.f32 %v351, %v1201
      %v1203 = vand.u32 %v1202, 4294901760
      %1204 = vmatmul.mubr.f32.gmra.mxu0 %v1203
      %v1205 = vpop.f32.mrf.mxu0
      %v1206 = vadd.f32 %v1033, %v1205
      %v1207 = vpop.f32.mrf.mxu0
      %v1208 = vand.u32 %v414, 4294901760
      %v1209 = vsub.f32 %v414, %v1208
      %v1210 = vand.u32 %v1209, 4294901760
      %1211 = vmatprep.mubr.f32.mxu0 %v1210
      %v1212 = vand.u32 %v352, 4294901760
      %v1213 = vsub.f32 %v352, %v1212
      %v1214 = vand.u32 %v1213, 4294901760
      %1215 = vmatmul.mubr.f32.gmra.mxu0 %v1214
      %v1216 = vpop.f32.mrf.mxu0
      %v1217 = vadd.f32 %v1042, %v1216
      %v1218 = vpop.f32.mrf.mxu0
      %v1219 = vand.u32 %v417, 4294901760
      %v1220 = vsub.f32 %v417, %v1219
      %v1221 = vand.u32 %v1220, 4294901760
      %1222 = vmatprep.mubr.f32.mxu0 %v1221
      %v1223 = vand.u32 %v353, 4294901760
      %v1224 = vsub.f32 %v353, %v1223
      %v1225 = vand.u32 %v1224, 4294901760
      %1226 = vmatmul.mubr.f32.gmra.mxu0 %v1225
      %v1227 = vpop.f32.mrf.mxu0
      %v1228 = vadd.f32 %v1051, %v1227
      %v1229 = vpop.f32.mrf.mxu0
      %1230 = vdwg.mxu0
      %1231 = vmatprep.subr.mxu0 0.0
      %v1232 = vand.u32 %v378, 4294901760
      %v1233 = vsub.f32 %v378, %v1232
      %v1234 = vand.u32 %v1233, 4294901760
      %1235 = vmatpush1.msra.mxu0 %v1234
      %1236 = vmatprep.subr.mxu0 0.0
      %v1237 = vand.u32 %v377, 4294901760
      %v1238 = vsub.f32 %v377, %v1237
      %v1239 = vand.u32 %v1238, 4294901760
      %1240 = vmatpush1.msra.mxu0 %v1239
      %1241 = vmatprep.subr.mxu0 0.0
      %v1242 = vand.u32 %v376, 4294901760
      %v1243 = vsub.f32 %v376, %v1242
      %v1244 = vand.u32 %v1243, 4294901760
      %1245 = vmatpush1.msra.mxu0 %v1244
      %1246 = vmatprep.subr.mxu0 0.0
      %v1247 = vand.u32 %v375, 4294901760
      %v1248 = vsub.f32 %v375, %v1247
      %v1249 = vand.u32 %v1248, 4294901760
      %1250 = vmatpush1.msra.mxu0 %v1249
      %1251 = vmatprep.subr.mxu0 0.0
      %v1252 = vand.u32 %v374, 4294901760
      %v1253 = vsub.f32 %v374, %v1252
      %v1254 = vand.u32 %v1253, 4294901760
      %1255 = vmatpush1.msra.mxu0 %v1254
      %1256 = vmatprep.subr.mxu0 0.0
      %v1257 = vand.u32 %v373, 4294901760
      %v1258 = vsub.f32 %v373, %v1257
      %v1259 = vand.u32 %v1258, 4294901760
      %1260 = vmatpush1.msra.mxu0 %v1259
      %1261 = vmatprep.subr.mxu0 0.0
      %v1262 = vand.u32 %v372, 4294901760
      %v1263 = vsub.f32 %v372, %v1262
      %v1264 = vand.u32 %v1263, 4294901760
      %1265 = vmatpush1.msra.mxu0 %v1264
      %1266 = vmatprep.subr.mxu0 0.0
      %v1267 = vand.u32 %v371, 4294901760
      %v1268 = vsub.f32 %v371, %v1267
      %v1269 = vand.u32 %v1268, 4294901760
      %1270 = vmatpush1.msra.mxu0 %v1269
      %1271 = vmatprep.subr.mxu0 0.0
      %v1272 = vand.u32 %v370, 4294901760
      %v1273 = vsub.f32 %v370, %v1272
      %v1274 = vand.u32 %v1273, 4294901760
      %1275 = vmatpush1.msra.mxu0 %v1274
      %1276 = vmatprep.subr.mxu0 0.0
      %v1277 = vand.u32 %v369, 4294901760
      %v1278 = vsub.f32 %v369, %v1277
      %v1279 = vand.u32 %v1278, 4294901760
      %1280 = vmatpush1.msra.mxu0 %v1279
      %1281 = vmatprep.subr.mxu0 0.0
      %v1282 = vand.u32 %v368, 4294901760
      %v1283 = vsub.f32 %v368, %v1282
      %v1284 = vand.u32 %v1283, 4294901760
      %1285 = vmatpush1.msra.mxu0 %v1284
      %1286 = vmatprep.subr.mxu0 0.0
      %v1287 = vand.u32 %v367, 4294901760
      %v1288 = vsub.f32 %v367, %v1287
      %v1289 = vand.u32 %v1288, 4294901760
      %1290 = vmatpush1.msra.mxu0 %v1289
      %1291 = vmatprep.subr.mxu0 0.0
      %v1292 = vand.u32 %v366, 4294901760
      %v1293 = vsub.f32 %v366, %v1292
      %v1294 = vand.u32 %v1293, 4294901760
      %1295 = vmatpush1.msra.mxu0 %v1294
      %1296 = vmatprep.subr.mxu0 0.0
      %v1297 = vand.u32 %v365, 4294901760
      %v1298 = vsub.f32 %v365, %v1297
      %v1299 = vand.u32 %v1298, 4294901760
      %1300 = vmatpush1.msra.mxu0 %v1299
      %1301 = vmatprep.subr.mxu0 0.0
      %v1302 = vand.u32 %v364, 4294901760
      %v1303 = vsub.f32 %v364, %v1302
      %v1304 = vand.u32 %v1303, 4294901760
      %1305 = vmatpush1.msra.mxu0 %v1304
      %1306 = vmatprep.subr.mxu0 0.0
      %v1307 = vand.u32 %v363, 4294901760
      %v1308 = vsub.f32 %v363, %v1307
      %v1309 = vand.u32 %v1308, 4294901760
      %1310 = vmatpush1.msra.mxu0 %v1309
      %1311 = vmatprep.subr.mxu0 0.0
      %1312 = vmatpush2.msra.mxu0 0.0
      %1313 = vmatprep.subr.mxu0 0.0
      %1314 = vmatpush2.msra.mxu0 0.0
      %1315 = vmatprep.subr.mxu0 0.0
      %1316 = vmatpush2.msra.mxu0 0.0
      %1317 = vmatprep.subr.mxu0 0.0
      %1318 = vmatpush2.msra.mxu0 0.0
      %1319 = vmatprep.subr.mxu0 0.0
      %1320 = vmatpush2.msra.mxu0 0.0
      %1321 = vmatprep.subr.mxu0 0.0
      %1322 = vmatpush2.msra.mxu0 0.0
      %1323 = vmatprep.subr.mxu0 0.0
      %1324 = vmatpush2.msra.mxu0 0.0
      %1325 = vmatprep.subr.mxu0 0.0
      %1326 = vmatpush2.msra.mxu0 0.0
      %1327 = vmatprep.subr.mxu0 0.0
      %v1328 = vand.u32 %v386, 4294901760
      %v1329 = vsub.f32 %v386, %v1328
      %v1330 = vand.u32 %v1329, 4294901760
      %1331 = vmatpush2.msra.mxu0 %v1330
      %1332 = vmatprep.subr.mxu0 0.0
      %v1333 = vand.u32 %v385, 4294901760
      %v1334 = vsub.f32 %v385, %v1333
      %v1335 = vand.u32 %v1334, 4294901760
      %1336 = vmatpush2.msra.mxu0 %v1335
      %1337 = vmatprep.subr.mxu0 0.0
      %v1338 = vand.u32 %v384, 4294901760
      %v1339 = vsub.f32 %v384, %v1338
      %v1340 = vand.u32 %v1339, 4294901760
      %1341 = vmatpush2.msra.mxu0 %v1340
      %1342 = vmatprep.subr.mxu0 0.0
      %v1343 = vand.u32 %v383, 4294901760
      %v1344 = vsub.f32 %v383, %v1343
      %v1345 = vand.u32 %v1344, 4294901760
      %1346 = vmatpush2.msra.mxu0 %v1345
      %1347 = vmatprep.subr.mxu0 0.0
      %v1348 = vand.u32 %v382, 4294901760
      %v1349 = vsub.f32 %v382, %v1348
      %v1350 = vand.u32 %v1349, 4294901760
      %1351 = vmatpush2.msra.mxu0 %v1350
      %1352 = vmatprep.subr.mxu0 0.0
      %v1353 = vand.u32 %v381, 4294901760
      %v1354 = vsub.f32 %v381, %v1353
      %v1355 = vand.u32 %v1354, 4294901760
      %1356 = vmatpush2.msra.mxu0 %v1355
      %1357 = vmatprep.subr.mxu0 0.0
      %v1358 = vand.u32 %v380, 4294901760
      %v1359 = vsub.f32 %v380, %v1358
      %v1360 = vand.u32 %v1359, 4294901760
      %1361 = vmatpush2.msra.mxu0 %v1360
      %1362 = vmatprep.subr.mxu0 0.0
      %v1363 = vand.u32 %v379, 4294901760
      %v1364 = vsub.f32 %v379, %v1363
      %v1365 = vand.u32 %v1364, 4294901760
      %1366 = vmatpush2.msra.mxu0 %v1365
      %v1367 = vand.u32 %v396, 4294901760
      %1368 = vmatprep.mubr.f32.mxu0 %v1367
      %v1369 = vand.u32 %v346, 4294901760
      %1370 = vmatmul.mubr.f32.gmra.mxu0 %v1369
      %v1371 = vpop.f32.mrf.mxu0
      %v1372 = vadd.f32 %v1151, %v1371
      %v1373 = vpop.f32.mrf.mxu0
      %v1374 = vand.u32 %v399, 4294901760
      %1375 = vmatprep.mubr.f32.mxu0 %v1374
      %v1376 = vand.u32 %v347, 4294901760
      %1377 = vmatmul.mubr.f32.gmra.mxu0 %v1376
      %v1378 = vpop.f32.mrf.mxu0
      %v1379 = vadd.f32 %v1162, %v1378
      %v1380 = vpop.f32.mrf.mxu0
      %v1381 = vand.u32 %v402, 4294901760
      %1382 = vmatprep.mubr.f32.mxu0 %v1381
      %v1383 = vand.u32 %v348, 4294901760
      %1384 = vmatmul.mubr.f32.gmra.mxu0 %v1383
      %v1385 = vpop.f32.mrf.mxu0
      %v1386 = vadd.f32 %v1173, %v1385
      %v1387 = vpop.f32.mrf.mxu0
      %v1388 = vand.u32 %v405, 4294901760
      %1389 = vmatprep.mubr.f32.mxu0 %v1388
      %v1390 = vand.u32 %v349, 4294901760
      %1391 = vmatmul.mubr.f32.gmra.mxu0 %v1390
      %v1392 = vpop.f32.mrf.mxu0
      %v1393 = vadd.f32 %v1184, %v1392
      %v1394 = vpop.f32.mrf.mxu0
      %v1395 = vand.u32 %v408, 4294901760
      %1396 = vmatprep.mubr.f32.mxu0 %v1395
      %v1397 = vand.u32 %v350, 4294901760
      %1398 = vmatmul.mubr.f32.gmra.mxu0 %v1397
      %v1399 = vpop.f32.mrf.mxu0
      %v1400 = vadd.f32 %v1195, %v1399
      %v1401 = vpop.f32.mrf.mxu0
      %v1402 = vand.u32 %v411, 4294901760
      %1403 = vmatprep.mubr.f32.mxu0 %v1402
      %v1404 = vand.u32 %v351, 4294901760
      %1405 = vmatmul.mubr.f32.gmra.mxu0 %v1404
      %v1406 = vpop.f32.mrf.mxu0
      %v1407 = vadd.f32 %v1206, %v1406
      %v1408 = vpop.f32.mrf.mxu0
      %v1409 = vand.u32 %v414, 4294901760
      %1410 = vmatprep.mubr.f32.mxu0 %v1409
      %v1411 = vand.u32 %v352, 4294901760
      %1412 = vmatmul.mubr.f32.gmra.mxu0 %v1411
      %v1413 = vpop.f32.mrf.mxu0
      %v1414 = vadd.f32 %v1217, %v1413
      %v1415 = vpop.f32.mrf.mxu0
      %v1416 = vand.u32 %v417, 4294901760
      %1417 = vmatprep.mubr.f32.mxu0 %v1416
      %v1418 = vand.u32 %v353, 4294901760
      %1419 = vmatmul.mubr.f32.gmra.mxu0 %v1418
      %v1420 = vpop.f32.mrf.mxu0
      %v1421 = vadd.f32 %v1228, %v1420
      %v1422 = vpop.f32.mrf.mxu0
      %1423 = vdwg.mxu0
      %1424 = vmatprep.subr.mxu0 0.0
      %v1425 = vand.u32 %v378, 4294901760
      %1426 = vmatpush1.msra.mxu0 %v1425
      %1427 = vmatprep.subr.mxu0 0.0
      %v1428 = vand.u32 %v377, 4294901760
      %1429 = vmatpush1.msra.mxu0 %v1428
      %1430 = vmatprep.subr.mxu0 0.0
      %v1431 = vand.u32 %v376, 4294901760
      %1432 = vmatpush1.msra.mxu0 %v1431
      %1433 = vmatprep.subr.mxu0 0.0
      %v1434 = vand.u32 %v375, 4294901760
      %1435 = vmatpush1.msra.mxu0 %v1434
      %1436 = vmatprep.subr.mxu0 0.0
      %v1437 = vand.u32 %v374, 4294901760
      %1438 = vmatpush1.msra.mxu0 %v1437
      %1439 = vmatprep.subr.mxu0 0.0
      %v1440 = vand.u32 %v373, 4294901760
      %1441 = vmatpush1.msra.mxu0 %v1440
      %1442 = vmatprep.subr.mxu0 0.0
      %v1443 = vand.u32 %v372, 4294901760
      %1444 = vmatpush1.msra.mxu0 %v1443
      %1445 = vmatprep.subr.mxu0 0.0
      %v1446 = vand.u32 %v371, 4294901760
      %1447 = vmatpush1.msra.mxu0 %v1446
      %1448 = vmatprep.subr.mxu0 0.0
      %v1449 = vand.u32 %v370, 4294901760
      %1450 = vmatpush1.msra.mxu0 %v1449
      %1451 = vmatprep.subr.mxu0 0.0
      %v1452 = vand.u32 %v369, 4294901760
      %1453 = vmatpush1.msra.mxu0 %v1452
      %1454 = vmatprep.subr.mxu0 0.0
      %v1455 = vand.u32 %v368, 4294901760
      %1456 = vmatpush1.msra.mxu0 %v1455
      %1457 = vmatprep.subr.mxu0 0.0
      %v1458 = vand.u32 %v367, 4294901760
      %1459 = vmatpush1.msra.mxu0 %v1458
      %1460 = vmatprep.subr.mxu0 0.0
      %v1461 = vand.u32 %v366, 4294901760
      %1462 = vmatpush1.msra.mxu0 %v1461
      %1463 = vmatprep.subr.mxu0 0.0
      %v1464 = vand.u32 %v365, 4294901760
      %1465 = vmatpush1.msra.mxu0 %v1464
      %1466 = vmatprep.subr.mxu0 0.0
      %v1467 = vand.u32 %v364, 4294901760
      %1468 = vmatpush1.msra.mxu0 %v1467
      %1469 = vmatprep.subr.mxu0 0.0
      %v1470 = vand.u32 %v363, 4294901760
      %1471 = vmatpush1.msra.mxu0 %v1470
      %1472 = vmatprep.subr.mxu0 0.0
      %1473 = vmatpush2.msra.mxu0 0.0
      %1474 = vmatprep.subr.mxu0 0.0
      %1475 = vmatpush2.msra.mxu0 0.0
      %1476 = vmatprep.subr.mxu0 0.0
      %1477 = vmatpush2.msra.mxu0 0.0
      %1478 = vmatprep.subr.mxu0 0.0
      %1479 = vmatpush2.msra.mxu0 0.0
      %1480 = vmatprep.subr.mxu0 0.0
      %1481 = vmatpush2.msra.mxu0 0.0
      %1482 = vmatprep.subr.mxu0 0.0
      %1483 = vmatpush2.msra.mxu0 0.0
      %1484 = vmatprep.subr.mxu0 0.0
      %1485 = vmatpush2.msra.mxu0 0.0
      %1486 = vmatprep.subr.mxu0 0.0
      %1487 = vmatpush2.msra.mxu0 0.0
      %1488 = vmatprep.subr.mxu0 0.0
      %v1489 = vand.u32 %v386, 4294901760
      %1490 = vmatpush2.msra.mxu0 %v1489
      %1491 = vmatprep.subr.mxu0 0.0
      %v1492 = vand.u32 %v385, 4294901760
      %1493 = vmatpush2.msra.mxu0 %v1492
      %1494 = vmatprep.subr.mxu0 0.0
      %v1495 = vand.u32 %v384, 4294901760
      %1496 = vmatpush2.msra.mxu0 %v1495
      %1497 = vmatprep.subr.mxu0 0.0
      %v1498 = vand.u32 %v383, 4294901760
      %1499 = vmatpush2.msra.mxu0 %v1498
      %1500 = vmatprep.subr.mxu0 0.0
      %v1501 = vand.u32 %v382, 4294901760
      %1502 = vmatpush2.msra.mxu0 %v1501
      %1503 = vmatprep.subr.mxu0 0.0
      %v1504 = vand.u32 %v381, 4294901760
      %1505 = vmatpush2.msra.mxu0 %v1504
      %1506 = vmatprep.subr.mxu0 0.0
      %v1507 = vand.u32 %v380, 4294901760
      %1508 = vmatpush2.msra.mxu0 %v1507
      %1509 = vmatprep.subr.mxu0 0.0
      %v1510 = vand.u32 %v379, 4294901760
      %1511 = vmatpush2.msra.mxu0 %v1510
      %v1512 = vand.u32 %v396, 4294901760
      %1513 = vmatprep.mubr.f32.mxu0 %v1512
      %v1514 = vand.u32 %v346, 4294901760
      %1515 = vmatmul.mubr.f32.gmra.mxu0 %v1514
      %v1516 = vpop.f32.mrf.mxu0
      %v1517 = vadd.f32 %v1372, %v1516
      %v1518 = vpop.f32.mrf.mxu0
      %v1519 = vand.u32 %v399, 4294901760
      %1520 = vmatprep.mubr.f32.mxu0 %v1519
      %v1521 = vand.u32 %v347, 4294901760
      %1522 = vmatmul.mubr.f32.gmra.mxu0 %v1521
      %v1523 = vpop.f32.mrf.mxu0
      %v1524 = vadd.f32 %v1379, %v1523
      %v1525 = vpop.f32.mrf.mxu0
      %v1526 = vand.u32 %v402, 4294901760
      %1527 = vmatprep.mubr.f32.mxu0 %v1526
      %v1528 = vand.u32 %v348, 4294901760
      %1529 = vmatmul.mubr.f32.gmra.mxu0 %v1528
      %v1530 = vpop.f32.mrf.mxu0
      %v1531 = vadd.f32 %v1386, %v1530
      %v1532 = vpop.f32.mrf.mxu0
      %v1533 = vand.u32 %v405, 4294901760
      %1534 = vmatprep.mubr.f32.mxu0 %v1533
      %v1535 = vand.u32 %v349, 4294901760
      %1536 = vmatmul.mubr.f32.gmra.mxu0 %v1535
      %v1537 = vpop.f32.mrf.mxu0
      %v1538 = vadd.f32 %v1393, %v1537
      %v1539 = vpop.f32.mrf.mxu0
      %v1540 = vand.u32 %v408, 4294901760
      %1541 = vmatprep.mubr.f32.mxu0 %v1540
      %v1542 = vand.u32 %v350, 4294901760
      %1543 = vmatmul.mubr.f32.gmra.mxu0 %v1542
      %v1544 = vpop.f32.mrf.mxu0
      %v1545 = vadd.f32 %v1400, %v1544
      %v1546 = vpop.f32.mrf.mxu0
      %v1547 = vand.u32 %v411, 4294901760
      %1548 = vmatprep.mubr.f32.mxu0 %v1547
      %v1549 = vand.u32 %v351, 4294901760
      %1550 = vmatmul.mubr.f32.gmra.mxu0 %v1549
      %v1551 = vpop.f32.mrf.mxu0
      %v1552 = vadd.f32 %v1407, %v1551
      %v1553 = vpop.f32.mrf.mxu0
      %v1554 = vand.u32 %v414, 4294901760
      %1555 = vmatprep.mubr.f32.mxu0 %v1554
      %v1556 = vand.u32 %v352, 4294901760
      %1557 = vmatmul.mubr.f32.gmra.mxu0 %v1556
      %v1558 = vpop.f32.mrf.mxu0
      %v1559 = vadd.f32 %v1414, %v1558
      %v1560 = vpop.f32.mrf.mxu0
      %v1561 = vand.u32 %v417, 4294901760
      %1562 = vmatprep.mubr.f32.mxu0 %v1561
      %v1563 = vand.u32 %v353, 4294901760
      %1564 = vmatmul.mubr.f32.gmra.mxu0 %v1563
      %v1565 = vpop.f32.mrf.mxu0
      %v1566 = vadd.f32 %v1421, %v1565
      %v1567 = vpop.f32.mrf.mxu0
      %1568 = vdwg.mxu0
      %v1569 = vmax.f32 %v1517, 0.0
      %v1570 = vmax.f32 %v1524, 0.0
      %v1571 = vmax.f32 %v1531, 0.0
      %v1572 = vmax.f32 %v1538, 0.0
      %v1573 = vmax.f32 %v1545, 0.0
      %v1574 = vmax.f32 %v1552, 0.0
      %v1575 = vmax.f32 %v1559, 0.0
      %v1576 = vmax.f32 %v1566, 0.0
      %1585 = vrot.lane.b32.xlu0 %v1569, 122
      %v1586 = vpop.permute.xlu0 %1585
      %1587 = vrot.lane.b32.xlu0 %v1570, 122
      %v1588 = vpop.permute.xlu0 %1587
      %1589 = vrot.lane.b32.xlu0 %v1571, 122
      %v1590 = vpop.permute.xlu0 %1589
      %1591 = vrot.lane.b32.xlu0 %v1572, 122
      %v1592 = vpop.permute.xlu0 %1591
      %1593 = vrot.lane.b32.xlu0 %v1573, 122
      %v1594 = vpop.permute.xlu0 %1593
      %1595 = vrot.lane.b32.xlu0 %v1574, 122
      %v1596 = vpop.permute.xlu0 %1595
      %1597 = vrot.lane.b32.xlu0 %v1575, 122
      %v1598 = vpop.permute.xlu0 %1597
      %1599 = vrot.lane.b32.xlu0 %v1576, 122
      %v1600 = vpop.permute.xlu0 %1599
      %v1609 = vmax.f32 %v1569, %v1586
      %v1610 = vmax.f32 %v1570, %v1588
      %v1611 = vmax.f32 %v1571, %v1590
      %v1612 = vmax.f32 %v1572, %v1592
      %v1613 = vmax.f32 %v1573, %v1594
      %v1614 = vmax.f32 %v1574, %v1596
      %v1615 = vmax.f32 %v1575, %v1598
      %v1616 = vmax.f32 %v1576, %v1600
      %1625 = vrot.lane.b32.xlu0 %v1609, 116
      %v1626 = vpop.permute.xlu0 %1625
      %1627 = vrot.lane.b32.xlu0 %v1610, 116
      %v1628 = vpop.permute.xlu0 %1627
      %1629 = vrot.lane.b32.xlu0 %v1611, 116
      %v1630 = vpop.permute.xlu0 %1629
      %1631 = vrot.lane.b32.xlu0 %v1612, 116
      %v1632 = vpop.permute.xlu0 %1631
      %1633 = vrot.lane.b32.xlu0 %v1613, 116
      %v1634 = vpop.permute.xlu0 %1633
      %1635 = vrot.lane.b32.xlu0 %v1614, 116
      %v1636 = vpop.permute.xlu0 %1635
      %1637 = vrot.lane.b32.xlu0 %v1615, 116
      %v1638 = vpop.permute.xlu0 %1637
      %1639 = vrot.lane.b32.xlu0 %v1616, 116
      %v1640 = vpop.permute.xlu0 %1639
      %v1649 = vmax.f32 %v1609, %v1626
      %v1650 = vmax.f32 %v1610, %v1628
      %v1651 = vmax.f32 %v1611, %v1630
      %v1652 = vmax.f32 %v1612, %v1632
      %v1653 = vmax.f32 %v1613, %v1634
      %v1654 = vmax.f32 %v1614, %v1636
      %v1655 = vmax.f32 %v1615, %v1638
      %v1656 = vmax.f32 %v1616, %v1640
      %1665 = vrot.lane.b32.xlu0 %v1649, 110
      %v1666 = vpop.permute.xlu0 %1665
      %1667 = vrot.lane.b32.xlu0 %v1650, 110
      %v1668 = vpop.permute.xlu0 %1667
      %1669 = vrot.lane.b32.xlu0 %v1651, 110
      %v1670 = vpop.permute.xlu0 %1669
      %1671 = vrot.lane.b32.xlu0 %v1652, 110
      %v1672 = vpop.permute.xlu0 %1671
      %1673 = vrot.lane.b32.xlu0 %v1653, 110
      %v1674 = vpop.permute.xlu0 %1673
      %1675 = vrot.lane.b32.xlu0 %v1654, 110
      %v1676 = vpop.permute.xlu0 %1675
      %1677 = vrot.lane.b32.xlu0 %v1655, 110
      %v1678 = vpop.permute.xlu0 %1677
      %1679 = vrot.lane.b32.xlu0 %v1656, 110
      %v1680 = vpop.permute.xlu0 %1679
      %1689 = vrot.lane.b32.xlu0 %v1649, 92
      %v1690 = vpop.permute.xlu0 %1689
      %1691 = vrot.lane.b32.xlu0 %v1650, 92
      %v1692 = vpop.permute.xlu0 %1691
      %1693 = vrot.lane.b32.xlu0 %v1651, 92
      %v1694 = vpop.permute.xlu0 %1693
      %1695 = vrot.lane.b32.xlu0 %v1652, 92
      %v1696 = vpop.permute.xlu0 %1695
      %1697 = vrot.lane.b32.xlu0 %v1653, 92
      %v1698 = vpop.permute.xlu0 %1697
      %1699 = vrot.lane.b32.xlu0 %v1654, 92
      %v1700 = vpop.permute.xlu0 %1699
      %1701 = vrot.lane.b32.xlu0 %v1655, 92
      %v1702 = vpop.permute.xlu0 %1701
      %1703 = vrot.lane.b32.xlu0 %v1656, 92
      %v1704 = vpop.permute.xlu0 %1703
      %1713 = vrot.lane.b32.xlu0 %v1649, 74
      %v1714 = vpop.permute.xlu0 %1713
      %1715 = vrot.lane.b32.xlu0 %v1650, 74
      %v1716 = vpop.permute.xlu0 %1715
      %1717 = vrot.lane.b32.xlu0 %v1651, 74
      %v1718 = vpop.permute.xlu0 %1717
      %1719 = vrot.lane.b32.xlu0 %v1652, 74
      %v1720 = vpop.permute.xlu0 %1719
      %1721 = vrot.lane.b32.xlu0 %v1653, 74
      %v1722 = vpop.permute.xlu0 %1721
      %1723 = vrot.lane.b32.xlu0 %v1654, 74
      %v1724 = vpop.permute.xlu0 %1723
      %1725 = vrot.lane.b32.xlu0 %v1655, 74
      %v1726 = vpop.permute.xlu0 %1725
      %1727 = vrot.lane.b32.xlu0 %v1656, 74
      %v1728 = vpop.permute.xlu0 %1727
      %vm1737 = vcmask 48128
      %v1738 = vsel %vm1737, %v1649, %v1666
      %v1739 = vsel %vm1737, %v1650, %v1668
      %v1740 = vsel %vm1737, %v1651, %v1670
      %v1741 = vsel %vm1737, %v1652, %v1672
      %v1742 = vsel %vm1737, %v1653, %v1674
      %v1743 = vsel %vm1737, %v1654, %v1676
      %v1744 = vsel %vm1737, %v1655, %v1678
      %v1745 = vsel %vm1737, %v1656, %v1680
      %vm1746 = vcmask 97280
      %v1747 = vsel %vm1746, %v1738, %v1690
      %v1748 = vsel %vm1746, %v1739, %v1692
      %v1749 = vsel %vm1746, %v1740, %v1694
      %v1750 = vsel %vm1746, %v1741, %v1696
      %v1751 = vsel %vm1746, %v1742, %v1698
      %v1752 = vsel %vm1746, %v1743, %v1700
      %v1753 = vsel %vm1746, %v1744, %v1702
      %v1754 = vsel %vm1746, %v1745, %v1704
      %vm1755 = vcmask 146432
      %v1756 = vsel %vm1755, %v1747, %v1714
      %v1757 = vsel %vm1755, %v1748, %v1716
      %v1758 = vsel %vm1755, %v1749, %v1718
      %v1759 = vsel %vm1755, %v1750, %v1720
      %v1760 = vsel %vm1755, %v1751, %v1722
      %v1761 = vsel %vm1755, %v1752, %v1724
      %v1762 = vsel %vm1755, %v1753, %v1726
      %v1763 = vsel %vm1755, %v1754, %v1728
      %v1772 = vrot.slane %v1756, 1
      %v1773 = vrot.slane %v1757, 1
      %v1774 = vsel %vm245, %v1772, %v1773
      %v1775 = vrot.slane %v1758, 1
      %v1776 = vsel %vm245, %v1773, %v1775
      %v1777 = vrot.slane %v1759, 1
      %v1778 = vsel %vm245, %v1775, %v1777
      %v1779 = vrot.slane %v1760, 1
      %v1780 = vsel %vm245, %v1777, %v1779
      %v1781 = vrot.slane %v1761, 1
      %v1782 = vsel %vm245, %v1779, %v1781
      %v1783 = vrot.slane %v1762, 1
      %v1784 = vsel %vm245, %v1781, %v1783
      %v1785 = vrot.slane %v1763, 1
      %v1786 = vsel %vm245, %v1783, %v1785
      %v1787 = vsel %vm245, %v1785, %v261
      %1788 = vrot.lane.b32.xlu0 %v1774, 24
      %v1789 = vpop.permute.xlu0 %1788
      %1790 = vrot.lane.b32.xlu0 %v1776, 24
      %v1791 = vpop.permute.xlu0 %1790
      %1792 = vrot.lane.b32.xlu0 %v1778, 24
      %v1793 = vpop.permute.xlu0 %1792
      %1794 = vrot.lane.b32.xlu0 %v1780, 24
      %v1795 = vpop.permute.xlu0 %1794
      %1796 = vrot.lane.b32.xlu0 %v1782, 24
      %v1797 = vpop.permute.xlu0 %1796
      %1798 = vrot.lane.b32.xlu0 %v1784, 24
      %v1799 = vpop.permute.xlu0 %1798
      %1800 = vrot.lane.b32.xlu0 %v1786, 24
      %v1801 = vpop.permute.xlu0 %1800
      %1802 = vrot.lane.b32.xlu0 %v1787, 24
      %v1803 = vpop.permute.xlu0 %1802
      %vm1812 = vcmask 1045504
      %v1813 = vrot.slane %v1756, 2
      %v1814 = vrot.slane %v1757, 2
      %v1815 = vsel %vm1812, %v1813, %v1814
      %v1816 = vrot.slane %v1758, 2
      %v1817 = vsel %vm1812, %v1814, %v1816
      %v1818 = vrot.slane %v1759, 2
      %v1819 = vsel %vm1812, %v1816, %v1818
      %v1820 = vrot.slane %v1760, 2
      %v1821 = vsel %vm1812, %v1818, %v1820
      %v1822 = vrot.slane %v1761, 2
      %v1823 = vsel %vm1812, %v1820, %v1822
      %v1824 = vrot.slane %v1762, 2
      %v1825 = vsel %vm1812, %v1822, %v1824
      %v1826 = vrot.slane %v1763, 2
      %v1827 = vsel %vm1812, %v1824, %v1826
      %v1828 = vrot.slane 0.0, 2
      %v1829 = vsel %vm1812, %v1826, %v1828
      %1830 = vrot.lane.b32.xlu0 %v1815, 48
      %v1831 = vpop.permute.xlu0 %1830
      %1832 = vrot.lane.b32.xlu0 %v1817, 48
      %v1833 = vpop.permute.xlu0 %1832
      %1834 = vrot.lane.b32.xlu0 %v1819, 48
      %v1835 = vpop.permute.xlu0 %1834
      %1836 = vrot.lane.b32.xlu0 %v1821, 48
      %v1837 = vpop.permute.xlu0 %1836
      %1838 = vrot.lane.b32.xlu0 %v1823, 48
      %v1839 = vpop.permute.xlu0 %1838
      %1840 = vrot.lane.b32.xlu0 %v1825, 48
      %v1841 = vpop.permute.xlu0 %1840
      %1842 = vrot.lane.b32.xlu0 %v1827, 48
      %v1843 = vpop.permute.xlu0 %1842
      %1844 = vrot.lane.b32.xlu0 %v1829, 48
      %v1845 = vpop.permute.xlu0 %1844
      %1854 = vrot.lane.b32.xlu0 %v1757, 72
      %v1855 = vpop.permute.xlu0 %1854
      %1856 = vrot.lane.b32.xlu0 %v1758, 72
      %v1857 = vpop.permute.xlu0 %1856
      %1858 = vrot.lane.b32.xlu0 %v1759, 72
      %v1859 = vpop.permute.xlu0 %1858
      %1860 = vrot.lane.b32.xlu0 %v1760, 72
      %v1861 = vpop.permute.xlu0 %1860
      %1862 = vrot.lane.b32.xlu0 %v1761, 72
      %v1863 = vpop.permute.xlu0 %1862
      %1864 = vrot.lane.b32.xlu0 %v1762, 72
      %v1865 = vpop.permute.xlu0 %1864
      %1866 = vrot.lane.b32.xlu0 %v1763, 72
      %v1867 = vpop.permute.xlu0 %1866
      %1868 = vrot.lane.b32.xlu0 0.0, 72
      %v1869 = vpop.permute.xlu0 %1868
      %1878 = vrot.lane.b32.xlu0 %v1776, 96
      %v1879 = vpop.permute.xlu0 %1878
      %1880 = vrot.lane.b32.xlu0 %v1778, 96
      %v1881 = vpop.permute.xlu0 %1880
      %1882 = vrot.lane.b32.xlu0 %v1780, 96
      %v1883 = vpop.permute.xlu0 %1882
      %1884 = vrot.lane.b32.xlu0 %v1782, 96
      %v1885 = vpop.permute.xlu0 %1884
      %1886 = vrot.lane.b32.xlu0 %v1784, 96
      %v1887 = vpop.permute.xlu0 %1886
      %1888 = vrot.lane.b32.xlu0 %v1786, 96
      %v1889 = vpop.permute.xlu0 %1888
      %1890 = vrot.lane.b32.xlu0 %v1787, 96
      %v1891 = vpop.permute.xlu0 %1890
      %1892 = vrot.lane.b32.xlu0 %v311, 96
      %v1893 = vpop.permute.xlu0 %1892
      %v1902 = vsel %vm1812, %v1828, %v1828
      %1903 = vrot.lane.b32.xlu0 %v1817, 120
      %v1904 = vpop.permute.xlu0 %1903
      %1905 = vrot.lane.b32.xlu0 %v1819, 120
      %v1906 = vpop.permute.xlu0 %1905
      %1907 = vrot.lane.b32.xlu0 %v1821, 120
      %v1908 = vpop.permute.xlu0 %1907
      %1909 = vrot.lane.b32.xlu0 %v1823, 120
      %v1910 = vpop.permute.xlu0 %1909
      %1911 = vrot.lane.b32.xlu0 %v1825, 120
      %v1912 = vpop.permute.xlu0 %1911
      %1913 = vrot.lane.b32.xlu0 %v1827, 120
      %v1914 = vpop.permute.xlu0 %1913
      %1915 = vrot.lane.b32.xlu0 %v1829, 120
      %v1916 = vpop.permute.xlu0 %1915
      %1917 = vrot.lane.b32.xlu0 %v1902, 120
      %v1918 = vpop.permute.xlu0 %1917
      %1927 = vrot.lane.b32.xlu0 %v1758, 16
      %v1928 = vpop.permute.xlu0 %1927
      %1929 = vrot.lane.b32.xlu0 %v1759, 16
      %v1930 = vpop.permute.xlu0 %1929
      %1931 = vrot.lane.b32.xlu0 %v1760, 16
      %v1932 = vpop.permute.xlu0 %1931
      %1933 = vrot.lane.b32.xlu0 %v1761, 16
      %v1934 = vpop.permute.xlu0 %1933
      %1935 = vrot.lane.b32.xlu0 %v1762, 16
      %v1936 = vpop.permute.xlu0 %1935
      %1937 = vrot.lane.b32.xlu0 %v1763, 16
      %v1938 = vpop.permute.xlu0 %1937
      %1939 = vrot.lane.b32.xlu0 0.0, 16
      %v1940 = vpop.permute.xlu0 %1939
      %1948 = vrot.lane.b32.xlu0 %v1778, 40
      %v1949 = vpop.permute.xlu0 %1948
      %1950 = vrot.lane.b32.xlu0 %v1780, 40
      %v1951 = vpop.permute.xlu0 %1950
      %1952 = vrot.lane.b32.xlu0 %v1782, 40
      %v1953 = vpop.permute.xlu0 %1952
      %1954 = vrot.lane.b32.xlu0 %v1784, 40
      %v1955 = vpop.permute.xlu0 %1954
      %1956 = vrot.lane.b32.xlu0 %v1786, 40
      %v1957 = vpop.permute.xlu0 %1956
      %1958 = vrot.lane.b32.xlu0 %v1787, 40
      %v1959 = vpop.permute.xlu0 %1958
      %1960 = vrot.lane.b32.xlu0 %v311, 40
      %v1961 = vpop.permute.xlu0 %1960
      %1969 = vrot.lane.b32.xlu0 %v1819, 64
      %v1970 = vpop.permute.xlu0 %1969
      %1971 = vrot.lane.b32.xlu0 %v1821, 64
      %v1972 = vpop.permute.xlu0 %1971
      %1973 = vrot.lane.b32.xlu0 %v1823, 64
      %v1974 = vpop.permute.xlu0 %1973
      %1975 = vrot.lane.b32.xlu0 %v1825, 64
      %v1976 = vpop.permute.xlu0 %1975
      %1977 = vrot.lane.b32.xlu0 %v1827, 64
      %v1978 = vpop.permute.xlu0 %1977
      %1979 = vrot.lane.b32.xlu0 %v1829, 64
      %v1980 = vpop.permute.xlu0 %1979
      %1981 = vrot.lane.b32.xlu0 %v1902, 64
      %v1982 = vpop.permute.xlu0 %1981
      %vm1990 = vcmask 195584
      %v1991 = vsel %vm1990, %v1756, %v1789
      %v1992 = vsel %vm1990, %v1757, %v1791
      %v1993 = vsel %vm1990, %v1758, %v1793
      %v1994 = vsel %vm1990, %v1759, %v1795
      %v1995 = vsel %vm1990, %v1760, %v1797
      %v1996 = vsel %vm1990, %v1761, %v1799
      %v1997 = vsel %vm1990, %v1762, %v1801
      %v1998 = vsel %vm1990, %v1763, %v1803
      %v1999 = vsel %vm336, %v1991, %v1831
      %v2000 = vsel %vm336, %v1992, %v1833
      %v2001 = vsel %vm336, %v1993, %v1835
      %v2002 = vsel %vm336, %v1994, %v1837
      %v2003 = vsel %vm336, %v1995, %v1839
      %v2004 = vsel %vm336, %v1996, %v1841
      %v2005 = vsel %vm336, %v1997, %v1843
      %v2006 = vsel %vm336, %v1998, %v1845
      %vm2007 = vcmask 588800
      %v2008 = vsel %vm2007, %v1999, %v1855
      %v2009 = vsel %vm2007, %v2000, %v1857
      %v2010 = vsel %vm2007, %v2001, %v1859
      %v2011 = vsel %vm2007, %v2002, %v1861
      %v2012 = vsel %vm2007, %v2003, %v1863
      %v2013 = vsel %vm2007, %v2004, %v1865
      %v2014 = vsel %vm2007, %v2005, %v1867
      %v2015 = vsel %vm2007, %v2006, %v1869
      %v2016 = vsel %vm345, %v2008, %v1879
      %v2017 = vsel %vm345, %v2009, %v1881
      %v2018 = vsel %vm345, %v2010, %v1883
      %v2019 = vsel %vm345, %v2011, %v1885
      %v2020 = vsel %vm345, %v2012, %v1887
      %v2021 = vsel %vm345, %v2013, %v1889
      %v2022 = vsel %vm345, %v2014, %v1891
      %v2023 = vsel %vm345, %v2015, %v1893
      %vm2024 = vcmask 982016
      %v2025 = vsel %vm2024, %v2016, %v1904
      %v2026 = vsel %vm2024, %v2017, %v1906
      %v2027 = vsel %vm2024, %v2018, %v1908
      %v2028 = vsel %vm2024, %v2019, %v1910
      %v2029 = vsel %vm2024, %v2020, %v1912
      %v2030 = vsel %vm2024, %v2021, %v1914
      %v2031 = vsel %vm2024, %v2022, %v1916
      %v2032 = vsel %vm2024, %v2023, %v1918
      %v2033 = vsel %vm354, %v1904, %v1928
      %v2034 = vsel %vm354, %v1906, %v1930
      %v2035 = vsel %vm354, %v1908, %v1932
      %v2036 = vsel %vm354, %v1910, %v1934
      %v2037 = vsel %vm354, %v1912, %v1936
      %v2038 = vsel %vm354, %v1914, %v1938
      %v2039 = vsel %vm354, %v1916, %v1940
      %v2040 = vsel %vm354, %v1918, %v1940
      %vm2041 = vcmask 326656
      %v2042 = vsel %vm2041, %v2033, %v1949
      %v2043 = vsel %vm2041, %v2034, %v1951
      %v2044 = vsel %vm2041, %v2035, %v1953
      %v2045 = vsel %vm2041, %v2036, %v1955
      %v2046 = vsel %vm2041, %v2037, %v1957
      %v2047 = vsel %vm2041, %v2038, %v1959
      %v2048 = vsel %vm2041, %v2039, %v1961
      %v2049 = vsel %vm2041, %v2040, %v1961
      %v2050 = vsel %vm394, %v2042, %v1970
      %v2051 = vsel %vm394, %v2043, %v1972
      %v2052 = vsel %vm394, %v2044, %v1974
      %v2053 = vsel %vm394, %v2045, %v1976
      %v2054 = vsel %vm394, %v2046, %v1978
      %v2055 = vsel %vm394, %v2047, %v1980
      %v2056 = vsel %vm394, %v2048, %v1982
      %v2057 = vsel %vm394, %v2049, %v1982
      %v2058 = vld [vmem:[%s3] sm:$0xff]
      %v2059 = vld [vmem:[%s3 + $0x8] sm:$0xff]
      %v2060 = vld [vmem:[%s3 + $0x10] sm:$0xff]
      %v2061 = vld [vmem:[%s3 + $0x18] sm:$0xff]
      %v2062 = vld [vmem:[%s3 + $0x20] sm:$0xff]
      %v2063 = vld [vmem:[%s3 + $0x28] sm:$0xff]
      %v2064 = vld [vmem:[%s3 + $0x30] sm:$0xff]
      %v2065 = vld [vmem:[%s3 + $0x38] sm:$0xff]
      %v2066 = vld [vmem:[%s3 + $0x40] sm:$0xff]
      %v2067 = vld [vmem:[%s3 + $0x48] sm:$0xff]
      %v2068 = vld [vmem:[%s3 + $0x50] sm:$0xff]
      %v2069 = vld [vmem:[%s3 + $0x58] sm:$0xff]
      %v2070 = vld [vmem:[%s3 + $0x60] sm:$0xff]
      %v2071 = vld [vmem:[%s3 + $0x68] sm:$0xff]
      %v2072 = vld [vmem:[%s3 + $0x70] sm:$0xff]
      %v2073 = vld [vmem:[%s3 + $0x78] sm:$0xff]
      %v2074 = vld [vmem:[%s3 + $0x80] sm:$0xff]
      %v2075 = vld [vmem:[%s3 + $0x88] sm:$0xff]
      %v2076 = vld [vmem:[%s3 + $0x90] sm:$0xff]
      %v2077 = vld [vmem:[%s3 + $0x98] sm:$0xff]
      %v2078 = vld [vmem:[%s3 + $0xa0] sm:$0xff]
      %v2079 = vld [vmem:[%s3 + $0xa8] sm:$0xff]
      %v2080 = vld [vmem:[%s3 + $0xb0] sm:$0xff]
      %v2081 = vld [vmem:[%s3 + $0xb8] sm:$0xff]
      %v2082 = vld [vmem:[%s3 + $0xc0] sm:$0xff]
      %v2083 = vld [vmem:[%s3 + $0xc8] sm:$0xff]
      %v2084 = vld [vmem:[%s3 + $0xd0] sm:$0xff]
      %v2085 = vld [vmem:[%s4] sm:$0x1]
      %v2087 = vlaneseq
      %v2088 = vshrl.u32 %v2087, 7
      %v2089 = vsub.s32 0, %v2088
      %v2090 = vrot.slane %v2085, %v2089
      %vm2092 = vcmask 719872
      %v2094 = vsel %vm2092, %v2050, 0
      %v2097 = vsel %vm2092, %v2051, 0
      %v2100 = vsel %vm2092, %v2052, 0
      %v2103 = vsel %vm2092, %v2053, 0
      %v2106 = vsel %vm2092, %v2054, 0
      %v2109 = vsel %vm2092, %v2055, 0
      %v2112 = vsel %vm2092, %v2056, 0
      %v2115 = vsel %vm2092, %v2057, 0
      %2117 = vmatprep.subr.mxu0 0.0
      %v2118 = vand.u32 %v2073, 4294901760
      %2119 = vmatpush1.msra.mxu0 %v2118
      %2120 = vmatprep.subr.mxu0 0.0
      %v2121 = vand.u32 %v2072, 4294901760
      %2122 = vmatpush1.msra.mxu0 %v2121
      %2123 = vmatprep.subr.mxu0 0.0
      %v2124 = vand.u32 %v2071, 4294901760
      %2125 = vmatpush1.msra.mxu0 %v2124
      %2126 = vmatprep.subr.mxu0 0.0
      %v2127 = vand.u32 %v2070, 4294901760
      %2128 = vmatpush1.msra.mxu0 %v2127
      %2129 = vmatprep.subr.mxu0 0.0
      %v2130 = vand.u32 %v2069, 4294901760
      %2131 = vmatpush1.msra.mxu0 %v2130
      %2132 = vmatprep.subr.mxu0 0.0
      %v2133 = vand.u32 %v2068, 4294901760
      %2134 = vmatpush1.msra.mxu0 %v2133
      %2135 = vmatprep.subr.mxu0 0.0
      %v2136 = vand.u32 %v2067, 4294901760
      %2137 = vmatpush1.msra.mxu0 %v2136
      %2138 = vmatprep.subr.mxu0 0.0
      %v2139 = vand.u32 %v2066, 4294901760
      %2140 = vmatpush1.msra.mxu0 %v2139
      %2141 = vmatprep.subr.mxu0 0.0
      %v2142 = vand.u32 %v2065, 4294901760
      %2143 = vmatpush1.msra.mxu0 %v2142
      %2144 = vmatprep.subr.mxu0 0.0
      %v2145 = vand.u32 %v2064, 4294901760
      %2146 = vmatpush1.msra.mxu0 %v2145
      %2147 = vmatprep.subr.mxu0 0.0
      %v2148 = vand.u32 %v2063, 4294901760
      %2149 = vmatpush1.msra.mxu0 %v2148
      %2150 = vmatprep.subr.mxu0 0.0
      %v2151 = vand.u32 %v2062, 4294901760
      %2152 = vmatpush1.msra.mxu0 %v2151
      %2153 = vmatprep.subr.mxu0 0.0
      %v2154 = vand.u32 %v2061, 4294901760
      %2155 = vmatpush1.msra.mxu0 %v2154
      %2156 = vmatprep.subr.mxu0 0.0
      %v2157 = vand.u32 %v2060, 4294901760
      %2158 = vmatpush1.msra.mxu0 %v2157
      %2159 = vmatprep.subr.mxu0 0.0
      %v2160 = vand.u32 %v2059, 4294901760
      %2161 = vmatpush1.msra.mxu0 %v2160
      %2162 = vmatprep.subr.mxu0 0.0
      %v2163 = vand.u32 %v2058, 4294901760
      %2164 = vmatpush1.msra.mxu0 %v2163
      %2165 = vmatprep.subr.mxu0 0.0
      %2166 = vmatpush2.msra.mxu0 0.0
      %2167 = vmatprep.subr.mxu0 0.0
      %2168 = vmatpush2.msra.mxu0 0.0
      %2169 = vmatprep.subr.mxu0 0.0
      %2170 = vmatpush2.msra.mxu0 0.0
      %2171 = vmatprep.subr.mxu0 0.0
      %2172 = vmatpush2.msra.mxu0 0.0
      %2173 = vmatprep.subr.mxu0 0.0
      %2174 = vmatpush2.msra.mxu0 0.0
      %2175 = vmatprep.subr.mxu0 0.0
      %v2176 = vand.u32 %v2084, 4294901760
      %2177 = vmatpush2.msra.mxu0 %v2176
      %2178 = vmatprep.subr.mxu0 0.0
      %v2179 = vand.u32 %v2083, 4294901760
      %2180 = vmatpush2.msra.mxu0 %v2179
      %2181 = vmatprep.subr.mxu0 0.0
      %v2182 = vand.u32 %v2082, 4294901760
      %2183 = vmatpush2.msra.mxu0 %v2182
      %2184 = vmatprep.subr.mxu0 0.0
      %v2185 = vand.u32 %v2081, 4294901760
      %2186 = vmatpush2.msra.mxu0 %v2185
      %2187 = vmatprep.subr.mxu0 0.0
      %v2188 = vand.u32 %v2080, 4294901760
      %2189 = vmatpush2.msra.mxu0 %v2188
      %2190 = vmatprep.subr.mxu0 0.0
      %v2191 = vand.u32 %v2079, 4294901760
      %2192 = vmatpush2.msra.mxu0 %v2191
      %2193 = vmatprep.subr.mxu0 0.0
      %v2194 = vand.u32 %v2078, 4294901760
      %2195 = vmatpush2.msra.mxu0 %v2194
      %2196 = vmatprep.subr.mxu0 0.0
      %v2197 = vand.u32 %v2077, 4294901760
      %2198 = vmatpush2.msra.mxu0 %v2197
      %2199 = vmatprep.subr.mxu0 0.0
      %v2200 = vand.u32 %v2076, 4294901760
      %2201 = vmatpush2.msra.mxu0 %v2200
      %2202 = vmatprep.subr.mxu0 0.0
      %v2203 = vand.u32 %v2075, 4294901760
      %2204 = vmatpush2.msra.mxu0 %v2203
      %2205 = vmatprep.subr.mxu0 0.0
      %v2206 = vand.u32 %v2074, 4294901760
      %2207 = vmatpush2.msra.mxu0 %v2206
      %v2208 = vand.u32 %v2094, 4294901760
      %v2209 = vsub.f32 %v2094, %v2208
      %v2210 = vand.u32 %v2209, 4294901760
      %v2211 = vsub.f32 %v2209, %v2210
      %v2212 = vand.u32 %v2211, 4294901760
      %2213 = vmatprep.mubr.f32.mxu0 %v2212
      %v2214 = vand.u32 %v2025, 4294901760
      %v2215 = vsub.f32 %v2025, %v2214
      %v2216 = vand.u32 %v2215, 4294901760
      %v2217 = vsub.f32 %v2215, %v2216
      %v2218 = vand.u32 %v2217, 4294901760
      %2219 = vmatmul.mubr.f32.gmra.mxu0 %v2218
      %v2220 = vpop.f32.mrf.mxu0
      %v2221 = vadd.f32 %v2090, %v2220
      %v2222 = vpop.f32.mrf.mxu0
      %v2223 = vand.u32 %v2097, 4294901760
      %v2224 = vsub.f32 %v2097, %v2223
      %v2225 = vand.u32 %v2224, 4294901760
      %v2226 = vsub.f32 %v2224, %v2225
      %v2227 = vand.u32 %v2226, 4294901760
      %2228 = vmatprep.mubr.f32.mxu0 %v2227
      %v2229 = vand.u32 %v2026, 4294901760
      %v2230 = vsub.f32 %v2026, %v2229
      %v2231 = vand.u32 %v2230, 4294901760
      %v2232 = vsub.f32 %v2230, %v2231
      %v2233 = vand.u32 %v2232, 4294901760
      %2234 = vmatmul.mubr.f32.gmra.mxu0 %v2233
      %v2235 = vpop.f32.mrf.mxu0
      %v2236 = vadd.f32 %v2090, %v2235
      %v2237 = vpop.f32.mrf.mxu0
      %v2238 = vand.u32 %v2100, 4294901760
      %v2239 = vsub.f32 %v2100, %v2238
      %v2240 = vand.u32 %v2239, 4294901760
      %v2241 = vsub.f32 %v2239, %v2240
      %v2242 = vand.u32 %v2241, 4294901760
      %2243 = vmatprep.mubr.f32.mxu0 %v2242
      %v2244 = vand.u32 %v2027, 4294901760
      %v2245 = vsub.f32 %v2027, %v2244
      %v2246 = vand.u32 %v2245, 4294901760
      %v2247 = vsub.f32 %v2245, %v2246
      %v2248 = vand.u32 %v2247, 4294901760
      %2249 = vmatmul.mubr.f32.gmra.mxu0 %v2248
      %v2250 = vpop.f32.mrf.mxu0
      %v2251 = vadd.f32 %v2090, %v2250
      %v2252 = vpop.f32.mrf.mxu0
      %v2253 = vand.u32 %v2103, 4294901760
      %v2254 = vsub.f32 %v2103, %v2253
      %v2255 = vand.u32 %v2254, 4294901760
      %v2256 = vsub.f32 %v2254, %v2255
      %v2257 = vand.u32 %v2256, 4294901760
      %2258 = vmatprep.mubr.f32.mxu0 %v2257
      %v2259 = vand.u32 %v2028, 4294901760
      %v2260 = vsub.f32 %v2028, %v2259
      %v2261 = vand.u32 %v2260, 4294901760
      %v2262 = vsub.f32 %v2260, %v2261
      %v2263 = vand.u32 %v2262, 4294901760
      %2264 = vmatmul.mubr.f32.gmra.mxu0 %v2263
      %v2265 = vpop.f32.mrf.mxu0
      %v2266 = vadd.f32 %v2090, %v2265
      %v2267 = vpop.f32.mrf.mxu0
      %v2268 = vand.u32 %v2106, 4294901760
      %v2269 = vsub.f32 %v2106, %v2268
      %v2270 = vand.u32 %v2269, 4294901760
      %v2271 = vsub.f32 %v2269, %v2270
      %v2272 = vand.u32 %v2271, 4294901760
      %2273 = vmatprep.mubr.f32.mxu0 %v2272
      %v2274 = vand.u32 %v2029, 4294901760
      %v2275 = vsub.f32 %v2029, %v2274
      %v2276 = vand.u32 %v2275, 4294901760
      %v2277 = vsub.f32 %v2275, %v2276
      %v2278 = vand.u32 %v2277, 4294901760
      %2279 = vmatmul.mubr.f32.gmra.mxu0 %v2278
      %v2280 = vpop.f32.mrf.mxu0
      %v2281 = vadd.f32 %v2090, %v2280
      %v2282 = vpop.f32.mrf.mxu0
      %v2283 = vand.u32 %v2109, 4294901760
      %v2284 = vsub.f32 %v2109, %v2283
      %v2285 = vand.u32 %v2284, 4294901760
      %v2286 = vsub.f32 %v2284, %v2285
      %v2287 = vand.u32 %v2286, 4294901760
      %2288 = vmatprep.mubr.f32.mxu0 %v2287
      %v2289 = vand.u32 %v2030, 4294901760
      %v2290 = vsub.f32 %v2030, %v2289
      %v2291 = vand.u32 %v2290, 4294901760
      %v2292 = vsub.f32 %v2290, %v2291
      %v2293 = vand.u32 %v2292, 4294901760
      %2294 = vmatmul.mubr.f32.gmra.mxu0 %v2293
      %v2295 = vpop.f32.mrf.mxu0
      %v2296 = vadd.f32 %v2090, %v2295
      %v2297 = vpop.f32.mrf.mxu0
      %v2298 = vand.u32 %v2112, 4294901760
      %v2299 = vsub.f32 %v2112, %v2298
      %v2300 = vand.u32 %v2299, 4294901760
      %v2301 = vsub.f32 %v2299, %v2300
      %v2302 = vand.u32 %v2301, 4294901760
      %2303 = vmatprep.mubr.f32.mxu0 %v2302
      %v2304 = vand.u32 %v2031, 4294901760
      %v2305 = vsub.f32 %v2031, %v2304
      %v2306 = vand.u32 %v2305, 4294901760
      %v2307 = vsub.f32 %v2305, %v2306
      %v2308 = vand.u32 %v2307, 4294901760
      %2309 = vmatmul.mubr.f32.gmra.mxu0 %v2308
      %v2310 = vpop.f32.mrf.mxu0
      %v2311 = vadd.f32 %v2090, %v2310
      %v2312 = vpop.f32.mrf.mxu0
      %v2313 = vand.u32 %v2115, 4294901760
      %v2314 = vsub.f32 %v2115, %v2313
      %v2315 = vand.u32 %v2314, 4294901760
      %v2316 = vsub.f32 %v2314, %v2315
      %v2317 = vand.u32 %v2316, 4294901760
      %2318 = vmatprep.mubr.f32.mxu0 %v2317
      %v2319 = vand.u32 %v2032, 4294901760
      %v2320 = vsub.f32 %v2032, %v2319
      %v2321 = vand.u32 %v2320, 4294901760
      %v2322 = vsub.f32 %v2320, %v2321
      %v2323 = vand.u32 %v2322, 4294901760
      %2324 = vmatmul.mubr.f32.gmra.mxu0 %v2323
      %v2325 = vpop.f32.mrf.mxu0
      %v2326 = vadd.f32 %v2090, %v2325
      %v2327 = vpop.f32.mrf.mxu0
      %2328 = vdwg.mxu0
      %2329 = vmatprep.subr.mxu0 0.0
      %v2330 = vand.u32 %v2073, 4294901760
      %v2331 = vsub.f32 %v2073, %v2330
      %v2332 = vand.u32 %v2331, 4294901760
      %v2333 = vsub.f32 %v2331, %v2332
      %v2334 = vand.u32 %v2333, 4294901760
      %2335 = vmatpush1.msra.mxu0 %v2334
      %2336 = vmatprep.subr.mxu0 0.0
      %v2337 = vand.u32 %v2072, 4294901760
      %v2338 = vsub.f32 %v2072, %v2337
      %v2339 = vand.u32 %v2338, 4294901760
      %v2340 = vsub.f32 %v2338, %v2339
      %v2341 = vand.u32 %v2340, 4294901760
      %2342 = vmatpush1.msra.mxu0 %v2341
      %2343 = vmatprep.subr.mxu0 0.0
      %v2344 = vand.u32 %v2071, 4294901760
      %v2345 = vsub.f32 %v2071, %v2344
      %v2346 = vand.u32 %v2345, 4294901760
      %v2347 = vsub.f32 %v2345, %v2346
      %v2348 = vand.u32 %v2347, 4294901760
      %2349 = vmatpush1.msra.mxu0 %v2348
      %2350 = vmatprep.subr.mxu0 0.0
      %v2351 = vand.u32 %v2070, 4294901760
      %v2352 = vsub.f32 %v2070, %v2351
      %v2353 = vand.u32 %v2352, 4294901760
      %v2354 = vsub.f32 %v2352, %v2353
      %v2355 = vand.u32 %v2354, 4294901760
      %2356 = vmatpush1.msra.mxu0 %v2355
      %2357 = vmatprep.subr.mxu0 0.0
      %v2358 = vand.u32 %v2069, 4294901760
      %v2359 = vsub.f32 %v2069, %v2358
      %v2360 = vand.u32 %v2359, 4294901760
      %v2361 = vsub.f32 %v2359, %v2360
      %v2362 = vand.u32 %v2361, 4294901760
      %2363 = vmatpush1.msra.mxu0 %v2362
      %2364 = vmatprep.subr.mxu0 0.0
      %v2365 = vand.u32 %v2068, 4294901760
      %v2366 = vsub.f32 %v2068, %v2365
      %v2367 = vand.u32 %v2366, 4294901760
      %v2368 = vsub.f32 %v2366, %v2367
      %v2369 = vand.u32 %v2368, 4294901760
      %2370 = vmatpush1.msra.mxu0 %v2369
      %2371 = vmatprep.subr.mxu0 0.0
      %v2372 = vand.u32 %v2067, 4294901760
      %v2373 = vsub.f32 %v2067, %v2372
      %v2374 = vand.u32 %v2373, 4294901760
      %v2375 = vsub.f32 %v2373, %v2374
      %v2376 = vand.u32 %v2375, 4294901760
      %2377 = vmatpush1.msra.mxu0 %v2376
      %2378 = vmatprep.subr.mxu0 0.0
      %v2379 = vand.u32 %v2066, 4294901760
      %v2380 = vsub.f32 %v2066, %v2379
      %v2381 = vand.u32 %v2380, 4294901760
      %v2382 = vsub.f32 %v2380, %v2381
      %v2383 = vand.u32 %v2382, 4294901760
      %2384 = vmatpush1.msra.mxu0 %v2383
      %2385 = vmatprep.subr.mxu0 0.0
      %v2386 = vand.u32 %v2065, 4294901760
      %v2387 = vsub.f32 %v2065, %v2386
      %v2388 = vand.u32 %v2387, 4294901760
      %v2389 = vsub.f32 %v2387, %v2388
      %v2390 = vand.u32 %v2389, 4294901760
      %2391 = vmatpush1.msra.mxu0 %v2390
      %2392 = vmatprep.subr.mxu0 0.0
      %v2393 = vand.u32 %v2064, 4294901760
      %v2394 = vsub.f32 %v2064, %v2393
      %v2395 = vand.u32 %v2394, 4294901760
      %v2396 = vsub.f32 %v2394, %v2395
      %v2397 = vand.u32 %v2396, 4294901760
      %2398 = vmatpush1.msra.mxu0 %v2397
      %2399 = vmatprep.subr.mxu0 0.0
      %v2400 = vand.u32 %v2063, 4294901760
      %v2401 = vsub.f32 %v2063, %v2400
      %v2402 = vand.u32 %v2401, 4294901760
      %v2403 = vsub.f32 %v2401, %v2402
      %v2404 = vand.u32 %v2403, 4294901760
      %2405 = vmatpush1.msra.mxu0 %v2404
      %2406 = vmatprep.subr.mxu0 0.0
      %v2407 = vand.u32 %v2062, 4294901760
      %v2408 = vsub.f32 %v2062, %v2407
      %v2409 = vand.u32 %v2408, 4294901760
      %v2410 = vsub.f32 %v2408, %v2409
      %v2411 = vand.u32 %v2410, 4294901760
      %2412 = vmatpush1.msra.mxu0 %v2411
      %2413 = vmatprep.subr.mxu0 0.0
      %v2414 = vand.u32 %v2061, 4294901760
      %v2415 = vsub.f32 %v2061, %v2414
      %v2416 = vand.u32 %v2415, 4294901760
      %v2417 = vsub.f32 %v2415, %v2416
      %v2418 = vand.u32 %v2417, 4294901760
      %2419 = vmatpush1.msra.mxu0 %v2418
      %2420 = vmatprep.subr.mxu0 0.0
      %v2421 = vand.u32 %v2060, 4294901760
      %v2422 = vsub.f32 %v2060, %v2421
      %v2423 = vand.u32 %v2422, 4294901760
      %v2424 = vsub.f32 %v2422, %v2423
      %v2425 = vand.u32 %v2424, 4294901760
      %2426 = vmatpush1.msra.mxu0 %v2425
      %2427 = vmatprep.subr.mxu0 0.0
      %v2428 = vand.u32 %v2059, 4294901760
      %v2429 = vsub.f32 %v2059, %v2428
      %v2430 = vand.u32 %v2429, 4294901760
      %v2431 = vsub.f32 %v2429, %v2430
      %v2432 = vand.u32 %v2431, 4294901760
      %2433 = vmatpush1.msra.mxu0 %v2432
      %2434 = vmatprep.subr.mxu0 0.0
      %v2435 = vand.u32 %v2058, 4294901760
      %v2436 = vsub.f32 %v2058, %v2435
      %v2437 = vand.u32 %v2436, 4294901760
      %v2438 = vsub.f32 %v2436, %v2437
      %v2439 = vand.u32 %v2438, 4294901760
      %2440 = vmatpush1.msra.mxu0 %v2439
      %2441 = vmatprep.subr.mxu0 0.0
      %2442 = vmatpush2.msra.mxu0 0.0
      %2443 = vmatprep.subr.mxu0 0.0
      %2444 = vmatpush2.msra.mxu0 0.0
      %2445 = vmatprep.subr.mxu0 0.0
      %2446 = vmatpush2.msra.mxu0 0.0
      %2447 = vmatprep.subr.mxu0 0.0
      %2448 = vmatpush2.msra.mxu0 0.0
      %2449 = vmatprep.subr.mxu0 0.0
      %2450 = vmatpush2.msra.mxu0 0.0
      %2451 = vmatprep.subr.mxu0 0.0
      %v2452 = vand.u32 %v2084, 4294901760
      %v2453 = vsub.f32 %v2084, %v2452
      %v2454 = vand.u32 %v2453, 4294901760
      %v2455 = vsub.f32 %v2453, %v2454
      %v2456 = vand.u32 %v2455, 4294901760
      %2457 = vmatpush2.msra.mxu0 %v2456
      %2458 = vmatprep.subr.mxu0 0.0
      %v2459 = vand.u32 %v2083, 4294901760
      %v2460 = vsub.f32 %v2083, %v2459
      %v2461 = vand.u32 %v2460, 4294901760
      %v2462 = vsub.f32 %v2460, %v2461
      %v2463 = vand.u32 %v2462, 4294901760
      %2464 = vmatpush2.msra.mxu0 %v2463
      %2465 = vmatprep.subr.mxu0 0.0
      %v2466 = vand.u32 %v2082, 4294901760
      %v2467 = vsub.f32 %v2082, %v2466
      %v2468 = vand.u32 %v2467, 4294901760
      %v2469 = vsub.f32 %v2467, %v2468
      %v2470 = vand.u32 %v2469, 4294901760
      %2471 = vmatpush2.msra.mxu0 %v2470
      %2472 = vmatprep.subr.mxu0 0.0
      %v2473 = vand.u32 %v2081, 4294901760
      %v2474 = vsub.f32 %v2081, %v2473
      %v2475 = vand.u32 %v2474, 4294901760
      %v2476 = vsub.f32 %v2474, %v2475
      %v2477 = vand.u32 %v2476, 4294901760
      %2478 = vmatpush2.msra.mxu0 %v2477
      %2479 = vmatprep.subr.mxu0 0.0
      %v2480 = vand.u32 %v2080, 4294901760
      %v2481 = vsub.f32 %v2080, %v2480
      %v2482 = vand.u32 %v2481, 4294901760
      %v2483 = vsub.f32 %v2481, %v2482
      %v2484 = vand.u32 %v2483, 4294901760
      %2485 = vmatpush2.msra.mxu0 %v2484
      %2486 = vmatprep.subr.mxu0 0.0
      %v2487 = vand.u32 %v2079, 4294901760
      %v2488 = vsub.f32 %v2079, %v2487
      %v2489 = vand.u32 %v2488, 4294901760
      %v2490 = vsub.f32 %v2488, %v2489
      %v2491 = vand.u32 %v2490, 4294901760
      %2492 = vmatpush2.msra.mxu0 %v2491
      %2493 = vmatprep.subr.mxu0 0.0
      %v2494 = vand.u32 %v2078, 4294901760
      %v2495 = vsub.f32 %v2078, %v2494
      %v2496 = vand.u32 %v2495, 4294901760
      %v2497 = vsub.f32 %v2495, %v2496
      %v2498 = vand.u32 %v2497, 4294901760
      %2499 = vmatpush2.msra.mxu0 %v2498
      %2500 = vmatprep.subr.mxu0 0.0
      %v2501 = vand.u32 %v2077, 4294901760
      %v2502 = vsub.f32 %v2077, %v2501
      %v2503 = vand.u32 %v2502, 4294901760
      %v2504 = vsub.f32 %v2502, %v2503
      %v2505 = vand.u32 %v2504, 4294901760
      %2506 = vmatpush2.msra.mxu0 %v2505
      %2507 = vmatprep.subr.mxu0 0.0
      %v2508 = vand.u32 %v2076, 4294901760
      %v2509 = vsub.f32 %v2076, %v2508
      %v2510 = vand.u32 %v2509, 4294901760
      %v2511 = vsub.f32 %v2509, %v2510
      %v2512 = vand.u32 %v2511, 4294901760
      %2513 = vmatpush2.msra.mxu0 %v2512
      %2514 = vmatprep.subr.mxu0 0.0
      %v2515 = vand.u32 %v2075, 4294901760
      %v2516 = vsub.f32 %v2075, %v2515
      %v2517 = vand.u32 %v2516, 4294901760
      %v2518 = vsub.f32 %v2516, %v2517
      %v2519 = vand.u32 %v2518, 4294901760
      %2520 = vmatpush2.msra.mxu0 %v2519
      %2521 = vmatprep.subr.mxu0 0.0
      %v2522 = vand.u32 %v2074, 4294901760
      %v2523 = vsub.f32 %v2074, %v2522
      %v2524 = vand.u32 %v2523, 4294901760
      %v2525 = vsub.f32 %v2523, %v2524
      %v2526 = vand.u32 %v2525, 4294901760
      %2527 = vmatpush2.msra.mxu0 %v2526
      %v2528 = vand.u32 %v2094, 4294901760
      %2529 = vmatprep.mubr.f32.mxu0 %v2528
      %v2530 = vand.u32 %v2025, 4294901760
      %2531 = vmatmul.mubr.f32.gmra.mxu0 %v2530
      %v2532 = vpop.f32.mrf.mxu0
      %v2533 = vadd.f32 %v2221, %v2532
      %v2534 = vpop.f32.mrf.mxu0
      %v2535 = vand.u32 %v2097, 4294901760
      %2536 = vmatprep.mubr.f32.mxu0 %v2535
      %v2537 = vand.u32 %v2026, 4294901760
      %2538 = vmatmul.mubr.f32.gmra.mxu0 %v2537
      %v2539 = vpop.f32.mrf.mxu0
      %v2540 = vadd.f32 %v2236, %v2539
      %v2541 = vpop.f32.mrf.mxu0
      %v2542 = vand.u32 %v2100, 4294901760
      %2543 = vmatprep.mubr.f32.mxu0 %v2542
      %v2544 = vand.u32 %v2027, 4294901760
      %2545 = vmatmul.mubr.f32.gmra.mxu0 %v2544
      %v2546 = vpop.f32.mrf.mxu0
      %v2547 = vadd.f32 %v2251, %v2546
      %v2548 = vpop.f32.mrf.mxu0
      %v2549 = vand.u32 %v2103, 4294901760
      %2550 = vmatprep.mubr.f32.mxu0 %v2549
      %v2551 = vand.u32 %v2028, 4294901760
      %2552 = vmatmul.mubr.f32.gmra.mxu0 %v2551
      %v2553 = vpop.f32.mrf.mxu0
      %v2554 = vadd.f32 %v2266, %v2553
      %v2555 = vpop.f32.mrf.mxu0
      %v2556 = vand.u32 %v2106, 4294901760
      %2557 = vmatprep.mubr.f32.mxu0 %v2556
      %v2558 = vand.u32 %v2029, 4294901760
      %2559 = vmatmul.mubr.f32.gmra.mxu0 %v2558
      %v2560 = vpop.f32.mrf.mxu0
      %v2561 = vadd.f32 %v2281, %v2560
      %v2562 = vpop.f32.mrf.mxu0
      %v2563 = vand.u32 %v2109, 4294901760
      %2564 = vmatprep.mubr.f32.mxu0 %v2563
      %v2565 = vand.u32 %v2030, 4294901760
      %2566 = vmatmul.mubr.f32.gmra.mxu0 %v2565
      %v2567 = vpop.f32.mrf.mxu0
      %v2568 = vadd.f32 %v2296, %v2567
      %v2569 = vpop.f32.mrf.mxu0
      %v2570 = vand.u32 %v2112, 4294901760
      %2571 = vmatprep.mubr.f32.mxu0 %v2570
      %v2572 = vand.u32 %v2031, 4294901760
      %2573 = vmatmul.mubr.f32.gmra.mxu0 %v2572
      %v2574 = vpop.f32.mrf.mxu0
      %v2575 = vadd.f32 %v2311, %v2574
      %v2576 = vpop.f32.mrf.mxu0
      %v2577 = vand.u32 %v2115, 4294901760
      %2578 = vmatprep.mubr.f32.mxu0 %v2577
      %v2579 = vand.u32 %v2032, 4294901760
      %2580 = vmatmul.mubr.f32.gmra.mxu0 %v2579
      %v2581 = vpop.f32.mrf.mxu0
      %v2582 = vadd.f32 %v2326, %v2581
      %v2583 = vpop.f32.mrf.mxu0
      %2584 = vdwg.mxu0
      %2585 = vmatprep.subr.mxu0 0.0
      %v2586 = vand.u32 %v2073, 4294901760
      %v2587 = vsub.f32 %v2073, %v2586
      %2588 = vmatpush1.msra.mxu0 %v2587
      %2589 = vmatprep.subr.mxu0 0.0
      %v2590 = vand.u32 %v2072, 4294901760
      %v2591 = vsub.f32 %v2072, %v2590
      %2592 = vmatpush1.msra.mxu0 %v2591
      %2593 = vmatprep.subr.mxu0 0.0
      %v2594 = vand.u32 %v2071, 4294901760
      %v2595 = vsub.f32 %v2071, %v2594
      %2596 = vmatpush1.msra.mxu0 %v2595
      %2597 = vmatprep.subr.mxu0 0.0
      %v2598 = vand.u32 %v2070, 4294901760
      %v2599 = vsub.f32 %v2070, %v2598
      %2600 = vmatpush1.msra.mxu0 %v2599
      %2601 = vmatprep.subr.mxu0 0.0
      %v2602 = vand.u32 %v2069, 4294901760
      %v2603 = vsub.f32 %v2069, %v2602
      %2604 = vmatpush1.msra.mxu0 %v2603
      %2605 = vmatprep.subr.mxu0 0.0
      %v2606 = vand.u32 %v2068, 4294901760
      %v2607 = vsub.f32 %v2068, %v2606
      %2608 = vmatpush1.msra.mxu0 %v2607
      %2609 = vmatprep.subr.mxu0 0.0
      %v2610 = vand.u32 %v2067, 4294901760
      %v2611 = vsub.f32 %v2067, %v2610
      %2612 = vmatpush1.msra.mxu0 %v2611
      %2613 = vmatprep.subr.mxu0 0.0
      %v2614 = vand.u32 %v2066, 4294901760
      %v2615 = vsub.f32 %v2066, %v2614
      %2616 = vmatpush1.msra.mxu0 %v2615
      %2617 = vmatprep.subr.mxu0 0.0
      %v2618 = vand.u32 %v2065, 4294901760
      %v2619 = vsub.f32 %v2065, %v2618
      %2620 = vmatpush1.msra.mxu0 %v2619
      %2621 = vmatprep.subr.mxu0 0.0
      %v2622 = vand.u32 %v2064, 4294901760
      %v2623 = vsub.f32 %v2064, %v2622
      %2624 = vmatpush1.msra.mxu0 %v2623
      %2625 = vmatprep.subr.mxu0 0.0
      %v2626 = vand.u32 %v2063, 4294901760
      %v2627 = vsub.f32 %v2063, %v2626
      %2628 = vmatpush1.msra.mxu0 %v2627
      %2629 = vmatprep.subr.mxu0 0.0
      %v2630 = vand.u32 %v2062, 4294901760
      %v2631 = vsub.f32 %v2062, %v2630
      %2632 = vmatpush1.msra.mxu0 %v2631
      %2633 = vmatprep.subr.mxu0 0.0
      %v2634 = vand.u32 %v2061, 4294901760
      %v2635 = vsub.f32 %v2061, %v2634
      %2636 = vmatpush1.msra.mxu0 %v2635
      %2637 = vmatprep.subr.mxu0 0.0
      %v2638 = vand.u32 %v2060, 4294901760
      %v2639 = vsub.f32 %v2060, %v2638
      %2640 = vmatpush1.msra.mxu0 %v2639
      %2641 = vmatprep.subr.mxu0 0.0
      %v2642 = vand.u32 %v2059, 4294901760
      %v2643 = vsub.f32 %v2059, %v2642
      %2644 = vmatpush1.msra.mxu0 %v2643
      %2645 = vmatprep.subr.mxu0 0.0
      %v2646 = vand.u32 %v2058, 4294901760
      %v2647 = vsub.f32 %v2058, %v2646
      %2648 = vmatpush1.msra.mxu0 %v2647
      %2649 = vmatprep.subr.mxu0 0.0
      %2650 = vmatpush2.msra.mxu0 0.0
      %2651 = vmatprep.subr.mxu0 0.0
      %2652 = vmatpush2.msra.mxu0 0.0
      %2653 = vmatprep.subr.mxu0 0.0
      %2654 = vmatpush2.msra.mxu0 0.0
      %2655 = vmatprep.subr.mxu0 0.0
      %2656 = vmatpush2.msra.mxu0 0.0
      %2657 = vmatprep.subr.mxu0 0.0
      %2658 = vmatpush2.msra.mxu0 0.0
      %2659 = vmatprep.subr.mxu0 0.0
      %v2660 = vand.u32 %v2084, 4294901760
      %v2661 = vsub.f32 %v2084, %v2660
      %2662 = vmatpush2.msra.mxu0 %v2661
      %2663 = vmatprep.subr.mxu0 0.0
      %v2664 = vand.u32 %v2083, 4294901760
      %v2665 = vsub.f32 %v2083, %v2664
      %2666 = vmatpush2.msra.mxu0 %v2665
      %2667 = vmatprep.subr.mxu0 0.0
      %v2668 = vand.u32 %v2082, 4294901760
      %v2669 = vsub.f32 %v2082, %v2668
      %2670 = vmatpush2.msra.mxu0 %v2669
      %2671 = vmatprep.subr.mxu0 0.0
      %v2672 = vand.u32 %v2081, 4294901760
      %v2673 = vsub.f32 %v2081, %v2672
      %2674 = vmatpush2.msra.mxu0 %v2673
      %2675 = vmatprep.subr.mxu0 0.0
      %v2676 = vand.u32 %v2080, 4294901760
      %v2677 = vsub.f32 %v2080, %v2676
      %2678 = vmatpush2.msra.mxu0 %v2677
      %2679 = vmatprep.subr.mxu0 0.0
      %v2680 = vand.u32 %v2079, 4294901760
      %v2681 = vsub.f32 %v2079, %v2680
      %2682 = vmatpush2.msra.mxu0 %v2681
      %2683 = vmatprep.subr.mxu0 0.0
      %v2684 = vand.u32 %v2078, 4294901760
      %v2685 = vsub.f32 %v2078, %v2684
      %2686 = vmatpush2.msra.mxu0 %v2685
      %2687 = vmatprep.subr.mxu0 0.0
      %v2688 = vand.u32 %v2077, 4294901760
      %v2689 = vsub.f32 %v2077, %v2688
      %2690 = vmatpush2.msra.mxu0 %v2689
      %2691 = vmatprep.subr.mxu0 0.0
      %v2692 = vand.u32 %v2076, 4294901760
      %v2693 = vsub.f32 %v2076, %v2692
      %2694 = vmatpush2.msra.mxu0 %v2693
      %2695 = vmatprep.subr.mxu0 0.0
      %v2696 = vand.u32 %v2075, 4294901760
      %v2697 = vsub.f32 %v2075, %v2696
      %2698 = vmatpush2.msra.mxu0 %v2697
      %2699 = vmatprep.subr.mxu0 0.0
      %v2700 = vand.u32 %v2074, 4294901760
      %v2701 = vsub.f32 %v2074, %v2700
      %2702 = vmatpush2.msra.mxu0 %v2701
      %v2703 = vand.u32 %v2094, 4294901760
      %v2704 = vsub.f32 %v2094, %v2703
      %2705 = vmatprep.mubr.f32.mxu0 %v2704
      %v2706 = vand.u32 %v2025, 4294901760
      %v2707 = vsub.f32 %v2025, %v2706
      %2708 = vmatmul.mubr.f32.gmra.mxu0 %v2707
      %v2709 = vpop.f32.mrf.mxu0
      %v2710 = vadd.f32 %v2533, %v2709
      %v2711 = vpop.f32.mrf.mxu0
      %v2712 = vand.u32 %v2097, 4294901760
      %v2713 = vsub.f32 %v2097, %v2712
      %2714 = vmatprep.mubr.f32.mxu0 %v2713
      %v2715 = vand.u32 %v2026, 4294901760
      %v2716 = vsub.f32 %v2026, %v2715
      %2717 = vmatmul.mubr.f32.gmra.mxu0 %v2716
      %v2718 = vpop.f32.mrf.mxu0
      %v2719 = vadd.f32 %v2540, %v2718
      %v2720 = vpop.f32.mrf.mxu0
      %v2721 = vand.u32 %v2100, 4294901760
      %v2722 = vsub.f32 %v2100, %v2721
      %2723 = vmatprep.mubr.f32.mxu0 %v2722
      %v2724 = vand.u32 %v2027, 4294901760
      %v2725 = vsub.f32 %v2027, %v2724
      %2726 = vmatmul.mubr.f32.gmra.mxu0 %v2725
      %v2727 = vpop.f32.mrf.mxu0
      %v2728 = vadd.f32 %v2547, %v2727
      %v2729 = vpop.f32.mrf.mxu0
      %v2730 = vand.u32 %v2103, 4294901760
      %v2731 = vsub.f32 %v2103, %v2730
      %2732 = vmatprep.mubr.f32.mxu0 %v2731
      %v2733 = vand.u32 %v2028, 4294901760
      %v2734 = vsub.f32 %v2028, %v2733
      %2735 = vmatmul.mubr.f32.gmra.mxu0 %v2734
      %v2736 = vpop.f32.mrf.mxu0
      %v2737 = vadd.f32 %v2554, %v2736
      %v2738 = vpop.f32.mrf.mxu0
      %v2739 = vand.u32 %v2106, 4294901760
      %v2740 = vsub.f32 %v2106, %v2739
      %2741 = vmatprep.mubr.f32.mxu0 %v2740
      %v2742 = vand.u32 %v2029, 4294901760
      %v2743 = vsub.f32 %v2029, %v2742
      %2744 = vmatmul.mubr.f32.gmra.mxu0 %v2743
      %v2745 = vpop.f32.mrf.mxu0
      %v2746 = vadd.f32 %v2561, %v2745
      %v2747 = vpop.f32.mrf.mxu0
      %v2748 = vand.u32 %v2109, 4294901760
      %v2749 = vsub.f32 %v2109, %v2748
      %2750 = vmatprep.mubr.f32.mxu0 %v2749
      %v2751 = vand.u32 %v2030, 4294901760
      %v2752 = vsub.f32 %v2030, %v2751
      %2753 = vmatmul.mubr.f32.gmra.mxu0 %v2752
      %v2754 = vpop.f32.mrf.mxu0
      %v2755 = vadd.f32 %v2568, %v2754
      %v2756 = vpop.f32.mrf.mxu0
      %v2757 = vand.u32 %v2112, 4294901760
      %v2758 = vsub.f32 %v2112, %v2757
      %2759 = vmatprep.mubr.f32.mxu0 %v2758
      %v2760 = vand.u32 %v2031, 4294901760
      %v2761 = vsub.f32 %v2031, %v2760
      %2762 = vmatmul.mubr.f32.gmra.mxu0 %v2761
      %v2763 = vpop.f32.mrf.mxu0
      %v2764 = vadd.f32 %v2575, %v2763
      %v2765 = vpop.f32.mrf.mxu0
      %v2766 = vand.u32 %v2115, 4294901760
      %v2767 = vsub.f32 %v2115, %v2766
      %2768 = vmatprep.mubr.f32.mxu0 %v2767
      %v2769 = vand.u32 %v2032, 4294901760
      %v2770 = vsub.f32 %v2032, %v2769
      %2771 = vmatmul.mubr.f32.gmra.mxu0 %v2770
      %v2772 = vpop.f32.mrf.mxu0
      %v2773 = vadd.f32 %v2582, %v2772
      %v2774 = vpop.f32.mrf.mxu0
      %2775 = vdwg.mxu0
      %2776 = vmatprep.subr.mxu0 0.0
      %v2777 = vand.u32 %v2073, 4294901760
      %2778 = vmatpush1.msra.mxu0 %v2777
      %2779 = vmatprep.subr.mxu0 0.0
      %v2780 = vand.u32 %v2072, 4294901760
      %2781 = vmatpush1.msra.mxu0 %v2780
      %2782 = vmatprep.subr.mxu0 0.0
      %v2783 = vand.u32 %v2071, 4294901760
      %2784 = vmatpush1.msra.mxu0 %v2783
      %2785 = vmatprep.subr.mxu0 0.0
      %v2786 = vand.u32 %v2070, 4294901760
      %2787 = vmatpush1.msra.mxu0 %v2786
      %2788 = vmatprep.subr.mxu0 0.0
      %v2789 = vand.u32 %v2069, 4294901760
      %2790 = vmatpush1.msra.mxu0 %v2789
      %2791 = vmatprep.subr.mxu0 0.0
      %v2792 = vand.u32 %v2068, 4294901760
      %2793 = vmatpush1.msra.mxu0 %v2792
      %2794 = vmatprep.subr.mxu0 0.0
      %v2795 = vand.u32 %v2067, 4294901760
      %2796 = vmatpush1.msra.mxu0 %v2795
      %2797 = vmatprep.subr.mxu0 0.0
      %v2798 = vand.u32 %v2066, 4294901760
      %2799 = vmatpush1.msra.mxu0 %v2798
      %2800 = vmatprep.subr.mxu0 0.0
      %v2801 = vand.u32 %v2065, 4294901760
      %2802 = vmatpush1.msra.mxu0 %v2801
      %2803 = vmatprep.subr.mxu0 0.0
      %v2804 = vand.u32 %v2064, 4294901760
      %2805 = vmatpush1.msra.mxu0 %v2804
      %2806 = vmatprep.subr.mxu0 0.0
      %v2807 = vand.u32 %v2063, 4294901760
      %2808 = vmatpush1.msra.mxu0 %v2807
      %2809 = vmatprep.subr.mxu0 0.0
      %v2810 = vand.u32 %v2062, 4294901760
      %2811 = vmatpush1.msra.mxu0 %v2810
      %2812 = vmatprep.subr.mxu0 0.0
      %v2813 = vand.u32 %v2061, 4294901760
      %2814 = vmatpush1.msra.mxu0 %v2813
      %2815 = vmatprep.subr.mxu0 0.0
      %v2816 = vand.u32 %v2060, 4294901760
      %2817 = vmatpush1.msra.mxu0 %v2816
      %2818 = vmatprep.subr.mxu0 0.0
      %v2819 = vand.u32 %v2059, 4294901760
      %2820 = vmatpush1.msra.mxu0 %v2819
      %2821 = vmatprep.subr.mxu0 0.0
      %v2822 = vand.u32 %v2058, 4294901760
      %2823 = vmatpush1.msra.mxu0 %v2822
      %2824 = vmatprep.subr.mxu0 0.0
      %2825 = vmatpush2.msra.mxu0 0.0
      %2826 = vmatprep.subr.mxu0 0.0
      %2827 = vmatpush2.msra.mxu0 0.0
      %2828 = vmatprep.subr.mxu0 0.0
      %2829 = vmatpush2.msra.mxu0 0.0
      %2830 = vmatprep.subr.mxu0 0.0
      %2831 = vmatpush2.msra.mxu0 0.0
      %2832 = vmatprep.subr.mxu0 0.0
      %2833 = vmatpush2.msra.mxu0 0.0
      %2834 = vmatprep.subr.mxu0 0.0
      %v2835 = vand.u32 %v2084, 4294901760
      %2836 = vmatpush2.msra.mxu0 %v2835
      %2837 = vmatprep.subr.mxu0 0.0
      %v2838 = vand.u32 %v2083, 4294901760
      %2839 = vmatpush2.msra.mxu0 %v2838
      %2840 = vmatprep.subr.mxu0 0.0
      %v2841 = vand.u32 %v2082, 4294901760
      %2842 = vmatpush2.msra.mxu0 %v2841
      %2843 = vmatprep.subr.mxu0 0.0
      %v2844 = vand.u32 %v2081, 4294901760
      %2845 = vmatpush2.msra.mxu0 %v2844
      %2846 = vmatprep.subr.mxu0 0.0
      %v2847 = vand.u32 %v2080, 4294901760
      %2848 = vmatpush2.msra.mxu0 %v2847
      %2849 = vmatprep.subr.mxu0 0.0
      %v2850 = vand.u32 %v2079, 4294901760
      %2851 = vmatpush2.msra.mxu0 %v2850
      %2852 = vmatprep.subr.mxu0 0.0
      %v2853 = vand.u32 %v2078, 4294901760
      %2854 = vmatpush2.msra.mxu0 %v2853
      %2855 = vmatprep.subr.mxu0 0.0
      %v2856 = vand.u32 %v2077, 4294901760
      %2857 = vmatpush2.msra.mxu0 %v2856
      %2858 = vmatprep.subr.mxu0 0.0
      %v2859 = vand.u32 %v2076, 4294901760
      %2860 = vmatpush2.msra.mxu0 %v2859
      %2861 = vmatprep.subr.mxu0 0.0
      %v2862 = vand.u32 %v2075, 4294901760
      %2863 = vmatpush2.msra.mxu0 %v2862
      %2864 = vmatprep.subr.mxu0 0.0
      %v2865 = vand.u32 %v2074, 4294901760
      %2866 = vmatpush2.msra.mxu0 %v2865
      %v2867 = vand.u32 %v2094, 4294901760
      %v2868 = vsub.f32 %v2094, %v2867
      %v2869 = vand.u32 %v2868, 4294901760
      %2870 = vmatprep.mubr.f32.mxu0 %v2869
      %v2871 = vand.u32 %v2025, 4294901760
      %v2872 = vsub.f32 %v2025, %v2871
      %v2873 = vand.u32 %v2872, 4294901760
      %2874 = vmatmul.mubr.f32.gmra.mxu0 %v2873
      %v2875 = vpop.f32.mrf.mxu0
      %v2876 = vadd.f32 %v2710, %v2875
      %v2877 = vpop.f32.mrf.mxu0
      %v2878 = vand.u32 %v2097, 4294901760
      %v2879 = vsub.f32 %v2097, %v2878
      %v2880 = vand.u32 %v2879, 4294901760
      %2881 = vmatprep.mubr.f32.mxu0 %v2880
      %v2882 = vand.u32 %v2026, 4294901760
      %v2883 = vsub.f32 %v2026, %v2882
      %v2884 = vand.u32 %v2883, 4294901760
      %2885 = vmatmul.mubr.f32.gmra.mxu0 %v2884
      %v2886 = vpop.f32.mrf.mxu0
      %v2887 = vadd.f32 %v2719, %v2886
      %v2888 = vpop.f32.mrf.mxu0
      %v2889 = vand.u32 %v2100, 4294901760
      %v2890 = vsub.f32 %v2100, %v2889
      %v2891 = vand.u32 %v2890, 4294901760
      %2892 = vmatprep.mubr.f32.mxu0 %v2891
      %v2893 = vand.u32 %v2027, 4294901760
      %v2894 = vsub.f32 %v2027, %v2893
      %v2895 = vand.u32 %v2894, 4294901760
      %2896 = vmatmul.mubr.f32.gmra.mxu0 %v2895
      %v2897 = vpop.f32.mrf.mxu0
      %v2898 = vadd.f32 %v2728, %v2897
      %v2899 = vpop.f32.mrf.mxu0
      %v2900 = vand.u32 %v2103, 4294901760
      %v2901 = vsub.f32 %v2103, %v2900
      %v2902 = vand.u32 %v2901, 4294901760
      %2903 = vmatprep.mubr.f32.mxu0 %v2902
      %v2904 = vand.u32 %v2028, 4294901760
      %v2905 = vsub.f32 %v2028, %v2904
      %v2906 = vand.u32 %v2905, 4294901760
      %2907 = vmatmul.mubr.f32.gmra.mxu0 %v2906
      %v2908 = vpop.f32.mrf.mxu0
      %v2909 = vadd.f32 %v2737, %v2908
      %v2910 = vpop.f32.mrf.mxu0
      %v2911 = vand.u32 %v2106, 4294901760
      %v2912 = vsub.f32 %v2106, %v2911
      %v2913 = vand.u32 %v2912, 4294901760
      %2914 = vmatprep.mubr.f32.mxu0 %v2913
      %v2915 = vand.u32 %v2029, 4294901760
      %v2916 = vsub.f32 %v2029, %v2915
      %v2917 = vand.u32 %v2916, 4294901760
      %2918 = vmatmul.mubr.f32.gmra.mxu0 %v2917
      %v2919 = vpop.f32.mrf.mxu0
      %v2920 = vadd.f32 %v2746, %v2919
      %v2921 = vpop.f32.mrf.mxu0
      %v2922 = vand.u32 %v2109, 4294901760
      %v2923 = vsub.f32 %v2109, %v2922
      %v2924 = vand.u32 %v2923, 4294901760
      %2925 = vmatprep.mubr.f32.mxu0 %v2924
      %v2926 = vand.u32 %v2030, 4294901760
      %v2927 = vsub.f32 %v2030, %v2926
      %v2928 = vand.u32 %v2927, 4294901760
      %2929 = vmatmul.mubr.f32.gmra.mxu0 %v2928
      %v2930 = vpop.f32.mrf.mxu0
      %v2931 = vadd.f32 %v2755, %v2930
      %v2932 = vpop.f32.mrf.mxu0
      %v2933 = vand.u32 %v2112, 4294901760
      %v2934 = vsub.f32 %v2112, %v2933
      %v2935 = vand.u32 %v2934, 4294901760
      %2936 = vmatprep.mubr.f32.mxu0 %v2935
      %v2937 = vand.u32 %v2031, 4294901760
      %v2938 = vsub.f32 %v2031, %v2937
      %v2939 = vand.u32 %v2938, 4294901760
      %2940 = vmatmul.mubr.f32.gmra.mxu0 %v2939
      %v2941 = vpop.f32.mrf.mxu0
      %v2942 = vadd.f32 %v2764, %v2941
      %v2943 = vpop.f32.mrf.mxu0
      %v2944 = vand.u32 %v2115, 4294901760
      %v2945 = vsub.f32 %v2115, %v2944
      %v2946 = vand.u32 %v2945, 4294901760
      %2947 = vmatprep.mubr.f32.mxu0 %v2946
      %v2948 = vand.u32 %v2032, 4294901760
      %v2949 = vsub.f32 %v2032, %v2948
      %v2950 = vand.u32 %v2949, 4294901760
      %2951 = vmatmul.mubr.f32.gmra.mxu0 %v2950
      %v2952 = vpop.f32.mrf.mxu0
      %v2953 = vadd.f32 %v2773, %v2952
      %v2954 = vpop.f32.mrf.mxu0
      %2955 = vdwg.mxu0
      %2956 = vmatprep.subr.mxu0 0.0
      %v2957 = vand.u32 %v2073, 4294901760
      %v2958 = vsub.f32 %v2073, %v2957
      %v2959 = vand.u32 %v2958, 4294901760
      %2960 = vmatpush1.msra.mxu0 %v2959
      %2961 = vmatprep.subr.mxu0 0.0
      %v2962 = vand.u32 %v2072, 4294901760
      %v2963 = vsub.f32 %v2072, %v2962
      %v2964 = vand.u32 %v2963, 4294901760
      %2965 = vmatpush1.msra.mxu0 %v2964
      %2966 = vmatprep.subr.mxu0 0.0
      %v2967 = vand.u32 %v2071, 4294901760
      %v2968 = vsub.f32 %v2071, %v2967
      %v2969 = vand.u32 %v2968, 4294901760
      %2970 = vmatpush1.msra.mxu0 %v2969
      %2971 = vmatprep.subr.mxu0 0.0
      %v2972 = vand.u32 %v2070, 4294901760
      %v2973 = vsub.f32 %v2070, %v2972
      %v2974 = vand.u32 %v2973, 4294901760
      %2975 = vmatpush1.msra.mxu0 %v2974
      %2976 = vmatprep.subr.mxu0 0.0
      %v2977 = vand.u32 %v2069, 4294901760
      %v2978 = vsub.f32 %v2069, %v2977
      %v2979 = vand.u32 %v2978, 4294901760
      %2980 = vmatpush1.msra.mxu0 %v2979
      %2981 = vmatprep.subr.mxu0 0.0
      %v2982 = vand.u32 %v2068, 4294901760
      %v2983 = vsub.f32 %v2068, %v2982
      %v2984 = vand.u32 %v2983, 4294901760
      %2985 = vmatpush1.msra.mxu0 %v2984
      %2986 = vmatprep.subr.mxu0 0.0
      %v2987 = vand.u32 %v2067, 4294901760
      %v2988 = vsub.f32 %v2067, %v2987
      %v2989 = vand.u32 %v2988, 4294901760
      %2990 = vmatpush1.msra.mxu0 %v2989
      %2991 = vmatprep.subr.mxu0 0.0
      %v2992 = vand.u32 %v2066, 4294901760
      %v2993 = vsub.f32 %v2066, %v2992
      %v2994 = vand.u32 %v2993, 4294901760
      %2995 = vmatpush1.msra.mxu0 %v2994
      %2996 = vmatprep.subr.mxu0 0.0
      %v2997 = vand.u32 %v2065, 4294901760
      %v2998 = vsub.f32 %v2065, %v2997
      %v2999 = vand.u32 %v2998, 4294901760
      %3000 = vmatpush1.msra.mxu0 %v2999
      %3001 = vmatprep.subr.mxu0 0.0
      %v3002 = vand.u32 %v2064, 4294901760
      %v3003 = vsub.f32 %v2064, %v3002
      %v3004 = vand.u32 %v3003, 4294901760
      %3005 = vmatpush1.msra.mxu0 %v3004
      %3006 = vmatprep.subr.mxu0 0.0
      %v3007 = vand.u32 %v2063, 4294901760
      %v3008 = vsub.f32 %v2063, %v3007
      %v3009 = vand.u32 %v3008, 4294901760
      %3010 = vmatpush1.msra.mxu0 %v3009
      %3011 = vmatprep.subr.mxu0 0.0
      %v3012 = vand.u32 %v2062, 4294901760
      %v3013 = vsub.f32 %v2062, %v3012
      %v3014 = vand.u32 %v3013, 4294901760
      %3015 = vmatpush1.msra.mxu0 %v3014
      %3016 = vmatprep.subr.mxu0 0.0
      %v3017 = vand.u32 %v2061, 4294901760
      %v3018 = vsub.f32 %v2061, %v3017
      %v3019 = vand.u32 %v3018, 4294901760
      %3020 = vmatpush1.msra.mxu0 %v3019
      %3021 = vmatprep.subr.mxu0 0.0
      %v3022 = vand.u32 %v2060, 4294901760
      %v3023 = vsub.f32 %v2060, %v3022
      %v3024 = vand.u32 %v3023, 4294901760
      %3025 = vmatpush1.msra.mxu0 %v3024
      %3026 = vmatprep.subr.mxu0 0.0
      %v3027 = vand.u32 %v2059, 4294901760
      %v3028 = vsub.f32 %v2059, %v3027
      %v3029 = vand.u32 %v3028, 4294901760
      %3030 = vmatpush1.msra.mxu0 %v3029
      %3031 = vmatprep.subr.mxu0 0.0
      %v3032 = vand.u32 %v2058, 4294901760
      %v3033 = vsub.f32 %v2058, %v3032
      %v3034 = vand.u32 %v3033, 4294901760
      %3035 = vmatpush1.msra.mxu0 %v3034
      %3036 = vmatprep.subr.mxu0 0.0
      %3037 = vmatpush2.msra.mxu0 0.0
      %3038 = vmatprep.subr.mxu0 0.0
      %3039 = vmatpush2.msra.mxu0 0.0
      %3040 = vmatprep.subr.mxu0 0.0
      %3041 = vmatpush2.msra.mxu0 0.0
      %3042 = vmatprep.subr.mxu0 0.0
      %3043 = vmatpush2.msra.mxu0 0.0
      %3044 = vmatprep.subr.mxu0 0.0
      %3045 = vmatpush2.msra.mxu0 0.0
      %3046 = vmatprep.subr.mxu0 0.0
      %v3047 = vand.u32 %v2084, 4294901760
      %v3048 = vsub.f32 %v2084, %v3047
      %v3049 = vand.u32 %v3048, 4294901760
      %3050 = vmatpush2.msra.mxu0 %v3049
      %3051 = vmatprep.subr.mxu0 0.0
      %v3052 = vand.u32 %v2083, 4294901760
      %v3053 = vsub.f32 %v2083, %v3052
      %v3054 = vand.u32 %v3053, 4294901760
      %3055 = vmatpush2.msra.mxu0 %v3054
      %3056 = vmatprep.subr.mxu0 0.0
      %v3057 = vand.u32 %v2082, 4294901760
      %v3058 = vsub.f32 %v2082, %v3057
      %v3059 = vand.u32 %v3058, 4294901760
      %3060 = vmatpush2.msra.mxu0 %v3059
      %3061 = vmatprep.subr.mxu0 0.0
      %v3062 = vand.u32 %v2081, 4294901760
      %v3063 = vsub.f32 %v2081, %v3062
      %v3064 = vand.u32 %v3063, 4294901760
      %3065 = vmatpush2.msra.mxu0 %v3064
      %3066 = vmatprep.subr.mxu0 0.0
      %v3067 = vand.u32 %v2080, 4294901760
      %v3068 = vsub.f32 %v2080, %v3067
      %v3069 = vand.u32 %v3068, 4294901760
      %3070 = vmatpush2.msra.mxu0 %v3069
      %3071 = vmatprep.subr.mxu0 0.0
      %v3072 = vand.u32 %v2079, 4294901760
      %v3073 = vsub.f32 %v2079, %v3072
      %v3074 = vand.u32 %v3073, 4294901760
      %3075 = vmatpush2.msra.mxu0 %v3074
      %3076 = vmatprep.subr.mxu0 0.0
      %v3077 = vand.u32 %v2078, 4294901760
      %v3078 = vsub.f32 %v2078, %v3077
      %v3079 = vand.u32 %v3078, 4294901760
      %3080 = vmatpush2.msra.mxu0 %v3079
      %3081 = vmatprep.subr.mxu0 0.0
      %v3082 = vand.u32 %v2077, 4294901760
      %v3083 = vsub.f32 %v2077, %v3082
      %v3084 = vand.u32 %v3083, 4294901760
      %3085 = vmatpush2.msra.mxu0 %v3084
      %3086 = vmatprep.subr.mxu0 0.0
      %v3087 = vand.u32 %v2076, 4294901760
      %v3088 = vsub.f32 %v2076, %v3087
      %v3089 = vand.u32 %v3088, 4294901760
      %3090 = vmatpush2.msra.mxu0 %v3089
      %3091 = vmatprep.subr.mxu0 0.0
      %v3092 = vand.u32 %v2075, 4294901760
      %v3093 = vsub.f32 %v2075, %v3092
      %v3094 = vand.u32 %v3093, 4294901760
      %3095 = vmatpush2.msra.mxu0 %v3094
      %3096 = vmatprep.subr.mxu0 0.0
      %v3097 = vand.u32 %v2074, 4294901760
      %v3098 = vsub.f32 %v2074, %v3097
      %v3099 = vand.u32 %v3098, 4294901760
      %3100 = vmatpush2.msra.mxu0 %v3099
      %v3101 = vand.u32 %v2094, 4294901760
      %3102 = vmatprep.mubr.f32.mxu0 %v3101
      %v3103 = vand.u32 %v2025, 4294901760
      %3104 = vmatmul.mubr.f32.gmra.mxu0 %v3103
      %v3105 = vpop.f32.mrf.mxu0
      %v3106 = vadd.f32 %v2876, %v3105
      %v3107 = vpop.f32.mrf.mxu0
      %v3108 = vand.u32 %v2097, 4294901760
      %3109 = vmatprep.mubr.f32.mxu0 %v3108
      %v3110 = vand.u32 %v2026, 4294901760
      %3111 = vmatmul.mubr.f32.gmra.mxu0 %v3110
      %v3112 = vpop.f32.mrf.mxu0
      %v3113 = vadd.f32 %v2887, %v3112
      %v3114 = vpop.f32.mrf.mxu0
      %v3115 = vand.u32 %v2100, 4294901760
      %3116 = vmatprep.mubr.f32.mxu0 %v3115
      %v3117 = vand.u32 %v2027, 4294901760
      %3118 = vmatmul.mubr.f32.gmra.mxu0 %v3117
      %v3119 = vpop.f32.mrf.mxu0
      %v3120 = vadd.f32 %v2898, %v3119
      %v3121 = vpop.f32.mrf.mxu0
      %v3122 = vand.u32 %v2103, 4294901760
      %3123 = vmatprep.mubr.f32.mxu0 %v3122
      %v3124 = vand.u32 %v2028, 4294901760
      %3125 = vmatmul.mubr.f32.gmra.mxu0 %v3124
      %v3126 = vpop.f32.mrf.mxu0
      %v3127 = vadd.f32 %v2909, %v3126
      %v3128 = vpop.f32.mrf.mxu0
      %v3129 = vand.u32 %v2106, 4294901760
      %3130 = vmatprep.mubr.f32.mxu0 %v3129
      %v3131 = vand.u32 %v2029, 4294901760
      %3132 = vmatmul.mubr.f32.gmra.mxu0 %v3131
      %v3133 = vpop.f32.mrf.mxu0
      %v3134 = vadd.f32 %v2920, %v3133
      %v3135 = vpop.f32.mrf.mxu0
      %v3136 = vand.u32 %v2109, 4294901760
      %3137 = vmatprep.mubr.f32.mxu0 %v3136
      %v3138 = vand.u32 %v2030, 4294901760
      %3139 = vmatmul.mubr.f32.gmra.mxu0 %v3138
      %v3140 = vpop.f32.mrf.mxu0
      %v3141 = vadd.f32 %v2931, %v3140
      %v3142 = vpop.f32.mrf.mxu0
      %v3143 = vand.u32 %v2112, 4294901760
      %3144 = vmatprep.mubr.f32.mxu0 %v3143
      %v3145 = vand.u32 %v2031, 4294901760
      %3146 = vmatmul.mubr.f32.gmra.mxu0 %v3145
      %v3147 = vpop.f32.mrf.mxu0
      %v3148 = vadd.f32 %v2942, %v3147
      %v3149 = vpop.f32.mrf.mxu0
      %v3150 = vand.u32 %v2115, 4294901760
      %3151 = vmatprep.mubr.f32.mxu0 %v3150
      %v3152 = vand.u32 %v2032, 4294901760
      %3153 = vmatmul.mubr.f32.gmra.mxu0 %v3152
      %v3154 = vpop.f32.mrf.mxu0
      %v3155 = vadd.f32 %v2953, %v3154
      %v3156 = vpop.f32.mrf.mxu0
      %3157 = vdwg.mxu0
      %3158 = vmatprep.subr.mxu0 0.0
      %v3159 = vand.u32 %v2073, 4294901760
      %3160 = vmatpush1.msra.mxu0 %v3159
      %3161 = vmatprep.subr.mxu0 0.0
      %v3162 = vand.u32 %v2072, 4294901760
      %3163 = vmatpush1.msra.mxu0 %v3162
      %3164 = vmatprep.subr.mxu0 0.0
      %v3165 = vand.u32 %v2071, 4294901760
      %3166 = vmatpush1.msra.mxu0 %v3165
      %3167 = vmatprep.subr.mxu0 0.0
      %v3168 = vand.u32 %v2070, 4294901760
      %3169 = vmatpush1.msra.mxu0 %v3168
      %3170 = vmatprep.subr.mxu0 0.0
      %v3171 = vand.u32 %v2069, 4294901760
      %3172 = vmatpush1.msra.mxu0 %v3171
      %3173 = vmatprep.subr.mxu0 0.0
      %v3174 = vand.u32 %v2068, 4294901760
      %3175 = vmatpush1.msra.mxu0 %v3174
      %3176 = vmatprep.subr.mxu0 0.0
      %v3177 = vand.u32 %v2067, 4294901760
      %3178 = vmatpush1.msra.mxu0 %v3177
      %3179 = vmatprep.subr.mxu0 0.0
      %v3180 = vand.u32 %v2066, 4294901760
      %3181 = vmatpush1.msra.mxu0 %v3180
      %3182 = vmatprep.subr.mxu0 0.0
      %v3183 = vand.u32 %v2065, 4294901760
      %3184 = vmatpush1.msra.mxu0 %v3183
      %3185 = vmatprep.subr.mxu0 0.0
      %v3186 = vand.u32 %v2064, 4294901760
      %3187 = vmatpush1.msra.mxu0 %v3186
      %3188 = vmatprep.subr.mxu0 0.0
      %v3189 = vand.u32 %v2063, 4294901760
      %3190 = vmatpush1.msra.mxu0 %v3189
      %3191 = vmatprep.subr.mxu0 0.0
      %v3192 = vand.u32 %v2062, 4294901760
      %3193 = vmatpush1.msra.mxu0 %v3192
      %3194 = vmatprep.subr.mxu0 0.0
      %v3195 = vand.u32 %v2061, 4294901760
      %3196 = vmatpush1.msra.mxu0 %v3195
      %3197 = vmatprep.subr.mxu0 0.0
      %v3198 = vand.u32 %v2060, 4294901760
      %3199 = vmatpush1.msra.mxu0 %v3198
      %3200 = vmatprep.subr.mxu0 0.0
      %v3201 = vand.u32 %v2059, 4294901760
      %3202 = vmatpush1.msra.mxu0 %v3201
      %3203 = vmatprep.subr.mxu0 0.0
      %v3204 = vand.u32 %v2058, 4294901760
      %3205 = vmatpush1.msra.mxu0 %v3204
      %3206 = vmatprep.subr.mxu0 0.0
      %3207 = vmatpush2.msra.mxu0 0.0
      %3208 = vmatprep.subr.mxu0 0.0
      %3209 = vmatpush2.msra.mxu0 0.0
      %3210 = vmatprep.subr.mxu0 0.0
      %3211 = vmatpush2.msra.mxu0 0.0
      %3212 = vmatprep.subr.mxu0 0.0
      %3213 = vmatpush2.msra.mxu0 0.0
      %3214 = vmatprep.subr.mxu0 0.0
      %3215 = vmatpush2.msra.mxu0 0.0
      %3216 = vmatprep.subr.mxu0 0.0
      %v3217 = vand.u32 %v2084, 4294901760
      %3218 = vmatpush2.msra.mxu0 %v3217
      %3219 = vmatprep.subr.mxu0 0.0
      %v3220 = vand.u32 %v2083, 4294901760
      %3221 = vmatpush2.msra.mxu0 %v3220
      %3222 = vmatprep.subr.mxu0 0.0
      %v3223 = vand.u32 %v2082, 4294901760
      %3224 = vmatpush2.msra.mxu0 %v3223
      %3225 = vmatprep.subr.mxu0 0.0
      %v3226 = vand.u32 %v2081, 4294901760
      %3227 = vmatpush2.msra.mxu0 %v3226
      %3228 = vmatprep.subr.mxu0 0.0
      %v3229 = vand.u32 %v2080, 4294901760
      %3230 = vmatpush2.msra.mxu0 %v3229
      %3231 = vmatprep.subr.mxu0 0.0
      %v3232 = vand.u32 %v2079, 4294901760
      %3233 = vmatpush2.msra.mxu0 %v3232
      %3234 = vmatprep.subr.mxu0 0.0
      %v3235 = vand.u32 %v2078, 4294901760
      %3236 = vmatpush2.msra.mxu0 %v3235
      %3237 = vmatprep.subr.mxu0 0.0
      %v3238 = vand.u32 %v2077, 4294901760
      %3239 = vmatpush2.msra.mxu0 %v3238
      %3240 = vmatprep.subr.mxu0 0.0
      %v3241 = vand.u32 %v2076, 4294901760
      %3242 = vmatpush2.msra.mxu0 %v3241
      %3243 = vmatprep.subr.mxu0 0.0
      %v3244 = vand.u32 %v2075, 4294901760
      %3245 = vmatpush2.msra.mxu0 %v3244
      %3246 = vmatprep.subr.mxu0 0.0
      %v3247 = vand.u32 %v2074, 4294901760
      %3248 = vmatpush2.msra.mxu0 %v3247
      %v3249 = vand.u32 %v2094, 4294901760
      %3250 = vmatprep.mubr.f32.mxu0 %v3249
      %v3251 = vand.u32 %v2025, 4294901760
      %3252 = vmatmul.mubr.f32.gmra.mxu0 %v3251
      %v3253 = vpop.f32.mrf.mxu0
      %v3254 = vadd.f32 %v3106, %v3253
      %v3255 = vpop.f32.mrf.mxu0
      %v3256 = vand.u32 %v2097, 4294901760
      %3257 = vmatprep.mubr.f32.mxu0 %v3256
      %v3258 = vand.u32 %v2026, 4294901760
      %3259 = vmatmul.mubr.f32.gmra.mxu0 %v3258
      %v3260 = vpop.f32.mrf.mxu0
      %v3261 = vadd.f32 %v3113, %v3260
      %v3262 = vpop.f32.mrf.mxu0
      %v3263 = vand.u32 %v2100, 4294901760
      %3264 = vmatprep.mubr.f32.mxu0 %v3263
      %v3265 = vand.u32 %v2027, 4294901760
      %3266 = vmatmul.mubr.f32.gmra.mxu0 %v3265
      %v3267 = vpop.f32.mrf.mxu0
      %v3268 = vadd.f32 %v3120, %v3267
      %v3269 = vpop.f32.mrf.mxu0
      %v3270 = vand.u32 %v2103, 4294901760
      %3271 = vmatprep.mubr.f32.mxu0 %v3270
      %v3272 = vand.u32 %v2028, 4294901760
      %3273 = vmatmul.mubr.f32.gmra.mxu0 %v3272
      %v3274 = vpop.f32.mrf.mxu0
      %v3275 = vadd.f32 %v3127, %v3274
      %v3276 = vpop.f32.mrf.mxu0
      %v3277 = vand.u32 %v2106, 4294901760
      %3278 = vmatprep.mubr.f32.mxu0 %v3277
      %v3279 = vand.u32 %v2029, 4294901760
      %3280 = vmatmul.mubr.f32.gmra.mxu0 %v3279
      %v3281 = vpop.f32.mrf.mxu0
      %v3282 = vadd.f32 %v3134, %v3281
      %v3283 = vpop.f32.mrf.mxu0
      %v3284 = vand.u32 %v2109, 4294901760
      %3285 = vmatprep.mubr.f32.mxu0 %v3284
      %v3286 = vand.u32 %v2030, 4294901760
      %3287 = vmatmul.mubr.f32.gmra.mxu0 %v3286
      %v3288 = vpop.f32.mrf.mxu0
      %v3289 = vadd.f32 %v3141, %v3288
      %v3290 = vpop.f32.mrf.mxu0
      %v3291 = vand.u32 %v2112, 4294901760
      %3292 = vmatprep.mubr.f32.mxu0 %v3291
      %v3293 = vand.u32 %v2031, 4294901760
      %3294 = vmatmul.mubr.f32.gmra.mxu0 %v3293
      %v3295 = vpop.f32.mrf.mxu0
      %v3296 = vadd.f32 %v3148, %v3295
      %v3297 = vpop.f32.mrf.mxu0
      %v3298 = vand.u32 %v2115, 4294901760
      %3299 = vmatprep.mubr.f32.mxu0 %v3298
      %v3300 = vand.u32 %v2032, 4294901760
      %3301 = vmatmul.mubr.f32.gmra.mxu0 %v3300
      %v3302 = vpop.f32.mrf.mxu0
      %v3303 = vadd.f32 %v3155, %v3302
      %v3304 = vpop.f32.mrf.mxu0
      %3305 = vdwg.mxu0
      %v3306 = vmax.f32 %v3254, 0.0
      %v3307 = vmax.f32 %v3261, 0.0
      %v3308 = vmax.f32 %v3268, 0.0
      %v3309 = vmax.f32 %v3275, 0.0
      %v3310 = vmax.f32 %v3282, 0.0
      %v3311 = vmax.f32 %v3289, 0.0
      %v3312 = vmax.f32 %v3296, 0.0
      %v3313 = vmax.f32 %v3303, 0.0
      %3322 = vrot.lane.b32.xlu0 %v3306, 112
      %v3323 = vpop.permute.xlu0 %3322
      %3324 = vrot.lane.b32.xlu0 %v3307, 112
      %v3325 = vpop.permute.xlu0 %3324
      %3326 = vrot.lane.b32.xlu0 %v3308, 112
      %v3327 = vpop.permute.xlu0 %3326
      %3328 = vrot.lane.b32.xlu0 %v3309, 112
      %v3329 = vpop.permute.xlu0 %3328
      %3330 = vrot.lane.b32.xlu0 %v3310, 112
      %v3331 = vpop.permute.xlu0 %3330
      %3332 = vrot.lane.b32.xlu0 %v3311, 112
      %v3333 = vpop.permute.xlu0 %3332
      %3334 = vrot.lane.b32.xlu0 %v3312, 112
      %v3335 = vpop.permute.xlu0 %3334
      %3336 = vrot.lane.b32.xlu0 %v3313, 112
      %v3337 = vpop.permute.xlu0 %3336
      %v3346 = vmax.f32 %v3306, %v3323
      %v3347 = vmax.f32 %v3307, %v3325
      %v3348 = vmax.f32 %v3308, %v3327
      %v3349 = vmax.f32 %v3309, %v3329
      %v3350 = vmax.f32 %v3310, %v3331
      %v3351 = vmax.f32 %v3311, %v3333
      %v3352 = vmax.f32 %v3312, %v3335
      %v3353 = vmax.f32 %v3313, %v3337
      %3362 = vrot.lane.b32.xlu0 %v3346, 96
      %v3363 = vpop.permute.xlu0 %3362
      %3364 = vrot.lane.b32.xlu0 %v3347, 96
      %v3365 = vpop.permute.xlu0 %3364
      %3366 = vrot.lane.b32.xlu0 %v3348, 96
      %v3367 = vpop.permute.xlu0 %3366
      %3368 = vrot.lane.b32.xlu0 %v3349, 96
      %v3369 = vpop.permute.xlu0 %3368
      %3370 = vrot.lane.b32.xlu0 %v3350, 96
      %v3371 = vpop.permute.xlu0 %3370
      %3372 = vrot.lane.b32.xlu0 %v3351, 96
      %v3373 = vpop.permute.xlu0 %3372
      %3374 = vrot.lane.b32.xlu0 %v3352, 96
      %v3375 = vpop.permute.xlu0 %3374
      %3376 = vrot.lane.b32.xlu0 %v3353, 96
      %v3377 = vpop.permute.xlu0 %3376
      %v3386 = vmax.f32 %v3346, %v3363
      %v3387 = vmax.f32 %v3347, %v3365
      %v3388 = vmax.f32 %v3348, %v3367
      %v3389 = vmax.f32 %v3349, %v3369
      %v3390 = vmax.f32 %v3350, %v3371
      %v3391 = vmax.f32 %v3351, %v3373
      %v3392 = vmax.f32 %v3352, %v3375
      %v3393 = vmax.f32 %v3353, %v3377
      %3394 = vst.msk [vmem:[%s226] sm:$0xff] %vm354, %v3386
      %3395 = vst.msk [vmem:[%s226 + $0x8] sm:$0xff] %vm354, %v3387
      %3396 = vst.msk [vmem:[%s226 + $0x10] sm:$0xff] %vm354, %v3388
      %3397 = vst.msk [vmem:[%s226 + $0x18] sm:$0xff] %vm354, %v3389
      %3398 = vst.msk [vmem:[%s226 + $0x20] sm:$0xff] %vm354, %v3390
      %3399 = vst.msk [vmem:[%s226 + $0x28] sm:$0xff] %vm354, %v3391
      %3400 = vst.msk [vmem:[%s226 + $0x30] sm:$0xff] %vm354, %v3392
      %3401 = vst.msk [vmem:[%s226 + $0x38] sm:$0xff] %vm354, %v3393
      %s3402 = smul.u32 8, %s16
      %p3403 = scmp.lt.s32.totalorder %s3402, 15
      %s3404 = scalar_select %p3403, %s3402, 15
      %s3405 = smul.addr %s3404, 8
      %s3406 = scalar_lea.vmem %s5, %s3405
      // Predicated region
      $region41: #{lenet5_forward.2} parent=39 // pred_check
        %p3407 = pneg %p144
      $region42: #{lenet5_forward.2} parent=39 // pred_check_branch
        %3409 = sbr.rel (%p3407) target = $region44
      $region43: #{lenet5_forward.2} parent=39 // pred_region
        %s3410 = smul.u32 8, %s16
      $region44: #{lenet5_forward.2} parent=39 // pred_fallthru
        _
    $region40: #{lenet5_forward.2} parent=5 // pred_fallthru
      _
    %p3411 = scmp.le.s32.totalorder 2, %s11
    // Predicated region
    $region45: #{lenet5_forward.2} parent=5 // pred_check
      %p3412 = pneg %p3411
    $region46: #{lenet5_forward.2} parent=5 // pred_check_branch
      %3414 = sbr.rel (%p3412) target = $region48
    $region47: #{lenet5_forward.2} parent=5 // pred_region
      %s3415 = ssub.s32 %s11, 2
      // Predicated region
      $region49: #{lenet5_forward.2} parent=47 // pred_check
        %p3416 = pneg %p150
      $region50: #{lenet5_forward.2} parent=47 // pred_check_branch
        %3418 = sbr.rel (%p3416) target = $region52
      $region51: #{lenet5_forward.2} parent=47 // pred_region
        %s3419 = smul.u32 8, %s17
        %p3420 = scmp.lt.s32.totalorder %s3419, 15
        %s3421 = scalar_select %p3420, %s3419, 15
        %s3422 = smul.addr %s3421, 8
        %s3423 = scalar_lea.vmem %s5, %s3422
      $region52: #{lenet5_forward.2} parent=47 // pred_fallthru
        _
    $region48: #{lenet5_forward.2} parent=5 // pred_fallthru
      _
  $region6: #{lenet5_forward.2} parent=0 // loop_footer
    %s15 = sadd.s32 1, %s11
  $region7: #{lenet5_forward.2} parent=0 // loop_footer_branch
    %10 = sbr.rel target = $region3
  $region8: #{lenet5_forward.2} parent=0 // loop_exit
    _

// kernel: lenet5_forward.3
$region0: #{lenet5_forward.3}
  #allocation0 [shape = 'u32[]', space=smem, size = 0x4, offset = 0x4, fixed_abs, tag = 'smem constant byte address 0x4 - core index']
  #allocation1 [shape = 'u32[144,128]{1,0:T(1,128)}', space=vmem, size = 0x12000, scoped, tag = 'internal scratch']
  %s0 = inlined_call_operand.vmem [shape: f32[2,1024], index: 0, kind: input, shape index: {}]
  %s1 = inlined_call_operand.vmem [shape: f32[1024,128], index: 1, kind: input, shape index: {}]
  %s2 = inlined_call_operand.vmem [shape: f32[1,128], index: 2, kind: input, shape index: {}]
  %s3 = inlined_call_operand.vmem [shape: f32[128,128], index: 3, kind: input, shape index: {}]
  %s4 = inlined_call_operand.vmem [shape: f32[1,128], index: 4, kind: input, shape index: {}]
  %s5 = inlined_call_operand.vmem [shape: f32[128,128], index: 5, kind: input, shape index: {}]
  %s6 = inlined_call_operand.vmem [shape: f32[1,128], index: 6, kind: input, shape index: {}]
  %s7 = inlined_call_operand.hbm [shape: f32[2,128], index: 7, kind: output, shape index: {}]
  %s8 = sld [smem:[#allocation0]]
  $region38: #{lenet5_forward.3} parent=0
    _
  %s10 = ssub.s32 1, %s8
  %s11 = scalar_select 0, %s10, %s8
  $region1: #{lenet5_forward.3} parent=0
    #allocation2 [shape = 'u8[1024]{0}', space=vmem, size = 0x400, scoped, tag = 'output window, operand 0, single buffered']
    #allocation3 [shape = 's32[1]{0}', space=sflag, size = 0x4, scoped, tag = 'scoped memory for lenet5_forward.3']
    %12 = vsyncpa [#allocation3], 0
    // Predicated region
    $region2: #{lenet5_forward.3} parent=1 // pred_check
      _
    $region3: #{lenet5_forward.3} parent=1 // pred_check_branch
      %14 = sbr.rel (0) target = $region5
    $region4: #{lenet5_forward.3} parent=1 // pred_region
      _
    $region5: #{lenet5_forward.3} parent=1 // pred_fallthru
      _
    // Predicated region
    $region6: #{lenet5_forward.3} parent=1 // pred_check
      _
    $region7: #{lenet5_forward.3} parent=1 // pred_check_branch
      %16 = sbr.rel (0) target = $region9
    $region8: #{lenet5_forward.3} parent=1 // pred_region
      _
    $region9: #{lenet5_forward.3} parent=1 // pred_fallthru
      _
    // Predicated region
    $region10: #{lenet5_forward.3} parent=1 // pred_check
      _
    $region11: #{lenet5_forward.3} parent=1 // pred_check_branch
      %18 = sbr.rel (0) target = $region13
    $region12: #{lenet5_forward.3} parent=1 // pred_region
      _
    $region13: #{lenet5_forward.3} parent=1 // pred_fallthru
      _
    // Predicated region
    $region14: #{lenet5_forward.3} parent=1 // pred_check
      _
    $region15: #{lenet5_forward.3} parent=1 // pred_check_branch
      %20 = sbr.rel (0) target = $region17
    $region16: #{lenet5_forward.3} parent=1 // pred_region
      _
    $region17: #{lenet5_forward.3} parent=1 // pred_fallthru
      _
    // Predicated region
    $region18: #{lenet5_forward.3} parent=1 // pred_check
      _
    $region19: #{lenet5_forward.3} parent=1 // pred_check_branch
      %22 = sbr.rel (0) target = $region21
    $region20: #{lenet5_forward.3} parent=1 // pred_region
      _
    $region21: #{lenet5_forward.3} parent=1 // pred_fallthru
      _
    // Predicated region
    $region22: #{lenet5_forward.3} parent=1 // pred_check
      _
    $region23: #{lenet5_forward.3} parent=1 // pred_check_branch
      %24 = sbr.rel (0) target = $region25
    $region24: #{lenet5_forward.3} parent=1 // pred_region
      _
    $region25: #{lenet5_forward.3} parent=1 // pred_fallthru
      _
    // Predicated region
    $region26: #{lenet5_forward.3} parent=1 // pred_check
      _
    $region27: #{lenet5_forward.3} parent=1 // pred_check_branch
      %26 = sbr.rel (0) target = $region29
    $region28: #{lenet5_forward.3} parent=1 // pred_region
      _
    $region29: #{lenet5_forward.3} parent=1 // pred_fallthru
      _
    %v27 = vld [vmem:[%s0] sm:$0xff]
    %v28 = vld [vmem:[%s0 + $0x8] sm:$0xff]
    %v29 = vld [vmem:[%s1] sm:$0xff]
    %v30 = vld [vmem:[%s1 + $0x8] sm:$0xff]
    %v31 = vld [vmem:[%s1 + $0x10] sm:$0xff]
    %v32 = vld [vmem:[%s1 + $0x18] sm:$0xff]
    %v33 = vld [vmem:[%s1 + $0x20] sm:$0xff]
    %v34 = vld [vmem:[%s1 + $0x28] sm:$0xff]
    %v35 = vld [vmem:[%s1 + $0x30] sm:$0xff]
    %v36 = vld [vmem:[%s1 + $0x38] sm:$0xff]
    %v37 = vld [vmem:[%s1 + $0x40] sm:$0xff]
    %v38 = vld [vmem:[%s1 + $0x48] sm:$0xff]
    %v39 = vld [vmem:[%s1 + $0x50] sm:$0xff]
    %v40 = vld [vmem:[%s1 + $0x58] sm:$0xff]
    %v41 = vld [vmem:[%s1 + $0x60] sm:$0xff]
    %v42 = vld [vmem:[%s1 + $0x68] sm:$0xff]
    %v43 = vld [vmem:[%s1 + $0x70] sm:$0xff]
    %v44 = vld [vmem:[%s1 + $0x78] sm:$0xff]
    %v45 = vld [vmem:[%s1 + $0x80] sm:$0xff]
    %v46 = vld [vmem:[%s1 + $0x88] sm:$0xff]
    %v47 = vld [vmem:[%s1 + $0x90] sm:$0xff]
    %v48 = vld [vmem:[%s1 + $0x98] sm:$0xff]
    %v49 = vld [vmem:[%s1 + $0xa0] sm:$0xff]
    %v50 = vld [vmem:[%s1 + $0xa8] sm:$0xff]
    %v51 = vld [vmem:[%s1 + $0xb0] sm:$0xff]
    %v52 = vld [vmem:[%s1 + $0xb8] sm:$0xff]
    %v53 = vld [vmem:[%s1 + $0xc0] sm:$0xff]
    %v54 = vld [vmem:[%s1 + $0xc8] sm:$0xff]
    %v55 = vld [vmem:[%s1 + $0xd0] sm:$0xff]
    %v56 = vld [vmem:[%s1 + $0xd8] sm:$0xff]
    %v57 = vld [vmem:[%s1 + $0xe0] sm:$0xff]
    %v58 = vld [vmem:[%s1 + $0xe8] sm:$0xff]
    %v59 = vld [vmem:[%s1 + $0xf0] sm:$0xff]
    %v60 = vld [vmem:[%s1 + $0xf8] sm:$0xff]
    %v61 = vld [vmem:[%s1 + $0x100] sm:$0xff]
    %v62 = vld [vmem:[%s1 + $0x108] sm:$0xff]
    %v63 = vld [vmem:[%s1 + $0x110] sm:$0xff]
    %v64 = vld [vmem:[%s1 + $0x118] sm:$0xff]
    %v65 = vld [vmem:[%s1 + $0x120] sm:$0xff]
    %v66 = vld [vmem:[%s1 + $0x128] sm:$0xff]
    %v67 = vld [vmem:[%s1 + $0x130] sm:$0xff]
    %v68 = vld [vmem:[%s1 + $0x138] sm:$0xff]
    %v69 = vld [vmem:[%s1 + $0x140] sm:$0xff]
    %v70 = vld [vmem:[%s1 + $0x148] sm:$0xff]
    %v71 = vld [vmem:[%s1 + $0x150] sm:$0xff]
    %v72 = vld [vmem:[%s1 + $0x158] sm:$0xff]
    %v73 = vld [vmem:[%s1 + $0x160] sm:$0xff]
    %v74 = vld [vmem:[%s1 + $0x168] sm:$0xff]
    %v75 = vld [vmem:[%s1 + $0x170] sm:$0xff]
    %v76 = vld [vmem:[%s1 + $0x178] sm:$0xff]
    %v77 = vld [vmem:[%s1 + $0x180] sm:$0xff]
    %v78 = vld [vmem:[%s1 + $0x188] sm:$0xff]
    %v79 = vld [vmem:[%s1 + $0x190] sm:$0xff]
    %v80 = vld [vmem:[%s1 + $0x198] sm:$0xff]
    %v81 = vld [vmem:[%s1 + $0x1a0] sm:$0xff]
    %v82 = vld [vmem:[%s1 + $0x1a8] sm:$0xff]
    %v83 = vld [vmem:[%s1 + $0x1b0] sm:$0xff]
    %v84 = vld [vmem:[%s1 + $0x1b8] sm:$0xff]
    %v85 = vld [vmem:[%s1 + $0x1c0] sm:$0xff]
    %v86 = vld [vmem:[%s1 + $0x1c8] sm:$0xff]
    %v87 = vld [vmem:[%s1 + $0x1d0] sm:$0xff]
    %v88 = vld [vmem:[%s1 + $0x1d8] sm:$0xff]
    %v89 = vld [vmem:[%s1 + $0x1e0] sm:$0xff]
    %v90 = vld [vmem:[%s1 + $0x1e8] sm:$0xff]
    %v91 = vld [vmem:[%s1 + $0x1f0] sm:$0xff]
    %v92 = vld [vmem:[%s1 + $0x1f8] sm:$0xff]
    %v93 = vld [vmem:[%s1 + $0x200] sm:$0xff]
    %v94 = vld [vmem:[%s1 + $0x208] sm:$0xff]
    %v95 = vld [vmem:[%s1 + $0x210] sm:$0xff]
    %v96 = vld [vmem:[%s1 + $0x218] sm:$0xff]
    %v97 = vld [vmem:[%s1 + $0x220] sm:$0xff]
    %v98 = vld [vmem:[%s1 + $0x228] sm:$0xff]
    %v99 = vld [vmem:[%s1 + $0x230] sm:$0xff]
    %v100 = vld [vmem:[%s1 + $0x238] sm:$0xff]
    %v101 = vld [vmem:[%s1 + $0x240] sm:$0xff]
    %v102 = vld [vmem:[%s1 + $0x248] sm:$0xff]
    %v103 = vld [vmem:[%s1 + $0x250] sm:$0xff]
    %v104 = vld [vmem:[%s1 + $0x258] sm:$0xff]
    %v105 = vld [vmem:[%s1 + $0x260] sm:$0xff]
    %v106 = vld [vmem:[%s1 + $0x268] sm:$0xff]
    %v107 = vld [vmem:[%s1 + $0x270] sm:$0xff]
    %v108 = vld [vmem:[%s1 + $0x278] sm:$0xff]
    %v109 = vld [vmem:[%s1 + $0x280] sm:$0xff]
    %v110 = vld [vmem:[%s1 + $0x288] sm:$0xff]
    %v111 = vld [vmem:[%s1 + $0x290] sm:$0xff]
    %v112 = vld [vmem:[%s1 + $0x298] sm:$0xff]
    %v113 = vld [vmem:[%s1 + $0x2a0] sm:$0xff]
    %v114 = vld [vmem:[%s1 + $0x2a8] sm:$0xff]
    %v115 = vld [vmem:[%s1 + $0x2b0] sm:$0xff]
    %v116 = vld [vmem:[%s1 + $0x2b8] sm:$0xff]
    %v117 = vld [vmem:[%s1 + $0x2c0] sm:$0xff]
    %v118 = vld [vmem:[%s1 + $0x2c8] sm:$0xff]
    %v119 = vld [vmem:[%s1 + $0x2d0] sm:$0xff]
    %v120 = vld [vmem:[%s1 + $0x2d8] sm:$0xff]
    %v121 = vld [vmem:[%s1 + $0x2e0] sm:$0xff]
    %v122 = vld [vmem:[%s1 + $0x2e8] sm:$0xff]
    %v123 = vld [vmem:[%s1 + $0x2f0] sm:$0xff]
    %v124 = vld [vmem:[%s1 + $0x2f8] sm:$0xff]
    %v125 = vld [vmem:[%s1 + $0x300] sm:$0xff]
    %v126 = vld [vmem:[%s1 + $0x308] sm:$0xff]
    %v127 = vld [vmem:[%s1 + $0x310] sm:$0xff]
    %v128 = vld [vmem:[%s1 + $0x318] sm:$0xff]
    %v129 = vld [vmem:[%s1 + $0x320] sm:$0xff]
    %v130 = vld [vmem:[%s1 + $0x328] sm:$0xff]
    %v131 = vld [vmem:[%s1 + $0x330] sm:$0xff]
    %v132 = vld [vmem:[%s1 + $0x338] sm:$0xff]
    %v133 = vld [vmem:[%s1 + $0x340] sm:$0xff]
    %v134 = vld [vmem:[%s1 + $0x348] sm:$0xff]
    %v135 = vld [vmem:[%s1 + $0x350] sm:$0xff]
    %v136 = vld [vmem:[%s1 + $0x358] sm:$0xff]
    %v137 = vld [vmem:[%s1 + $0x360] sm:$0xff]
    %v138 = vld [vmem:[%s1 + $0x368] sm:$0xff]
    %v139 = vld [vmem:[%s1 + $0x370] sm:$0xff]
    %v140 = vld [vmem:[%s1 + $0x378] sm:$0xff]
    %v141 = vld [vmem:[%s1 + $0x380] sm:$0xff]
    %v142 = vld [vmem:[%s1 + $0x388] sm:$0xff]
    %v143 = vld [vmem:[%s1 + $0x390] sm:$0xff]
    %v144 = vld [vmem:[%s1 + $0x398] sm:$0xff]
    %v145 = vld [vmem:[%s1 + $0x3a0] sm:$0xff]
    %v146 = vld [vmem:[%s1 + $0x3a8] sm:$0xff]
    %v147 = vld [vmem:[%s1 + $0x3b0] sm:$0xff]
    %v148 = vld [vmem:[%s1 + $0x3b8] sm:$0xff]
    %v149 = vld [vmem:[%s1 + $0x3c0] sm:$0xff]
    %v150 = vld [vmem:[%s1 + $0x3c8] sm:$0xff]
    %v151 = vld [vmem:[%s1 + $0x3d0] sm:$0xff]
    %v152 = vld [vmem:[%s1 + $0x3d8] sm:$0xff]
    %v153 = vld [vmem:[%s1 + $0x3e0] sm:$0xff]
    %v154 = vld [vmem:[%s1 + $0x3e8] sm:$0xff]
    %v155 = vld [vmem:[%s1 + $0x3f0] sm:$0xff]
    %v156 = vld [vmem:[%s1 + $0x3f8] sm:$0xff]
    %v157 = vld [vmem:[%s2] sm:$0x1]
    %v159 = vlaneseq
    %v160 = vshrl.u32 %v159, 7
    %v161 = vsub.s32 0, %v160
    %v162 = vrot.slane %v157, %v161
    %v166 = vcombine.high %v27, %v27
    %v168 = vunpack.c.l.s4 1983009808
    %v169 = vunpack.c.0.s8 %v168
    %v170 = vlaneseq
    %v171 = vshrl.u32 %v170, 7
    %v172 = vsub.s32 %v169, %v171
    %v173 = vrot.slane %v27, %v172
    %v175 = vunpack.c.l.s4 1983009808
    %v176 = vunpack.c.0.s8 %v175
    %v177 = vlaneseq
    %v178 = vshrl.u32 %v177, 7
    %v179 = vsub.s32 %v176, %v178
    %v180 = vrot.slane %v166, %v179
    %v181 = vcombine.high %v173, %v173
    %v182 = vcombine.high %v180, %v180
    %v183 = vcombine.high %v28, %v28
    %v185 = vunpack.c.l.s4 1983009808
    %v186 = vunpack.c.0.s8 %v185
    %v187 = vlaneseq
    %v188 = vshrl.u32 %v187, 7
    %v189 = vsub.s32 %v186, %v188
    %v190 = vrot.slane %v28, %v189
    %v192 = vunpack.c.l.s4 1983009808
    %v193 = vunpack.c.0.s8 %v192
    %v194 = vlaneseq
    %v195 = vshrl.u32 %v194, 7
    %v196 = vsub.s32 %v193, %v195
    %v197 = vrot.slane %v183, %v196
    %v198 = vcombine.high %v190, %v190
    %v199 = vcombine.high %v197, %v197
    %208 = vmatprep.subr.mxu0 0.0
    %v209 = vand.u32 %v44, 4294901760
    %210 = vmatpush1.msra.mxu0 %v209
    %211 = vmatprep.subr.mxu0 0.0
    %v212 = vand.u32 %v43, 4294901760
    %213 = vmatpush1.msra.mxu0 %v212
    %214 = vmatprep.subr.mxu0 0.0
    %v215 = vand.u32 %v42, 4294901760
    %216 = vmatpush1.msra.mxu0 %v215
    %217 = vmatprep.subr.mxu0 0.0
    %v218 = vand.u32 %v41, 4294901760
    %219 = vmatpush1.msra.mxu0 %v218
    %220 = vmatprep.subr.mxu0 0.0
    %v221 = vand.u32 %v40, 4294901760
    %222 = vmatpush1.msra.mxu0 %v221
    %223 = vmatprep.subr.mxu0 0.0
    %v224 = vand.u32 %v39, 4294901760
    %225 = vmatpush1.msra.mxu0 %v224
    %226 = vmatprep.subr.mxu0 0.0
    %v227 = vand.u32 %v38, 4294901760
    %228 = vmatpush1.msra.mxu0 %v227
    %229 = vmatprep.subr.mxu0 0.0
    %v230 = vand.u32 %v37, 4294901760
    %231 = vmatpush1.msra.mxu0 %v230
    %232 = vmatprep.subr.mxu0 0.0
    %v233 = vand.u32 %v36, 4294901760
    %234 = vmatpush1.msra.mxu0 %v233
    %235 = vmatprep.subr.mxu0 0.0
    %v236 = vand.u32 %v35, 4294901760
    %237 = vmatpush1.msra.mxu0 %v236
    %238 = vmatprep.subr.mxu0 0.0
    %v239 = vand.u32 %v34, 4294901760
    %240 = vmatpush1.msra.mxu0 %v239
    %241 = vmatprep.subr.mxu0 0.0
    %v242 = vand.u32 %v33, 4294901760
    %243 = vmatpush1.msra.mxu0 %v242
    %244 = vmatprep.subr.mxu0 0.0
    %v245 = vand.u32 %v32, 4294901760
    %246 = vmatpush1.msra.mxu0 %v245
    %247 = vmatprep.subr.mxu0 0.0
    %v248 = vand.u32 %v31, 4294901760
    %249 = vmatpush1.msra.mxu0 %v248
    %250 = vmatprep.subr.mxu0 0.0
    %v251 = vand.u32 %v30, 4294901760
    %252 = vmatpush1.msra.mxu0 %v251
    %253 = vmatprep.subr.mxu0 0.0
    %v254 = vand.u32 %v29, 4294901760
    %255 = vmatpush1.msra.mxu0 %v254
    %256 = vmatprep.subr.mxu0 0.0
    %v257 = vand.u32 %v60, 4294901760
    %258 = vmatpush2.msra.mxu0 %v257
    %259 = vmatprep.subr.mxu0 0.0
    %v260 = vand.u32 %v59, 4294901760
    %261 = vmatpush2.msra.mxu0 %v260
    %262 = vmatprep.subr.mxu0 0.0
    %v263 = vand.u32 %v58, 4294901760
    %264 = vmatpush2.msra.mxu0 %v263
    %265 = vmatprep.subr.mxu0 0.0
    %v266 = vand.u32 %v57, 4294901760
    %267 = vmatpush2.msra.mxu0 %v266
    %268 = vmatprep.subr.mxu0 0.0
    %v269 = vand.u32 %v56, 4294901760
    %270 = vmatpush2.msra.mxu0 %v269
    %271 = vmatprep.subr.mxu0 0.0
    %v272 = vand.u32 %v55, 4294901760
    %273 = vmatpush2.msra.mxu0 %v272
    %274 = vmatprep.subr.mxu0 0.0
    %v275 = vand.u32 %v54, 4294901760
    %276 = vmatpush2.msra.mxu0 %v275
    %277 = vmatprep.subr.mxu0 0.0
    %v278 = vand.u32 %v53, 4294901760
    %279 = vmatpush2.msra.mxu0 %v278
    %280 = vmatprep.subr.mxu0 0.0
    %v281 = vand.u32 %v52, 4294901760
    %282 = vmatpush2.msra.mxu0 %v281
    %283 = vmatprep.subr.mxu0 0.0
    %v284 = vand.u32 %v51, 4294901760
    %285 = vmatpush2.msra.mxu0 %v284
    %286 = vmatprep.subr.mxu0 0.0
    %v287 = vand.u32 %v50, 4294901760
    %288 = vmatpush2.msra.mxu0 %v287
    %289 = vmatprep.subr.mxu0 0.0
    %v290 = vand.u32 %v49, 4294901760
    %291 = vmatpush2.msra.mxu0 %v290
    %292 = vmatprep.subr.mxu0 0.0
    %v293 = vand.u32 %v48, 4294901760
    %294 = vmatpush2.msra.mxu0 %v293
    %295 = vmatprep.subr.mxu0 0.0
    %v296 = vand.u32 %v47, 4294901760
    %297 = vmatpush2.msra.mxu0 %v296
    %298 = vmatprep.subr.mxu0 0.0
    %v299 = vand.u32 %v46, 4294901760
    %300 = vmatpush2.msra.mxu0 %v299
    %301 = vmatprep.subr.mxu0 0.0
    %v302 = vand.u32 %v45, 4294901760
    %303 = vmatpush2.msra.mxu0 %v302
    %v304 = vand.u32 %v181, 4294901760
    %v305 = vsub.f32 %v181, %v304
    %v306 = vand.u32 %v305, 4294901760
    %v307 = vsub.f32 %v305, %v306
    %v308 = vand.u32 %v307, 4294901760
    %309 = vmatprep.mubr.f32.mxu0 %v308
    %v310 = vand.u32 %v173, 4294901760
    %v311 = vsub.f32 %v173, %v310
    %v312 = vand.u32 %v311, 4294901760
    %v313 = vsub.f32 %v311, %v312
    %v314 = vand.u32 %v313, 4294901760
    %315 = vmatmul.mubr.f32.gmra.mxu0 %v314
    %v316 = vpop.f32.mrf.mxu0
    %v317 = vadd.f32 %v162, %v316
    %v318 = vpop.f32.mrf.mxu0
    %319 = vdwg.mxu0
    %320 = vmatprep.subr.mxu0 0.0
    %v321 = vand.u32 %v44, 4294901760
    %v322 = vsub.f32 %v44, %v321
    %v323 = vand.u32 %v322, 4294901760
    %v324 = vsub.f32 %v322, %v323
    %v325 = vand.u32 %v324, 4294901760
    %326 = vmatpush1.msra.mxu0 %v325
    %327 = vmatprep.subr.mxu0 0.0
    %v328 = vand.u32 %v43, 4294901760
    %v329 = vsub.f32 %v43, %v328
    %v330 = vand.u32 %v329, 4294901760
    %v331 = vsub.f32 %v329, %v330
    %v332 = vand.u32 %v331, 4294901760
    %333 = vmatpush1.msra.mxu0 %v332
    %334 = vmatprep.subr.mxu0 0.0
    %v335 = vand.u32 %v42, 4294901760
    %v336 = vsub.f32 %v42, %v335
    %v337 = vand.u32 %v336, 4294901760
    %v338 = vsub.f32 %v336, %v337
    %v339 = vand.u32 %v338, 4294901760
    %340 = vmatpush1.msra.mxu0 %v339
    %341 = vmatprep.subr.mxu0 0.0
    %v342 = vand.u32 %v41, 4294901760
    %v343 = vsub.f32 %v41, %v342
    %v344 = vand.u32 %v343, 4294901760
    %v345 = vsub.f32 %v343, %v344
    %v346 = vand.u32 %v345, 4294901760
    %347 = vmatpush1.msra.mxu0 %v346
    %348 = vmatprep.subr.mxu0 0.0
    %v349 = vand.u32 %v40, 4294901760
    %v350 = vsub.f32 %v40, %v349
    %v351 = vand.u32 %v350, 4294901760
    %v352 = vsub.f32 %v350, %v351
    %v353 = vand.u32 %v352, 4294901760
    %354 = vmatpush1.msra.mxu0 %v353
    %355 = vmatprep.subr.mxu0 0.0
    %v356 = vand.u32 %v39, 4294901760
    %v357 = vsub.f32 %v39, %v356
    %v358 = vand.u32 %v357, 4294901760
    %v359 = vsub.f32 %v357, %v358
    %v360 = vand.u32 %v359, 4294901760
    %361 = vmatpush1.msra.mxu0 %v360
    %362 = vmatprep.subr.mxu0 0.0
    %v363 = vand.u32 %v38, 4294901760
    %v364 = vsub.f32 %v38, %v363
    %v365 = vand.u32 %v364, 4294901760
    %v366 = vsub.f32 %v364, %v365
    %v367 = vand.u32 %v366, 4294901760
    %368 = vmatpush1.msra.mxu0 %v367
    %369 = vmatprep.subr.mxu0 0.0
    %v370 = vand.u32 %v37, 4294901760
    %v371 = vsub.f32 %v37, %v370
    %v372 = vand.u32 %v371, 4294901760
    %v373 = vsub.f32 %v371, %v372
    %v374 = vand.u32 %v373, 4294901760
    %375 = vmatpush1.msra.mxu0 %v374
    %376 = vmatprep.subr.mxu0 0.0
    %v377 = vand.u32 %v36, 4294901760
    %v378 = vsub.f32 %v36, %v377
    %v379 = vand.u32 %v378, 4294901760
    %v380 = vsub.f32 %v378, %v379
    %v381 = vand.u32 %v380, 4294901760
    %382 = vmatpush1.msra.mxu0 %v381
    %383 = vmatprep.subr.mxu0 0.0
    %v384 = vand.u32 %v35, 4294901760
    %v385 = vsub.f32 %v35, %v384
    %v386 = vand.u32 %v385, 4294901760
    %v387 = vsub.f32 %v385, %v386
    %v388 = vand.u32 %v387, 4294901760
    %389 = vmatpush1.msra.mxu0 %v388
    %390 = vmatprep.subr.mxu0 0.0
    %v391 = vand.u32 %v34, 4294901760
    %v392 = vsub.f32 %v34, %v391
    %v393 = vand.u32 %v392, 4294901760
    %v394 = vsub.f32 %v392, %v393
    %v395 = vand.u32 %v394, 4294901760
    %396 = vmatpush1.msra.mxu0 %v395
    %397 = vmatprep.subr.mxu0 0.0
    %v398 = vand.u32 %v33, 4294901760
    %v399 = vsub.f32 %v33, %v398
    %v400 = vand.u32 %v399, 4294901760
    %v401 = vsub.f32 %v399, %v400
    %v402 = vand.u32 %v401, 4294901760
    %403 = vmatpush1.msra.mxu0 %v402
    %404 = vmatprep.subr.mxu0 0.0
    %v405 = vand.u32 %v32, 4294901760
    %v406 = vsub.f32 %v32, %v405
    %v407 = vand.u32 %v406, 4294901760
    %v408 = vsub.f32 %v406, %v407
    %v409 = vand.u32 %v408, 4294901760
    %410 = vmatpush1.msra.mxu0 %v409
    %411 = vmatprep.subr.mxu0 0.0
    %v412 = vand.u32 %v31, 4294901760
    %v413 = vsub.f32 %v31, %v412
    %v414 = vand.u32 %v413, 4294901760
    %v415 = vsub.f32 %v413, %v414
    %v416 = vand.u32 %v415, 4294901760
    %417 = vmatpush1.msra.mxu0 %v416
    %418 = vmatprep.subr.mxu0 0.0
    %v419 = vand.u32 %v30, 4294901760
    %v420 = vsub.f32 %v30, %v419
    %v421 = vand.u32 %v420, 4294901760
    %v422 = vsub.f32 %v420, %v421
    %v423 = vand.u32 %v422, 4294901760
    %424 = vmatpush1.msra.mxu0 %v423
    %425 = vmatprep.subr.mxu0 0.0
    %v426 = vand.u32 %v29, 4294901760
    %v427 = vsub.f32 %v29, %v426
    %v428 = vand.u32 %v427, 4294901760
    %v429 = vsub.f32 %v427, %v428
    %v430 = vand.u32 %v429, 4294901760
    %431 = vmatpush1.msra.mxu0 %v430
    %432 = vmatprep.subr.mxu0 0.0
    %v433 = vand.u32 %v60, 4294901760
    %v434 = vsub.f32 %v60, %v433
    %v435 = vand.u32 %v434, 4294901760
    %v436 = vsub.f32 %v434, %v435
    %v437 = vand.u32 %v436, 4294901760
    %438 = vmatpush2.msra.mxu0 %v437
    %439 = vmatprep.subr.mxu0 0.0
    %v440 = vand.u32 %v59, 4294901760
    %v441 = vsub.f32 %v59, %v440
    %v442 = vand.u32 %v441, 4294901760
    %v443 = vsub.f32 %v441, %v442
    %v444 = vand.u32 %v443, 4294901760
    %445 = vmatpush2.msra.mxu0 %v444
    %446 = vmatprep.subr.mxu0 0.0
    %v447 = vand.u32 %v58, 4294901760
    %v448 = vsub.f32 %v58, %v447
    %v449 = vand.u32 %v448, 4294901760
    %v450 = vsub.f32 %v448, %v449
    %v451 = vand.u32 %v450, 4294901760
    %452 = vmatpush2.msra.mxu0 %v451
    %453 = vmatprep.subr.mxu0 0.0
    %v454 = vand.u32 %v57, 4294901760
    %v455 = vsub.f32 %v57, %v454
    %v456 = vand.u32 %v455, 4294901760
    %v457 = vsub.f32 %v455, %v456
    %v458 = vand.u32 %v457, 4294901760
    %459 = vmatpush2.msra.mxu0 %v458
    %460 = vmatprep.subr.mxu0 0.0
    %v461 = vand.u32 %v56, 4294901760
    %v462 = vsub.f32 %v56, %v461
    %v463 = vand.u32 %v462, 4294901760
    %v464 = vsub.f32 %v462, %v463
    %v465 = vand.u32 %v464, 4294901760
    %466 = vmatpush2.msra.mxu0 %v465
    %467 = vmatprep.subr.mxu0 0.0
    %v468 = vand.u32 %v55, 4294901760
    %v469 = vsub.f32 %v55, %v468
    %v470 = vand.u32 %v469, 4294901760
    %v471 = vsub.f32 %v469, %v470
    %v472 = vand.u32 %v471, 4294901760
    %473 = vmatpush2.msra.mxu0 %v472
    %474 = vmatprep.subr.mxu0 0.0
    %v475 = vand.u32 %v54, 4294901760
    %v476 = vsub.f32 %v54, %v475
    %v477 = vand.u32 %v476, 4294901760
    %v478 = vsub.f32 %v476, %v477
    %v479 = vand.u32 %v478, 4294901760
    %480 = vmatpush2.msra.mxu0 %v479
    %481 = vmatprep.subr.mxu0 0.0
    %v482 = vand.u32 %v53, 4294901760
    %v483 = vsub.f32 %v53, %v482
    %v484 = vand.u32 %v483, 4294901760
    %v485 = vsub.f32 %v483, %v484
    %v486 = vand.u32 %v485, 4294901760
    %487 = vmatpush2.msra.mxu0 %v486
    %488 = vmatprep.subr.mxu0 0.0
    %v489 = vand.u32 %v52, 4294901760
    %v490 = vsub.f32 %v52, %v489
    %v491 = vand.u32 %v490, 4294901760
    %v492 = vsub.f32 %v490, %v491
    %v493 = vand.u32 %v492, 4294901760
    %494 = vmatpush2.msra.mxu0 %v493
    %495 = vmatprep.subr.mxu0 0.0
    %v496 = vand.u32 %v51, 4294901760
    %v497 = vsub.f32 %v51, %v496
    %v498 = vand.u32 %v497, 4294901760
    %v499 = vsub.f32 %v497, %v498
    %v500 = vand.u32 %v499, 4294901760
    %501 = vmatpush2.msra.mxu0 %v500
    %502 = vmatprep.subr.mxu0 0.0
    %v503 = vand.u32 %v50, 4294901760
    %v504 = vsub.f32 %v50, %v503
    %v505 = vand.u32 %v504, 4294901760
    %v506 = vsub.f32 %v504, %v505
    %v507 = vand.u32 %v506, 4294901760
    %508 = vmatpush2.msra.mxu0 %v507
    %509 = vmatprep.subr.mxu0 0.0
    %v510 = vand.u32 %v49, 4294901760
    %v511 = vsub.f32 %v49, %v510
    %v512 = vand.u32 %v511, 4294901760
    %v513 = vsub.f32 %v511, %v512
    %v514 = vand.u32 %v513, 4294901760
    %515 = vmatpush2.msra.mxu0 %v514
    %516 = vmatprep.subr.mxu0 0.0
    %v517 = vand.u32 %v48, 4294901760
    %v518 = vsub.f32 %v48, %v517
    %v519 = vand.u32 %v518, 4294901760
    %v520 = vsub.f32 %v518, %v519
    %v521 = vand.u32 %v520, 4294901760
    %522 = vmatpush2.msra.mxu0 %v521
    %523 = vmatprep.subr.mxu0 0.0
    %v524 = vand.u32 %v47, 4294901760
    %v525 = vsub.f32 %v47, %v524
    %v526 = vand.u32 %v525, 4294901760
    %v527 = vsub.f32 %v525, %v526
    %v528 = vand.u32 %v527, 4294901760
    %529 = vmatpush2.msra.mxu0 %v528
    %530 = vmatprep.subr.mxu0 0.0
    %v531 = vand.u32 %v46, 4294901760
    %v532 = vsub.f32 %v46, %v531
    %v533 = vand.u32 %v532, 4294901760
    %v534 = vsub.f32 %v532, %v533
    %v535 = vand.u32 %v534, 4294901760
    %536 = vmatpush2.msra.mxu0 %v535
    %537 = vmatprep.subr.mxu0 0.0
    %v538 = vand.u32 %v45, 4294901760
    %v539 = vsub.f32 %v45, %v538
    %v540 = vand.u32 %v539, 4294901760
    %v541 = vsub.f32 %v539, %v540
    %v542 = vand.u32 %v541, 4294901760
    %543 = vmatpush2.msra.mxu0 %v542
    %v544 = vand.u32 %v181, 4294901760
    %545 = vmatprep.mubr.f32.mxu0 %v544
    %v546 = vand.u32 %v173, 4294901760
    %547 = vmatmul.mubr.f32.gmra.mxu0 %v546
    %v548 = vpop.f32.mrf.mxu0
    %v549 = vadd.f32 %v317, %v548
    %v550 = vpop.f32.mrf.mxu0
    %551 = vdwg.mxu0
    %552 = vmatprep.subr.mxu0 0.0
    %v553 = vand.u32 %v44, 4294901760
    %v554 = vsub.f32 %v44, %v553
    %555 = vmatpush1.msra.mxu0 %v554
    %556 = vmatprep.subr.mxu0 0.0
    %v557 = vand.u32 %v43, 4294901760
    %v558 = vsub.f32 %v43, %v557
    %559 = vmatpush1.msra.mxu0 %v558
    %560 = vmatprep.subr.mxu0 0.0
    %v561 = vand.u32 %v42, 4294901760
    %v562 = vsub.f32 %v42, %v561
    %563 = vmatpush1.msra.mxu0 %v562
    %564 = vmatprep.subr.mxu0 0.0
    %v565 = vand.u32 %v41, 4294901760
    %v566 = vsub.f32 %v41, %v565
    %567 = vmatpush1.msra.mxu0 %v566
    %568 = vmatprep.subr.mxu0 0.0
    %v569 = vand.u32 %v40, 4294901760
    %v570 = vsub.f32 %v40, %v569
    %571 = vmatpush1.msra.mxu0 %v570
    %572 = vmatprep.subr.mxu0 0.0
    %v573 = vand.u32 %v39, 4294901760
    %v574 = vsub.f32 %v39, %v573
    %575 = vmatpush1.msra.mxu0 %v574
    %576 = vmatprep.subr.mxu0 0.0
    %v577 = vand.u32 %v38, 4294901760
    %v578 = vsub.f32 %v38, %v577
    %579 = vmatpush1.msra.mxu0 %v578
    %580 = vmatprep.subr.mxu0 0.0
    %v581 = vand.u32 %v37, 4294901760
    %v582 = vsub.f32 %v37, %v581
    %583 = vmatpush1.msra.mxu0 %v582
    %584 = vmatprep.subr.mxu0 0.0
    %v585 = vand.u32 %v36, 4294901760
    %v586 = vsub.f32 %v36, %v585
    %587 = vmatpush1.msra.mxu0 %v586
    %588 = vmatprep.subr.mxu0 0.0
    %v589 = vand.u32 %v35, 4294901760
    %v590 = vsub.f32 %v35, %v589
    %591 = vmatpush1.msra.mxu0 %v590
    %592 = vmatprep.subr.mxu0 0.0
    %v593 = vand.u32 %v34, 4294901760
    %v594 = vsub.f32 %v34, %v593
    %595 = vmatpush1.msra.mxu0 %v594
    %596 = vmatprep.subr.mxu0 0.0
    %v597 = vand.u32 %v33, 4294901760
    %v598 = vsub.f32 %v33, %v597
    %599 = vmatpush1.msra.mxu0 %v598
    %600 = vmatprep.subr.mxu0 0.0
    %v601 = vand.u32 %v32, 4294901760
    %v602 = vsub.f32 %v32, %v601
    %603 = vmatpush1.msra.mxu0 %v602
    %604 = vmatprep.subr.mxu0 0.0
    %v605 = vand.u32 %v31, 4294901760
    %v606 = vsub.f32 %v31, %v605
    %607 = vmatpush1.msra.mxu0 %v606
    %608 = vmatprep.subr.mxu0 0.0
    %v609 = vand.u32 %v30, 4294901760
    %v610 = vsub.f32 %v30, %v609
    %611 = vmatpush1.msra.mxu0 %v610
    %612 = vmatprep.subr.mxu0 0.0
    %v613 = vand.u32 %v29, 4294901760
    %v614 = vsub.f32 %v29, %v613
    %615 = vmatpush1.msra.mxu0 %v614
    %616 = vmatprep.subr.mxu0 0.0
    %v617 = vand.u32 %v60, 4294901760
    %v618 = vsub.f32 %v60, %v617
    %619 = vmatpush2.msra.mxu0 %v618
    %620 = vmatprep.subr.mxu0 0.0
    %v621 = vand.u32 %v59, 4294901760
    %v622 = vsub.f32 %v59, %v621
    %623 = vmatpush2.msra.mxu0 %v622
    %624 = vmatprep.subr.mxu0 0.0
    %v625 = vand.u32 %v58, 4294901760
    %v626 = vsub.f32 %v58, %v625
    %627 = vmatpush2.msra.mxu0 %v626
    %628 = vmatprep.subr.mxu0 0.0
    %v629 = vand.u32 %v57, 4294901760
    %v630 = vsub.f32 %v57, %v629
    %631 = vmatpush2.msra.mxu0 %v630
    %632 = vmatprep.subr.mxu0 0.0
    %v633 = vand.u32 %v56, 4294901760
    %v634 = vsub.f32 %v56, %v633
    %635 = vmatpush2.msra.mxu0 %v634
    %636 = vmatprep.subr.mxu0 0.0
    %v637 = vand.u32 %v55, 4294901760
    %v638 = vsub.f32 %v55, %v637
    %639 = vmatpush2.msra.mxu0 %v638
    %640 = vmatprep.subr.mxu0 0.0
    %v641 = vand.u32 %v54, 4294901760
    %v642 = vsub.f32 %v54, %v641
    %643 = vmatpush2.msra.mxu0 %v642
    %644 = vmatprep.subr.mxu0 0.0
    %v645 = vand.u32 %v53, 4294901760
    %v646 = vsub.f32 %v53, %v645
    %647 = vmatpush2.msra.mxu0 %v646
    %648 = vmatprep.subr.mxu0 0.0
    %v649 = vand.u32 %v52, 4294901760
    %v650 = vsub.f32 %v52, %v649
    %651 = vmatpush2.msra.mxu0 %v650
    %652 = vmatprep.subr.mxu0 0.0
    %v653 = vand.u32 %v51, 4294901760
    %v654 = vsub.f32 %v51, %v653
    %655 = vmatpush2.msra.mxu0 %v654
    %656 = vmatprep.subr.mxu0 0.0
    %v657 = vand.u32 %v50, 4294901760
    %v658 = vsub.f32 %v50, %v657
    %659 = vmatpush2.msra.mxu0 %v658
    %660 = vmatprep.subr.mxu0 0.0
    %v661 = vand.u32 %v49, 4294901760
    %v662 = vsub.f32 %v49, %v661
    %663 = vmatpush2.msra.mxu0 %v662
    %664 = vmatprep.subr.mxu0 0.0
    %v665 = vand.u32 %v48, 4294901760
    %v666 = vsub.f32 %v48, %v665
    %667 = vmatpush2.msra.mxu0 %v666
    %668 = vmatprep.subr.mxu0 0.0
    %v669 = vand.u32 %v47, 4294901760
    %v670 = vsub.f32 %v47, %v669
    %671 = vmatpush2.msra.mxu0 %v670
    %672 = vmatprep.subr.mxu0 0.0
    %v673 = vand.u32 %v46, 4294901760
    %v674 = vsub.f32 %v46, %v673
    %675 = vmatpush2.msra.mxu0 %v674
    %676 = vmatprep.subr.mxu0 0.0
    %v677 = vand.u32 %v45, 4294901760
    %v678 = vsub.f32 %v45, %v677
    %679 = vmatpush2.msra.mxu0 %v678
    %v680 = vand.u32 %v181, 4294901760
    %v681 = vsub.f32 %v181, %v680
    %682 = vmatprep.mubr.f32.mxu0 %v681
    %v683 = vand.u32 %v173, 4294901760
    %v684 = vsub.f32 %v173, %v683
    %685 = vmatmul.mubr.f32.gmra.mxu0 %v684
    %v686 = vpop.f32.mrf.mxu0
    %v687 = vadd.f32 %v549, %v686
    %v688 = vpop.f32.mrf.mxu0
    %689 = vdwg.mxu0
    %690 = vmatprep.subr.mxu0 0.0
    %v691 = vand.u32 %v44, 4294901760
    %692 = vmatpush1.msra.mxu0 %v691
    %693 = vmatprep.subr.mxu0 0.0
    %v694 = vand.u32 %v43, 4294901760
    %695 = vmatpush1.msra.mxu0 %v694
    %696 = vmatprep.subr.mxu0 0.0
    %v697 = vand.u32 %v42, 4294901760
    %698 = vmatpush1.msra.mxu0 %v697
    %699 = vmatprep.subr.mxu0 0.0
    %v700 = vand.u32 %v41, 4294901760
    %701 = vmatpush1.msra.mxu0 %v700
    %702 = vmatprep.subr.mxu0 0.0
    %v703 = vand.u32 %v40, 4294901760
    %704 = vmatpush1.msra.mxu0 %v703
    %705 = vmatprep.subr.mxu0 0.0
    %v706 = vand.u32 %v39, 4294901760
    %707 = vmatpush1.msra.mxu0 %v706
    %708 = vmatprep.subr.mxu0 0.0
    %v709 = vand.u32 %v38, 4294901760
    %710 = vmatpush1.msra.mxu0 %v709
    %711 = vmatprep.subr.mxu0 0.0
    %v712 = vand.u32 %v37, 4294901760
    %713 = vmatpush1.msra.mxu0 %v712
    %714 = vmatprep.subr.mxu0 0.0
    %v715 = vand.u32 %v36, 4294901760
    %716 = vmatpush1.msra.mxu0 %v715
    %717 = vmatprep.subr.mxu0 0.0
    %v718 = vand.u32 %v35, 4294901760
    %719 = vmatpush1.msra.mxu0 %v718
    %720 = vmatprep.subr.mxu0 0.0
    %v721 = vand.u32 %v34, 4294901760
    %722 = vmatpush1.msra.mxu0 %v721
    %723 = vmatprep.subr.mxu0 0.0
    %v724 = vand.u32 %v33, 4294901760
    %725 = vmatpush1.msra.mxu0 %v724
    %726 = vmatprep.subr.mxu0 0.0
    %v727 = vand.u32 %v32, 4294901760
    %728 = vmatpush1.msra.mxu0 %v727
    %729 = vmatprep.subr.mxu0 0.0
    %v730 = vand.u32 %v31, 4294901760
    %731 = vmatpush1.msra.mxu0 %v730
    %732 = vmatprep.subr.mxu0 0.0
    %v733 = vand.u32 %v30, 4294901760
    %734 = vmatpush1.msra.mxu0 %v733
    %735 = vmatprep.subr.mxu0 0.0
    %v736 = vand.u32 %v29, 4294901760
    %737 = vmatpush1.msra.mxu0 %v736
    %738 = vmatprep.subr.mxu0 0.0
    %v739 = vand.u32 %v60, 4294901760
    %740 = vmatpush2.msra.mxu0 %v739
    %741 = vmatprep.subr.mxu0 0.0
    %v742 = vand.u32 %v59, 4294901760
    %743 = vmatpush2.msra.mxu0 %v742
    %744 = vmatprep.subr.mxu0 0.0
    %v745 = vand.u32 %v58, 4294901760
    %746 = vmatpush2.msra.mxu0 %v745
    %747 = vmatprep.subr.mxu0 0.0
    %v748 = vand.u32 %v57, 4294901760
    %749 = vmatpush2.msra.mxu0 %v748
    %750 = vmatprep.subr.mxu0 0.0
    %v751 = vand.u32 %v56, 4294901760
    %752 = vmatpush2.msra.mxu0 %v751
    %753 = vmatprep.subr.mxu0 0.0
    %v754 = vand.u32 %v55, 4294901760
    %755 = vmatpush2.msra.mxu0 %v754
    %756 = vmatprep.subr.mxu0 0.0
    %v757 = vand.u32 %v54, 4294901760
    %758 = vmatpush2.msra.mxu0 %v757
    %759 = vmatprep.subr.mxu0 0.0
    %v760 = vand.u32 %v53, 4294901760
    %761 = vmatpush2.msra.mxu0 %v760
    %762 = vmatprep.subr.mxu0 0.0
    %v763 = vand.u32 %v52, 4294901760
    %764 = vmatpush2.msra.mxu0 %v763
    %765 = vmatprep.subr.mxu0 0.0
    %v766 = vand.u32 %v51, 4294901760
    %767 = vmatpush2.msra.mxu0 %v766
    %768 = vmatprep.subr.mxu0 0.0
    %v769 = vand.u32 %v50, 4294901760
    %770 = vmatpush2.msra.mxu0 %v769
    %771 = vmatprep.subr.mxu0 0.0
    %v772 = vand.u32 %v49, 4294901760
    %773 = vmatpush2.msra.mxu0 %v772
    %774 = vmatprep.subr.mxu0 0.0
    %v775 = vand.u32 %v48, 4294901760
    %776 = vmatpush2.msra.mxu0 %v775
    %777 = vmatprep.subr.mxu0 0.0
    %v778 = vand.u32 %v47, 4294901760
    %779 = vmatpush2.msra.mxu0 %v778
    %780 = vmatprep.subr.mxu0 0.0
    %v781 = vand.u32 %v46, 4294901760
    %782 = vmatpush2.msra.mxu0 %v781
    %783 = vmatprep.subr.mxu0 0.0
    %v784 = vand.u32 %v45, 4294901760
    %785 = vmatpush2.msra.mxu0 %v784
    %v786 = vand.u32 %v181, 4294901760
    %v787 = vsub.f32 %v181, %v786
    %v788 = vand.u32 %v787, 4294901760
    %789 = vmatprep.mubr.f32.mxu0 %v788
    %v790 = vand.u32 %v173, 4294901760
    %v791 = vsub.f32 %v173, %v790
    %v792 = vand.u32 %v791, 4294901760
    %793 = vmatmul.mubr.f32.gmra.mxu0 %v792
    %v794 = vpop.f32.mrf.mxu0
    %v795 = vadd.f32 %v687, %v794
    %v796 = vpop.f32.mrf.mxu0
    %797 = vdwg.mxu0
    %798 = vmatprep.subr.mxu0 0.0
    %v799 = vand.u32 %v44, 4294901760
    %v800 = vsub.f32 %v44, %v799
    %v801 = vand.u32 %v800, 4294901760
    %802 = vmatpush1.msra.mxu0 %v801
    %803 = vmatprep.subr.mxu0 0.0
    %v804 = vand.u32 %v43, 4294901760
    %v805 = vsub.f32 %v43, %v804
    %v806 = vand.u32 %v805, 4294901760
    %807 = vmatpush1.msra.mxu0 %v806
    %808 = vmatprep.subr.mxu0 0.0
    %v809 = vand.u32 %v42, 4294901760
    %v810 = vsub.f32 %v42, %v809
    %v811 = vand.u32 %v810, 4294901760
    %812 = vmatpush1.msra.mxu0 %v811
    %813 = vmatprep.subr.mxu0 0.0
    %v814 = vand.u32 %v41, 4294901760
    %v815 = vsub.f32 %v41, %v814
    %v816 = vand.u32 %v815, 4294901760
    %817 = vmatpush1.msra.mxu0 %v816
    %818 = vmatprep.subr.mxu0 0.0
    %v819 = vand.u32 %v40, 4294901760
    %v820 = vsub.f32 %v40, %v819
    %v821 = vand.u32 %v820, 4294901760
    %822 = vmatpush1.msra.mxu0 %v821
    %823 = vmatprep.subr.mxu0 0.0
    %v824 = vand.u32 %v39, 4294901760
    %v825 = vsub.f32 %v39, %v824
    %v826 = vand.u32 %v825, 4294901760
    %827 = vmatpush1.msra.mxu0 %v826
    %828 = vmatprep.subr.mxu0 0.0
    %v829 = vand.u32 %v38, 4294901760
    %v830 = vsub.f32 %v38, %v829
    %v831 = vand.u32 %v830, 4294901760
    %832 = vmatpush1.msra.mxu0 %v831
    %833 = vmatprep.subr.mxu0 0.0
    %v834 = vand.u32 %v37, 4294901760
    %v835 = vsub.f32 %v37, %v834
    %v836 = vand.u32 %v835, 4294901760
    %837 = vmatpush1.msra.mxu0 %v836
    %838 = vmatprep.subr.mxu0 0.0
    %v839 = vand.u32 %v36, 4294901760
    %v840 = vsub.f32 %v36, %v839
    %v841 = vand.u32 %v840, 4294901760
    %842 = vmatpush1.msra.mxu0 %v841
    %843 = vmatprep.subr.mxu0 0.0
    %v844 = vand.u32 %v35, 4294901760
    %v845 = vsub.f32 %v35, %v844
    %v846 = vand.u32 %v845, 4294901760
    %847 = vmatpush1.msra.mxu0 %v846
    %848 = vmatprep.subr.mxu0 0.0
    %v849 = vand.u32 %v34, 4294901760
    %v850 = vsub.f32 %v34, %v849
    %v851 = vand.u32 %v850, 4294901760
    %852 = vmatpush1.msra.mxu0 %v851
    %853 = vmatprep.subr.mxu0 0.0
    %v854 = vand.u32 %v33, 4294901760
    %v855 = vsub.f32 %v33, %v854
    %v856 = vand.u32 %v855, 4294901760
    %857 = vmatpush1.msra.mxu0 %v856
    %858 = vmatprep.subr.mxu0 0.0
    %v859 = vand.u32 %v32, 4294901760
    %v860 = vsub.f32 %v32, %v859
    %v861 = vand.u32 %v860, 4294901760
    %862 = vmatpush1.msra.mxu0 %v861
    %863 = vmatprep.subr.mxu0 0.0
    %v864 = vand.u32 %v31, 4294901760
    %v865 = vsub.f32 %v31, %v864
    %v866 = vand.u32 %v865, 4294901760
    %867 = vmatpush1.msra.mxu0 %v866
    %868 = vmatprep.subr.mxu0 0.0
    %v869 = vand.u32 %v30, 4294901760
    %v870 = vsub.f32 %v30, %v869
    %v871 = vand.u32 %v870, 4294901760
    %872 = vmatpush1.msra.mxu0 %v871
    %873 = vmatprep.subr.mxu0 0.0
    %v874 = vand.u32 %v29, 4294901760
    %v875 = vsub.f32 %v29, %v874
    %v876 = vand.u32 %v875, 4294901760
    %877 = vmatpush1.msra.mxu0 %v876
    %878 = vmatprep.subr.mxu0 0.0
    %v879 = vand.u32 %v60, 4294901760
    %v880 = vsub.f32 %v60, %v879
    %v881 = vand.u32 %v880, 4294901760
    %882 = vmatpush2.msra.mxu0 %v881
    %883 = vmatprep.subr.mxu0 0.0
    %v884 = vand.u32 %v59, 4294901760
    %v885 = vsub.f32 %v59, %v884
    %v886 = vand.u32 %v885, 4294901760
    %887 = vmatpush2.msra.mxu0 %v886
    %888 = vmatprep.subr.mxu0 0.0
    %v889 = vand.u32 %v58, 4294901760
    %v890 = vsub.f32 %v58, %v889
    %v891 = vand.u32 %v890, 4294901760
    %892 = vmatpush2.msra.mxu0 %v891
    %893 = vmatprep.subr.mxu0 0.0
    %v894 = vand.u32 %v57, 4294901760
    %v895 = vsub.f32 %v57, %v894
    %v896 = vand.u32 %v895, 4294901760
    %897 = vmatpush2.msra.mxu0 %v896
    %898 = vmatprep.subr.mxu0 0.0
    %v899 = vand.u32 %v56, 4294901760
    %v900 = vsub.f32 %v56, %v899
    %v901 = vand.u32 %v900, 4294901760
    %902 = vmatpush2.msra.mxu0 %v901
    %903 = vmatprep.subr.mxu0 0.0
    %v904 = vand.u32 %v55, 4294901760
    %v905 = vsub.f32 %v55, %v904
    %v906 = vand.u32 %v905, 4294901760
    %907 = vmatpush2.msra.mxu0 %v906
    %908 = vmatprep.subr.mxu0 0.0
    %v909 = vand.u32 %v54, 4294901760
    %v910 = vsub.f32 %v54, %v909
    %v911 = vand.u32 %v910, 4294901760
    %912 = vmatpush2.msra.mxu0 %v911
    %913 = vmatprep.subr.mxu0 0.0
    %v914 = vand.u32 %v53, 4294901760
    %v915 = vsub.f32 %v53, %v914
    %v916 = vand.u32 %v915, 4294901760
    %917 = vmatpush2.msra.mxu0 %v916
    %918 = vmatprep.subr.mxu0 0.0
    %v919 = vand.u32 %v52, 4294901760
    %v920 = vsub.f32 %v52, %v919
    %v921 = vand.u32 %v920, 4294901760
    %922 = vmatpush2.msra.mxu0 %v921
    %923 = vmatprep.subr.mxu0 0.0
    %v924 = vand.u32 %v51, 4294901760
    %v925 = vsub.f32 %v51, %v924
    %v926 = vand.u32 %v925, 4294901760
    %927 = vmatpush2.msra.mxu0 %v926
    %928 = vmatprep.subr.mxu0 0.0
    %v929 = vand.u32 %v50, 4294901760
    %v930 = vsub.f32 %v50, %v929
    %v931 = vand.u32 %v930, 4294901760
    %932 = vmatpush2.msra.mxu0 %v931
    %933 = vmatprep.subr.mxu0 0.0
    %v934 = vand.u32 %v49, 4294901760
    %v935 = vsub.f32 %v49, %v934
    %v936 = vand.u32 %v935, 4294901760
    %937 = vmatpush2.msra.mxu0 %v936
    %938 = vmatprep.subr.mxu0 0.0
    %v939 = vand.u32 %v48, 4294901760
    %v940 = vsub.f32 %v48, %v939
    %v941 = vand.u32 %v940, 4294901760
    %942 = vmatpush2.msra.mxu0 %v941
    %943 = vmatprep.subr.mxu0 0.0
    %v944 = vand.u32 %v47, 4294901760
    %v945 = vsub.f32 %v47, %v944
    %v946 = vand.u32 %v945, 4294901760
    %947 = vmatpush2.msra.mxu0 %v946
    %948 = vmatprep.subr.mxu0 0.0
    %v949 = vand.u32 %v46, 4294901760
    %v950 = vsub.f32 %v46, %v949
    %v951 = vand.u32 %v950, 4294901760
    %952 = vmatpush2.msra.mxu0 %v951
    %953 = vmatprep.subr.mxu0 0.0
    %v954 = vand.u32 %v45, 4294901760
    %v955 = vsub.f32 %v45, %v954
    %v956 = vand.u32 %v955, 4294901760
    %957 = vmatpush2.msra.mxu0 %v956
    %v958 = vand.u32 %v181, 4294901760
    %959 = vmatprep.mubr.f32.mxu0 %v958
    %v960 = vand.u32 %v173, 4294901760
    %961 = vmatmul.mubr.f32.gmra.mxu0 %v960
    %v962 = vpop.f32.mrf.mxu0
    %v963 = vadd.f32 %v795, %v962
    %v964 = vpop.f32.mrf.mxu0
    %965 = vdwg.mxu0
    %966 = vmatprep.subr.mxu0 0.0
    %v967 = vand.u32 %v44, 4294901760
    %968 = vmatpush1.msra.mxu0 %v967
    %969 = vmatprep.subr.mxu0 0.0
    %v970 = vand.u32 %v43, 4294901760
    %971 = vmatpush1.msra.mxu0 %v970
    %972 = vmatprep.subr.mxu0 0.0
    %v973 = vand.u32 %v42, 4294901760
    %974 = vmatpush1.msra.mxu0 %v973
    %975 = vmatprep.subr.mxu0 0.0
    %v976 = vand.u32 %v41, 4294901760
    %977 = vmatpush1.msra.mxu0 %v976
    %978 = vmatprep.subr.mxu0 0.0
    %v979 = vand.u32 %v40, 4294901760
    %980 = vmatpush1.msra.mxu0 %v979
    %981 = vmatprep.subr.mxu0 0.0
    %v982 = vand.u32 %v39, 4294901760
    %983 = vmatpush1.msra.mxu0 %v982
    %984 = vmatprep.subr.mxu0 0.0
    %v985 = vand.u32 %v38, 4294901760
    %986 = vmatpush1.msra.mxu0 %v985
    %987 = vmatprep.subr.mxu0 0.0
    %v988 = vand.u32 %v37, 4294901760
    %989 = vmatpush1.msra.mxu0 %v988
    %990 = vmatprep.subr.mxu0 0.0
    %v991 = vand.u32 %v36, 4294901760
    %992 = vmatpush1.msra.mxu0 %v991
    %993 = vmatprep.subr.mxu0 0.0
    %v994 = vand.u32 %v35, 4294901760
    %995 = vmatpush1.msra.mxu0 %v994
    %996 = vmatprep.subr.mxu0 0.0
    %v997 = vand.u32 %v34, 4294901760
    %998 = vmatpush1.msra.mxu0 %v997
    %999 = vmatprep.subr.mxu0 0.0
    %v1000 = vand.u32 %v33, 4294901760
    %1001 = vmatpush1.msra.mxu0 %v1000
    %1002 = vmatprep.subr.mxu0 0.0
    %v1003 = vand.u32 %v32, 4294901760
    %1004 = vmatpush1.msra.mxu0 %v1003
    %1005 = vmatprep.subr.mxu0 0.0
    %v1006 = vand.u32 %v31, 4294901760
    %1007 = vmatpush1.msra.mxu0 %v1006
    %1008 = vmatprep.subr.mxu0 0.0
    %v1009 = vand.u32 %v30, 4294901760
    %1010 = vmatpush1.msra.mxu0 %v1009
    %1011 = vmatprep.subr.mxu0 0.0
    %v1012 = vand.u32 %v29, 4294901760
    %1013 = vmatpush1.msra.mxu0 %v1012
    %1014 = vmatprep.subr.mxu0 0.0
    %v1015 = vand.u32 %v60, 4294901760
    %1016 = vmatpush2.msra.mxu0 %v1015
    %1017 = vmatprep.subr.mxu0 0.0
    %v1018 = vand.u32 %v59, 4294901760
    %1019 = vmatpush2.msra.mxu0 %v1018
    %1020 = vmatprep.subr.mxu0 0.0
    %v1021 = vand.u32 %v58, 4294901760
    %1022 = vmatpush2.msra.mxu0 %v1021
    %1023 = vmatprep.subr.mxu0 0.0
    %v1024 = vand.u32 %v57, 4294901760
    %1025 = vmatpush2.msra.mxu0 %v1024
    %1026 = vmatprep.subr.mxu0 0.0
    %v1027 = vand.u32 %v56, 4294901760
    %1028 = vmatpush2.msra.mxu0 %v1027
    %1029 = vmatprep.subr.mxu0 0.0
    %v1030 = vand.u32 %v55, 4294901760
    %1031 = vmatpush2.msra.mxu0 %v1030
    %1032 = vmatprep.subr.mxu0 0.0
    %v1033 = vand.u32 %v54, 4294901760
    %1034 = vmatpush2.msra.mxu0 %v1033
    %1035 = vmatprep.subr.mxu0 0.0
    %v1036 = vand.u32 %v53, 4294901760
    %1037 = vmatpush2.msra.mxu0 %v1036
    %1038 = vmatprep.subr.mxu0 0.0
    %v1039 = vand.u32 %v52, 4294901760
    %1040 = vmatpush2.msra.mxu0 %v1039
    %1041 = vmatprep.subr.mxu0 0.0
    %v1042 = vand.u32 %v51, 4294901760
    %1043 = vmatpush2.msra.mxu0 %v1042
    %1044 = vmatprep.subr.mxu0 0.0
    %v1045 = vand.u32 %v50, 4294901760
    %1046 = vmatpush2.msra.mxu0 %v1045
    %1047 = vmatprep.subr.mxu0 0.0
    %v1048 = vand.u32 %v49, 4294901760
    %1049 = vmatpush2.msra.mxu0 %v1048
    %1050 = vmatprep.subr.mxu0 0.0
    %v1051 = vand.u32 %v48, 4294901760
    %1052 = vmatpush2.msra.mxu0 %v1051
    %1053 = vmatprep.subr.mxu0 0.0
    %v1054 = vand.u32 %v47, 4294901760
    %1055 = vmatpush2.msra.mxu0 %v1054
    %1056 = vmatprep.subr.mxu0 0.0
    %v1057 = vand.u32 %v46, 4294901760
    %1058 = vmatpush2.msra.mxu0 %v1057
    %1059 = vmatprep.subr.mxu0 0.0
    %v1060 = vand.u32 %v45, 4294901760
    %1061 = vmatpush2.msra.mxu0 %v1060
    %v1062 = vand.u32 %v181, 4294901760
    %1063 = vmatprep.mubr.f32.mxu0 %v1062
    %v1064 = vand.u32 %v173, 4294901760
    %1065 = vmatmul.mubr.f32.gmra.mxu0 %v1064
    %v1066 = vpop.f32.mrf.mxu0
    %v1067 = vadd.f32 %v963, %v1066
    %v1068 = vpop.f32.mrf.mxu0
    %1069 = vdwg.mxu0
    %1070 = vmatprep.subr.mxu0 0.0
    %v1071 = vand.u32 %v76, 4294901760
    %1072 = vmatpush1.msra.mxu0 %v1071
    %1073 = vmatprep.subr.mxu0 0.0
    %v1074 = vand.u32 %v75, 4294901760
    %1075 = vmatpush1.msra.mxu0 %v1074
    %1076 = vmatprep.subr.mxu0 0.0
    %v1077 = vand.u32 %v74, 4294901760
    %1078 = vmatpush1.msra.mxu0 %v1077
    %1079 = vmatprep.subr.mxu0 0.0
    %v1080 = vand.u32 %v73, 4294901760
    %1081 = vmatpush1.msra.mxu0 %v1080
    %1082 = vmatprep.subr.mxu0 0.0
    %v1083 = vand.u32 %v72, 4294901760
    %1084 = vmatpush1.msra.mxu0 %v1083
    %1085 = vmatprep.subr.mxu0 0.0
    %v1086 = vand.u32 %v71, 4294901760
    %1087 = vmatpush1.msra.mxu0 %v1086
    %1088 = vmatprep.subr.mxu0 0.0
    %v1089 = vand.u32 %v70, 4294901760
    %1090 = vmatpush1.msra.mxu0 %v1089
    %1091 = vmatprep.subr.mxu0 0.0
    %v1092 = vand.u32 %v69, 4294901760
    %1093 = vmatpush1.msra.mxu0 %v1092
    %1094 = vmatprep.subr.mxu0 0.0
    %v1095 = vand.u32 %v68, 4294901760
    %1096 = vmatpush1.msra.mxu0 %v1095
    %1097 = vmatprep.subr.mxu0 0.0
    %v1098 = vand.u32 %v67, 4294901760
    %1099 = vmatpush1.msra.mxu0 %v1098
    %1100 = vmatprep.subr.mxu0 0.0
    %v1101 = vand.u32 %v66, 4294901760
    %1102 = vmatpush1.msra.mxu0 %v1101
    %1103 = vmatprep.subr.mxu0 0.0
    %v1104 = vand.u32 %v65, 4294901760
    %1105 = vmatpush1.msra.mxu0 %v1104
    %1106 = vmatprep.subr.mxu0 0.0
    %v1107 = vand.u32 %v64, 4294901760
    %1108 = vmatpush1.msra.mxu0 %v1107
    %1109 = vmatprep.subr.mxu0 0.0
    %v1110 = vand.u32 %v63, 4294901760
    %1111 = vmatpush1.msra.mxu0 %v1110
    %1112 = vmatprep.subr.mxu0 0.0
    %v1113 = vand.u32 %v62, 4294901760
    %1114 = vmatpush1.msra.mxu0 %v1113
    %1115 = vmatprep.subr.mxu0 0.0
    %v1116 = vand.u32 %v61, 4294901760
    %1117 = vmatpush1.msra.mxu0 %v1116
    %1118 = vmatprep.subr.mxu0 0.0
    %v1119 = vand.u32 %v92, 4294901760
    %1120 = vmatpush2.msra.mxu0 %v1119
    %1121 = vmatprep.subr.mxu0 0.0
    %v1122 = vand.u32 %v91, 4294901760
    %1123 = vmatpush2.msra.mxu0 %v1122
    %1124 = vmatprep.subr.mxu0 0.0
    %v1125 = vand.u32 %v90, 4294901760
    %1126 = vmatpush2.msra.mxu0 %v1125
    %1127 = vmatprep.subr.mxu0 0.0
    %v1128 = vand.u32 %v89, 4294901760
    %1129 = vmatpush2.msra.mxu0 %v1128
    %1130 = vmatprep.subr.mxu0 0.0
    %v1131 = vand.u32 %v88, 4294901760
    %1132 = vmatpush2.msra.mxu0 %v1131
    %1133 = vmatprep.subr.mxu0 0.0
    %v1134 = vand.u32 %v87, 4294901760
    %1135 = vmatpush2.msra.mxu0 %v1134
    %1136 = vmatprep.subr.mxu0 0.0
    %v1137 = vand.u32 %v86, 4294901760
    %1138 = vmatpush2.msra.mxu0 %v1137
    %1139 = vmatprep.subr.mxu0 0.0
    %v1140 = vand.u32 %v85, 4294901760
    %1141 = vmatpush2.msra.mxu0 %v1140
    %1142 = vmatprep.subr.mxu0 0.0
    %v1143 = vand.u32 %v84, 4294901760
    %1144 = vmatpush2.msra.mxu0 %v1143
    %1145 = vmatprep.subr.mxu0 0.0
    %v1146 = vand.u32 %v83, 4294901760
    %1147 = vmatpush2.msra.mxu0 %v1146
    %1148 = vmatprep.subr.mxu0 0.0
    %v1149 = vand.u32 %v82, 4294901760
    %1150 = vmatpush2.msra.mxu0 %v1149
    %1151 = vmatprep.subr.mxu0 0.0
    %v1152 = vand.u32 %v81, 4294901760
    %1153 = vmatpush2.msra.mxu0 %v1152
    %1154 = vmatprep.subr.mxu0 0.0
    %v1155 = vand.u32 %v80, 4294901760
    %1156 = vmatpush2.msra.mxu0 %v1155
    %1157 = vmatprep.subr.mxu0 0.0
    %v1158 = vand.u32 %v79, 4294901760
    %1159 = vmatpush2.msra.mxu0 %v1158
    %1160 = vmatprep.subr.mxu0 0.0
    %v1161 = vand.u32 %v78, 4294901760
    %1162 = vmatpush2.msra.mxu0 %v1161
    %1163 = vmatprep.subr.mxu0 0.0
    %v1164 = vand.u32 %v77, 4294901760
    %1165 = vmatpush2.msra.mxu0 %v1164
    %v1166 = vand.u32 %v182, 4294901760
    %v1167 = vsub.f32 %v182, %v1166
    %v1168 = vand.u32 %v1167, 4294901760
    %v1169 = vsub.f32 %v1167, %v1168
    %v1170 = vand.u32 %v1169, 4294901760
    %1171 = vmatprep.mubr.f32.mxu0 %v1170
    %v1172 = vand.u32 %v180, 4294901760
    %v1173 = vsub.f32 %v180, %v1172
    %v1174 = vand.u32 %v1173, 4294901760
    %v1175 = vsub.f32 %v1173, %v1174
    %v1176 = vand.u32 %v1175, 4294901760
    %1177 = vmatmul.mubr.f32.gmra.mxu0 %v1176
    %v1178 = vpop.f32.mrf.mxu0
    %v1179 = vadd.f32 %v1067, %v1178
    %v1180 = vpop.f32.mrf.mxu0
    %1181 = vdwg.mxu0
    %1182 = vmatprep.subr.mxu0 0.0
    %v1183 = vand.u32 %v76, 4294901760
    %v1184 = vsub.f32 %v76, %v1183
    %v1185 = vand.u32 %v1184, 4294901760
    %v1186 = vsub.f32 %v1184, %v1185
    %v1187 = vand.u32 %v1186, 4294901760
    %1188 = vmatpush1.msra.mxu0 %v1187
    %1189 = vmatprep.subr.mxu0 0.0
    %v1190 = vand.u32 %v75, 4294901760
    %v1191 = vsub.f32 %v75, %v1190
    %v1192 = vand.u32 %v1191, 4294901760
    %v1193 = vsub.f32 %v1191, %v1192
    %v1194 = vand.u32 %v1193, 4294901760
    %1195 = vmatpush1.msra.mxu0 %v1194
    %1196 = vmatprep.subr.mxu0 0.0
    %v1197 = vand.u32 %v74, 4294901760
    %v1198 = vsub.f32 %v74, %v1197
    %v1199 = vand.u32 %v1198, 4294901760
    %v1200 = vsub.f32 %v1198, %v1199
    %v1201 = vand.u32 %v1200, 4294901760
    %1202 = vmatpush1.msra.mxu0 %v1201
    %1203 = vmatprep.subr.mxu0 0.0
    %v1204 = vand.u32 %v73, 4294901760
    %v1205 = vsub.f32 %v73, %v1204
    %v1206 = vand.u32 %v1205, 4294901760
    %v1207 = vsub.f32 %v1205, %v1206
    %v1208 = vand.u32 %v1207, 4294901760
    %1209 = vmatpush1.msra.mxu0 %v1208
    %1210 = vmatprep.subr.mxu0 0.0
    %v1211 = vand.u32 %v72, 4294901760
    %v1212 = vsub.f32 %v72, %v1211
    %v1213 = vand.u32 %v1212, 4294901760
    %v1214 = vsub.f32 %v1212, %v1213
    %v1215 = vand.u32 %v1214, 4294901760
    %1216 = vmatpush1.msra.mxu0 %v1215
    %1217 = vmatprep.subr.mxu0 0.0
    %v1218 = vand.u32 %v71, 4294901760
    %v1219 = vsub.f32 %v71, %v1218
    %v1220 = vand.u32 %v1219, 4294901760
    %v1221 = vsub.f32 %v1219, %v1220
    %v1222 = vand.u32 %v1221, 4294901760
    %1223 = vmatpush1.msra.mxu0 %v1222
    %1224 = vmatprep.subr.mxu0 0.0
    %v1225 = vand.u32 %v70, 4294901760
    %v1226 = vsub.f32 %v70, %v1225
    %v1227 = vand.u32 %v1226, 4294901760
    %v1228 = vsub.f32 %v1226, %v1227
    %v1229 = vand.u32 %v1228, 4294901760
    %1230 = vmatpush1.msra.mxu0 %v1229
    %1231 = vmatprep.subr.mxu0 0.0
    %v1232 = vand.u32 %v69, 4294901760
    %v1233 = vsub.f32 %v69, %v1232
    %v1234 = vand.u32 %v1233, 4294901760
    %v1235 = vsub.f32 %v1233, %v1234
    %v1236 = vand.u32 %v1235, 4294901760
    %1237 = vmatpush1.msra.mxu0 %v1236
    %1238 = vmatprep.subr.mxu0 0.0
    %v1239 = vand.u32 %v68, 4294901760
    %v1240 = vsub.f32 %v68, %v1239
    %v1241 = vand.u32 %v1240, 4294901760
    %v1242 = vsub.f32 %v1240, %v1241
    %v1243 = vand.u32 %v1242, 4294901760
    %1244 = vmatpush1.msra.mxu0 %v1243
    %1245 = vmatprep.subr.mxu0 0.0
    %v1246 = vand.u32 %v67, 4294901760
    %v1247 = vsub.f32 %v67, %v1246
    %v1248 = vand.u32 %v1247, 4294901760
    %v1249 = vsub.f32 %v1247, %v1248
    %v1250 = vand.u32 %v1249, 4294901760
    %1251 = vmatpush1.msra.mxu0 %v1250
    %1252 = vmatprep.subr.mxu0 0.0
    %v1253 = vand.u32 %v66, 4294901760
    %v1254 = vsub.f32 %v66, %v1253
    %v1255 = vand.u32 %v1254, 4294901760
    %v1256 = vsub.f32 %v1254, %v1255
    %v1257 = vand.u32 %v1256, 4294901760
    %1258 = vmatpush1.msra.mxu0 %v1257
    %1259 = vmatprep.subr.mxu0 0.0
    %v1260 = vand.u32 %v65, 4294901760
    %v1261 = vsub.f32 %v65, %v1260
    %v1262 = vand.u32 %v1261, 4294901760
    %v1263 = vsub.f32 %v1261, %v1262
    %v1264 = vand.u32 %v1263, 4294901760
    %1265 = vmatpush1.msra.mxu0 %v1264
    %1266 = vmatprep.subr.mxu0 0.0
    %v1267 = vand.u32 %v64, 4294901760
    %v1268 = vsub.f32 %v64, %v1267
    %v1269 = vand.u32 %v1268, 4294901760
    %v1270 = vsub.f32 %v1268, %v1269
    %v1271 = vand.u32 %v1270, 4294901760
    %1272 = vmatpush1.msra.mxu0 %v1271
    %1273 = vmatprep.subr.mxu0 0.0
    %v1274 = vand.u32 %v63, 4294901760
    %v1275 = vsub.f32 %v63, %v1274
    %v1276 = vand.u32 %v1275, 4294901760
    %v1277 = vsub.f32 %v1275, %v1276
    %v1278 = vand.u32 %v1277, 4294901760
    %1279 = vmatpush1.msra.mxu0 %v1278
    %1280 = vmatprep.subr.mxu0 0.0
    %v1281 = vand.u32 %v62, 4294901760
    %v1282 = vsub.f32 %v62, %v1281
    %v1283 = vand.u32 %v1282, 4294901760
    %v1284 = vsub.f32 %v1282, %v1283
    %v1285 = vand.u32 %v1284, 4294901760
    %1286 = vmatpush1.msra.mxu0 %v1285
    %1287 = vmatprep.subr.mxu0 0.0
    %v1288 = vand.u32 %v61, 4294901760
    %v1289 = vsub.f32 %v61, %v1288
    %v1290 = vand.u32 %v1289, 4294901760
    %v1291 = vsub.f32 %v1289, %v1290
    %v1292 = vand.u32 %v1291, 4294901760
    %1293 = vmatpush1.msra.mxu0 %v1292
    %1294 = vmatprep.subr.mxu0 0.0
    %v1295 = vand.u32 %v92, 4294901760
    %v1296 = vsub.f32 %v92, %v1295
    %v1297 = vand.u32 %v1296, 4294901760
    %v1298 = vsub.f32 %v1296, %v1297
    %v1299 = vand.u32 %v1298, 4294901760
    %1300 = vmatpush2.msra.mxu0 %v1299
    %1301 = vmatprep.subr.mxu0 0.0
    %v1302 = vand.u32 %v91, 4294901760
    %v1303 = vsub.f32 %v91, %v1302
    %v1304 = vand.u32 %v1303, 4294901760
    %v1305 = vsub.f32 %v1303, %v1304
    %v1306 = vand.u32 %v1305, 4294901760
    %1307 = vmatpush2.msra.mxu0 %v1306
    %1308 = vmatprep.subr.mxu0 0.0
    %v1309 = vand.u32 %v90, 4294901760
    %v1310 = vsub.f32 %v90, %v1309
    %v1311 = vand.u32 %v1310, 4294901760
    %v1312 = vsub.f32 %v1310, %v1311
    %v1313 = vand.u32 %v1312, 4294901760
    %1314 = vmatpush2.msra.mxu0 %v1313
    %1315 = vmatprep.subr.mxu0 0.0
    %v1316 = vand.u32 %v89, 4294901760
    %v1317 = vsub.f32 %v89, %v1316
    %v1318 = vand.u32 %v1317, 4294901760
    %v1319 = vsub.f32 %v1317, %v1318
    %v1320 = vand.u32 %v1319, 4294901760
    %1321 = vmatpush2.msra.mxu0 %v1320
    %1322 = vmatprep.subr.mxu0 0.0
    %v1323 = vand.u32 %v88, 4294901760
    %v1324 = vsub.f32 %v88, %v1323
    %v1325 = vand.u32 %v1324, 4294901760
    %v1326 = vsub.f32 %v1324, %v1325
    %v1327 = vand.u32 %v1326, 4294901760
    %1328 = vmatpush2.msra.mxu0 %v1327
    %1329 = vmatprep.subr.mxu0 0.0
    %v1330 = vand.u32 %v87, 4294901760
    %v1331 = vsub.f32 %v87, %v1330
    %v1332 = vand.u32 %v1331, 4294901760
    %v1333 = vsub.f32 %v1331, %v1332
    %v1334 = vand.u32 %v1333, 4294901760
    %1335 = vmatpush2.msra.mxu0 %v1334
    %1336 = vmatprep.subr.mxu0 0.0
    %v1337 = vand.u32 %v86, 4294901760
    %v1338 = vsub.f32 %v86, %v1337
    %v1339 = vand.u32 %v1338, 4294901760
    %v1340 = vsub.f32 %v1338, %v1339
    %v1341 = vand.u32 %v1340, 4294901760
    %1342 = vmatpush2.msra.mxu0 %v1341
    %1343 = vmatprep.subr.mxu0 0.0
    %v1344 = vand.u32 %v85, 4294901760
    %v1345 = vsub.f32 %v85, %v1344
    %v1346 = vand.u32 %v1345, 4294901760
    %v1347 = vsub.f32 %v1345, %v1346
    %v1348 = vand.u32 %v1347, 4294901760
    %1349 = vmatpush2.msra.mxu0 %v1348
    %1350 = vmatprep.subr.mxu0 0.0
    %v1351 = vand.u32 %v84, 4294901760
    %v1352 = vsub.f32 %v84, %v1351
    %v1353 = vand.u32 %v1352, 4294901760
    %v1354 = vsub.f32 %v1352, %v1353
    %v1355 = vand.u32 %v1354, 4294901760
    %1356 = vmatpush2.msra.mxu0 %v1355
    %1357 = vmatprep.subr.mxu0 0.0
    %v1358 = vand.u32 %v83, 4294901760
    %v1359 = vsub.f32 %v83, %v1358
    %v1360 = vand.u32 %v1359, 4294901760
    %v1361 = vsub.f32 %v1359, %v1360
    %v1362 = vand.u32 %v1361, 4294901760
    %1363 = vmatpush2.msra.mxu0 %v1362
    %1364 = vmatprep.subr.mxu0 0.0
    %v1365 = vand.u32 %v82, 4294901760
    %v1366 = vsub.f32 %v82, %v1365
    %v1367 = vand.u32 %v1366, 4294901760
    %v1368 = vsub.f32 %v1366, %v1367
    %v1369 = vand.u32 %v1368, 4294901760
    %1370 = vmatpush2.msra.mxu0 %v1369
    %1371 = vmatprep.subr.mxu0 0.0
    %v1372 = vand.u32 %v81, 4294901760
    %v1373 = vsub.f32 %v81, %v1372
    %v1374 = vand.u32 %v1373, 4294901760
    %v1375 = vsub.f32 %v1373, %v1374
    %v1376 = vand.u32 %v1375, 4294901760
    %1377 = vmatpush2.msra.mxu0 %v1376
    %1378 = vmatprep.subr.mxu0 0.0
    %v1379 = vand.u32 %v80, 4294901760
    %v1380 = vsub.f32 %v80, %v1379
    %v1381 = vand.u32 %v1380, 4294901760
    %v1382 = vsub.f32 %v1380, %v1381
    %v1383 = vand.u32 %v1382, 4294901760
    %1384 = vmatpush2.msra.mxu0 %v1383
    %1385 = vmatprep.subr.mxu0 0.0
    %v1386 = vand.u32 %v79, 4294901760
    %v1387 = vsub.f32 %v79, %v1386
    %v1388 = vand.u32 %v1387, 4294901760
    %v1389 = vsub.f32 %v1387, %v1388
    %v1390 = vand.u32 %v1389, 4294901760
    %1391 = vmatpush2.msra.mxu0 %v1390
    %1392 = vmatprep.subr.mxu0 0.0
    %v1393 = vand.u32 %v78, 4294901760
    %v1394 = vsub.f32 %v78, %v1393
    %v1395 = vand.u32 %v1394, 4294901760
    %v1396 = vsub.f32 %v1394, %v1395
    %v1397 = vand.u32 %v1396, 4294901760
    %1398 = vmatpush2.msra.mxu0 %v1397
    %1399 = vmatprep.subr.mxu0 0.0
    %v1400 = vand.u32 %v77, 4294901760
    %v1401 = vsub.f32 %v77, %v1400
    %v1402 = vand.u32 %v1401, 4294901760
    %v1403 = vsub.f32 %v1401, %v1402
    %v1404 = vand.u32 %v1403, 4294901760
    %1405 = vmatpush2.msra.mxu0 %v1404
    %v1406 = vand.u32 %v182, 4294901760
    %1407 = vmatprep.mubr.f32.mxu0 %v1406
    %v1408 = vand.u32 %v180, 4294901760
    %1409 = vmatmul.mubr.f32.gmra.mxu0 %v1408
    %v1410 = vpop.f32.mrf.mxu0
    %v1411 = vadd.f32 %v1179, %v1410
    %v1412 = vpop.f32.mrf.mxu0
    %1413 = vdwg.mxu0
    %1414 = vmatprep.subr.mxu0 0.0
    %v1415 = vand.u32 %v76, 4294901760
    %v1416 = vsub.f32 %v76, %v1415
    %1417 = vmatpush1.msra.mxu0 %v1416
    %1418 = vmatprep.subr.mxu0 0.0
    %v1419 = vand.u32 %v75, 4294901760
    %v1420 = vsub.f32 %v75, %v1419
    %1421 = vmatpush1.msra.mxu0 %v1420
    %1422 = vmatprep.subr.mxu0 0.0
    %v1423 = vand.u32 %v74, 4294901760
    %v1424 = vsub.f32 %v74, %v1423
    %1425 = vmatpush1.msra.mxu0 %v1424
    %1426 = vmatprep.subr.mxu0 0.0
    %v1427 = vand.u32 %v73, 4294901760
    %v1428 = vsub.f32 %v73, %v1427
    %1429 = vmatpush1.msra.mxu0 %v1428
    %1430 = vmatprep.subr.mxu0 0.0
    %v1431 = vand.u32 %v72, 4294901760
    %v1432 = vsub.f32 %v72, %v1431
    %1433 = vmatpush1.msra.mxu0 %v1432
    %1434 = vmatprep.subr.mxu0 0.0
    %v1435 = vand.u32 %v71, 4294901760
    %v1436 = vsub.f32 %v71, %v1435
    %1437 = vmatpush1.msra.mxu0 %v1436
    %1438 = vmatprep.subr.mxu0 0.0
    %v1439 = vand.u32 %v70, 4294901760
    %v1440 = vsub.f32 %v70, %v1439
    %1441 = vmatpush1.msra.mxu0 %v1440
    %1442 = vmatprep.subr.mxu0 0.0
    %v1443 = vand.u32 %v69, 4294901760
    %v1444 = vsub.f32 %v69, %v1443
    %1445 = vmatpush1.msra.mxu0 %v1444
    %1446 = vmatprep.subr.mxu0 0.0
    %v1447 = vand.u32 %v68, 4294901760
    %v1448 = vsub.f32 %v68, %v1447
    %1449 = vmatpush1.msra.mxu0 %v1448
    %1450 = vmatprep.subr.mxu0 0.0
    %v1451 = vand.u32 %v67, 4294901760
    %v1452 = vsub.f32 %v67, %v1451
    %1453 = vmatpush1.msra.mxu0 %v1452
    %1454 = vmatprep.subr.mxu0 0.0
    %v1455 = vand.u32 %v66, 4294901760
    %v1456 = vsub.f32 %v66, %v1455
    %1457 = vmatpush1.msra.mxu0 %v1456
    %1458 = vmatprep.subr.mxu0 0.0
    %v1459 = vand.u32 %v65, 4294901760
    %v1460 = vsub.f32 %v65, %v1459
    %1461 = vmatpush1.msra.mxu0 %v1460
    %1462 = vmatprep.subr.mxu0 0.0
    %v1463 = vand.u32 %v64, 4294901760
    %v1464 = vsub.f32 %v64, %v1463
    %1465 = vmatpush1.msra.mxu0 %v1464
    %1466 = vmatprep.subr.mxu0 0.0
    %v1467 = vand.u32 %v63, 4294901760
    %v1468 = vsub.f32 %v63, %v1467
    %1469 = vmatpush1.msra.mxu0 %v1468
    %1470 = vmatprep.subr.mxu0 0.0
    %v1471 = vand.u32 %v62, 4294901760
    %v1472 = vsub.f32 %v62, %v1471
    %1473 = vmatpush1.msra.mxu0 %v1472
    %1474 = vmatprep.subr.mxu0 0.0
    %v1475 = vand.u32 %v61, 4294901760
    %v1476 = vsub.f32 %v61, %v1475
    %1477 = vmatpush1.msra.mxu0 %v1476
    %1478 = vmatprep.subr.mxu0 0.0
    %v1479 = vand.u32 %v92, 4294901760
    %v1480 = vsub.f32 %v92, %v1479
    %1481 = vmatpush2.msra.mxu0 %v1480
    %1482 = vmatprep.subr.mxu0 0.0
    %v1483 = vand.u32 %v91, 4294901760
    %v1484 = vsub.f32 %v91, %v1483
    %1485 = vmatpush2.msra.mxu0 %v1484
    %1486 = vmatprep.subr.mxu0 0.0
    %v1487 = vand.u32 %v90, 4294901760
    %v1488 = vsub.f32 %v90, %v1487
    %1489 = vmatpush2.msra.mxu0 %v1488
    %1490 = vmatprep.subr.mxu0 0.0
    %v1491 = vand.u32 %v89, 4294901760
    %v1492 = vsub.f32 %v89, %v1491
    %1493 = vmatpush2.msra.mxu0 %v1492
    %1494 = vmatprep.subr.mxu0 0.0
    %v1495 = vand.u32 %v88, 4294901760
    %v1496 = vsub.f32 %v88, %v1495
    %1497 = vmatpush2.msra.mxu0 %v1496
    %1498 = vmatprep.subr.mxu0 0.0
    %v1499 = vand.u32 %v87, 4294901760
    %v1500 = vsub.f32 %v87, %v1499
    %1501 = vmatpush2.msra.mxu0 %v1500
    %1502 = vmatprep.subr.mxu0 0.0
    %v1503 = vand.u32 %v86, 4294901760
    %v1504 = vsub.f32 %v86, %v1503
    %1505 = vmatpush2.msra.mxu0 %v1504
    %1506 = vmatprep.subr.mxu0 0.0
    %v1507 = vand.u32 %v85, 4294901760
    %v1508 = vsub.f32 %v85, %v1507
    %1509 = vmatpush2.msra.mxu0 %v1508
    %1510 = vmatprep.subr.mxu0 0.0
    %v1511 = vand.u32 %v84, 4294901760
    %v1512 = vsub.f32 %v84, %v1511
    %1513 = vmatpush2.msra.mxu0 %v1512
    %1514 = vmatprep.subr.mxu0 0.0
    %v1515 = vand.u32 %v83, 4294901760
    %v1516 = vsub.f32 %v83, %v1515
    %1517 = vmatpush2.msra.mxu0 %v1516
    %1518 = vmatprep.subr.mxu0 0.0
    %v1519 = vand.u32 %v82, 4294901760
    %v1520 = vsub.f32 %v82, %v1519
    %1521 = vmatpush2.msra.mxu0 %v1520
    %1522 = vmatprep.subr.mxu0 0.0
    %v1523 = vand.u32 %v81, 4294901760
    %v1524 = vsub.f32 %v81, %v1523
    %1525 = vmatpush2.msra.mxu0 %v1524
    %1526 = vmatprep.subr.mxu0 0.0
    %v1527 = vand.u32 %v80, 4294901760
    %v1528 = vsub.f32 %v80, %v1527
    %1529 = vmatpush2.msra.mxu0 %v1528
    %1530 = vmatprep.subr.mxu0 0.0
    %v1531 = vand.u32 %v79, 4294901760
    %v1532 = vsub.f32 %v79, %v1531
    %1533 = vmatpush2.msra.mxu0 %v1532
    %1534 = vmatprep.subr.mxu0 0.0
    %v1535 = vand.u32 %v78, 4294901760
    %v1536 = vsub.f32 %v78, %v1535
    %1537 = vmatpush2.msra.mxu0 %v1536
    %1538 = vmatprep.subr.mxu0 0.0
    %v1539 = vand.u32 %v77, 4294901760
    %v1540 = vsub.f32 %v77, %v1539
    %1541 = vmatpush2.msra.mxu0 %v1540
    %v1542 = vand.u32 %v182, 4294901760
    %v1543 = vsub.f32 %v182, %v1542
    %1544 = vmatprep.mubr.f32.mxu0 %v1543
    %v1545 = vand.u32 %v180, 4294901760
    %v1546 = vsub.f32 %v180, %v1545
    %1547 = vmatmul.mubr.f32.gmra.mxu0 %v1546
    %v1548 = vpop.f32.mrf.mxu0
    %v1549 = vadd.f32 %v1411, %v1548
    %v1550 = vpop.f32.mrf.mxu0
    %1551 = vdwg.mxu0
    %1552 = vmatprep.subr.mxu0 0.0
    %v1553 = vand.u32 %v76, 4294901760
    %1554 = vmatpush1.msra.mxu0 %v1553
    %1555 = vmatprep.subr.mxu0 0.0
    %v1556 = vand.u32 %v75, 4294901760
    %1557 = vmatpush1.msra.mxu0 %v1556
    %1558 = vmatprep.subr.mxu0 0.0
    %v1559 = vand.u32 %v74, 4294901760
    %1560 = vmatpush1.msra.mxu0 %v1559
    %1561 = vmatprep.subr.mxu0 0.0
    %v1562 = vand.u32 %v73, 4294901760
    %1563 = vmatpush1.msra.mxu0 %v1562
    %1564 = vmatprep.subr.mxu0 0.0
    %v1565 = vand.u32 %v72, 4294901760
    %1566 = vmatpush1.msra.mxu0 %v1565
    %1567 = vmatprep.subr.mxu0 0.0
    %v1568 = vand.u32 %v71, 4294901760
    %1569 = vmatpush1.msra.mxu0 %v1568
    %1570 = vmatprep.subr.mxu0 0.0
    %v1571 = vand.u32 %v70, 4294901760
    %1572 = vmatpush1.msra.mxu0 %v1571
    %1573 = vmatprep.subr.mxu0 0.0
    %v1574 = vand.u32 %v69, 4294901760
    %1575 = vmatpush1.msra.mxu0 %v1574
    %1576 = vmatprep.subr.mxu0 0.0
    %v1577 = vand.u32 %v68, 4294901760
    %1578 = vmatpush1.msra.mxu0 %v1577
    %1579 = vmatprep.subr.mxu0 0.0
    %v1580 = vand.u32 %v67, 4294901760
    %1581 = vmatpush1.msra.mxu0 %v1580
    %1582 = vmatprep.subr.mxu0 0.0
    %v1583 = vand.u32 %v66, 4294901760
    %1584 = vmatpush1.msra.mxu0 %v1583
    %1585 = vmatprep.subr.mxu0 0.0
    %v1586 = vand.u32 %v65, 4294901760
    %1587 = vmatpush1.msra.mxu0 %v1586
    %1588 = vmatprep.subr.mxu0 0.0
    %v1589 = vand.u32 %v64, 4294901760
    %1590 = vmatpush1.msra.mxu0 %v1589
    %1591 = vmatprep.subr.mxu0 0.0
    %v1592 = vand.u32 %v63, 4294901760
    %1593 = vmatpush1.msra.mxu0 %v1592
    %1594 = vmatprep.subr.mxu0 0.0
    %v1595 = vand.u32 %v62, 4294901760
    %1596 = vmatpush1.msra.mxu0 %v1595
    %1597 = vmatprep.subr.mxu0 0.0
    %v1598 = vand.u32 %v61, 4294901760
    %1599 = vmatpush1.msra.mxu0 %v1598
    %1600 = vmatprep.subr.mxu0 0.0
    %v1601 = vand.u32 %v92, 4294901760
    %1602 = vmatpush2.msra.mxu0 %v1601
    %1603 = vmatprep.subr.mxu0 0.0
    %v1604 = vand.u32 %v91, 4294901760
    %1605 = vmatpush2.msra.mxu0 %v1604
    %1606 = vmatprep.subr.mxu0 0.0
    %v1607 = vand.u32 %v90, 4294901760
    %1608 = vmatpush2.msra.mxu0 %v1607
    %1609 = vmatprep.subr.mxu0 0.0
    %v1610 = vand.u32 %v89, 4294901760
    %1611 = vmatpush2.msra.mxu0 %v1610
    %1612 = vmatprep.subr.mxu0 0.0
    %v1613 = vand.u32 %v88, 4294901760
    %1614 = vmatpush2.msra.mxu0 %v1613
    %1615 = vmatprep.subr.mxu0 0.0
    %v1616 = vand.u32 %v87, 4294901760
    %1617 = vmatpush2.msra.mxu0 %v1616
    %1618 = vmatprep.subr.mxu0 0.0
    %v1619 = vand.u32 %v86, 4294901760
    %1620 = vmatpush2.msra.mxu0 %v1619
    %1621 = vmatprep.subr.mxu0 0.0
    %v1622 = vand.u32 %v85, 4294901760
    %1623 = vmatpush2.msra.mxu0 %v1622
    %1624 = vmatprep.subr.mxu0 0.0
    %v1625 = vand.u32 %v84, 4294901760
    %1626 = vmatpush2.msra.mxu0 %v1625
    %1627 = vmatprep.subr.mxu0 0.0
    %v1628 = vand.u32 %v83, 4294901760
    %1629 = vmatpush2.msra.mxu0 %v1628
    %1630 = vmatprep.subr.mxu0 0.0
    %v1631 = vand.u32 %v82, 4294901760
    %1632 = vmatpush2.msra.mxu0 %v1631
    %1633 = vmatprep.subr.mxu0 0.0
    %v1634 = vand.u32 %v81, 4294901760
    %1635 = vmatpush2.msra.mxu0 %v1634
    %1636 = vmatprep.subr.mxu0 0.0
    %v1637 = vand.u32 %v80, 4294901760
    %1638 = vmatpush2.msra.mxu0 %v1637
    %1639 = vmatprep.subr.mxu0 0.0
    %v1640 = vand.u32 %v79, 4294901760
    %1641 = vmatpush2.msra.mxu0 %v1640
    %1642 = vmatprep.subr.mxu0 0.0
    %v1643 = vand.u32 %v78, 4294901760
    %1644 = vmatpush2.msra.mxu0 %v1643
    %1645 = vmatprep.subr.mxu0 0.0
    %v1646 = vand.u32 %v77, 4294901760
    %1647 = vmatpush2.msra.mxu0 %v1646
    %v1648 = vand.u32 %v182, 4294901760
    %v1649 = vsub.f32 %v182, %v1648
    %v1650 = vand.u32 %v1649, 4294901760
    %1651 = vmatprep.mubr.f32.mxu0 %v1650
    %v1652 = vand.u32 %v180, 4294901760
    %v1653 = vsub.f32 %v180, %v1652
    %v1654 = vand.u32 %v1653, 4294901760
    %1655 = vmatmul.mubr.f32.gmra.mxu0 %v1654
    %v1656 = vpop.f32.mrf.mxu0
    %v1657 = vadd.f32 %v1549, %v1656
    %v1658 = vpop.f32.mrf.mxu0
    %1659 = vdwg.mxu0
    %1660 = vmatprep.subr.mxu0 0.0
    %v1661 = vand.u32 %v76, 4294901760
    %v1662 = vsub.f32 %v76, %v1661
    %v1663 = vand.u32 %v1662, 4294901760
    %1664 = vmatpush1.msra.mxu0 %v1663
    %1665 = vmatprep.subr.mxu0 0.0
    %v1666 = vand.u32 %v75, 4294901760
    %v1667 = vsub.f32 %v75, %v1666
    %v1668 = vand.u32 %v1667, 4294901760
    %1669 = vmatpush1.msra.mxu0 %v1668
    %1670 = vmatprep.subr.mxu0 0.0
    %v1671 = vand.u32 %v74, 4294901760
    %v1672 = vsub.f32 %v74, %v1671
    %v1673 = vand.u32 %v1672, 4294901760
    %1674 = vmatpush1.msra.mxu0 %v1673
    %1675 = vmatprep.subr.mxu0 0.0
    %v1676 = vand.u32 %v73, 4294901760
    %v1677 = vsub.f32 %v73, %v1676
    %v1678 = vand.u32 %v1677, 4294901760
    %1679 = vmatpush1.msra.mxu0 %v1678
    %1680 = vmatprep.subr.mxu0 0.0
    %v1681 = vand.u32 %v72, 4294901760
    %v1682 = vsub.f32 %v72, %v1681
    %v1683 = vand.u32 %v1682, 4294901760
    %1684 = vmatpush1.msra.mxu0 %v1683
    %1685 = vmatprep.subr.mxu0 0.0
    %v1686 = vand.u32 %v71, 4294901760
    %v1687 = vsub.f32 %v71, %v1686
    %v1688 = vand.u32 %v1687, 4294901760
    %1689 = vmatpush1.msra.mxu0 %v1688
    %1690 = vmatprep.subr.mxu0 0.0
    %v1691 = vand.u32 %v70, 4294901760
    %v1692 = vsub.f32 %v70, %v1691
    %v1693 = vand.u32 %v1692, 4294901760
    %1694 = vmatpush1.msra.mxu0 %v1693
    %1695 = vmatprep.subr.mxu0 0.0
    %v1696 = vand.u32 %v69, 4294901760
    %v1697 = vsub.f32 %v69, %v1696
    %v1698 = vand.u32 %v1697, 4294901760
    %1699 = vmatpush1.msra.mxu0 %v1698
    %1700 = vmatprep.subr.mxu0 0.0
    %v1701 = vand.u32 %v68, 4294901760
    %v1702 = vsub.f32 %v68, %v1701
    %v1703 = vand.u32 %v1702, 4294901760
    %1704 = vmatpush1.msra.mxu0 %v1703
    %1705 = vmatprep.subr.mxu0 0.0
    %v1706 = vand.u32 %v67, 4294901760
    %v1707 = vsub.f32 %v67, %v1706
    %v1708 = vand.u32 %v1707, 4294901760
    %1709 = vmatpush1.msra.mxu0 %v1708
    %1710 = vmatprep.subr.mxu0 0.0
    %v1711 = vand.u32 %v66, 4294901760
    %v1712 = vsub.f32 %v66, %v1711
    %v1713 = vand.u32 %v1712, 4294901760
    %1714 = vmatpush1.msra.mxu0 %v1713
    %1715 = vmatprep.subr.mxu0 0.0
    %v1716 = vand.u32 %v65, 4294901760
    %v1717 = vsub.f32 %v65, %v1716
    %v1718 = vand.u32 %v1717, 4294901760
    %1719 = vmatpush1.msra.mxu0 %v1718
    %1720 = vmatprep.subr.mxu0 0.0
    %v1721 = vand.u32 %v64, 4294901760
    %v1722 = vsub.f32 %v64, %v1721
    %v1723 = vand.u32 %v1722, 4294901760
    %1724 = vmatpush1.msra.mxu0 %v1723
    %1725 = vmatprep.subr.mxu0 0.0
    %v1726 = vand.u32 %v63, 4294901760
    %v1727 = vsub.f32 %v63, %v1726
    %v1728 = vand.u32 %v1727, 4294901760
    %1729 = vmatpush1.msra.mxu0 %v1728
    %1730 = vmatprep.subr.mxu0 0.0
    %v1731 = vand.u32 %v62, 4294901760
    %v1732 = vsub.f32 %v62, %v1731
    %v1733 = vand.u32 %v1732, 4294901760
    %1734 = vmatpush1.msra.mxu0 %v1733
    %1735 = vmatprep.subr.mxu0 0.0
    %v1736 = vand.u32 %v61, 4294901760
    %v1737 = vsub.f32 %v61, %v1736
    %v1738 = vand.u32 %v1737, 4294901760
    %1739 = vmatpush1.msra.mxu0 %v1738
    %1740 = vmatprep.subr.mxu0 0.0
    %v1741 = vand.u32 %v92, 4294901760
    %v1742 = vsub.f32 %v92, %v1741
    %v1743 = vand.u32 %v1742, 4294901760
    %1744 = vmatpush2.msra.mxu0 %v1743
    %1745 = vmatprep.subr.mxu0 0.0
    %v1746 = vand.u32 %v91, 4294901760
    %v1747 = vsub.f32 %v91, %v1746
    %v1748 = vand.u32 %v1747, 4294901760
    %1749 = vmatpush2.msra.mxu0 %v1748
    %1750 = vmatprep.subr.mxu0 0.0
    %v1751 = vand.u32 %v90, 4294901760
    %v1752 = vsub.f32 %v90, %v1751
    %v1753 = vand.u32 %v1752, 4294901760
    %1754 = vmatpush2.msra.mxu0 %v1753
    %1755 = vmatprep.subr.mxu0 0.0
    %v1756 = vand.u32 %v89, 4294901760
    %v1757 = vsub.f32 %v89, %v1756
    %v1758 = vand.u32 %v1757, 4294901760
    %1759 = vmatpush2.msra.mxu0 %v1758
    %1760 = vmatprep.subr.mxu0 0.0
    %v1761 = vand.u32 %v88, 4294901760
    %v1762 = vsub.f32 %v88, %v1761
    %v1763 = vand.u32 %v1762, 4294901760
    %1764 = vmatpush2.msra.mxu0 %v1763
    %1765 = vmatprep.subr.mxu0 0.0
    %v1766 = vand.u32 %v87, 4294901760
    %v1767 = vsub.f32 %v87, %v1766
    %v1768 = vand.u32 %v1767, 4294901760
    %1769 = vmatpush2.msra.mxu0 %v1768
    %1770 = vmatprep.subr.mxu0 0.0
    %v1771 = vand.u32 %v86, 4294901760
    %v1772 = vsub.f32 %v86, %v1771
    %v1773 = vand.u32 %v1772, 4294901760
    %1774 = vmatpush2.msra.mxu0 %v1773
    %1775 = vmatprep.subr.mxu0 0.0
    %v1776 = vand.u32 %v85, 4294901760
    %v1777 = vsub.f32 %v85, %v1776
    %v1778 = vand.u32 %v1777, 4294901760
    %1779 = vmatpush2.msra.mxu0 %v1778
    %1780 = vmatprep.subr.mxu0 0.0
    %v1781 = vand.u32 %v84, 4294901760
    %v1782 = vsub.f32 %v84, %v1781
    %v1783 = vand.u32 %v1782, 4294901760
    %1784 = vmatpush2.msra.mxu0 %v1783
    %1785 = vmatprep.subr.mxu0 0.0
    %v1786 = vand.u32 %v83, 4294901760
    %v1787 = vsub.f32 %v83, %v1786
    %v1788 = vand.u32 %v1787, 4294901760
    %1789 = vmatpush2.msra.mxu0 %v1788
    %1790 = vmatprep.subr.mxu0 0.0
    %v1791 = vand.u32 %v82, 4294901760
    %v1792 = vsub.f32 %v82, %v1791
    %v1793 = vand.u32 %v1792, 4294901760
    %1794 = vmatpush2.msra.mxu0 %v1793
    %1795 = vmatprep.subr.mxu0 0.0
    %v1796 = vand.u32 %v81, 4294901760
    %v1797 = vsub.f32 %v81, %v1796
    %v1798 = vand.u32 %v1797, 4294901760
    %1799 = vmatpush2.msra.mxu0 %v1798
    %1800 = vmatprep.subr.mxu0 0.0
    %v1801 = vand.u32 %v80, 4294901760
    %v1802 = vsub.f32 %v80, %v1801
    %v1803 = vand.u32 %v1802, 4294901760
    %1804 = vmatpush2.msra.mxu0 %v1803
    %1805 = vmatprep.subr.mxu0 0.0
    %v1806 = vand.u32 %v79, 4294901760
    %v1807 = vsub.f32 %v79, %v1806
    %v1808 = vand.u32 %v1807, 4294901760
    %1809 = vmatpush2.msra.mxu0 %v1808
    %1810 = vmatprep.subr.mxu0 0.0
    %v1811 = vand.u32 %v78, 4294901760
    %v1812 = vsub.f32 %v78, %v1811
    %v1813 = vand.u32 %v1812, 4294901760
    %1814 = vmatpush2.msra.mxu0 %v1813
    %1815 = vmatprep.subr.mxu0 0.0
    %v1816 = vand.u32 %v77, 4294901760
    %v1817 = vsub.f32 %v77, %v1816
    %v1818 = vand.u32 %v1817, 4294901760
    %1819 = vmatpush2.msra.mxu0 %v1818
    %v1820 = vand.u32 %v182, 4294901760
    %1821 = vmatprep.mubr.f32.mxu0 %v1820
    %v1822 = vand.u32 %v180, 4294901760
    %1823 = vmatmul.mubr.f32.gmra.mxu0 %v1822
    %v1824 = vpop.f32.mrf.mxu0
    %v1825 = vadd.f32 %v1657, %v1824
    %v1826 = vpop.f32.mrf.mxu0
    %1827 = vdwg.mxu0
    %1828 = vmatprep.subr.mxu0 0.0
    %v1829 = vand.u32 %v76, 4294901760
    %1830 = vmatpush1.msra.mxu0 %v1829
    %1831 = vmatprep.subr.mxu0 0.0
    %v1832 = vand.u32 %v75, 4294901760
    %1833 = vmatpush1.msra.mxu0 %v1832
    %1834 = vmatprep.subr.mxu0 0.0
    %v1835 = vand.u32 %v74, 4294901760
    %1836 = vmatpush1.msra.mxu0 %v1835
    %1837 = vmatprep.subr.mxu0 0.0
    %v1838 = vand.u32 %v73, 4294901760
    %1839 = vmatpush1.msra.mxu0 %v1838
    %1840 = vmatprep.subr.mxu0 0.0
    %v1841 = vand.u32 %v72, 4294901760
    %1842 = vmatpush1.msra.mxu0 %v1841
    %1843 = vmatprep.subr.mxu0 0.0
    %v1844 = vand.u32 %v71, 4294901760
    %1845 = vmatpush1.msra.mxu0 %v1844
    %1846 = vmatprep.subr.mxu0 0.0
    %v1847 = vand.u32 %v70, 4294901760
    %1848 = vmatpush1.msra.mxu0 %v1847
    %1849 = vmatprep.subr.mxu0 0.0
    %v1850 = vand.u32 %v69, 4294901760
    %1851 = vmatpush1.msra.mxu0 %v1850
    %1852 = vmatprep.subr.mxu0 0.0
    %v1853 = vand.u32 %v68, 4294901760
    %1854 = vmatpush1.msra.mxu0 %v1853
    %1855 = vmatprep.subr.mxu0 0.0
    %v1856 = vand.u32 %v67, 4294901760
    %1857 = vmatpush1.msra.mxu0 %v1856
    %1858 = vmatprep.subr.mxu0 0.0
    %v1859 = vand.u32 %v66, 4294901760
    %1860 = vmatpush1.msra.mxu0 %v1859
    %1861 = vmatprep.subr.mxu0 0.0
    %v1862 = vand.u32 %v65, 4294901760
    %1863 = vmatpush1.msra.mxu0 %v1862
    %1864 = vmatprep.subr.mxu0 0.0
    %v1865 = vand.u32 %v64, 4294901760
    %1866 = vmatpush1.msra.mxu0 %v1865
    %1867 = vmatprep.subr.mxu0 0.0
    %v1868 = vand.u32 %v63, 4294901760
    %1869 = vmatpush1.msra.mxu0 %v1868
    %1870 = vmatprep.subr.mxu0 0.0
    %v1871 = vand.u32 %v62, 4294901760
    %1872 = vmatpush1.msra.mxu0 %v1871
    %1873 = vmatprep.subr.mxu0 0.0
    %v1874 = vand.u32 %v61, 4294901760
    %1875 = vmatpush1.msra.mxu0 %v1874
    %1876 = vmatprep.subr.mxu0 0.0
    %v1877 = vand.u32 %v92, 4294901760
    %1878 = vmatpush2.msra.mxu0 %v1877
    %1879 = vmatprep.subr.mxu0 0.0
    %v1880 = vand.u32 %v91, 4294901760
    %1881 = vmatpush2.msra.mxu0 %v1880
    %1882 = vmatprep.subr.mxu0 0.0
    %v1883 = vand.u32 %v90, 4294901760
    %1884 = vmatpush2.msra.mxu0 %v1883
    %1885 = vmatprep.subr.mxu0 0.0
    %v1886 = vand.u32 %v89, 4294901760
    %1887 = vmatpush2.msra.mxu0 %v1886
    %1888 = vmatprep.subr.mxu0 0.0
    %v1889 = vand.u32 %v88, 4294901760
    %1890 = vmatpush2.msra.mxu0 %v1889
    %1891 = vmatprep.subr.mxu0 0.0
    %v1892 = vand.u32 %v87, 4294901760
    %1893 = vmatpush2.msra.mxu0 %v1892
    %1894 = vmatprep.subr.mxu0 0.0
    %v1895 = vand.u32 %v86, 4294901760
    %1896 = vmatpush2.msra.mxu0 %v1895
    %1897 = vmatprep.subr.mxu0 0.0
    %v1898 = vand.u32 %v85, 4294901760
    %1899 = vmatpush2.msra.mxu0 %v1898
    %1900 = vmatprep.subr.mxu0 0.0
    %v1901 = vand.u32 %v84, 4294901760
    %1902 = vmatpush2.msra.mxu0 %v1901
    %1903 = vmatprep.subr.mxu0 0.0
    %v1904 = vand.u32 %v83, 4294901760
    %1905 = vmatpush2.msra.mxu0 %v1904
    %1906 = vmatprep.subr.mxu0 0.0
    %v1907 = vand.u32 %v82, 4294901760
    %1908 = vmatpush2.msra.mxu0 %v1907
    %1909 = vmatprep.subr.mxu0 0.0
    %v1910 = vand.u32 %v81, 4294901760
    %1911 = vmatpush2.msra.mxu0 %v1910
    %1912 = vmatprep.subr.mxu0 0.0
    %v1913 = vand.u32 %v80, 4294901760
    %1914 = vmatpush2.msra.mxu0 %v1913
    %1915 = vmatprep.subr.mxu0 0.0
    %v1916 = vand.u32 %v79, 4294901760
    %1917 = vmatpush2.msra.mxu0 %v1916
    %1918 = vmatprep.subr.mxu0 0.0
    %v1919 = vand.u32 %v78, 4294901760
    %1920 = vmatpush2.msra.mxu0 %v1919
    %1921 = vmatprep.subr.mxu0 0.0
    %v1922 = vand.u32 %v77, 4294901760
    %1923 = vmatpush2.msra.mxu0 %v1922
    %v1924 = vand.u32 %v182, 4294901760
    %1925 = vmatprep.mubr.f32.mxu0 %v1924
    %v1926 = vand.u32 %v180, 4294901760
    %1927 = vmatmul.mubr.f32.gmra.mxu0 %v1926
    %v1928 = vpop.f32.mrf.mxu0
    %v1929 = vadd.f32 %v1825, %v1928
    %v1930 = vpop.f32.mrf.mxu0
    %1931 = vdwg.mxu0
    %1932 = vmatprep.subr.mxu0 0.0
    %v1933 = vand.u32 %v108, 4294901760
    %1934 = vmatpush1.msra.mxu0 %v1933
    %1935 = vmatprep.subr.mxu0 0.0
    %v1936 = vand.u32 %v107, 4294901760
    %1937 = vmatpush1.msra.mxu0 %v1936
    %1938 = vmatprep.subr.mxu0 0.0
    %v1939 = vand.u32 %v106, 4294901760
    %1940 = vmatpush1.msra.mxu0 %v1939
    %1941 = vmatprep.subr.mxu0 0.0
    %v1942 = vand.u32 %v105, 4294901760
    %1943 = vmatpush1.msra.mxu0 %v1942
    %1944 = vmatprep.subr.mxu0 0.0
    %v1945 = vand.u32 %v104, 4294901760
    %1946 = vmatpush1.msra.mxu0 %v1945
    %1947 = vmatprep.subr.mxu0 0.0
    %v1948 = vand.u32 %v103, 4294901760
    %1949 = vmatpush1.msra.mxu0 %v1948
    %1950 = vmatprep.subr.mxu0 0.0
    %v1951 = vand.u32 %v102, 4294901760
    %1952 = vmatpush1.msra.mxu0 %v1951
    %1953 = vmatprep.subr.mxu0 0.0
    %v1954 = vand.u32 %v101, 4294901760
    %1955 = vmatpush1.msra.mxu0 %v1954
    %1956 = vmatprep.subr.mxu0 0.0
    %v1957 = vand.u32 %v100, 4294901760
    %1958 = vmatpush1.msra.mxu0 %v1957
    %1959 = vmatprep.subr.mxu0 0.0
    %v1960 = vand.u32 %v99, 4294901760
    %1961 = vmatpush1.msra.mxu0 %v1960
    %1962 = vmatprep.subr.mxu0 0.0
    %v1963 = vand.u32 %v98, 4294901760
    %1964 = vmatpush1.msra.mxu0 %v1963
    %1965 = vmatprep.subr.mxu0 0.0
    %v1966 = vand.u32 %v97, 4294901760
    %1967 = vmatpush1.msra.mxu0 %v1966
    %1968 = vmatprep.subr.mxu0 0.0
    %v1969 = vand.u32 %v96, 4294901760
    %1970 = vmatpush1.msra.mxu0 %v1969
    %1971 = vmatprep.subr.mxu0 0.0
    %v1972 = vand.u32 %v95, 4294901760
    %1973 = vmatpush1.msra.mxu0 %v1972
    %1974 = vmatprep.subr.mxu0 0.0
    %v1975 = vand.u32 %v94, 4294901760
    %1976 = vmatpush1.msra.mxu0 %v1975
    %1977 = vmatprep.subr.mxu0 0.0
    %v1978 = vand.u32 %v93, 4294901760
    %1979 = vmatpush1.msra.mxu0 %v1978
    %1980 = vmatprep.subr.mxu0 0.0
    %v1981 = vand.u32 %v124, 4294901760
    %1982 = vmatpush2.msra.mxu0 %v1981
    %1983 = vmatprep.subr.mxu0 0.0
    %v1984 = vand.u32 %v123, 4294901760
    %1985 = vmatpush2.msra.mxu0 %v1984
    %1986 = vmatprep.subr.mxu0 0.0
    %v1987 = vand.u32 %v122, 4294901760
    %1988 = vmatpush2.msra.mxu0 %v1987
    %1989 = vmatprep.subr.mxu0 0.0
    %v1990 = vand.u32 %v121, 4294901760
    %1991 = vmatpush2.msra.mxu0 %v1990
    %1992 = vmatprep.subr.mxu0 0.0
    %v1993 = vand.u32 %v120, 4294901760
    %1994 = vmatpush2.msra.mxu0 %v1993
    %1995 = vmatprep.subr.mxu0 0.0
    %v1996 = vand.u32 %v119, 4294901760
    %1997 = vmatpush2.msra.mxu0 %v1996
    %1998 = vmatprep.subr.mxu0 0.0
    %v1999 = vand.u32 %v118, 4294901760
    %2000 = vmatpush2.msra.mxu0 %v1999
    %2001 = vmatprep.subr.mxu0 0.0
    %v2002 = vand.u32 %v117, 4294901760
    %2003 = vmatpush2.msra.mxu0 %v2002
    %2004 = vmatprep.subr.mxu0 0.0
    %v2005 = vand.u32 %v116, 4294901760
    %2006 = vmatpush2.msra.mxu0 %v2005
    %2007 = vmatprep.subr.mxu0 0.0
    %v2008 = vand.u32 %v115, 4294901760
    %2009 = vmatpush2.msra.mxu0 %v2008
    %2010 = vmatprep.subr.mxu0 0.0
    %v2011 = vand.u32 %v114, 4294901760
    %2012 = vmatpush2.msra.mxu0 %v2011
    %2013 = vmatprep.subr.mxu0 0.0
    %v2014 = vand.u32 %v113, 4294901760
    %2015 = vmatpush2.msra.mxu0 %v2014
    %2016 = vmatprep.subr.mxu0 0.0
    %v2017 = vand.u32 %v112, 4294901760
    %2018 = vmatpush2.msra.mxu0 %v2017
    %2019 = vmatprep.subr.mxu0 0.0
    %v2020 = vand.u32 %v111, 4294901760
    %2021 = vmatpush2.msra.mxu0 %v2020
    %2022 = vmatprep.subr.mxu0 0.0
    %v2023 = vand.u32 %v110, 4294901760
    %2024 = vmatpush2.msra.mxu0 %v2023
    %2025 = vmatprep.subr.mxu0 0.0
    %v2026 = vand.u32 %v109, 4294901760
    %2027 = vmatpush2.msra.mxu0 %v2026
    %v2028 = vand.u32 %v198, 4294901760
    %v2029 = vsub.f32 %v198, %v2028
    %v2030 = vand.u32 %v2029, 4294901760
    %v2031 = vsub.f32 %v2029, %v2030
    %v2032 = vand.u32 %v2031, 4294901760
    %2033 = vmatprep.mubr.f32.mxu0 %v2032
    %v2034 = vand.u32 %v190, 4294901760
    %v2035 = vsub.f32 %v190, %v2034
    %v2036 = vand.u32 %v2035, 4294901760
    %v2037 = vsub.f32 %v2035, %v2036
    %v2038 = vand.u32 %v2037, 4294901760
    %2039 = vmatmul.mubr.f32.gmra.mxu0 %v2038
    %v2040 = vpop.f32.mrf.mxu0
    %v2041 = vadd.f32 %v1929, %v2040
    %v2042 = vpop.f32.mrf.mxu0
    %2043 = vdwg.mxu0
    %2044 = vmatprep.subr.mxu0 0.0
    %v2045 = vand.u32 %v108, 4294901760
    %v2046 = vsub.f32 %v108, %v2045
    %v2047 = vand.u32 %v2046, 4294901760
    %v2048 = vsub.f32 %v2046, %v2047
    %v2049 = vand.u32 %v2048, 4294901760
    %2050 = vmatpush1.msra.mxu0 %v2049
    %2051 = vmatprep.subr.mxu0 0.0
    %v2052 = vand.u32 %v107, 4294901760
    %v2053 = vsub.f32 %v107, %v2052
    %v2054 = vand.u32 %v2053, 4294901760
    %v2055 = vsub.f32 %v2053, %v2054
    %v2056 = vand.u32 %v2055, 4294901760
    %2057 = vmatpush1.msra.mxu0 %v2056
    %2058 = vmatprep.subr.mxu0 0.0
    %v2059 = vand.u32 %v106, 4294901760
    %v2060 = vsub.f32 %v106, %v2059
    %v2061 = vand.u32 %v2060, 4294901760
    %v2062 = vsub.f32 %v2060, %v2061
    %v2063 = vand.u32 %v2062, 4294901760
    %2064 = vmatpush1.msra.mxu0 %v2063
    %2065 = vmatprep.subr.mxu0 0.0
    %v2066 = vand.u32 %v105, 4294901760
    %v2067 = vsub.f32 %v105, %v2066
    %v2068 = vand.u32 %v2067, 4294901760
    %v2069 = vsub.f32 %v2067, %v2068
    %v2070 = vand.u32 %v2069, 4294901760
    %2071 = vmatpush1.msra.mxu0 %v2070
    %2072 = vmatprep.subr.mxu0 0.0
    %v2073 = vand.u32 %v104, 4294901760
    %v2074 = vsub.f32 %v104, %v2073
    %v2075 = vand.u32 %v2074, 4294901760
    %v2076 = vsub.f32 %v2074, %v2075
    %v2077 = vand.u32 %v2076, 4294901760
    %2078 = vmatpush1.msra.mxu0 %v2077
    %2079 = vmatprep.subr.mxu0 0.0
    %v2080 = vand.u32 %v103, 4294901760
    %v2081 = vsub.f32 %v103, %v2080
    %v2082 = vand.u32 %v2081, 4294901760
    %v2083 = vsub.f32 %v2081, %v2082
    %v2084 = vand.u32 %v2083, 4294901760
    %2085 = vmatpush1.msra.mxu0 %v2084
    %2086 = vmatprep.subr.mxu0 0.0
    %v2087 = vand.u32 %v102, 4294901760
    %v2088 = vsub.f32 %v102, %v2087
    %v2089 = vand.u32 %v2088, 4294901760
    %v2090 = vsub.f32 %v2088, %v2089
    %v2091 = vand.u32 %v2090, 4294901760
    %2092 = vmatpush1.msra.mxu0 %v2091
    %2093 = vmatprep.subr.mxu0 0.0
    %v2094 = vand.u32 %v101, 4294901760
    %v2095 = vsub.f32 %v101, %v2094
    %v2096 = vand.u32 %v2095, 4294901760
    %v2097 = vsub.f32 %v2095, %v2096
    %v2098 = vand.u32 %v2097, 4294901760
    %2099 = vmatpush1.msra.mxu0 %v2098
    %2100 = vmatprep.subr.mxu0 0.0
    %v2101 = vand.u32 %v100, 4294901760
    %v2102 = vsub.f32 %v100, %v2101
    %v2103 = vand.u32 %v2102, 4294901760
    %v2104 = vsub.f32 %v2102, %v2103
    %v2105 = vand.u32 %v2104, 4294901760
    %2106 = vmatpush1.msra.mxu0 %v2105
    %2107 = vmatprep.subr.mxu0 0.0
    %v2108 = vand.u32 %v99, 4294901760
    %v2109 = vsub.f32 %v99, %v2108
    %v2110 = vand.u32 %v2109, 4294901760
    %v2111 = vsub.f32 %v2109, %v2110
    %v2112 = vand.u32 %v2111, 4294901760
    %2113 = vmatpush1.msra.mxu0 %v2112
    %2114 = vmatprep.subr.mxu0 0.0
    %v2115 = vand.u32 %v98, 4294901760
    %v2116 = vsub.f32 %v98, %v2115
    %v2117 = vand.u32 %v2116, 4294901760
    %v2118 = vsub.f32 %v2116, %v2117
    %v2119 = vand.u32 %v2118, 4294901760
    %2120 = vmatpush1.msra.mxu0 %v2119
    %2121 = vmatprep.subr.mxu0 0.0
    %v2122 = vand.u32 %v97, 4294901760
    %v2123 = vsub.f32 %v97, %v2122
    %v2124 = vand.u32 %v2123, 4294901760
    %v2125 = vsub.f32 %v2123, %v2124
    %v2126 = vand.u32 %v2125, 4294901760
    %2127 = vmatpush1.msra.mxu0 %v2126
    %2128 = vmatprep.subr.mxu0 0.0
    %v2129 = vand.u32 %v96, 4294901760
    %v2130 = vsub.f32 %v96, %v2129
    %v2131 = vand.u32 %v2130, 4294901760
    %v2132 = vsub.f32 %v2130, %v2131
    %v2133 = vand.u32 %v2132, 4294901760
    %2134 = vmatpush1.msra.mxu0 %v2133
    %2135 = vmatprep.subr.mxu0 0.0
    %v2136 = vand.u32 %v95, 4294901760
    %v2137 = vsub.f32 %v95, %v2136
    %v2138 = vand.u32 %v2137, 4294901760
    %v2139 = vsub.f32 %v2137, %v2138
    %v2140 = vand.u32 %v2139, 4294901760
    %2141 = vmatpush1.msra.mxu0 %v2140
    %2142 = vmatprep.subr.mxu0 0.0
    %v2143 = vand.u32 %v94, 4294901760
    %v2144 = vsub.f32 %v94, %v2143
    %v2145 = vand.u32 %v2144, 4294901760
    %v2146 = vsub.f32 %v2144, %v2145
    %v2147 = vand.u32 %v2146, 4294901760
    %2148 = vmatpush1.msra.mxu0 %v2147
    %2149 = vmatprep.subr.mxu0 0.0
    %v2150 = vand.u32 %v93, 4294901760
    %v2151 = vsub.f32 %v93, %v2150
    %v2152 = vand.u32 %v2151, 4294901760
    %v2153 = vsub.f32 %v2151, %v2152
    %v2154 = vand.u32 %v2153, 4294901760
    %2155 = vmatpush1.msra.mxu0 %v2154
    %2156 = vmatprep.subr.mxu0 0.0
    %v2157 = vand.u32 %v124, 4294901760
    %v2158 = vsub.f32 %v124, %v2157
    %v2159 = vand.u32 %v2158, 4294901760
    %v2160 = vsub.f32 %v2158, %v2159
    %v2161 = vand.u32 %v2160, 4294901760
    %2162 = vmatpush2.msra.mxu0 %v2161
    %2163 = vmatprep.subr.mxu0 0.0
    %v2164 = vand.u32 %v123, 4294901760
    %v2165 = vsub.f32 %v123, %v2164
    %v2166 = vand.u32 %v2165, 4294901760
    %v2167 = vsub.f32 %v2165, %v2166
    %v2168 = vand.u32 %v2167, 4294901760
    %2169 = vmatpush2.msra.mxu0 %v2168
    %2170 = vmatprep.subr.mxu0 0.0
    %v2171 = vand.u32 %v122, 4294901760
    %v2172 = vsub.f32 %v122, %v2171
    %v2173 = vand.u32 %v2172, 4294901760
    %v2174 = vsub.f32 %v2172, %v2173
    %v2175 = vand.u32 %v2174, 4294901760
    %2176 = vmatpush2.msra.mxu0 %v2175
    %2177 = vmatprep.subr.mxu0 0.0
    %v2178 = vand.u32 %v121, 4294901760
    %v2179 = vsub.f32 %v121, %v2178
    %v2180 = vand.u32 %v2179, 4294901760
    %v2181 = vsub.f32 %v2179, %v2180
    %v2182 = vand.u32 %v2181, 4294901760
    %2183 = vmatpush2.msra.mxu0 %v2182
    %2184 = vmatprep.subr.mxu0 0.0
    %v2185 = vand.u32 %v120, 4294901760
    %v2186 = vsub.f32 %v120, %v2185
    %v2187 = vand.u32 %v2186, 4294901760
    %v2188 = vsub.f32 %v2186, %v2187
    %v2189 = vand.u32 %v2188, 4294901760
    %2190 = vmatpush2.msra.mxu0 %v2189
    %2191 = vmatprep.subr.mxu0 0.0
    %v2192 = vand.u32 %v119, 4294901760
    %v2193 = vsub.f32 %v119, %v2192
    %v2194 = vand.u32 %v2193, 4294901760
    %v2195 = vsub.f32 %v2193, %v2194
    %v2196 = vand.u32 %v2195, 4294901760
    %2197 = vmatpush2.msra.mxu0 %v2196
    %2198 = vmatprep.subr.mxu0 0.0
    %v2199 = vand.u32 %v118, 4294901760
    %v2200 = vsub.f32 %v118, %v2199
    %v2201 = vand.u32 %v2200, 4294901760
    %v2202 = vsub.f32 %v2200, %v2201
    %v2203 = vand.u32 %v2202, 4294901760
    %2204 = vmatpush2.msra.mxu0 %v2203
    %2205 = vmatprep.subr.mxu0 0.0
    %v2206 = vand.u32 %v117, 4294901760
    %v2207 = vsub.f32 %v117, %v2206
    %v2208 = vand.u32 %v2207, 4294901760
    %v2209 = vsub.f32 %v2207, %v2208
    %v2210 = vand.u32 %v2209, 4294901760
    %2211 = vmatpush2.msra.mxu0 %v2210
    %2212 = vmatprep.subr.mxu0 0.0
    %v2213 = vand.u32 %v116, 4294901760
    %v2214 = vsub.f32 %v116, %v2213
    %v2215 = vand.u32 %v2214, 4294901760
    %v2216 = vsub.f32 %v2214, %v2215
    %v2217 = vand.u32 %v2216, 4294901760
    %2218 = vmatpush2.msra.mxu0 %v2217
    %2219 = vmatprep.subr.mxu0 0.0
    %v2220 = vand.u32 %v115, 4294901760
    %v2221 = vsub.f32 %v115, %v2220
    %v2222 = vand.u32 %v2221, 4294901760
    %v2223 = vsub.f32 %v2221, %v2222
    %v2224 = vand.u32 %v2223, 4294901760
    %2225 = vmatpush2.msra.mxu0 %v2224
    %2226 = vmatprep.subr.mxu0 0.0
    %v2227 = vand.u32 %v114, 4294901760
    %v2228 = vsub.f32 %v114, %v2227
    %v2229 = vand.u32 %v2228, 4294901760
    %v2230 = vsub.f32 %v2228, %v2229
    %v2231 = vand.u32 %v2230, 4294901760
    %2232 = vmatpush2.msra.mxu0 %v2231
    %2233 = vmatprep.subr.mxu0 0.0
    %v2234 = vand.u32 %v113, 4294901760
    %v2235 = vsub.f32 %v113, %v2234
    %v2236 = vand.u32 %v2235, 4294901760
    %v2237 = vsub.f32 %v2235, %v2236
    %v2238 = vand.u32 %v2237, 4294901760
    %2239 = vmatpush2.msra.mxu0 %v2238
    %2240 = vmatprep.subr.mxu0 0.0
    %v2241 = vand.u32 %v112, 4294901760
    %v2242 = vsub.f32 %v112, %v2241
    %v2243 = vand.u32 %v2242, 4294901760
    %v2244 = vsub.f32 %v2242, %v2243
    %v2245 = vand.u32 %v2244, 4294901760
    %2246 = vmatpush2.msra.mxu0 %v2245
    %2247 = vmatprep.subr.mxu0 0.0
    %v2248 = vand.u32 %v111, 4294901760
    %v2249 = vsub.f32 %v111, %v2248
    %v2250 = vand.u32 %v2249, 4294901760
    %v2251 = vsub.f32 %v2249, %v2250
    %v2252 = vand.u32 %v2251, 4294901760
    %2253 = vmatpush2.msra.mxu0 %v2252
    %2254 = vmatprep.subr.mxu0 0.0
    %v2255 = vand.u32 %v110, 4294901760
    %v2256 = vsub.f32 %v110, %v2255
    %v2257 = vand.u32 %v2256, 4294901760
    %v2258 = vsub.f32 %v2256, %v2257
    %v2259 = vand.u32 %v2258, 4294901760
    %2260 = vmatpush2.msra.mxu0 %v2259
    %2261 = vmatprep.subr.mxu0 0.0
    %v2262 = vand.u32 %v109, 4294901760
    %v2263 = vsub.f32 %v109, %v2262
    %v2264 = vand.u32 %v2263, 4294901760
    %v2265 = vsub.f32 %v2263, %v2264
    %v2266 = vand.u32 %v2265, 4294901760
    %2267 = vmatpush2.msra.mxu0 %v2266
    %v2268 = vand.u32 %v198, 4294901760
    %2269 = vmatprep.mubr.f32.mxu0 %v2268
    %v2270 = vand.u32 %v190, 4294901760
    %2271 = vmatmul.mubr.f32.gmra.mxu0 %v2270
    %v2272 = vpop.f32.mrf.mxu0
    %v2273 = vadd.f32 %v2041, %v2272
    %v2274 = vpop.f32.mrf.mxu0
    %2275 = vdwg.mxu0
    %2276 = vmatprep.subr.mxu0 0.0
    %v2277 = vand.u32 %v108, 4294901760
    %v2278 = vsub.f32 %v108, %v2277
    %2279 = vmatpush1.msra.mxu0 %v2278
    %2280 = vmatprep.subr.mxu0 0.0
    %v2281 = vand.u32 %v107, 4294901760
    %v2282 = vsub.f32 %v107, %v2281
    %2283 = vmatpush1.msra.mxu0 %v2282
    %2284 = vmatprep.subr.mxu0 0.0
    %v2285 = vand.u32 %v106, 4294901760
    %v2286 = vsub.f32 %v106, %v2285
    %2287 = vmatpush1.msra.mxu0 %v2286
    %2288 = vmatprep.subr.mxu0 0.0
    %v2289 = vand.u32 %v105, 4294901760
    %v2290 = vsub.f32 %v105, %v2289
    %2291 = vmatpush1.msra.mxu0 %v2290
    %2292 = vmatprep.subr.mxu0 0.0
    %v2293 = vand.u32 %v104, 4294901760
    %v2294 = vsub.f32 %v104, %v2293
    %2295 = vmatpush1.msra.mxu0 %v2294
    %2296 = vmatprep.subr.mxu0 0.0
    %v2297 = vand.u32 %v103, 4294901760
    %v2298 = vsub.f32 %v103, %v2297
    %2299 = vmatpush1.msra.mxu0 %v2298
    %2300 = vmatprep.subr.mxu0 0.0
    %v2301 = vand.u32 %v102, 4294901760
    %v2302 = vsub.f32 %v102, %v2301
    %2303 = vmatpush1.msra.mxu0 %v2302
    %2304 = vmatprep.subr.mxu0 0.0
    %v2305 = vand.u32 %v101, 4294901760
    %v2306 = vsub.f32 %v101, %v2305
    %2307 = vmatpush1.msra.mxu0 %v2306
    %2308 = vmatprep.subr.mxu0 0.0
    %v2309 = vand.u32 %v100, 4294901760
    %v2310 = vsub.f32 %v100, %v2309
    %2311 = vmatpush1.msra.mxu0 %v2310
    %2312 = vmatprep.subr.mxu0 0.0
    %v2313 = vand.u32 %v99, 4294901760
    %v2314 = vsub.f32 %v99, %v2313
    %2315 = vmatpush1.msra.mxu0 %v2314
    %2316 = vmatprep.subr.mxu0 0.0
    %v2317 = vand.u32 %v98, 4294901760
    %v2318 = vsub.f32 %v98, %v2317
    %2319 = vmatpush1.msra.mxu0 %v2318
    %2320 = vmatprep.subr.mxu0 0.0
    %v2321 = vand.u32 %v97, 4294901760
    %v2322 = vsub.f32 %v97, %v2321
    %2323 = vmatpush1.msra.mxu0 %v2322
    %2324 = vmatprep.subr.mxu0 0.0
    %v2325 = vand.u32 %v96, 4294901760
    %v2326 = vsub.f32 %v96, %v2325
    %2327 = vmatpush1.msra.mxu0 %v2326
    %2328 = vmatprep.subr.mxu0 0.0
    %v2329 = vand.u32 %v95, 4294901760
    %v2330 = vsub.f32 %v95, %v2329
    %2331 = vmatpush1.msra.mxu0 %v2330
    %2332 = vmatprep.subr.mxu0 0.0
    %v2333 = vand.u32 %v94, 4294901760
    %v2334 = vsub.f32 %v94, %v2333
    %2335 = vmatpush1.msra.mxu0 %v2334
    %2336 = vmatprep.subr.mxu0 0.0
    %v2337 = vand.u32 %v93, 4294901760
    %v2338 = vsub.f32 %v93, %v2337
    %2339 = vmatpush1.msra.mxu0 %v2338
    %2340 = vmatprep.subr.mxu0 0.0
    %v2341 = vand.u32 %v124, 4294901760
    %v2342 = vsub.f32 %v124, %v2341
    %2343 = vmatpush2.msra.mxu0 %v2342
    %2344 = vmatprep.subr.mxu0 0.0
    %v2345 = vand.u32 %v123, 4294901760
    %v2346 = vsub.f32 %v123, %v2345
    %2347 = vmatpush2.msra.mxu0 %v2346
    %2348 = vmatprep.subr.mxu0 0.0
    %v2349 = vand.u32 %v122, 4294901760
    %v2350 = vsub.f32 %v122, %v2349
    %2351 = vmatpush2.msra.mxu0 %v2350
    %2352 = vmatprep.subr.mxu0 0.0
    %v2353 = vand.u32 %v121, 4294901760
    %v2354 = vsub.f32 %v121, %v2353
    %2355 = vmatpush2.msra.mxu0 %v2354
    %2356 = vmatprep.subr.mxu0 0.0
    %v2357 = vand.u32 %v120, 4294901760
    %v2358 = vsub.f32 %v120, %v2357
    %2359 = vmatpush2.msra.mxu0 %v2358
    %2360 = vmatprep.subr.mxu0 0.0
    %v2361 = vand.u32 %v119, 4294901760
    %v2362 = vsub.f32 %v119, %v2361
    %2363 = vmatpush2.msra.mxu0 %v2362
    %2364 = vmatprep.subr.mxu0 0.0
    %v2365 = vand.u32 %v118, 4294901760
    %v2366 = vsub.f32 %v118, %v2365
    %2367 = vmatpush2.msra.mxu0 %v2366
    %2368 = vmatprep.subr.mxu0 0.0
    %v2369 = vand.u32 %v117, 4294901760
    %v2370 = vsub.f32 %v117, %v2369
    %2371 = vmatpush2.msra.mxu0 %v2370
    %2372 = vmatprep.subr.mxu0 0.0
    %v2373 = vand.u32 %v116, 4294901760
    %v2374 = vsub.f32 %v116, %v2373
    %2375 = vmatpush2.msra.mxu0 %v2374
    %2376 = vmatprep.subr.mxu0 0.0
    %v2377 = vand.u32 %v115, 4294901760
    %v2378 = vsub.f32 %v115, %v2377
    %2379 = vmatpush2.msra.mxu0 %v2378
    %2380 = vmatprep.subr.mxu0 0.0
    %v2381 = vand.u32 %v114, 4294901760
    %v2382 = vsub.f32 %v114, %v2381
    %2383 = vmatpush2.msra.mxu0 %v2382
    %2384 = vmatprep.subr.mxu0 0.0
    %v2385 = vand.u32 %v113, 4294901760
    %v2386 = vsub.f32 %v113, %v2385
    %2387 = vmatpush2.msra.mxu0 %v2386
    %2388 = vmatprep.subr.mxu0 0.0
    %v2389 = vand.u32 %v112, 4294901760
    %v2390 = vsub.f32 %v112, %v2389
    %2391 = vmatpush2.msra.mxu0 %v2390
    %2392 = vmatprep.subr.mxu0 0.0
    %v2393 = vand.u32 %v111, 4294901760
    %v2394 = vsub.f32 %v111, %v2393
    %2395 = vmatpush2.msra.mxu0 %v2394
    %2396 = vmatprep.subr.mxu0 0.0
    %v2397 = vand.u32 %v110, 4294901760
    %v2398 = vsub.f32 %v110, %v2397
    %2399 = vmatpush2.msra.mxu0 %v2398
    %2400 = vmatprep.subr.mxu0 0.0
    %v2401 = vand.u32 %v109, 4294901760
    %v2402 = vsub.f32 %v109, %v2401
    %2403 = vmatpush2.msra.mxu0 %v2402
    %v2404 = vand.u32 %v198, 4294901760
    %v2405 = vsub.f32 %v198, %v2404
    %2406 = vmatprep.mubr.f32.mxu0 %v2405
    %v2407 = vand.u32 %v190, 4294901760
    %v2408 = vsub.f32 %v190, %v2407
    %2409 = vmatmul.mubr.f32.gmra.mxu0 %v2408
    %v2410 = vpop.f32.mrf.mxu0
    %v2411 = vadd.f32 %v2273, %v2410
    %v2412 = vpop.f32.mrf.mxu0
    %2413 = vdwg.mxu0
    %2414 = vmatprep.subr.mxu0 0.0
    %v2415 = vand.u32 %v108, 4294901760
    %2416 = vmatpush1.msra.mxu0 %v2415
    %2417 = vmatprep.subr.mxu0 0.0
    %v2418 = vand.u32 %v107, 4294901760
    %2419 = vmatpush1.msra.mxu0 %v2418
    %2420 = vmatprep.subr.mxu0 0.0
    %v2421 = vand.u32 %v106, 4294901760
    %2422 = vmatpush1.msra.mxu0 %v2421
    %2423 = vmatprep.subr.mxu0 0.0
    %v2424 = vand.u32 %v105, 4294901760
    %2425 = vmatpush1.msra.mxu0 %v2424
    %2426 = vmatprep.subr.mxu0 0.0
    %v2427 = vand.u32 %v104, 4294901760
    %2428 = vmatpush1.msra.mxu0 %v2427
    %2429 = vmatprep.subr.mxu0 0.0
    %v2430 = vand.u32 %v103, 4294901760
    %2431 = vmatpush1.msra.mxu0 %v2430
    %2432 = vmatprep.subr.mxu0 0.0
    %v2433 = vand.u32 %v102, 4294901760
    %2434 = vmatpush1.msra.mxu0 %v2433
    %2435 = vmatprep.subr.mxu0 0.0
    %v2436 = vand.u32 %v101, 4294901760
    %2437 = vmatpush1.msra.mxu0 %v2436
    %2438 = vmatprep.subr.mxu0 0.0
    %v2439 = vand.u32 %v100, 4294901760
    %2440 = vmatpush1.msra.mxu0 %v2439
    %2441 = vmatprep.subr.mxu0 0.0
    %v2442 = vand.u32 %v99, 4294901760
    %2443 = vmatpush1.msra.mxu0 %v2442
    %2444 = vmatprep.subr.mxu0 0.0
    %v2445 = vand.u32 %v98, 4294901760
    %2446 = vmatpush1.msra.mxu0 %v2445
    %2447 = vmatprep.subr.mxu0 0.0
    %v2448 = vand.u32 %v97, 4294901760
    %2449 = vmatpush1.msra.mxu0 %v2448
    %2450 = vmatprep.subr.mxu0 0.0
    %v2451 = vand.u32 %v96, 4294901760
    %2452 = vmatpush1.msra.mxu0 %v2451
    %2453 = vmatprep.subr.mxu0 0.0
    %v2454 = vand.u32 %v95, 4294901760
    %2455 = vmatpush1.msra.mxu0 %v2454
    %2456 = vmatprep.subr.mxu0 0.0
    %v2457 = vand.u32 %v94, 4294901760
    %2458 = vmatpush1.msra.mxu0 %v2457
    %2459 = vmatprep.subr.mxu0 0.0
    %v2460 = vand.u32 %v93, 4294901760
    %2461 = vmatpush1.msra.mxu0 %v2460
    %2462 = vmatprep.subr.mxu0 0.0
    %v2463 = vand.u32 %v124, 4294901760
    %2464 = vmatpush2.msra.mxu0 %v2463
    %2465 = vmatprep.subr.mxu0 0.0
    %v2466 = vand.u32 %v123, 4294901760
    %2467 = vmatpush2.msra.mxu0 %v2466
    %2468 = vmatprep.subr.mxu0 0.0
    %v2469 = vand.u32 %v122, 4294901760
    %2470 = vmatpush2.msra.mxu0 %v2469
    %2471 = vmatprep.subr.mxu0 0.0
    %v2472 = vand.u32 %v121, 4294901760
    %2473 = vmatpush2.msra.mxu0 %v2472
    %2474 = vmatprep.subr.mxu0 0.0
    %v2475 = vand.u32 %v120, 4294901760
    %2476 = vmatpush2.msra.mxu0 %v2475
    %2477 = vmatprep.subr.mxu0 0.0
    %v2478 = vand.u32 %v119, 4294901760
    %2479 = vmatpush2.msra.mxu0 %v2478
    %2480 = vmatprep.subr.mxu0 0.0
    %v2481 = vand.u32 %v118, 4294901760
    %2482 = vmatpush2.msra.mxu0 %v2481
    %2483 = vmatprep.subr.mxu0 0.0
    %v2484 = vand.u32 %v117, 4294901760
    %2485 = vmatpush2.msra.mxu0 %v2484
    %2486 = vmatprep.subr.mxu0 0.0
    %v2487 = vand.u32 %v116, 4294901760
    %2488 = vmatpush2.msra.mxu0 %v2487
    %2489 = vmatprep.subr.mxu0 0.0
    %v2490 = vand.u32 %v115, 4294901760
    %2491 = vmatpush2.msra.mxu0 %v2490
    %2492 = vmatprep.subr.mxu0 0.0
    %v2493 = vand.u32 %v114, 4294901760
    %2494 = vmatpush2.msra.mxu0 %v2493
    %2495 = vmatprep.subr.mxu0 0.0
    %v2496 = vand.u32 %v113, 4294901760
    %2497 = vmatpush2.msra.mxu0 %v2496
    %2498 = vmatprep.subr.mxu0 0.0
    %v2499 = vand.u32 %v112, 4294901760
    %2500 = vmatpush2.msra.mxu0 %v2499
    %2501 = vmatprep.subr.mxu0 0.0
    %v2502 = vand.u32 %v111, 4294901760
    %2503 = vmatpush2.msra.mxu0 %v2502
    %2504 = vmatprep.subr.mxu0 0.0
    %v2505 = vand.u32 %v110, 4294901760
    %2506 = vmatpush2.msra.mxu0 %v2505
    %2507 = vmatprep.subr.mxu0 0.0
    %v2508 = vand.u32 %v109, 4294901760
    %2509 = vmatpush2.msra.mxu0 %v2508
    %v2510 = vand.u32 %v198, 4294901760
    %v2511 = vsub.f32 %v198, %v2510
    %v2512 = vand.u32 %v2511, 4294901760
    %2513 = vmatprep.mubr.f32.mxu0 %v2512
    %v2514 = vand.u32 %v190, 4294901760
    %v2515 = vsub.f32 %v190, %v2514
    %v2516 = vand.u32 %v2515, 4294901760
    %2517 = vmatmul.mubr.f32.gmra.mxu0 %v2516
    %v2518 = vpop.f32.mrf.mxu0
    %v2519 = vadd.f32 %v2411, %v2518
    %v2520 = vpop.f32.mrf.mxu0
    %2521 = vdwg.mxu0
    %2522 = vmatprep.subr.mxu0 0.0
    %v2523 = vand.u32 %v108, 4294901760
    %v2524 = vsub.f32 %v108, %v2523
    %v2525 = vand.u32 %v2524, 4294901760
    %2526 = vmatpush1.msra.mxu0 %v2525
    %2527 = vmatprep.subr.mxu0 0.0
    %v2528 = vand.u32 %v107, 4294901760
    %v2529 = vsub.f32 %v107, %v2528
    %v2530 = vand.u32 %v2529, 4294901760
    %2531 = vmatpush1.msra.mxu0 %v2530
    %2532 = vmatprep.subr.mxu0 0.0
    %v2533 = vand.u32 %v106, 4294901760
    %v2534 = vsub.f32 %v106, %v2533
    %v2535 = vand.u32 %v2534, 4294901760
    %2536 = vmatpush1.msra.mxu0 %v2535
    %2537 = vmatprep.subr.mxu0 0.0
    %v2538 = vand.u32 %v105, 4294901760
    %v2539 = vsub.f32 %v105, %v2538
    %v2540 = vand.u32 %v2539, 4294901760
    %2541 = vmatpush1.msra.mxu0 %v2540
    %2542 = vmatprep.subr.mxu0 0.0
    %v2543 = vand.u32 %v104, 4294901760
    %v2544 = vsub.f32 %v104, %v2543
    %v2545 = vand.u32 %v2544, 4294901760
    %2546 = vmatpush1.msra.mxu0 %v2545
    %2547 = vmatprep.subr.mxu0 0.0
    %v2548 = vand.u32 %v103, 4294901760
    %v2549 = vsub.f32 %v103, %v2548
    %v2550 = vand.u32 %v2549, 4294901760
    %2551 = vmatpush1.msra.mxu0 %v2550
    %2552 = vmatprep.subr.mxu0 0.0
    %v2553 = vand.u32 %v102, 4294901760
    %v2554 = vsub.f32 %v102, %v2553
    %v2555 = vand.u32 %v2554, 4294901760
    %2556 = vmatpush1.msra.mxu0 %v2555
    %2557 = vmatprep.subr.mxu0 0.0
    %v2558 = vand.u32 %v101, 4294901760
    %v2559 = vsub.f32 %v101, %v2558
    %v2560 = vand.u32 %v2559, 4294901760
    %2561 = vmatpush1.msra.mxu0 %v2560
    %2562 = vmatprep.subr.mxu0 0.0
    %v2563 = vand.u32 %v100, 4294901760
    %v2564 = vsub.f32 %v100, %v2563
    %v2565 = vand.u32 %v2564, 4294901760
    %2566 = vmatpush1.msra.mxu0 %v2565
    %2567 = vmatprep.subr.mxu0 0.0
    %v2568 = vand.u32 %v99, 4294901760
    %v2569 = vsub.f32 %v99, %v2568
    %v2570 = vand.u32 %v2569, 4294901760
    %2571 = vmatpush1.msra.mxu0 %v2570
    %2572 = vmatprep.subr.mxu0 0.0
    %v2573 = vand.u32 %v98, 4294901760
    %v2574 = vsub.f32 %v98, %v2573
    %v2575 = vand.u32 %v2574, 4294901760
    %2576 = vmatpush1.msra.mxu0 %v2575
    %2577 = vmatprep.subr.mxu0 0.0
    %v2578 = vand.u32 %v97, 4294901760
    %v2579 = vsub.f32 %v97, %v2578
    %v2580 = vand.u32 %v2579, 4294901760
    %2581 = vmatpush1.msra.mxu0 %v2580
    %2582 = vmatprep.subr.mxu0 0.0
    %v2583 = vand.u32 %v96, 4294901760
    %v2584 = vsub.f32 %v96, %v2583
    %v2585 = vand.u32 %v2584, 4294901760
    %2586 = vmatpush1.msra.mxu0 %v2585
    %2587 = vmatprep.subr.mxu0 0.0
    %v2588 = vand.u32 %v95, 4294901760
    %v2589 = vsub.f32 %v95, %v2588
    %v2590 = vand.u32 %v2589, 4294901760
    %2591 = vmatpush1.msra.mxu0 %v2590
    %2592 = vmatprep.subr.mxu0 0.0
    %v2593 = vand.u32 %v94, 4294901760
    %v2594 = vsub.f32 %v94, %v2593
    %v2595 = vand.u32 %v2594, 4294901760
    %2596 = vmatpush1.msra.mxu0 %v2595
    %2597 = vmatprep.subr.mxu0 0.0
    %v2598 = vand.u32 %v93, 4294901760
    %v2599 = vsub.f32 %v93, %v2598
    %v2600 = vand.u32 %v2599, 4294901760
    %2601 = vmatpush1.msra.mxu0 %v2600
    %2602 = vmatprep.subr.mxu0 0.0
    %v2603 = vand.u32 %v124, 4294901760
    %v2604 = vsub.f32 %v124, %v2603
    %v2605 = vand.u32 %v2604, 4294901760
    %2606 = vmatpush2.msra.mxu0 %v2605
    %2607 = vmatprep.subr.mxu0 0.0
    %v2608 = vand.u32 %v123, 4294901760
    %v2609 = vsub.f32 %v123, %v2608
    %v2610 = vand.u32 %v2609, 4294901760
    %2611 = vmatpush2.msra.mxu0 %v2610
    %2612 = vmatprep.subr.mxu0 0.0
    %v2613 = vand.u32 %v122, 4294901760
    %v2614 = vsub.f32 %v122, %v2613
    %v2615 = vand.u32 %v2614, 4294901760
    %2616 = vmatpush2.msra.mxu0 %v2615
    %2617 = vmatprep.subr.mxu0 0.0
    %v2618 = vand.u32 %v121, 4294901760
    %v2619 = vsub.f32 %v121, %v2618
    %v2620 = vand.u32 %v2619, 4294901760
    %2621 = vmatpush2.msra.mxu0 %v2620
    %2622 = vmatprep.subr.mxu0 0.0
    %v2623 = vand.u32 %v120, 4294901760
    %v2624 = vsub.f32 %v120, %v2623
    %v2625 = vand.u32 %v2624, 4294901760
    %2626 = vmatpush2.msra.mxu0 %v2625
    %2627 = vmatprep.subr.mxu0 0.0
    %v2628 = vand.u32 %v119, 4294901760
    %v2629 = vsub.f32 %v119, %v2628
    %v2630 = vand.u32 %v2629, 4294901760
    %2631 = vmatpush2.msra.mxu0 %v2630
    %2632 = vmatprep.subr.mxu0 0.0
    %v2633 = vand.u32 %v118, 4294901760
    %v2634 = vsub.f32 %v118, %v2633
    %v2635 = vand.u32 %v2634, 4294901760
    %2636 = vmatpush2.msra.mxu0 %v2635
    %2637 = vmatprep.subr.mxu0 0.0
    %v2638 = vand.u32 %v117, 4294901760
    %v2639 = vsub.f32 %v117, %v2638
    %v2640 = vand.u32 %v2639, 4294901760
    %2641 = vmatpush2.msra.mxu0 %v2640
    %2642 = vmatprep.subr.mxu0 0.0
    %v2643 = vand.u32 %v116, 4294901760
    %v2644 = vsub.f32 %v116, %v2643
    %v2645 = vand.u32 %v2644, 4294901760
    %2646 = vmatpush2.msra.mxu0 %v2645
    %2647 = vmatprep.subr.mxu0 0.0
    %v2648 = vand.u32 %v115, 4294901760
    %v2649 = vsub.f32 %v115, %v2648
    %v2650 = vand.u32 %v2649, 4294901760
    %2651 = vmatpush2.msra.mxu0 %v2650
    %2652 = vmatprep.subr.mxu0 0.0
    %v2653 = vand.u32 %v114, 4294901760
    %v2654 = vsub.f32 %v114, %v2653
    %v2655 = vand.u32 %v2654, 4294901760
    %2656 = vmatpush2.msra.mxu0 %v2655
    %2657 = vmatprep.subr.mxu0 0.0
    %v2658 = vand.u32 %v113, 4294901760
    %v2659 = vsub.f32 %v113, %v2658
    %v2660 = vand.u32 %v2659, 4294901760
    %2661 = vmatpush2.msra.mxu0 %v2660
    %2662 = vmatprep.subr.mxu0 0.0
    %v2663 = vand.u32 %v112, 4294901760
    %v2664 = vsub.f32 %v112, %v2663
    %v2665 = vand.u32 %v2664, 4294901760
    %2666 = vmatpush2.msra.mxu0 %v2665
    %2667 = vmatprep.subr.mxu0 0.0
    %v2668 = vand.u32 %v111, 4294901760
    %v2669 = vsub.f32 %v111, %v2668
    %v2670 = vand.u32 %v2669, 4294901760
    %2671 = vmatpush2.msra.mxu0 %v2670
    %2672 = vmatprep.subr.mxu0 0.0
    %v2673 = vand.u32 %v110, 4294901760
    %v2674 = vsub.f32 %v110, %v2673
    %v2675 = vand.u32 %v2674, 4294901760
    %2676 = vmatpush2.msra.mxu0 %v2675
    %2677 = vmatprep.subr.mxu0 0.0
    %v2678 = vand.u32 %v109, 4294901760
    %v2679 = vsub.f32 %v109, %v2678
    %v2680 = vand.u32 %v2679, 4294901760
    %2681 = vmatpush2.msra.mxu0 %v2680
    %v2682 = vand.u32 %v198, 4294901760
    %2683 = vmatprep.mubr.f32.mxu0 %v2682
    %v2684 = vand.u32 %v190, 4294901760
    %2685 = vmatmul.mubr.f32.gmra.mxu0 %v2684
    %v2686 = vpop.f32.mrf.mxu0
    %v2687 = vadd.f32 %v2519, %v2686
    %v2688 = vpop.f32.mrf.mxu0
    %2689 = vdwg.mxu0
    %2690 = vmatprep.subr.mxu0 0.0
    %v2691 = vand.u32 %v108, 4294901760
    %2692 = vmatpush1.msra.mxu0 %v2691
    %2693 = vmatprep.subr.mxu0 0.0
    %v2694 = vand.u32 %v107, 4294901760
    %2695 = vmatpush1.msra.mxu0 %v2694
    %2696 = vmatprep.subr.mxu0 0.0
    %v2697 = vand.u32 %v106, 4294901760
    %2698 = vmatpush1.msra.mxu0 %v2697
    %2699 = vmatprep.subr.mxu0 0.0
    %v2700 = vand.u32 %v105, 4294901760
    %2701 = vmatpush1.msra.mxu0 %v2700
    %2702 = vmatprep.subr.mxu0 0.0
    %v2703 = vand.u32 %v104, 4294901760
    %2704 = vmatpush1.msra.mxu0 %v2703
    %2705 = vmatprep.subr.mxu0 0.0
    %v2706 = vand.u32 %v103, 4294901760
    %2707 = vmatpush1.msra.mxu0 %v2706
    %2708 = vmatprep.subr.mxu0 0.0
    %v2709 = vand.u32 %v102, 4294901760
    %2710 = vmatpush1.msra.mxu0 %v2709
    %2711 = vmatprep.subr.mxu0 0.0
    %v2712 = vand.u32 %v101, 4294901760
    %2713 = vmatpush1.msra.mxu0 %v2712
    %2714 = vmatprep.subr.mxu0 0.0
    %v2715 = vand.u32 %v100, 4294901760
    %2716 = vmatpush1.msra.mxu0 %v2715
    %2717 = vmatprep.subr.mxu0 0.0
    %v2718 = vand.u32 %v99, 4294901760
    %2719 = vmatpush1.msra.mxu0 %v2718
    %2720 = vmatprep.subr.mxu0 0.0
    %v2721 = vand.u32 %v98, 4294901760
    %2722 = vmatpush1.msra.mxu0 %v2721
    %2723 = vmatprep.subr.mxu0 0.0
    %v2724 = vand.u32 %v97, 4294901760
    %2725 = vmatpush1.msra.mxu0 %v2724
    %2726 = vmatprep.subr.mxu0 0.0
    %v2727 = vand.u32 %v96, 4294901760
    %2728 = vmatpush1.msra.mxu0 %v2727
    %2729 = vmatprep.subr.mxu0 0.0
    %v2730 = vand.u32 %v95, 4294901760
    %2731 = vmatpush1.msra.mxu0 %v2730
    %2732 = vmatprep.subr.mxu0 0.0
    %v2733 = vand.u32 %v94, 4294901760
    %2734 = vmatpush1.msra.mxu0 %v2733
    %2735 = vmatprep.subr.mxu0 0.0
    %v2736 = vand.u32 %v93, 4294901760
    %2737 = vmatpush1.msra.mxu0 %v2736
    %2738 = vmatprep.subr.mxu0 0.0
    %v2739 = vand.u32 %v124, 4294901760
    %2740 = vmatpush2.msra.mxu0 %v2739
    %2741 = vmatprep.subr.mxu0 0.0
    %v2742 = vand.u32 %v123, 4294901760
    %2743 = vmatpush2.msra.mxu0 %v2742
    %2744 = vmatprep.subr.mxu0 0.0
    %v2745 = vand.u32 %v122, 4294901760
    %2746 = vmatpush2.msra.mxu0 %v2745
    %2747 = vmatprep.subr.mxu0 0.0
    %v2748 = vand.u32 %v121, 4294901760
    %2749 = vmatpush2.msra.mxu0 %v2748
    %2750 = vmatprep.subr.mxu0 0.0
    %v2751 = vand.u32 %v120, 4294901760
    %2752 = vmatpush2.msra.mxu0 %v2751
    %2753 = vmatprep.subr.mxu0 0.0
    %v2754 = vand.u32 %v119, 4294901760
    %2755 = vmatpush2.msra.mxu0 %v2754
    %2756 = vmatprep.subr.mxu0 0.0
    %v2757 = vand.u32 %v118, 4294901760
    %2758 = vmatpush2.msra.mxu0 %v2757
    %2759 = vmatprep.subr.mxu0 0.0
    %v2760 = vand.u32 %v117, 4294901760
    %2761 = vmatpush2.msra.mxu0 %v2760
    %2762 = vmatprep.subr.mxu0 0.0
    %v2763 = vand.u32 %v116, 4294901760
    %2764 = vmatpush2.msra.mxu0 %v2763
    %2765 = vmatprep.subr.mxu0 0.0
    %v2766 = vand.u32 %v115, 4294901760
    %2767 = vmatpush2.msra.mxu0 %v2766
    %2768 = vmatprep.subr.mxu0 0.0
    %v2769 = vand.u32 %v114, 4294901760
    %2770 = vmatpush2.msra.mxu0 %v2769
    %2771 = vmatprep.subr.mxu0 0.0
    %v2772 = vand.u32 %v113, 4294901760
    %2773 = vmatpush2.msra.mxu0 %v2772
    %2774 = vmatprep.subr.mxu0 0.0
    %v2775 = vand.u32 %v112, 4294901760
    %2776 = vmatpush2.msra.mxu0 %v2775
    %2777 = vmatprep.subr.mxu0 0.0
    %v2778 = vand.u32 %v111, 4294901760
    %2779 = vmatpush2.msra.mxu0 %v2778
    %2780 = vmatprep.subr.mxu0 0.0
    %v2781 = vand.u32 %v110, 4294901760
    %2782 = vmatpush2.msra.mxu0 %v2781
    %2783 = vmatprep.subr.mxu0 0.0
    %v2784 = vand.u32 %v109, 4294901760
    %2785 = vmatpush2.msra.mxu0 %v2784
    %v2786 = vand.u32 %v198, 4294901760
    %2787 = vmatprep.mubr.f32.mxu0 %v2786
    %v2788 = vand.u32 %v190, 4294901760
    %2789 = vmatmul.mubr.f32.gmra.mxu0 %v2788
    %v2790 = vpop.f32.mrf.mxu0
    %v2791 = vadd.f32 %v2687, %v2790
    %v2792 = vpop.f32.mrf.mxu0
    %2793 = vdwg.mxu0
    %2794 = vmatprep.subr.mxu0 0.0
    %v2795 = vand.u32 %v140, 4294901760
    %2796 = vmatpush1.msra.mxu0 %v2795
    %2797 = vmatprep.subr.mxu0 0.0
    %v2798 = vand.u32 %v139, 4294901760
    %2799 = vmatpush1.msra.mxu0 %v2798
    %2800 = vmatprep.subr.mxu0 0.0
    %v2801 = vand.u32 %v138, 4294901760
    %2802 = vmatpush1.msra.mxu0 %v2801
    %2803 = vmatprep.subr.mxu0 0.0
    %v2804 = vand.u32 %v137, 4294901760
    %2805 = vmatpush1.msra.mxu0 %v2804
    %2806 = vmatprep.subr.mxu0 0.0
    %v2807 = vand.u32 %v136, 4294901760
    %2808 = vmatpush1.msra.mxu0 %v2807
    %2809 = vmatprep.subr.mxu0 0.0
    %v2810 = vand.u32 %v135, 4294901760
    %2811 = vmatpush1.msra.mxu0 %v2810
    %2812 = vmatprep.subr.mxu0 0.0
    %v2813 = vand.u32 %v134, 4294901760
    %2814 = vmatpush1.msra.mxu0 %v2813
    %2815 = vmatprep.subr.mxu0 0.0
    %v2816 = vand.u32 %v133, 4294901760
    %2817 = vmatpush1.msra.mxu0 %v2816
    %2818 = vmatprep.subr.mxu0 0.0
    %v2819 = vand.u32 %v132, 4294901760
    %2820 = vmatpush1.msra.mxu0 %v2819
    %2821 = vmatprep.subr.mxu0 0.0
    %v2822 = vand.u32 %v131, 4294901760
    %2823 = vmatpush1.msra.mxu0 %v2822
    %2824 = vmatprep.subr.mxu0 0.0
    %v2825 = vand.u32 %v130, 4294901760
    %2826 = vmatpush1.msra.mxu0 %v2825
    %2827 = vmatprep.subr.mxu0 0.0
    %v2828 = vand.u32 %v129, 4294901760
    %2829 = vmatpush1.msra.mxu0 %v2828
    %2830 = vmatprep.subr.mxu0 0.0
    %v2831 = vand.u32 %v128, 4294901760
    %2832 = vmatpush1.msra.mxu0 %v2831
    %2833 = vmatprep.subr.mxu0 0.0
    %v2834 = vand.u32 %v127, 4294901760
    %2835 = vmatpush1.msra.mxu0 %v2834
    %2836 = vmatprep.subr.mxu0 0.0
    %v2837 = vand.u32 %v126, 4294901760
    %2838 = vmatpush1.msra.mxu0 %v2837
    %2839 = vmatprep.subr.mxu0 0.0
    %v2840 = vand.u32 %v125, 4294901760
    %2841 = vmatpush1.msra.mxu0 %v2840
    %2842 = vmatprep.subr.mxu0 0.0
    %v2843 = vand.u32 %v156, 4294901760
    %2844 = vmatpush2.msra.mxu0 %v2843
    %2845 = vmatprep.subr.mxu0 0.0
    %v2846 = vand.u32 %v155, 4294901760
    %2847 = vmatpush2.msra.mxu0 %v2846
    %2848 = vmatprep.subr.mxu0 0.0
    %v2849 = vand.u32 %v154, 4294901760
    %2850 = vmatpush2.msra.mxu0 %v2849
    %2851 = vmatprep.subr.mxu0 0.0
    %v2852 = vand.u32 %v153, 4294901760
    %2853 = vmatpush2.msra.mxu0 %v2852
    %2854 = vmatprep.subr.mxu0 0.0
    %v2855 = vand.u32 %v152, 4294901760
    %2856 = vmatpush2.msra.mxu0 %v2855
    %2857 = vmatprep.subr.mxu0 0.0
    %v2858 = vand.u32 %v151, 4294901760
    %2859 = vmatpush2.msra.mxu0 %v2858
    %2860 = vmatprep.subr.mxu0 0.0
    %v2861 = vand.u32 %v150, 4294901760
    %2862 = vmatpush2.msra.mxu0 %v2861
    %2863 = vmatprep.subr.mxu0 0.0
    %v2864 = vand.u32 %v149, 4294901760
    %2865 = vmatpush2.msra.mxu0 %v2864
    %2866 = vmatprep.subr.mxu0 0.0
    %v2867 = vand.u32 %v148, 4294901760
    %2868 = vmatpush2.msra.mxu0 %v2867
    %2869 = vmatprep.subr.mxu0 0.0
    %v2870 = vand.u32 %v147, 4294901760
    %2871 = vmatpush2.msra.mxu0 %v2870
    %2872 = vmatprep.subr.mxu0 0.0
    %v2873 = vand.u32 %v146, 4294901760
    %2874 = vmatpush2.msra.mxu0 %v2873
    %2875 = vmatprep.subr.mxu0 0.0
    %v2876 = vand.u32 %v145, 4294901760
    %2877 = vmatpush2.msra.mxu0 %v2876
    %2878 = vmatprep.subr.mxu0 0.0
    %v2879 = vand.u32 %v144, 4294901760
    %2880 = vmatpush2.msra.mxu0 %v2879
    %2881 = vmatprep.subr.mxu0 0.0
    %v2882 = vand.u32 %v143, 4294901760
    %2883 = vmatpush2.msra.mxu0 %v2882
    %2884 = vmatprep.subr.mxu0 0.0
    %v2885 = vand.u32 %v142, 4294901760
    %2886 = vmatpush2.msra.mxu0 %v2885
    %2887 = vmatprep.subr.mxu0 0.0
    %v2888 = vand.u32 %v141, 4294901760
    %2889 = vmatpush2.msra.mxu0 %v2888
    %v2890 = vand.u32 %v199, 4294901760
    %v2891 = vsub.f32 %v199, %v2890
    %v2892 = vand.u32 %v2891, 4294901760
    %v2893 = vsub.f32 %v2891, %v2892
    %v2894 = vand.u32 %v2893, 4294901760
    %2895 = vmatprep.mubr.f32.mxu0 %v2894
    %v2896 = vand.u32 %v197, 4294901760
    %v2897 = vsub.f32 %v197, %v2896
    %v2898 = vand.u32 %v2897, 4294901760
    %v2899 = vsub.f32 %v2897, %v2898
    %v2900 = vand.u32 %v2899, 4294901760
    %2901 = vmatmul.mubr.f32.gmra.mxu0 %v2900
    %v2902 = vpop.f32.mrf.mxu0
    %v2903 = vadd.f32 %v2791, %v2902
    %v2904 = vpop.f32.mrf.mxu0
    %2905 = vdwg.mxu0
    %2906 = vmatprep.subr.mxu0 0.0
    %v2907 = vand.u32 %v140, 4294901760
    %v2908 = vsub.f32 %v140, %v2907
    %v2909 = vand.u32 %v2908, 4294901760
    %v2910 = vsub.f32 %v2908, %v2909
    %v2911 = vand.u32 %v2910, 4294901760
    %2912 = vmatpush1.msra.mxu0 %v2911
    %2913 = vmatprep.subr.mxu0 0.0
    %v2914 = vand.u32 %v139, 4294901760
    %v2915 = vsub.f32 %v139, %v2914
    %v2916 = vand.u32 %v2915, 4294901760
    %v2917 = vsub.f32 %v2915, %v2916
    %v2918 = vand.u32 %v2917, 4294901760
    %2919 = vmatpush1.msra.mxu0 %v2918
    %2920 = vmatprep.subr.mxu0 0.0
    %v2921 = vand.u32 %v138, 4294901760
    %v2922 = vsub.f32 %v138, %v2921
    %v2923 = vand.u32 %v2922, 4294901760
    %v2924 = vsub.f32 %v2922, %v2923
    %v2925 = vand.u32 %v2924, 4294901760
    %2926 = vmatpush1.msra.mxu0 %v2925
    %2927 = vmatprep.subr.mxu0 0.0
    %v2928 = vand.u32 %v137, 4294901760
    %v2929 = vsub.f32 %v137, %v2928
    %v2930 = vand.u32 %v2929, 4294901760
    %v2931 = vsub.f32 %v2929, %v2930
    %v2932 = vand.u32 %v2931, 4294901760
    %2933 = vmatpush1.msra.mxu0 %v2932
    %2934 = vmatprep.subr.mxu0 0.0
    %v2935 = vand.u32 %v136, 4294901760
    %v2936 = vsub.f32 %v136, %v2935
    %v2937 = vand.u32 %v2936, 4294901760
    %v2938 = vsub.f32 %v2936, %v2937
    %v2939 = vand.u32 %v2938, 4294901760
    %2940 = vmatpush1.msra.mxu0 %v2939
    %2941 = vmatprep.subr.mxu0 0.0
    %v2942 = vand.u32 %v135, 4294901760
    %v2943 = vsub.f32 %v135, %v2942
    %v2944 = vand.u32 %v2943, 4294901760
    %v2945 = vsub.f32 %v2943, %v2944
    %v2946 = vand.u32 %v2945, 4294901760
    %2947 = vmatpush1.msra.mxu0 %v2946
    %2948 = vmatprep.subr.mxu0 0.0
    %v2949 = vand.u32 %v134, 4294901760
    %v2950 = vsub.f32 %v134, %v2949
    %v2951 = vand.u32 %v2950, 4294901760
    %v2952 = vsub.f32 %v2950, %v2951
    %v2953 = vand.u32 %v2952, 4294901760
    %2954 = vmatpush1.msra.mxu0 %v2953
    %2955 = vmatprep.subr.mxu0 0.0
    %v2956 = vand.u32 %v133, 4294901760
    %v2957 = vsub.f32 %v133, %v2956
    %v2958 = vand.u32 %v2957, 4294901760
    %v2959 = vsub.f32 %v2957, %v2958
    %v2960 = vand.u32 %v2959, 4294901760
    %2961 = vmatpush1.msra.mxu0 %v2960
    %2962 = vmatprep.subr.mxu0 0.0
    %v2963 = vand.u32 %v132, 4294901760
    %v2964 = vsub.f32 %v132, %v2963
    %v2965 = vand.u32 %v2964, 4294901760
    %v2966 = vsub.f32 %v2964, %v2965
    %v2967 = vand.u32 %v2966, 4294901760
    %2968 = vmatpush1.msra.mxu0 %v2967
    %2969 = vmatprep.subr.mxu0 0.0
    %v2970 = vand.u32 %v131, 4294901760
    %v2971 = vsub.f32 %v131, %v2970
    %v2972 = vand.u32 %v2971, 4294901760
    %v2973 = vsub.f32 %v2971, %v2972
    %v2974 = vand.u32 %v2973, 4294901760
    %2975 = vmatpush1.msra.mxu0 %v2974
    %2976 = vmatprep.subr.mxu0 0.0
    %v2977 = vand.u32 %v130, 4294901760
    %v2978 = vsub.f32 %v130, %v2977
    %v2979 = vand.u32 %v2978, 4294901760
    %v2980 = vsub.f32 %v2978, %v2979
    %v2981 = vand.u32 %v2980, 4294901760
    %2982 = vmatpush1.msra.mxu0 %v2981
    %2983 = vmatprep.subr.mxu0 0.0
    %v2984 = vand.u32 %v129, 4294901760
    %v2985 = vsub.f32 %v129, %v2984
    %v2986 = vand.u32 %v2985, 4294901760
    %v2987 = vsub.f32 %v2985, %v2986
    %v2988 = vand.u32 %v2987, 4294901760
    %2989 = vmatpush1.msra.mxu0 %v2988
    %2990 = vmatprep.subr.mxu0 0.0
    %v2991 = vand.u32 %v128, 4294901760
    %v2992 = vsub.f32 %v128, %v2991
    %v2993 = vand.u32 %v2992, 4294901760
    %v2994 = vsub.f32 %v2992, %v2993
    %v2995 = vand.u32 %v2994, 4294901760
    %2996 = vmatpush1.msra.mxu0 %v2995
    %2997 = vmatprep.subr.mxu0 0.0
    %v2998 = vand.u32 %v127, 4294901760
    %v2999 = vsub.f32 %v127, %v2998
    %v3000 = vand.u32 %v2999, 4294901760
    %v3001 = vsub.f32 %v2999, %v3000
    %v3002 = vand.u32 %v3001, 4294901760
    %3003 = vmatpush1.msra.mxu0 %v3002
    %3004 = vmatprep.subr.mxu0 0.0
    %v3005 = vand.u32 %v126, 4294901760
    %v3006 = vsub.f32 %v126, %v3005
    %v3007 = vand.u32 %v3006, 4294901760
    %v3008 = vsub.f32 %v3006, %v3007
    %v3009 = vand.u32 %v3008, 4294901760
    %3010 = vmatpush1.msra.mxu0 %v3009
    %3011 = vmatprep.subr.mxu0 0.0
    %v3012 = vand.u32 %v125, 4294901760
    %v3013 = vsub.f32 %v125, %v3012
    %v3014 = vand.u32 %v3013, 4294901760
    %v3015 = vsub.f32 %v3013, %v3014
    %v3016 = vand.u32 %v3015, 4294901760
    %3017 = vmatpush1.msra.mxu0 %v3016
    %3018 = vmatprep.subr.mxu0 0.0
    %v3019 = vand.u32 %v156, 4294901760
    %v3020 = vsub.f32 %v156, %v3019
    %v3021 = vand.u32 %v3020, 4294901760
    %v3022 = vsub.f32 %v3020, %v3021
    %v3023 = vand.u32 %v3022, 4294901760
    %3024 = vmatpush2.msra.mxu0 %v3023
    %3025 = vmatprep.subr.mxu0 0.0
    %v3026 = vand.u32 %v155, 4294901760
    %v3027 = vsub.f32 %v155, %v3026
    %v3028 = vand.u32 %v3027, 4294901760
    %v3029 = vsub.f32 %v3027, %v3028
    %v3030 = vand.u32 %v3029, 4294901760
    %3031 = vmatpush2.msra.mxu0 %v3030
    %3032 = vmatprep.subr.mxu0 0.0
    %v3033 = vand.u32 %v154, 4294901760
    %v3034 = vsub.f32 %v154, %v3033
    %v3035 = vand.u32 %v3034, 4294901760
    %v3036 = vsub.f32 %v3034, %v3035
    %v3037 = vand.u32 %v3036, 4294901760
    %3038 = vmatpush2.msra.mxu0 %v3037
    %3039 = vmatprep.subr.mxu0 0.0
    %v3040 = vand.u32 %v153, 4294901760
    %v3041 = vsub.f32 %v153, %v3040
    %v3042 = vand.u32 %v3041, 4294901760
    %v3043 = vsub.f32 %v3041, %v3042
    %v3044 = vand.u32 %v3043, 4294901760
    %3045 = vmatpush2.msra.mxu0 %v3044
    %3046 = vmatprep.subr.mxu0 0.0
    %v3047 = vand.u32 %v152, 4294901760
    %v3048 = vsub.f32 %v152, %v3047
    %v3049 = vand.u32 %v3048, 4294901760
    %v3050 = vsub.f32 %v3048, %v3049
    %v3051 = vand.u32 %v3050, 4294901760
    %3052 = vmatpush2.msra.mxu0 %v3051
    %3053 = vmatprep.subr.mxu0 0.0
    %v3054 = vand.u32 %v151, 4294901760
    %v3055 = vsub.f32 %v151, %v3054
    %v3056 = vand.u32 %v3055, 4294901760
    %v3057 = vsub.f32 %v3055, %v3056
    %v3058 = vand.u32 %v3057, 4294901760
    %3059 = vmatpush2.msra.mxu0 %v3058
    %3060 = vmatprep.subr.mxu0 0.0
    %v3061 = vand.u32 %v150, 4294901760
    %v3062 = vsub.f32 %v150, %v3061
    %v3063 = vand.u32 %v3062, 4294901760
    %v3064 = vsub.f32 %v3062, %v3063
    %v3065 = vand.u32 %v3064, 4294901760
    %3066 = vmatpush2.msra.mxu0 %v3065
    %3067 = vmatprep.subr.mxu0 0.0
    %v3068 = vand.u32 %v149, 4294901760
    %v3069 = vsub.f32 %v149, %v3068
    %v3070 = vand.u32 %v3069, 4294901760
    %v3071 = vsub.f32 %v3069, %v3070
    %v3072 = vand.u32 %v3071, 4294901760
    %3073 = vmatpush2.msra.mxu0 %v3072
    %3074 = vmatprep.subr.mxu0 0.0
    %v3075 = vand.u32 %v148, 4294901760
    %v3076 = vsub.f32 %v148, %v3075
    %v3077 = vand.u32 %v3076, 4294901760
    %v3078 = vsub.f32 %v3076, %v3077
    %v3079 = vand.u32 %v3078, 4294901760
    %3080 = vmatpush2.msra.mxu0 %v3079
    %3081 = vmatprep.subr.mxu0 0.0
    %v3082 = vand.u32 %v147, 4294901760
    %v3083 = vsub.f32 %v147, %v3082
    %v3084 = vand.u32 %v3083, 4294901760
    %v3085 = vsub.f32 %v3083, %v3084
    %v3086 = vand.u32 %v3085, 4294901760
    %3087 = vmatpush2.msra.mxu0 %v3086
    %3088 = vmatprep.subr.mxu0 0.0
    %v3089 = vand.u32 %v146, 4294901760
    %v3090 = vsub.f32 %v146, %v3089
    %v3091 = vand.u32 %v3090, 4294901760
    %v3092 = vsub.f32 %v3090, %v3091
    %v3093 = vand.u32 %v3092, 4294901760
    %3094 = vmatpush2.msra.mxu0 %v3093
    %3095 = vmatprep.subr.mxu0 0.0
    %v3096 = vand.u32 %v145, 4294901760
    %v3097 = vsub.f32 %v145, %v3096
    %v3098 = vand.u32 %v3097, 4294901760
    %v3099 = vsub.f32 %v3097, %v3098
    %v3100 = vand.u32 %v3099, 4294901760
    %3101 = vmatpush2.msra.mxu0 %v3100
    %3102 = vmatprep.subr.mxu0 0.0
    %v3103 = vand.u32 %v144, 4294901760
    %v3104 = vsub.f32 %v144, %v3103
    %v3105 = vand.u32 %v3104, 4294901760
    %v3106 = vsub.f32 %v3104, %v3105
    %v3107 = vand.u32 %v3106, 4294901760
    %3108 = vmatpush2.msra.mxu0 %v3107
    %3109 = vmatprep.subr.mxu0 0.0
    %v3110 = vand.u32 %v143, 4294901760
    %v3111 = vsub.f32 %v143, %v3110
    %v3112 = vand.u32 %v3111, 4294901760
    %v3113 = vsub.f32 %v3111, %v3112
    %v3114 = vand.u32 %v3113, 4294901760
    %3115 = vmatpush2.msra.mxu0 %v3114
    %3116 = vmatprep.subr.mxu0 0.0
    %v3117 = vand.u32 %v142, 4294901760
    %v3118 = vsub.f32 %v142, %v3117
    %v3119 = vand.u32 %v3118, 4294901760
    %v3120 = vsub.f32 %v3118, %v3119
    %v3121 = vand.u32 %v3120, 4294901760
    %3122 = vmatpush2.msra.mxu0 %v3121
    %3123 = vmatprep.subr.mxu0 0.0
    %v3124 = vand.u32 %v141, 4294901760
    %v3125 = vsub.f32 %v141, %v3124
    %v3126 = vand.u32 %v3125, 4294901760
    %v3127 = vsub.f32 %v3125, %v3126
    %v3128 = vand.u32 %v3127, 4294901760
    %3129 = vmatpush2.msra.mxu0 %v3128
    %v3130 = vand.u32 %v199, 4294901760
    %3131 = vmatprep.mubr.f32.mxu0 %v3130
    %v3132 = vand.u32 %v197, 4294901760
    %3133 = vmatmul.mubr.f32.gmra.mxu0 %v3132
    %v3134 = vpop.f32.mrf.mxu0
    %v3135 = vadd.f32 %v2903, %v3134
    %v3136 = vpop.f32.mrf.mxu0
    %3137 = vdwg.mxu0
    %3138 = vmatprep.subr.mxu0 0.0
    %v3139 = vand.u32 %v140, 4294901760
    %v3140 = vsub.f32 %v140, %v3139
    %3141 = vmatpush1.msra.mxu0 %v3140
    %3142 = vmatprep.subr.mxu0 0.0
    %v3143 = vand.u32 %v139, 4294901760
    %v3144 = vsub.f32 %v139, %v3143
    %3145 = vmatpush1.msra.mxu0 %v3144
    %3146 = vmatprep.subr.mxu0 0.0
    %v3147 = vand.u32 %v138, 4294901760
    %v3148 = vsub.f32 %v138, %v3147
    %3149 = vmatpush1.msra.mxu0 %v3148
    %3150 = vmatprep.subr.mxu0 0.0
    %v3151 = vand.u32 %v137, 4294901760
    %v3152 = vsub.f32 %v137, %v3151
    %3153 = vmatpush1.msra.mxu0 %v3152
    %3154 = vmatprep.subr.mxu0 0.0
    %v3155 = vand.u32 %v136, 4294901760
    %v3156 = vsub.f32 %v136, %v3155
    %3157 = vmatpush1.msra.mxu0 %v3156
    %3158 = vmatprep.subr.mxu0 0.0
    %v3159 = vand.u32 %v135, 4294901760
    %v3160 = vsub.f32 %v135, %v3159
    %3161 = vmatpush1.msra.mxu0 %v3160
    %3162 = vmatprep.subr.mxu0 0.0
    %v3163 = vand.u32 %v134, 4294901760
    %v3164 = vsub.f32 %v134, %v3163
    %3165 = vmatpush1.msra.mxu0 %v3164
    %3166 = vmatprep.subr.mxu0 0.0
    %v3167 = vand.u32 %v133, 4294901760
    %v3168 = vsub.f32 %v133, %v3167
    %3169 = vmatpush1.msra.mxu0 %v3168
    %3170 = vmatprep.subr.mxu0 0.0
    %v3171 = vand.u32 %v132, 4294901760
    %v3172 = vsub.f32 %v132, %v3171
    %3173 = vmatpush1.msra.mxu0 %v3172
    %3174 = vmatprep.subr.mxu0 0.0
    %v3175 = vand.u32 %v131, 4294901760
    %v3176 = vsub.f32 %v131, %v3175
    %3177 = vmatpush1.msra.mxu0 %v3176
    %3178 = vmatprep.subr.mxu0 0.0
    %v3179 = vand.u32 %v130, 4294901760
    %v3180 = vsub.f32 %v130, %v3179
    %3181 = vmatpush1.msra.mxu0 %v3180
    %3182 = vmatprep.subr.mxu0 0.0
    %v3183 = vand.u32 %v129, 4294901760
    %v3184 = vsub.f32 %v129, %v3183
    %3185 = vmatpush1.msra.mxu0 %v3184
    %3186 = vmatprep.subr.mxu0 0.0
    %v3187 = vand.u32 %v128, 4294901760
    %v3188 = vsub.f32 %v128, %v3187
    %3189 = vmatpush1.msra.mxu0 %v3188
    %3190 = vmatprep.subr.mxu0 0.0
    %v3191 = vand.u32 %v127, 4294901760
    %v3192 = vsub.f32 %v127, %v3191
    %3193 = vmatpush1.msra.mxu0 %v3192
    %3194 = vmatprep.subr.mxu0 0.0
    %v3195 = vand.u32 %v126, 4294901760
    %v3196 = vsub.f32 %v126, %v3195
    %3197 = vmatpush1.msra.mxu0 %v3196
    %3198 = vmatprep.subr.mxu0 0.0
    %v3199 = vand.u32 %v125, 4294901760
    %v3200 = vsub.f32 %v125, %v3199
    %3201 = vmatpush1.msra.mxu0 %v3200
    %3202 = vmatprep.subr.mxu0 0.0
    %v3203 = vand.u32 %v156, 4294901760
    %v3204 = vsub.f32 %v156, %v3203
    %3205 = vmatpush2.msra.mxu0 %v3204
    %3206 = vmatprep.subr.mxu0 0.0
    %v3207 = vand.u32 %v155, 4294901760
    %v3208 = vsub.f32 %v155, %v3207
    %3209 = vmatpush2.msra.mxu0 %v3208
    %3210 = vmatprep.subr.mxu0 0.0
    %v3211 = vand.u32 %v154, 4294901760
    %v3212 = vsub.f32 %v154, %v3211
    %3213 = vmatpush2.msra.mxu0 %v3212
    %3214 = vmatprep.subr.mxu0 0.0
    %v3215 = vand.u32 %v153, 4294901760
    %v3216 = vsub.f32 %v153, %v3215
    %3217 = vmatpush2.msra.mxu0 %v3216
    %3218 = vmatprep.subr.mxu0 0.0
    %v3219 = vand.u32 %v152, 4294901760
    %v3220 = vsub.f32 %v152, %v3219
    %3221 = vmatpush2.msra.mxu0 %v3220
    %3222 = vmatprep.subr.mxu0 0.0
    %v3223 = vand.u32 %v151, 4294901760
    %v3224 = vsub.f32 %v151, %v3223
    %3225 = vmatpush2.msra.mxu0 %v3224
    %3226 = vmatprep.subr.mxu0 0.0
    %v3227 = vand.u32 %v150, 4294901760
    %v3228 = vsub.f32 %v150, %v3227
    %3229 = vmatpush2.msra.mxu0 %v3228
    %3230 = vmatprep.subr.mxu0 0.0
    %v3231 = vand.u32 %v149, 4294901760
    %v3232 = vsub.f32 %v149, %v3231
    %3233 = vmatpush2.msra.mxu0 %v3232
    %3234 = vmatprep.subr.mxu0 0.0
    %v3235 = vand.u32 %v148, 4294901760
    %v3236 = vsub.f32 %v148, %v3235
    %3237 = vmatpush2.msra.mxu0 %v3236
    %3238 = vmatprep.subr.mxu0 0.0
    %v3239 = vand.u32 %v147, 4294901760
    %v3240 = vsub.f32 %v147, %v3239
    %3241 = vmatpush2.msra.mxu0 %v3240
    %3242 = vmatprep.subr.mxu0 0.0
    %v3243 = vand.u32 %v146, 4294901760
    %v3244 = vsub.f32 %v146, %v3243
    %3245 = vmatpush2.msra.mxu0 %v3244
    %3246 = vmatprep.subr.mxu0 0.0
    %v3247 = vand.u32 %v145, 4294901760
    %v3248 = vsub.f32 %v145, %v3247
    %3249 = vmatpush2.msra.mxu0 %v3248
    %3250 = vmatprep.subr.mxu0 0.0
    %v3251 = vand.u32 %v144, 4294901760
    %v3252 = vsub.f32 %v144, %v3251
    %3253 = vmatpush2.msra.mxu0 %v3252
    %3254 = vmatprep.subr.mxu0 0.0
    %v3255 = vand.u32 %v143, 4294901760
    %v3256 = vsub.f32 %v143, %v3255
    %3257 = vmatpush2.msra.mxu0 %v3256
    %3258 = vmatprep.subr.mxu0 0.0
    %v3259 = vand.u32 %v142, 4294901760
    %v3260 = vsub.f32 %v142, %v3259
    %3261 = vmatpush2.msra.mxu0 %v3260
    %3262 = vmatprep.subr.mxu0 0.0
    %v3263 = vand.u32 %v141, 4294901760
    %v3264 = vsub.f32 %v141, %v3263
    %3265 = vmatpush2.msra.mxu0 %v3264
    %v3266 = vand.u32 %v199, 4294901760
    %v3267 = vsub.f32 %v199, %v3266
    %3268 = vmatprep.mubr.f32.mxu0 %v3267
    %v3269 = vand.u32 %v197, 4294901760
    %v3270 = vsub.f32 %v197, %v3269
    %3271 = vmatmul.mubr.f32.gmra.mxu0 %v3270
    %v3272 = vpop.f32.mrf.mxu0
    %v3273 = vadd.f32 %v3135, %v3272
    %v3274 = vpop.f32.mrf.mxu0
    %3275 = vdwg.mxu0
    %3276 = vmatprep.subr.mxu0 0.0
    %v3277 = vand.u32 %v140, 4294901760
    %3278 = vmatpush1.msra.mxu0 %v3277
    %3279 = vmatprep.subr.mxu0 0.0
    %v3280 = vand.u32 %v139, 4294901760
    %3281 = vmatpush1.msra.mxu0 %v3280
    %3282 = vmatprep.subr.mxu0 0.0
    %v3283 = vand.u32 %v138, 4294901760
    %3284 = vmatpush1.msra.mxu0 %v3283
    %3285 = vmatprep.subr.mxu0 0.0
    %v3286 = vand.u32 %v137, 4294901760
    %3287 = vmatpush1.msra.mxu0 %v3286
    %3288 = vmatprep.subr.mxu0 0.0
    %v3289 = vand.u32 %v136, 4294901760
    %3290 = vmatpush1.msra.mxu0 %v3289
    %3291 = vmatprep.subr.mxu0 0.0
    %v3292 = vand.u32 %v135, 4294901760
    %3293 = vmatpush1.msra.mxu0 %v3292
    %3294 = vmatprep.subr.mxu0 0.0
    %v3295 = vand.u32 %v134, 4294901760
    %3296 = vmatpush1.msra.mxu0 %v3295
    %3297 = vmatprep.subr.mxu0 0.0
    %v3298 = vand.u32 %v133, 4294901760
    %3299 = vmatpush1.msra.mxu0 %v3298
    %3300 = vmatprep.subr.mxu0 0.0
    %v3301 = vand.u32 %v132, 4294901760
    %3302 = vmatpush1.msra.mxu0 %v3301
    %3303 = vmatprep.subr.mxu0 0.0
    %v3304 = vand.u32 %v131, 4294901760
    %3305 = vmatpush1.msra.mxu0 %v3304
    %3306 = vmatprep.subr.mxu0 0.0
    %v3307 = vand.u32 %v130, 4294901760
    %3308 = vmatpush1.msra.mxu0 %v3307
    %3309 = vmatprep.subr.mxu0 0.0
    %v3310 = vand.u32 %v129, 4294901760
    %3311 = vmatpush1.msra.mxu0 %v3310
    %3312 = vmatprep.subr.mxu0 0.0
    %v3313 = vand.u32 %v128, 4294901760
    %3314 = vmatpush1.msra.mxu0 %v3313
    %3315 = vmatprep.subr.mxu0 0.0
    %v3316 = vand.u32 %v127, 4294901760
    %3317 = vmatpush1.msra.mxu0 %v3316
    %3318 = vmatprep.subr.mxu0 0.0
    %v3319 = vand.u32 %v126, 4294901760
    %3320 = vmatpush1.msra.mxu0 %v3319
    %3321 = vmatprep.subr.mxu0 0.0
    %v3322 = vand.u32 %v125, 4294901760
    %3323 = vmatpush1.msra.mxu0 %v3322
    %3324 = vmatprep.subr.mxu0 0.0
    %v3325 = vand.u32 %v156, 4294901760
    %3326 = vmatpush2.msra.mxu0 %v3325
    %3327 = vmatprep.subr.mxu0 0.0
    %v3328 = vand.u32 %v155, 4294901760
    %3329 = vmatpush2.msra.mxu0 %v3328
    %3330 = vmatprep.subr.mxu0 0.0
    %v3331 = vand.u32 %v154, 4294901760
    %3332 = vmatpush2.msra.mxu0 %v3331
    %3333 = vmatprep.subr.mxu0 0.0
    %v3334 = vand.u32 %v153, 4294901760
    %3335 = vmatpush2.msra.mxu0 %v3334
    %3336 = vmatprep.subr.mxu0 0.0
    %v3337 = vand.u32 %v152, 4294901760
    %3338 = vmatpush2.msra.mxu0 %v3337
    %3339 = vmatprep.subr.mxu0 0.0
    %v3340 = vand.u32 %v151, 4294901760
    %3341 = vmatpush2.msra.mxu0 %v3340
    %3342 = vmatprep.subr.mxu0 0.0
    %v3343 = vand.u32 %v150, 4294901760
    %3344 = vmatpush2.msra.mxu0 %v3343
    %3345 = vmatprep.subr.mxu0 0.0
    %v3346 = vand.u32 %v149, 4294901760
    %3347 = vmatpush2.msra.mxu0 %v3346
    %3348 = vmatprep.subr.mxu0 0.0
    %v3349 = vand.u32 %v148, 4294901760
    %3350 = vmatpush2.msra.mxu0 %v3349
    %3351 = vmatprep.subr.mxu0 0.0
    %v3352 = vand.u32 %v147, 4294901760
    %3353 = vmatpush2.msra.mxu0 %v3352
    %3354 = vmatprep.subr.mxu0 0.0
    %v3355 = vand.u32 %v146, 4294901760
    %3356 = vmatpush2.msra.mxu0 %v3355
    %3357 = vmatprep.subr.mxu0 0.0
    %v3358 = vand.u32 %v145, 4294901760
    %3359 = vmatpush2.msra.mxu0 %v3358
    %3360 = vmatprep.subr.mxu0 0.0
    %v3361 = vand.u32 %v144, 4294901760
    %3362 = vmatpush2.msra.mxu0 %v3361
    %3363 = vmatprep.subr.mxu0 0.0
    %v3364 = vand.u32 %v143, 4294901760
    %3365 = vmatpush2.msra.mxu0 %v3364
    %3366 = vmatprep.subr.mxu0 0.0
    %v3367 = vand.u32 %v142, 4294901760
    %3368 = vmatpush2.msra.mxu0 %v3367
    %3369 = vmatprep.subr.mxu0 0.0
    %v3370 = vand.u32 %v141, 4294901760
    %3371 = vmatpush2.msra.mxu0 %v3370
    %v3372 = vand.u32 %v199, 4294901760
    %v3373 = vsub.f32 %v199, %v3372
    %v3374 = vand.u32 %v3373, 4294901760
    %3375 = vmatprep.mubr.f32.mxu0 %v3374
    %v3376 = vand.u32 %v197, 4294901760
    %v3377 = vsub.f32 %v197, %v3376
    %v3378 = vand.u32 %v3377, 4294901760
    %3379 = vmatmul.mubr.f32.gmra.mxu0 %v3378
    %v3380 = vpop.f32.mrf.mxu0
    %v3381 = vadd.f32 %v3273, %v3380
    %v3382 = vpop.f32.mrf.mxu0
    %3383 = vdwg.mxu0
    %3384 = vmatprep.subr.mxu0 0.0
    %v3385 = vand.u32 %v140, 4294901760
    %v3386 = vsub.f32 %v140, %v3385
    %v3387 = vand.u32 %v3386, 4294901760
    %3388 = vmatpush1.msra.mxu0 %v3387
    %3389 = vmatprep.subr.mxu0 0.0
    %v3390 = vand.u32 %v139, 4294901760
    %v3391 = vsub.f32 %v139, %v3390
    %v3392 = vand.u32 %v3391, 4294901760
    %3393 = vmatpush1.msra.mxu0 %v3392
    %3394 = vmatprep.subr.mxu0 0.0
    %v3395 = vand.u32 %v138, 4294901760
    %v3396 = vsub.f32 %v138, %v3395
    %v3397 = vand.u32 %v3396, 4294901760
    %3398 = vmatpush1.msra.mxu0 %v3397
    %3399 = vmatprep.subr.mxu0 0.0
    %v3400 = vand.u32 %v137, 4294901760
    %v3401 = vsub.f32 %v137, %v3400
    %v3402 = vand.u32 %v3401, 4294901760
    %3403 = vmatpush1.msra.mxu0 %v3402
    %3404 = vmatprep.subr.mxu0 0.0
    %v3405 = vand.u32 %v136, 4294901760
    %v3406 = vsub.f32 %v136, %v3405
    %v3407 = vand.u32 %v3406, 4294901760
    %3408 = vmatpush1.msra.mxu0 %v3407
    %3409 = vmatprep.subr.mxu0 0.0
    %v3410 = vand.u32 %v135, 4294901760
    %v3411 = vsub.f32 %v135, %v3410
    %v3412 = vand.u32 %v3411, 4294901760
    %3413 = vmatpush1.msra.mxu0 %v3412
    %3414 = vmatprep.subr.mxu0 0.0
    %v3415 = vand.u32 %v134, 4294901760
    %v3416 = vsub.f32 %v134, %v3415
    %v3417 = vand.u32 %v3416, 4294901760
    %3418 = vmatpush1.msra.mxu0 %v3417
    %3419 = vmatprep.subr.mxu0 0.0
    %v3420 = vand.u32 %v133, 4294901760
    %v3421 = vsub.f32 %v133, %v3420
    %v3422 = vand.u32 %v3421, 4294901760
    %3423 = vmatpush1.msra.mxu0 %v3422
    %3424 = vmatprep.subr.mxu0 0.0
    %v3425 = vand.u32 %v132, 4294901760
    %v3426 = vsub.f32 %v132, %v3425
    %v3427 = vand.u32 %v3426, 4294901760
    %3428 = vmatpush1.msra.mxu0 %v3427
    %3429 = vmatprep.subr.mxu0 0.0
    %v3430 = vand.u32 %v131, 4294901760
    %v3431 = vsub.f32 %v131, %v3430
    %v3432 = vand.u32 %v3431, 4294901760
    %3433 = vmatpush1.msra.mxu0 %v3432
    %3434 = vmatprep.subr.mxu0 0.0
    %v3435 = vand.u32 %v130, 4294901760
    %v3436 = vsub.f32 %v130, %v3435
    %v3437 = vand.u32 %v3436, 4294901760
    %3438 = vmatpush1.msra.mxu0 %v3437
    %3439 = vmatprep.subr.mxu0 0.0
    %v3440 = vand.u32 %v129, 4294901760
    %v3441 = vsub.f32 %v129, %v3440
    %v3442 = vand.u32 %v3441, 4294901760
    %3443 = vmatpush1.msra.mxu0 %v3442
    %3444 = vmatprep.subr.mxu0 0.0
    %v3445 = vand.u32 %v128, 4294901760
    %v3446 = vsub.f32 %v128, %v3445
    %v3447 = vand.u32 %v3446, 4294901760
    %3448 = vmatpush1.msra.mxu0 %v3447
    %3449 = vmatprep.subr.mxu0 0.0
    %v3450 = vand.u32 %v127, 4294901760
    %v3451 = vsub.f32 %v127, %v3450
    %v3452 = vand.u32 %v3451, 4294901760
    %3453 = vmatpush1.msra.mxu0 %v3452
    %3454 = vmatprep.subr.mxu0 0.0
    %v3455 = vand.u32 %v126, 4294901760
    %v3456 = vsub.f32 %v126, %v3455
    %v3457 = vand.u32 %v3456, 4294901760
    %3458 = vmatpush1.msra.mxu0 %v3457
    %3459 = vmatprep.subr.mxu0 0.0
    %v3460 = vand.u32 %v125, 4294901760
    %v3461 = vsub.f32 %v125, %v3460
    %v3462 = vand.u32 %v3461, 4294901760
    %3463 = vmatpush1.msra.mxu0 %v3462
    %3464 = vmatprep.subr.mxu0 0.0
    %v3465 = vand.u32 %v156, 4294901760
    %v3466 = vsub.f32 %v156, %v3465
    %v3467 = vand.u32 %v3466, 4294901760
    %3468 = vmatpush2.msra.mxu0 %v3467
    %3469 = vmatprep.subr.mxu0 0.0
    %v3470 = vand.u32 %v155, 4294901760
    %v3471 = vsub.f32 %v155, %v3470
    %v3472 = vand.u32 %v3471, 4294901760
    %3473 = vmatpush2.msra.mxu0 %v3472
    %3474 = vmatprep.subr.mxu0 0.0
    %v3475 = vand.u32 %v154, 4294901760
    %v3476 = vsub.f32 %v154, %v3475
    %v3477 = vand.u32 %v3476, 4294901760
    %3478 = vmatpush2.msra.mxu0 %v3477
    %3479 = vmatprep.subr.mxu0 0.0
    %v3480 = vand.u32 %v153, 4294901760
    %v3481 = vsub.f32 %v153, %v3480
    %v3482 = vand.u32 %v3481, 4294901760
    %3483 = vmatpush2.msra.mxu0 %v3482
    %3484 = vmatprep.subr.mxu0 0.0
    %v3485 = vand.u32 %v152, 4294901760
    %v3486 = vsub.f32 %v152, %v3485
    %v3487 = vand.u32 %v3486, 4294901760
    %3488 = vmatpush2.msra.mxu0 %v3487
    %3489 = vmatprep.subr.mxu0 0.0
    %v3490 = vand.u32 %v151, 4294901760
    %v3491 = vsub.f32 %v151, %v3490
    %v3492 = vand.u32 %v3491, 4294901760
    %3493 = vmatpush2.msra.mxu0 %v3492
    %3494 = vmatprep.subr.mxu0 0.0
    %v3495 = vand.u32 %v150, 4294901760
    %v3496 = vsub.f32 %v150, %v3495
    %v3497 = vand.u32 %v3496, 4294901760
    %3498 = vmatpush2.msra.mxu0 %v3497
    %3499 = vmatprep.subr.mxu0 0.0
    %v3500 = vand.u32 %v149, 4294901760
    %v3501 = vsub.f32 %v149, %v3500
    %v3502 = vand.u32 %v3501, 4294901760
    %3503 = vmatpush2.msra.mxu0 %v3502
    %3504 = vmatprep.subr.mxu0 0.0
    %v3505 = vand.u32 %v148, 4294901760
    %v3506 = vsub.f32 %v148, %v3505
    %v3507 = vand.u32 %v3506, 4294901760
    %3508 = vmatpush2.msra.mxu0 %v3507
    %3509 = vmatprep.subr.mxu0 0.0
    %v3510 = vand.u32 %v147, 4294901760
    %v3511 = vsub.f32 %v147, %v3510
    %v3512 = vand.u32 %v3511, 4294901760
    %3513 = vmatpush2.msra.mxu0 %v3512
    %3514 = vmatprep.subr.mxu0 0.0
    %v3515 = vand.u32 %v146, 4294901760
    %v3516 = vsub.f32 %v146, %v3515
    %v3517 = vand.u32 %v3516, 4294901760
    %3518 = vmatpush2.msra.mxu0 %v3517
    %3519 = vmatprep.subr.mxu0 0.0
    %v3520 = vand.u32 %v145, 4294901760
    %v3521 = vsub.f32 %v145, %v3520
    %v3522 = vand.u32 %v3521, 4294901760
    %3523 = vmatpush2.msra.mxu0 %v3522
    %3524 = vmatprep.subr.mxu0 0.0
    %v3525 = vand.u32 %v144, 4294901760
    %v3526 = vsub.f32 %v144, %v3525
    %v3527 = vand.u32 %v3526, 4294901760
    %3528 = vmatpush2.msra.mxu0 %v3527
    %3529 = vmatprep.subr.mxu0 0.0
    %v3530 = vand.u32 %v143, 4294901760
    %v3531 = vsub.f32 %v143, %v3530
    %v3532 = vand.u32 %v3531, 4294901760
    %3533 = vmatpush2.msra.mxu0 %v3532
    %3534 = vmatprep.subr.mxu0 0.0
    %v3535 = vand.u32 %v142, 4294901760
    %v3536 = vsub.f32 %v142, %v3535
    %v3537 = vand.u32 %v3536, 4294901760
    %3538 = vmatpush2.msra.mxu0 %v3537
    %3539 = vmatprep.subr.mxu0 0.0
    %v3540 = vand.u32 %v141, 4294901760
    %v3541 = vsub.f32 %v141, %v3540
    %v3542 = vand.u32 %v3541, 4294901760
    %3543 = vmatpush2.msra.mxu0 %v3542
    %v3544 = vand.u32 %v199, 4294901760
    %3545 = vmatprep.mubr.f32.mxu0 %v3544
    %v3546 = vand.u32 %v197, 4294901760
    %3547 = vmatmul.mubr.f32.gmra.mxu0 %v3546
    %v3548 = vpop.f32.mrf.mxu0
    %v3549 = vadd.f32 %v3381, %v3548
    %v3550 = vpop.f32.mrf.mxu0
    %3551 = vdwg.mxu0
    %3552 = vmatprep.subr.mxu0 0.0
    %v3553 = vand.u32 %v140, 4294901760
    %3554 = vmatpush1.msra.mxu0 %v3553
    %3555 = vmatprep.subr.mxu0 0.0
    %v3556 = vand.u32 %v139, 4294901760
    %3557 = vmatpush1.msra.mxu0 %v3556
    %3558 = vmatprep.subr.mxu0 0.0
    %v3559 = vand.u32 %v138, 4294901760
    %3560 = vmatpush1.msra.mxu0 %v3559
    %3561 = vmatprep.subr.mxu0 0.0
    %v3562 = vand.u32 %v137, 4294901760
    %3563 = vmatpush1.msra.mxu0 %v3562
    %3564 = vmatprep.subr.mxu0 0.0
    %v3565 = vand.u32 %v136, 4294901760
    %3566 = vmatpush1.msra.mxu0 %v3565
    %3567 = vmatprep.subr.mxu0 0.0
    %v3568 = vand.u32 %v135, 4294901760
    %3569 = vmatpush1.msra.mxu0 %v3568
    %3570 = vmatprep.subr.mxu0 0.0
    %v3571 = vand.u32 %v134, 4294901760
    %3572 = vmatpush1.msra.mxu0 %v3571
    %3573 = vmatprep.subr.mxu0 0.0
    %v3574 = vand.u32 %v133, 4294901760
    %3575 = vmatpush1.msra.mxu0 %v3574
    %3576 = vmatprep.subr.mxu0 0.0
    %v3577 = vand.u32 %v132, 4294901760
    %3578 = vmatpush1.msra.mxu0 %v3577
    %3579 = vmatprep.subr.mxu0 0.0
    %v3580 = vand.u32 %v131, 4294901760
    %3581 = vmatpush1.msra.mxu0 %v3580
    %3582 = vmatprep.subr.mxu0 0.0
    %v3583 = vand.u32 %v130, 4294901760
    %3584 = vmatpush1.msra.mxu0 %v3583
    %3585 = vmatprep.subr.mxu0 0.0
    %v3586 = vand.u32 %v129, 4294901760
    %3587 = vmatpush1.msra.mxu0 %v3586
    %3588 = vmatprep.subr.mxu0 0.0
    %v3589 = vand.u32 %v128, 4294901760
    %3590 = vmatpush1.msra.mxu0 %v3589
    %3591 = vmatprep.subr.mxu0 0.0
    %v3592 = vand.u32 %v127, 4294901760
    %3593 = vmatpush1.msra.mxu0 %v3592
    %3594 = vmatprep.subr.mxu0 0.0
    %v3595 = vand.u32 %v126, 4294901760
    %3596 = vmatpush1.msra.mxu0 %v3595
    %3597 = vmatprep.subr.mxu0 0.0
    %v3598 = vand.u32 %v125, 4294901760
    %3599 = vmatpush1.msra.mxu0 %v3598
    %3600 = vmatprep.subr.mxu0 0.0
    %v3601 = vand.u32 %v156, 4294901760
    %3602 = vmatpush2.msra.mxu0 %v3601
    %3603 = vmatprep.subr.mxu0 0.0
    %v3604 = vand.u32 %v155, 4294901760
    %3605 = vmatpush2.msra.mxu0 %v3604
    %3606 = vmatprep.subr.mxu0 0.0
    %v3607 = vand.u32 %v154, 4294901760
    %3608 = vmatpush2.msra.mxu0 %v3607
    %3609 = vmatprep.subr.mxu0 0.0
    %v3610 = vand.u32 %v153, 4294901760
    %3611 = vmatpush2.msra.mxu0 %v3610
    %3612 = vmatprep.subr.mxu0 0.0
    %v3613 = vand.u32 %v152, 4294901760
    %3614 = vmatpush2.msra.mxu0 %v3613
    %3615 = vmatprep.subr.mxu0 0.0
    %v3616 = vand.u32 %v151, 4294901760
    %3617 = vmatpush2.msra.mxu0 %v3616
    %3618 = vmatprep.subr.mxu0 0.0
    %v3619 = vand.u32 %v150, 4294901760
    %3620 = vmatpush2.msra.mxu0 %v3619
    %3621 = vmatprep.subr.mxu0 0.0
    %v3622 = vand.u32 %v149, 4294901760
    %3623 = vmatpush2.msra.mxu0 %v3622
    %3624 = vmatprep.subr.mxu0 0.0
    %v3625 = vand.u32 %v148, 4294901760
    %3626 = vmatpush2.msra.mxu0 %v3625
    %3627 = vmatprep.subr.mxu0 0.0
    %v3628 = vand.u32 %v147, 4294901760
    %3629 = vmatpush2.msra.mxu0 %v3628
    %3630 = vmatprep.subr.mxu0 0.0
    %v3631 = vand.u32 %v146, 4294901760
    %3632 = vmatpush2.msra.mxu0 %v3631
    %3633 = vmatprep.subr.mxu0 0.0
    %v3634 = vand.u32 %v145, 4294901760
    %3635 = vmatpush2.msra.mxu0 %v3634
    %3636 = vmatprep.subr.mxu0 0.0
    %v3637 = vand.u32 %v144, 4294901760
    %3638 = vmatpush2.msra.mxu0 %v3637
    %3639 = vmatprep.subr.mxu0 0.0
    %v3640 = vand.u32 %v143, 4294901760
    %3641 = vmatpush2.msra.mxu0 %v3640
    %3642 = vmatprep.subr.mxu0 0.0
    %v3643 = vand.u32 %v142, 4294901760
    %3644 = vmatpush2.msra.mxu0 %v3643
    %3645 = vmatprep.subr.mxu0 0.0
    %v3646 = vand.u32 %v141, 4294901760
    %3647 = vmatpush2.msra.mxu0 %v3646
    %v3648 = vand.u32 %v199, 4294901760
    %3649 = vmatprep.mubr.f32.mxu0 %v3648
    %v3650 = vand.u32 %v197, 4294901760
    %3651 = vmatmul.mubr.f32.gmra.mxu0 %v3650
    %v3652 = vpop.f32.mrf.mxu0
    %v3653 = vadd.f32 %v3549, %v3652
    %v3654 = vpop.f32.mrf.mxu0
    %3655 = vdwg.mxu0
    %v3656 = vmax.f32 %v3653, 0.0
    %v3657 = vld [vmem:[%s3] sm:$0xff]
    %v3658 = vld [vmem:[%s3 + $0x8] sm:$0xff]
    %v3659 = vld [vmem:[%s3 + $0x10] sm:$0xff]
    %v3660 = vld [vmem:[%s3 + $0x18] sm:$0xff]
    %v3661 = vld [vmem:[%s3 + $0x20] sm:$0xff]
    %v3662 = vld [vmem:[%s3 + $0x28] sm:$0xff]
    %v3663 = vld [vmem:[%s3 + $0x30] sm:$0xff]
    %v3664 = vld [vmem:[%s3 + $0x38] sm:$0xff]
    %v3665 = vld [vmem:[%s3 + $0x40] sm:$0xff]
    %v3666 = vld [vmem:[%s3 + $0x48] sm:$0xff]
    %v3667 = vld [vmem:[%s3 + $0x50] sm:$0xff]
    %v3668 = vld [vmem:[%s3 + $0x58] sm:$0xff]
    %v3669 = vld [vmem:[%s3 + $0x60] sm:$0xff]
    %v3670 = vld [vmem:[%s3 + $0x68] sm:$0xff]
    %v3671 = vld [vmem:[%s3 + $0x70] sm:$0xff]
    %v3672 = vld [vmem:[%s3 + $0x78] sm:$0xff]
    %v3673 = vld [vmem:[%s4] sm:$0x1]
    %v3675 = vlaneseq
    %v3676 = vshrl.u32 %v3675, 7
    %v3677 = vsub.s32 0, %v3676
    %v3678 = vrot.slane %v3673, %v3677
    %3680 = vmatprep.subr.mxu0 0.0
    %v3681 = vand.u32 %v3672, 4294901760
    %3682 = vmatpush1.msra.mxu0 %v3681
    %3683 = vmatprep.subr.mxu0 0.0
    %v3684 = vand.u32 %v3671, 4294901760
    %3685 = vmatpush1.msra.mxu0 %v3684
    %3686 = vmatprep.subr.mxu0 0.0
    %v3687 = vand.u32 %v3670, 4294901760
    %3688 = vmatpush1.msra.mxu0 %v3687
    %3689 = vmatprep.subr.mxu0 0.0
    %v3690 = vand.u32 %v3669, 4294901760
    %3691 = vmatpush1.msra.mxu0 %v3690
    %3692 = vmatprep.subr.mxu0 0.0
    %v3693 = vand.u32 %v3668, 4294901760
    %3694 = vmatpush1.msra.mxu0 %v3693
    %3695 = vmatprep.subr.mxu0 0.0
    %v3696 = vand.u32 %v3667, 4294901760
    %3697 = vmatpush1.msra.mxu0 %v3696
    %3698 = vmatprep.subr.mxu0 0.0
    %v3699 = vand.u32 %v3666, 4294901760
    %3700 = vmatpush1.msra.mxu0 %v3699
    %3701 = vmatprep.subr.mxu0 0.0
    %v3702 = vand.u32 %v3665, 4294901760
    %3703 = vmatpush1.msra.mxu0 %v3702
    %3704 = vmatprep.subr.mxu0 0.0
    %v3705 = vand.u32 %v3664, 4294901760
    %3706 = vmatpush1.msra.mxu0 %v3705
    %3707 = vmatprep.subr.mxu0 0.0
    %v3708 = vand.u32 %v3663, 4294901760
    %3709 = vmatpush1.msra.mxu0 %v3708
    %3710 = vmatprep.subr.mxu0 0.0
    %v3711 = vand.u32 %v3662, 4294901760
    %3712 = vmatpush1.msra.mxu0 %v3711
    %3713 = vmatprep.subr.mxu0 0.0
    %v3714 = vand.u32 %v3661, 4294901760
    %3715 = vmatpush1.msra.mxu0 %v3714
    %3716 = vmatprep.subr.mxu0 0.0
    %v3717 = vand.u32 %v3660, 4294901760
    %3718 = vmatpush1.msra.mxu0 %v3717
    %3719 = vmatprep.subr.mxu0 0.0
    %v3720 = vand.u32 %v3659, 4294901760
    %3721 = vmatpush1.msra.mxu0 %v3720
    %3722 = vmatprep.subr.mxu0 0.0
    %v3723 = vand.u32 %v3658, 4294901760
    %3724 = vmatpush1.msra.mxu0 %v3723
    %3725 = vmatprep.subr.mxu0 0.0
    %v3726 = vand.u32 %v3657, 4294901760
    %3727 = vmatpush1.msra.mxu0 %v3726
    %3728 = vmatprep.subr.mxu0 0.0
    %3729 = vmatpush2.msra.mxu0 0.0
    %3730 = vmatprep.subr.mxu0 0.0
    %3731 = vmatpush2.msra.mxu0 0.0
    %3732 = vmatprep.subr.mxu0 0.0
    %3733 = vmatpush2.msra.mxu0 0.0
    %3734 = vmatprep.subr.mxu0 0.0
    %3735 = vmatpush2.msra.mxu0 0.0
    %3736 = vmatprep.subr.mxu0 0.0
    %3737 = vmatpush2.msra.mxu0 0.0
    %3738 = vmatprep.subr.mxu0 0.0
    %3739 = vmatpush2.msra.mxu0 0.0
    %3740 = vmatprep.subr.mxu0 0.0
    %3741 = vmatpush2.msra.mxu0 0.0
    %3742 = vmatprep.subr.mxu0 0.0
    %3743 = vmatpush2.msra.mxu0 0.0
    %3744 = vmatprep.subr.mxu0 0.0
    %3745 = vmatpush2.msra.mxu0 0.0
    %3746 = vmatprep.subr.mxu0 0.0
    %3747 = vmatpush2.msra.mxu0 0.0
    %3748 = vmatprep.subr.mxu0 0.0
    %3749 = vmatpush2.msra.mxu0 0.0
    %3750 = vmatprep.subr.mxu0 0.0
    %3751 = vmatpush2.msra.mxu0 0.0
    %3752 = vmatprep.subr.mxu0 0.0
    %3753 = vmatpush2.msra.mxu0 0.0
    %3754 = vmatprep.subr.mxu0 0.0
    %3755 = vmatpush2.msra.mxu0 0.0
    %3756 = vmatprep.subr.mxu0 0.0
    %3757 = vmatpush2.msra.mxu0 0.0
    %3758 = vmatprep.subr.mxu0 0.0
    %3759 = vmatpush2.msra.mxu0 0.0
    %3760 = vmatprep.mubr.f32.mxu0 0.0
    %v3761 = vand.u32 %v3656, 4294901760
    %v3762 = vsub.f32 %v3656, %v3761
    %v3763 = vand.u32 %v3762, 4294901760
    %v3764 = vsub.f32 %v3762, %v3763
    %v3765 = vand.u32 %v3764, 4294901760
    %3766 = vmatmul.mubr.f32.gmra.mxu0 %v3765
    %v3767 = vpop.f32.mrf.mxu0
    %v3768 = vadd.f32 %v3678, %v3767
    %v3769 = vpop.f32.mrf.mxu0
    %3770 = vdwg.mxu0
    %3771 = vmatprep.subr.mxu0 0.0
    %v3772 = vand.u32 %v3672, 4294901760
    %v3773 = vsub.f32 %v3672, %v3772
    %v3774 = vand.u32 %v3773, 4294901760
    %v3775 = vsub.f32 %v3773, %v3774
    %v3776 = vand.u32 %v3775, 4294901760
    %3777 = vmatpush1.msra.mxu0 %v3776
    %3778 = vmatprep.subr.mxu0 0.0
    %v3779 = vand.u32 %v3671, 4294901760
    %v3780 = vsub.f32 %v3671, %v3779
    %v3781 = vand.u32 %v3780, 4294901760
    %v3782 = vsub.f32 %v3780, %v3781
    %v3783 = vand.u32 %v3782, 4294901760
    %3784 = vmatpush1.msra.mxu0 %v3783
    %3785 = vmatprep.subr.mxu0 0.0
    %v3786 = vand.u32 %v3670, 4294901760
    %v3787 = vsub.f32 %v3670, %v3786
    %v3788 = vand.u32 %v3787, 4294901760
    %v3789 = vsub.f32 %v3787, %v3788
    %v3790 = vand.u32 %v3789, 4294901760
    %3791 = vmatpush1.msra.mxu0 %v3790
    %3792 = vmatprep.subr.mxu0 0.0
    %v3793 = vand.u32 %v3669, 4294901760
    %v3794 = vsub.f32 %v3669, %v3793
    %v3795 = vand.u32 %v3794, 4294901760
    %v3796 = vsub.f32 %v3794, %v3795
    %v3797 = vand.u32 %v3796, 4294901760
    %3798 = vmatpush1.msra.mxu0 %v3797
    %3799 = vmatprep.subr.mxu0 0.0
    %v3800 = vand.u32 %v3668, 4294901760
    %v3801 = vsub.f32 %v3668, %v3800
    %v3802 = vand.u32 %v3801, 4294901760
    %v3803 = vsub.f32 %v3801, %v3802
    %v3804 = vand.u32 %v3803, 4294901760
    %3805 = vmatpush1.msra.mxu0 %v3804
    %3806 = vmatprep.subr.mxu0 0.0
    %v3807 = vand.u32 %v3667, 4294901760
    %v3808 = vsub.f32 %v3667, %v3807
    %v3809 = vand.u32 %v3808, 4294901760
    %v3810 = vsub.f32 %v3808, %v3809
    %v3811 = vand.u32 %v3810, 4294901760
    %3812 = vmatpush1.msra.mxu0 %v3811
    %3813 = vmatprep.subr.mxu0 0.0
    %v3814 = vand.u32 %v3666, 4294901760
    %v3815 = vsub.f32 %v3666, %v3814
    %v3816 = vand.u32 %v3815, 4294901760
    %v3817 = vsub.f32 %v3815, %v3816
    %v3818 = vand.u32 %v3817, 4294901760
    %3819 = vmatpush1.msra.mxu0 %v3818
    %3820 = vmatprep.subr.mxu0 0.0
    %v3821 = vand.u32 %v3665, 4294901760
    %v3822 = vsub.f32 %v3665, %v3821
    %v3823 = vand.u32 %v3822, 4294901760
    %v3824 = vsub.f32 %v3822, %v3823
    %v3825 = vand.u32 %v3824, 4294901760
    %3826 = vmatpush1.msra.mxu0 %v3825
    %3827 = vmatprep.subr.mxu0 0.0
    %v3828 = vand.u32 %v3664, 4294901760
    %v3829 = vsub.f32 %v3664, %v3828
    %v3830 = vand.u32 %v3829, 4294901760
    %v3831 = vsub.f32 %v3829, %v3830
    %v3832 = vand.u32 %v3831, 4294901760
    %3833 = vmatpush1.msra.mxu0 %v3832
    %3834 = vmatprep.subr.mxu0 0.0
    %v3835 = vand.u32 %v3663, 4294901760
    %v3836 = vsub.f32 %v3663, %v3835
    %v3837 = vand.u32 %v3836, 4294901760
    %v3838 = vsub.f32 %v3836, %v3837
    %v3839 = vand.u32 %v3838, 4294901760
    %3840 = vmatpush1.msra.mxu0 %v3839
    %3841 = vmatprep.subr.mxu0 0.0
    %v3842 = vand.u32 %v3662, 4294901760
    %v3843 = vsub.f32 %v3662, %v3842
    %v3844 = vand.u32 %v3843, 4294901760
    %v3845 = vsub.f32 %v3843, %v3844
    %v3846 = vand.u32 %v3845, 4294901760
    %3847 = vmatpush1.msra.mxu0 %v3846
    %3848 = vmatprep.subr.mxu0 0.0
    %v3849 = vand.u32 %v3661, 4294901760
    %v3850 = vsub.f32 %v3661, %v3849
    %v3851 = vand.u32 %v3850, 4294901760
    %v3852 = vsub.f32 %v3850, %v3851
    %v3853 = vand.u32 %v3852, 4294901760
    %3854 = vmatpush1.msra.mxu0 %v3853
    %3855 = vmatprep.subr.mxu0 0.0
    %v3856 = vand.u32 %v3660, 4294901760
    %v3857 = vsub.f32 %v3660, %v3856
    %v3858 = vand.u32 %v3857, 4294901760
    %v3859 = vsub.f32 %v3857, %v3858
    %v3860 = vand.u32 %v3859, 4294901760
    %3861 = vmatpush1.msra.mxu0 %v3860
    %3862 = vmatprep.subr.mxu0 0.0
    %v3863 = vand.u32 %v3659, 4294901760
    %v3864 = vsub.f32 %v3659, %v3863
    %v3865 = vand.u32 %v3864, 4294901760
    %v3866 = vsub.f32 %v3864, %v3865
    %v3867 = vand.u32 %v3866, 4294901760
    %3868 = vmatpush1.msra.mxu0 %v3867
    %3869 = vmatprep.subr.mxu0 0.0
    %v3870 = vand.u32 %v3658, 4294901760
    %v3871 = vsub.f32 %v3658, %v3870
    %v3872 = vand.u32 %v3871, 4294901760
    %v3873 = vsub.f32 %v3871, %v3872
    %v3874 = vand.u32 %v3873, 4294901760
    %3875 = vmatpush1.msra.mxu0 %v3874
    %3876 = vmatprep.subr.mxu0 0.0
    %v3877 = vand.u32 %v3657, 4294901760
    %v3878 = vsub.f32 %v3657, %v3877
    %v3879 = vand.u32 %v3878, 4294901760
    %v3880 = vsub.f32 %v3878, %v3879
    %v3881 = vand.u32 %v3880, 4294901760
    %3882 = vmatpush1.msra.mxu0 %v3881
    %3883 = vmatprep.subr.mxu0 0.0
    %3884 = vmatpush2.msra.mxu0 0.0
    %3885 = vmatprep.subr.mxu0 0.0
    %3886 = vmatpush2.msra.mxu0 0.0
    %3887 = vmatprep.subr.mxu0 0.0
    %3888 = vmatpush2.msra.mxu0 0.0
    %3889 = vmatprep.subr.mxu0 0.0
    %3890 = vmatpush2.msra.mxu0 0.0
    %3891 = vmatprep.subr.mxu0 0.0
    %3892 = vmatpush2.msra.mxu0 0.0
    %3893 = vmatprep.subr.mxu0 0.0
    %3894 = vmatpush2.msra.mxu0 0.0
    %3895 = vmatprep.subr.mxu0 0.0
    %3896 = vmatpush2.msra.mxu0 0.0
    %3897 = vmatprep.subr.mxu0 0.0
    %3898 = vmatpush2.msra.mxu0 0.0
    %3899 = vmatprep.subr.mxu0 0.0
    %3900 = vmatpush2.msra.mxu0 0.0
    %3901 = vmatprep.subr.mxu0 0.0
    %3902 = vmatpush2.msra.mxu0 0.0
    %3903 = vmatprep.subr.mxu0 0.0
    %3904 = vmatpush2.msra.mxu0 0.0
    %3905 = vmatprep.subr.mxu0 0.0
    %3906 = vmatpush2.msra.mxu0 0.0
    %3907 = vmatprep.subr.mxu0 0.0
    %3908 = vmatpush2.msra.mxu0 0.0
    %3909 = vmatprep.subr.mxu0 0.0
    %3910 = vmatpush2.msra.mxu0 0.0
    %3911 = vmatprep.subr.mxu0 0.0
    %3912 = vmatpush2.msra.mxu0 0.0
    %3913 = vmatprep.subr.mxu0 0.0
    %3914 = vmatpush2.msra.mxu0 0.0
    %3915 = vmatprep.mubr.f32.mxu0 0.0
    %v3916 = vand.u32 %v3656, 4294901760
    %3917 = vmatmul.mubr.f32.gmra.mxu0 %v3916
    %v3918 = vpop.f32.mrf.mxu0
    %v3919 = vadd.f32 %v3768, %v3918
    %v3920 = vpop.f32.mrf.mxu0
    %3921 = vdwg.mxu0
    %3922 = vmatprep.subr.mxu0 0.0
    %v3923 = vand.u32 %v3672, 4294901760
    %v3924 = vsub.f32 %v3672, %v3923
    %3925 = vmatpush1.msra.mxu0 %v3924
    %3926 = vmatprep.subr.mxu0 0.0
    %v3927 = vand.u32 %v3671, 4294901760
    %v3928 = vsub.f32 %v3671, %v3927
    %3929 = vmatpush1.msra.mxu0 %v3928
    %3930 = vmatprep.subr.mxu0 0.0
    %v3931 = vand.u32 %v3670, 4294901760
    %v3932 = vsub.f32 %v3670, %v3931
    %3933 = vmatpush1.msra.mxu0 %v3932
    %3934 = vmatprep.subr.mxu0 0.0
    %v3935 = vand.u32 %v3669, 4294901760
    %v3936 = vsub.f32 %v3669, %v3935
    %3937 = vmatpush1.msra.mxu0 %v3936
    %3938 = vmatprep.subr.mxu0 0.0
    %v3939 = vand.u32 %v3668, 4294901760
    %v3940 = vsub.f32 %v3668, %v3939
    %3941 = vmatpush1.msra.mxu0 %v3940
    %3942 = vmatprep.subr.mxu0 0.0
    %v3943 = vand.u32 %v3667, 4294901760
    %v3944 = vsub.f32 %v3667, %v3943
    %3945 = vmatpush1.msra.mxu0 %v3944
    %3946 = vmatprep.subr.mxu0 0.0
    %v3947 = vand.u32 %v3666, 4294901760
    %v3948 = vsub.f32 %v3666, %v3947
    %3949 = vmatpush1.msra.mxu0 %v3948
    %3950 = vmatprep.subr.mxu0 0.0
    %v3951 = vand.u32 %v3665, 4294901760
    %v3952 = vsub.f32 %v3665, %v3951
    %3953 = vmatpush1.msra.mxu0 %v3952
    %3954 = vmatprep.subr.mxu0 0.0
    %v3955 = vand.u32 %v3664, 4294901760
    %v3956 = vsub.f32 %v3664, %v3955
    %3957 = vmatpush1.msra.mxu0 %v3956
    %3958 = vmatprep.subr.mxu0 0.0
    %v3959 = vand.u32 %v3663, 4294901760
    %v3960 = vsub.f32 %v3663, %v3959
    %3961 = vmatpush1.msra.mxu0 %v3960
    %3962 = vmatprep.subr.mxu0 0.0
    %v3963 = vand.u32 %v3662, 4294901760
    %v3964 = vsub.f32 %v3662, %v3963
    %3965 = vmatpush1.msra.mxu0 %v3964
    %3966 = vmatprep.subr.mxu0 0.0
    %v3967 = vand.u32 %v3661, 4294901760
    %v3968 = vsub.f32 %v3661, %v3967
    %3969 = vmatpush1.msra.mxu0 %v3968
    %3970 = vmatprep.subr.mxu0 0.0
    %v3971 = vand.u32 %v3660, 4294901760
    %v3972 = vsub.f32 %v3660, %v3971
    %3973 = vmatpush1.msra.mxu0 %v3972
    %3974 = vmatprep.subr.mxu0 0.0
    %v3975 = vand.u32 %v3659, 4294901760
    %v3976 = vsub.f32 %v3659, %v3975
    %3977 = vmatpush1.msra.mxu0 %v3976
    %3978 = vmatprep.subr.mxu0 0.0
    %v3979 = vand.u32 %v3658, 4294901760
    %v3980 = vsub.f32 %v3658, %v3979
    %3981 = vmatpush1.msra.mxu0 %v3980
    %3982 = vmatprep.subr.mxu0 0.0
    %v3983 = vand.u32 %v3657, 4294901760
    %v3984 = vsub.f32 %v3657, %v3983
    %3985 = vmatpush1.msra.mxu0 %v3984
    %3986 = vmatprep.subr.mxu0 0.0
    %3987 = vmatpush2.msra.mxu0 0.0
    %3988 = vmatprep.subr.mxu0 0.0
    %3989 = vmatpush2.msra.mxu0 0.0
    %3990 = vmatprep.subr.mxu0 0.0
    %3991 = vmatpush2.msra.mxu0 0.0
    %3992 = vmatprep.subr.mxu0 0.0
    %3993 = vmatpush2.msra.mxu0 0.0
    %3994 = vmatprep.subr.mxu0 0.0
    %3995 = vmatpush2.msra.mxu0 0.0
    %3996 = vmatprep.subr.mxu0 0.0
    %3997 = vmatpush2.msra.mxu0 0.0
    %3998 = vmatprep.subr.mxu0 0.0
    %3999 = vmatpush2.msra.mxu0 0.0
    %4000 = vmatprep.subr.mxu0 0.0
    %4001 = vmatpush2.msra.mxu0 0.0
    %4002 = vmatprep.subr.mxu0 0.0
    %4003 = vmatpush2.msra.mxu0 0.0
    %4004 = vmatprep.subr.mxu0 0.0
    %4005 = vmatpush2.msra.mxu0 0.0
    %4006 = vmatprep.subr.mxu0 0.0
    %4007 = vmatpush2.msra.mxu0 0.0
    %4008 = vmatprep.subr.mxu0 0.0
    %4009 = vmatpush2.msra.mxu0 0.0
    %4010 = vmatprep.subr.mxu0 0.0
    %4011 = vmatpush2.msra.mxu0 0.0
    %4012 = vmatprep.subr.mxu0 0.0
    %4013 = vmatpush2.msra.mxu0 0.0
    %4014 = vmatprep.subr.mxu0 0.0
    %4015 = vmatpush2.msra.mxu0 0.0
    %4016 = vmatprep.subr.mxu0 0.0
    %4017 = vmatpush2.msra.mxu0 0.0
    %4018 = vmatprep.mubr.f32.mxu0 0.0
    %v4019 = vand.u32 %v3656, 4294901760
    %v4020 = vsub.f32 %v3656, %v4019
    %4021 = vmatmul.mubr.f32.gmra.mxu0 %v4020
    %v4022 = vpop.f32.mrf.mxu0
    %v4023 = vadd.f32 %v3919, %v4022
    %v4024 = vpop.f32.mrf.mxu0
    %4025 = vdwg.mxu0
    %4026 = vmatprep.subr.mxu0 0.0
    %v4027 = vand.u32 %v3672, 4294901760
    %4028 = vmatpush1.msra.mxu0 %v4027
    %4029 = vmatprep.subr.mxu0 0.0
    %v4030 = vand.u32 %v3671, 4294901760
    %4031 = vmatpush1.msra.mxu0 %v4030
    %4032 = vmatprep.subr.mxu0 0.0
    %v4033 = vand.u32 %v3670, 4294901760
    %4034 = vmatpush1.msra.mxu0 %v4033
    %4035 = vmatprep.subr.mxu0 0.0
    %v4036 = vand.u32 %v3669, 4294901760
    %4037 = vmatpush1.msra.mxu0 %v4036
    %4038 = vmatprep.subr.mxu0 0.0
    %v4039 = vand.u32 %v3668, 4294901760
    %4040 = vmatpush1.msra.mxu0 %v4039
    %4041 = vmatprep.subr.mxu0 0.0
    %v4042 = vand.u32 %v3667, 4294901760
    %4043 = vmatpush1.msra.mxu0 %v4042
    %4044 = vmatprep.subr.mxu0 0.0
    %v4045 = vand.u32 %v3666, 4294901760
    %4046 = vmatpush1.msra.mxu0 %v4045
    %4047 = vmatprep.subr.mxu0 0.0
    %v4048 = vand.u32 %v3665, 4294901760
    %4049 = vmatpush1.msra.mxu0 %v4048
    %4050 = vmatprep.subr.mxu0 0.0
    %v4051 = vand.u32 %v3664, 4294901760
    %4052 = vmatpush1.msra.mxu0 %v4051
    %4053 = vmatprep.subr.mxu0 0.0
    %v4054 = vand.u32 %v3663, 4294901760
    %4055 = vmatpush1.msra.mxu0 %v4054
    %4056 = vmatprep.subr.mxu0 0.0
    %v4057 = vand.u32 %v3662, 4294901760
    %4058 = vmatpush1.msra.mxu0 %v4057
    %4059 = vmatprep.subr.mxu0 0.0
    %v4060 = vand.u32 %v3661, 4294901760
    %4061 = vmatpush1.msra.mxu0 %v4060
    %4062 = vmatprep.subr.mxu0 0.0
    %v4063 = vand.u32 %v3660, 4294901760
    %4064 = vmatpush1.msra.mxu0 %v4063
    %4065 = vmatprep.subr.mxu0 0.0
    %v4066 = vand.u32 %v3659, 4294901760
    %4067 = vmatpush1.msra.mxu0 %v4066
    %4068 = vmatprep.subr.mxu0 0.0
    %v4069 = vand.u32 %v3658, 4294901760
    %4070 = vmatpush1.msra.mxu0 %v4069
    %4071 = vmatprep.subr.mxu0 0.0
    %v4072 = vand.u32 %v3657, 4294901760
    %4073 = vmatpush1.msra.mxu0 %v4072
    %4074 = vmatprep.subr.mxu0 0.0
    %4075 = vmatpush2.msra.mxu0 0.0
    %4076 = vmatprep.subr.mxu0 0.0
    %4077 = vmatpush2.msra.mxu0 0.0
    %4078 = vmatprep.subr.mxu0 0.0
    %4079 = vmatpush2.msra.mxu0 0.0
    %4080 = vmatprep.subr.mxu0 0.0
    %4081 = vmatpush2.msra.mxu0 0.0
    %4082 = vmatprep.subr.mxu0 0.0
    %4083 = vmatpush2.msra.mxu0 0.0
    %4084 = vmatprep.subr.mxu0 0.0
    %4085 = vmatpush2.msra.mxu0 0.0
    %4086 = vmatprep.subr.mxu0 0.0
    %4087 = vmatpush2.msra.mxu0 0.0
    %4088 = vmatprep.subr.mxu0 0.0
    %4089 = vmatpush2.msra.mxu0 0.0
    %4090 = vmatprep.subr.mxu0 0.0
    %4091 = vmatpush2.msra.mxu0 0.0
    %4092 = vmatprep.subr.mxu0 0.0
    %4093 = vmatpush2.msra.mxu0 0.0
    %4094 = vmatprep.subr.mxu0 0.0
    %4095 = vmatpush2.msra.mxu0 0.0
    %4096 = vmatprep.subr.mxu0 0.0
    %4097 = vmatpush2.msra.mxu0 0.0
    %4098 = vmatprep.subr.mxu0 0.0
    %4099 = vmatpush2.msra.mxu0 0.0
    %4100 = vmatprep.subr.mxu0 0.0
    %4101 = vmatpush2.msra.mxu0 0.0
    %4102 = vmatprep.subr.mxu0 0.0
    %4103 = vmatpush2.msra.mxu0 0.0
    %4104 = vmatprep.subr.mxu0 0.0
    %4105 = vmatpush2.msra.mxu0 0.0
    %4106 = vmatprep.mubr.f32.mxu0 0.0
    %v4107 = vand.u32 %v3656, 4294901760
    %v4108 = vsub.f32 %v3656, %v4107
    %v4109 = vand.u32 %v4108, 4294901760
    %4110 = vmatmul.mubr.f32.gmra.mxu0 %v4109
    %v4111 = vpop.f32.mrf.mxu0
    %v4112 = vadd.f32 %v4023, %v4111
    %v4113 = vpop.f32.mrf.mxu0
    %4114 = vdwg.mxu0
    %4115 = vmatprep.subr.mxu0 0.0
    %v4116 = vand.u32 %v3672, 4294901760
    %v4117 = vsub.f32 %v3672, %v4116
    %v4118 = vand.u32 %v4117, 4294901760
    %4119 = vmatpush1.msra.mxu0 %v4118
    %4120 = vmatprep.subr.mxu0 0.0
    %v4121 = vand.u32 %v3671, 4294901760
    %v4122 = vsub.f32 %v3671, %v4121
    %v4123 = vand.u32 %v4122, 4294901760
    %4124 = vmatpush1.msra.mxu0 %v4123
    %4125 = vmatprep.subr.mxu0 0.0
    %v4126 = vand.u32 %v3670, 4294901760
    %v4127 = vsub.f32 %v3670, %v4126
    %v4128 = vand.u32 %v4127, 4294901760
    %4129 = vmatpush1.msra.mxu0 %v4128
    %4130 = vmatprep.subr.mxu0 0.0
    %v4131 = vand.u32 %v3669, 4294901760
    %v4132 = vsub.f32 %v3669, %v4131
    %v4133 = vand.u32 %v4132, 4294901760
    %4134 = vmatpush1.msra.mxu0 %v4133
    %4135 = vmatprep.subr.mxu0 0.0
    %v4136 = vand.u32 %v3668, 4294901760
    %v4137 = vsub.f32 %v3668, %v4136
    %v4138 = vand.u32 %v4137, 4294901760
    %4139 = vmatpush1.msra.mxu0 %v4138
    %4140 = vmatprep.subr.mxu0 0.0
    %v4141 = vand.u32 %v3667, 4294901760
    %v4142 = vsub.f32 %v3667, %v4141
    %v4143 = vand.u32 %v4142, 4294901760
    %4144 = vmatpush1.msra.mxu0 %v4143
    %4145 = vmatprep.subr.mxu0 0.0
    %v4146 = vand.u32 %v3666, 4294901760
    %v4147 = vsub.f32 %v3666, %v4146
    %v4148 = vand.u32 %v4147, 4294901760
    %4149 = vmatpush1.msra.mxu0 %v4148
    %4150 = vmatprep.subr.mxu0 0.0
    %v4151 = vand.u32 %v3665, 4294901760
    %v4152 = vsub.f32 %v3665, %v4151
    %v4153 = vand.u32 %v4152, 4294901760
    %4154 = vmatpush1.msra.mxu0 %v4153
    %4155 = vmatprep.subr.mxu0 0.0
    %v4156 = vand.u32 %v3664, 4294901760
    %v4157 = vsub.f32 %v3664, %v4156
    %v4158 = vand.u32 %v4157, 4294901760
    %4159 = vmatpush1.msra.mxu0 %v4158
    %4160 = vmatprep.subr.mxu0 0.0
    %v4161 = vand.u32 %v3663, 4294901760
    %v4162 = vsub.f32 %v3663, %v4161
    %v4163 = vand.u32 %v4162, 4294901760
    %4164 = vmatpush1.msra.mxu0 %v4163
    %4165 = vmatprep.subr.mxu0 0.0
    %v4166 = vand.u32 %v3662, 4294901760
    %v4167 = vsub.f32 %v3662, %v4166
    %v4168 = vand.u32 %v4167, 4294901760
    %4169 = vmatpush1.msra.mxu0 %v4168
    %4170 = vmatprep.subr.mxu0 0.0
    %v4171 = vand.u32 %v3661, 4294901760
    %v4172 = vsub.f32 %v3661, %v4171
    %v4173 = vand.u32 %v4172, 4294901760
    %4174 = vmatpush1.msra.mxu0 %v4173
    %4175 = vmatprep.subr.mxu0 0.0
    %v4176 = vand.u32 %v3660, 4294901760
    %v4177 = vsub.f32 %v3660, %v4176
    %v4178 = vand.u32 %v4177, 4294901760
    %4179 = vmatpush1.msra.mxu0 %v4178
    %4180 = vmatprep.subr.mxu0 0.0
    %v4181 = vand.u32 %v3659, 4294901760
    %v4182 = vsub.f32 %v3659, %v4181
    %v4183 = vand.u32 %v4182, 4294901760
    %4184 = vmatpush1.msra.mxu0 %v4183
    %4185 = vmatprep.subr.mxu0 0.0
    %v4186 = vand.u32 %v3658, 4294901760
    %v4187 = vsub.f32 %v3658, %v4186
    %v4188 = vand.u32 %v4187, 4294901760
    %4189 = vmatpush1.msra.mxu0 %v4188
    %4190 = vmatprep.subr.mxu0 0.0
    %v4191 = vand.u32 %v3657, 4294901760
    %v4192 = vsub.f32 %v3657, %v4191
    %v4193 = vand.u32 %v4192, 4294901760
    %4194 = vmatpush1.msra.mxu0 %v4193
    %4195 = vmatprep.subr.mxu0 0.0
    %4196 = vmatpush2.msra.mxu0 0.0
    %4197 = vmatprep.subr.mxu0 0.0
    %4198 = vmatpush2.msra.mxu0 0.0
    %4199 = vmatprep.subr.mxu0 0.0
    %4200 = vmatpush2.msra.mxu0 0.0
    %4201 = vmatprep.subr.mxu0 0.0
    %4202 = vmatpush2.msra.mxu0 0.0
    %4203 = vmatprep.subr.mxu0 0.0
    %4204 = vmatpush2.msra.mxu0 0.0
    %4205 = vmatprep.subr.mxu0 0.0
    %4206 = vmatpush2.msra.mxu0 0.0
    %4207 = vmatprep.subr.mxu0 0.0
    %4208 = vmatpush2.msra.mxu0 0.0
    %4209 = vmatprep.subr.mxu0 0.0
    %4210 = vmatpush2.msra.mxu0 0.0
    %4211 = vmatprep.subr.mxu0 0.0
    %4212 = vmatpush2.msra.mxu0 0.0
    %4213 = vmatprep.subr.mxu0 0.0
    %4214 = vmatpush2.msra.mxu0 0.0
    %4215 = vmatprep.subr.mxu0 0.0
    %4216 = vmatpush2.msra.mxu0 0.0
    %4217 = vmatprep.subr.mxu0 0.0
    %4218 = vmatpush2.msra.mxu0 0.0
    %4219 = vmatprep.subr.mxu0 0.0
    %4220 = vmatpush2.msra.mxu0 0.0
    %4221 = vmatprep.subr.mxu0 0.0
    %4222 = vmatpush2.msra.mxu0 0.0
    %4223 = vmatprep.subr.mxu0 0.0
    %4224 = vmatpush2.msra.mxu0 0.0
    %4225 = vmatprep.subr.mxu0 0.0
    %4226 = vmatpush2.msra.mxu0 0.0
    %4227 = vmatprep.mubr.f32.mxu0 0.0
    %v4228 = vand.u32 %v3656, 4294901760
    %4229 = vmatmul.mubr.f32.gmra.mxu0 %v4228
    %v4230 = vpop.f32.mrf.mxu0
    %v4231 = vadd.f32 %v4112, %v4230
    %v4232 = vpop.f32.mrf.mxu0
    %4233 = vdwg.mxu0
    %4234 = vmatprep.subr.mxu0 0.0
    %v4235 = vand.u32 %v3672, 4294901760
    %4236 = vmatpush1.msra.mxu0 %v4235
    %4237 = vmatprep.subr.mxu0 0.0
    %v4238 = vand.u32 %v3671, 4294901760
    %4239 = vmatpush1.msra.mxu0 %v4238
    %4240 = vmatprep.subr.mxu0 0.0
    %v4241 = vand.u32 %v3670, 4294901760
    %4242 = vmatpush1.msra.mxu0 %v4241
    %4243 = vmatprep.subr.mxu0 0.0
    %v4244 = vand.u32 %v3669, 4294901760
    %4245 = vmatpush1.msra.mxu0 %v4244
    %4246 = vmatprep.subr.mxu0 0.0
    %v4247 = vand.u32 %v3668, 4294901760
    %4248 = vmatpush1.msra.mxu0 %v4247
    %4249 = vmatprep.subr.mxu0 0.0
    %v4250 = vand.u32 %v3667, 4294901760
    %4251 = vmatpush1.msra.mxu0 %v4250
    %4252 = vmatprep.subr.mxu0 0.0
    %v4253 = vand.u32 %v3666, 4294901760
    %4254 = vmatpush1.msra.mxu0 %v4253
    %4255 = vmatprep.subr.mxu0 0.0
    %v4256 = vand.u32 %v3665, 4294901760
    %4257 = vmatpush1.msra.mxu0 %v4256
    %4258 = vmatprep.subr.mxu0 0.0
    %v4259 = vand.u32 %v3664, 4294901760
    %4260 = vmatpush1.msra.mxu0 %v4259
    %4261 = vmatprep.subr.mxu0 0.0
    %v4262 = vand.u32 %v3663, 4294901760
    %4263 = vmatpush1.msra.mxu0 %v4262
    %4264 = vmatprep.subr.mxu0 0.0
    %v4265 = vand.u32 %v3662, 4294901760
    %4266 = vmatpush1.msra.mxu0 %v4265
    %4267 = vmatprep.subr.mxu0 0.0
    %v4268 = vand.u32 %v3661, 4294901760
    %4269 = vmatpush1.msra.mxu0 %v4268
    %4270 = vmatprep.subr.mxu0 0.0
    %v4271 = vand.u32 %v3660, 4294901760
    %4272 = vmatpush1.msra.mxu0 %v4271
    %4273 = vmatprep.subr.mxu0 0.0
    %v4274 = vand.u32 %v3659, 4294901760
    %4275 = vmatpush1.msra.mxu0 %v4274
    %4276 = vmatprep.subr.mxu0 0.0
    %v4277 = vand.u32 %v3658, 4294901760
    %4278 = vmatpush1.msra.mxu0 %v4277
    %4279 = vmatprep.subr.mxu0 0.0
    %v4280 = vand.u32 %v3657, 4294901760
    %4281 = vmatpush1.msra.mxu0 %v4280
    %4282 = vmatprep.subr.mxu0 0.0
    %4283 = vmatpush2.msra.mxu0 0.0
    %4284 = vmatprep.subr.mxu0 0.0
    %4285 = vmatpush2.msra.mxu0 0.0
    %4286 = vmatprep.subr.mxu0 0.0
    %4287 = vmatpush2.msra.mxu0 0.0
    %4288 = vmatprep.subr.mxu0 0.0
    %4289 = vmatpush2.msra.mxu0 0.0
    %4290 = vmatprep.subr.mxu0 0.0
    %4291 = vmatpush2.msra.mxu0 0.0
    %4292 = vmatprep.subr.mxu0 0.0
    %4293 = vmatpush2.msra.mxu0 0.0
    %4294 = vmatprep.subr.mxu0 0.0
    %4295 = vmatpush2.msra.mxu0 0.0
    %4296 = vmatprep.subr.mxu0 0.0
    %4297 = vmatpush2.msra.mxu0 0.0
    %4298 = vmatprep.subr.mxu0 0.0
    %4299 = vmatpush2.msra.mxu0 0.0
    %4300 = vmatprep.subr.mxu0 0.0
    %4301 = vmatpush2.msra.mxu0 0.0
    %4302 = vmatprep.subr.mxu0 0.0
    %4303 = vmatpush2.msra.mxu0 0.0
    %4304 = vmatprep.subr.mxu0 0.0
    %4305 = vmatpush2.msra.mxu0 0.0
    %4306 = vmatprep.subr.mxu0 0.0
    %4307 = vmatpush2.msra.mxu0 0.0
    %4308 = vmatprep.subr.mxu0 0.0
    %4309 = vmatpush2.msra.mxu0 0.0
    %4310 = vmatprep.subr.mxu0 0.0
    %4311 = vmatpush2.msra.mxu0 0.0
    %4312 = vmatprep.subr.mxu0 0.0
    %4313 = vmatpush2.msra.mxu0 0.0
    %4314 = vmatprep.mubr.f32.mxu0 0.0
    %v4315 = vand.u32 %v3656, 4294901760
    %4316 = vmatmul.mubr.f32.gmra.mxu0 %v4315
    %v4317 = vpop.f32.mrf.mxu0
    %v4318 = vadd.f32 %v4231, %v4317
    %v4319 = vpop.f32.mrf.mxu0
    %4320 = vdwg.mxu0
    %v4321 = vmax.f32 %v4318, 0.0
    %v4322 = vld [vmem:[%s5] sm:$0xff]
    %v4323 = vld [vmem:[%s5 + $0x8] sm:$0xff]
    %v4324 = vld [vmem:[%s5 + $0x10] sm:$0xff]
    %v4325 = vld [vmem:[%s5 + $0x18] sm:$0xff]
    %v4326 = vld [vmem:[%s5 + $0x20] sm:$0xff]
    %v4327 = vld [vmem:[%s5 + $0x28] sm:$0xff]
    %v4328 = vld [vmem:[%s5 + $0x30] sm:$0xff]
    %v4329 = vld [vmem:[%s5 + $0x38] sm:$0xff]
    %v4330 = vld [vmem:[%s5 + $0x40] sm:$0xff]
    %v4331 = vld [vmem:[%s5 + $0x48] sm:$0xff]
    %v4332 = vld [vmem:[%s5 + $0x50] sm:$0xff]
    %v4333 = vld [vmem:[%s5 + $0x58] sm:$0xff]
    %v4334 = vld [vmem:[%s5 + $0x60] sm:$0xff]
    %v4335 = vld [vmem:[%s5 + $0x68] sm:$0xff]
    %v4336 = vld [vmem:[%s5 + $0x70] sm:$0xff]
    %v4337 = vld [vmem:[%s5 + $0x78] sm:$0xff]
    %v4338 = vld [vmem:[%s6] sm:$0x1]
    %v4340 = vlaneseq
    %v4341 = vshrl.u32 %v4340, 7
    %v4342 = vsub.s32 0, %v4341
    %v4343 = vrot.slane %v4338, %v4342
    %4345 = vmatprep.subr.mxu0 0.0
    %v4346 = vand.u32 %v4337, 4294901760
    %4347 = vmatpush1.msra.mxu0 %v4346
    %4348 = vmatprep.subr.mxu0 0.0
    %v4349 = vand.u32 %v4336, 4294901760
    %4350 = vmatpush1.msra.mxu0 %v4349
    %4351 = vmatprep.subr.mxu0 0.0
    %v4352 = vand.u32 %v4335, 4294901760
    %4353 = vmatpush1.msra.mxu0 %v4352
    %4354 = vmatprep.subr.mxu0 0.0
    %v4355 = vand.u32 %v4334, 4294901760
    %4356 = vmatpush1.msra.mxu0 %v4355
    %4357 = vmatprep.subr.mxu0 0.0
    %v4358 = vand.u32 %v4333, 4294901760
    %4359 = vmatpush1.msra.mxu0 %v4358
    %4360 = vmatprep.subr.mxu0 0.0
    %v4361 = vand.u32 %v4332, 4294901760
    %4362 = vmatpush1.msra.mxu0 %v4361
    %4363 = vmatprep.subr.mxu0 0.0
    %v4364 = vand.u32 %v4331, 4294901760
    %4365 = vmatpush1.msra.mxu0 %v4364
    %4366 = vmatprep.subr.mxu0 0.0
    %v4367 = vand.u32 %v4330, 4294901760
    %4368 = vmatpush1.msra.mxu0 %v4367
    %4369 = vmatprep.subr.mxu0 0.0
    %v4370 = vand.u32 %v4329, 4294901760
    %4371 = vmatpush1.msra.mxu0 %v4370
    %4372 = vmatprep.subr.mxu0 0.0
    %v4373 = vand.u32 %v4328, 4294901760
    %4374 = vmatpush1.msra.mxu0 %v4373
    %4375 = vmatprep.subr.mxu0 0.0
    %v4376 = vand.u32 %v4327, 4294901760
    %4377 = vmatpush1.msra.mxu0 %v4376
    %4378 = vmatprep.subr.mxu0 0.0
    %v4379 = vand.u32 %v4326, 4294901760
    %4380 = vmatpush1.msra.mxu0 %v4379
    %4381 = vmatprep.subr.mxu0 0.0
    %v4382 = vand.u32 %v4325, 4294901760
    %4383 = vmatpush1.msra.mxu0 %v4382
    %4384 = vmatprep.subr.mxu0 0.0
    %v4385 = vand.u32 %v4324, 4294901760
    %4386 = vmatpush1.msra.mxu0 %v4385
    %4387 = vmatprep.subr.mxu0 0.0
    %v4388 = vand.u32 %v4323, 4294901760
    %4389 = vmatpush1.msra.mxu0 %v4388
    %4390 = vmatprep.subr.mxu0 0.0
    %v4391 = vand.u32 %v4322, 4294901760
    %4392 = vmatpush1.msra.mxu0 %v4391
    %4393 = vmatprep.subr.mxu0 0.0
    %4394 = vmatpush2.msra.mxu0 0.0
    %4395 = vmatprep.subr.mxu0 0.0
    %4396 = vmatpush2.msra.mxu0 0.0
    %4397 = vmatprep.subr.mxu0 0.0
    %4398 = vmatpush2.msra.mxu0 0.0
    %4399 = vmatprep.subr.mxu0 0.0
    %4400 = vmatpush2.msra.mxu0 0.0
    %4401 = vmatprep.subr.mxu0 0.0
    %4402 = vmatpush2.msra.mxu0 0.0
    %4403 = vmatprep.subr.mxu0 0.0
    %4404 = vmatpush2.msra.mxu0 0.0
    %4405 = vmatprep.subr.mxu0 0.0
    %4406 = vmatpush2.msra.mxu0 0.0
    %4407 = vmatprep.subr.mxu0 0.0
    %4408 = vmatpush2.msra.mxu0 0.0
    %4409 = vmatprep.subr.mxu0 0.0
    %4410 = vmatpush2.msra.mxu0 0.0
    %4411 = vmatprep.subr.mxu0 0.0
    %4412 = vmatpush2.msra.mxu0 0.0
    %4413 = vmatprep.subr.mxu0 0.0
    %4414 = vmatpush2.msra.mxu0 0.0
    %4415 = vmatprep.subr.mxu0 0.0
    %4416 = vmatpush2.msra.mxu0 0.0
    %4417 = vmatprep.subr.mxu0 0.0
    %4418 = vmatpush2.msra.mxu0 0.0
    %4419 = vmatprep.subr.mxu0 0.0
    %4420 = vmatpush2.msra.mxu0 0.0
    %4421 = vmatprep.subr.mxu0 0.0
    %4422 = vmatpush2.msra.mxu0 0.0
    %4423 = vmatprep.subr.mxu0 0.0
    %4424 = vmatpush2.msra.mxu0 0.0
    %4425 = vmatprep.mubr.f32.mxu0 0.0
    %v4426 = vand.u32 %v4321, 4294901760
    %v4427 = vsub.f32 %v4321, %v4426
    %v4428 = vand.u32 %v4427, 4294901760
    %v4429 = vsub.f32 %v4427, %v4428
    %v4430 = vand.u32 %v4429, 4294901760
    %4431 = vmatmul.mubr.f32.gmra.mxu0 %v4430
    %v4432 = vpop.f32.mrf.mxu0
    %v4433 = vadd.f32 %v4343, %v4432
    %v4434 = vpop.f32.mrf.mxu0
    %4435 = vdwg.mxu0
    %4436 = vmatprep.subr.mxu0 0.0
    %v4437 = vand.u32 %v4337, 4294901760
    %v4438 = vsub.f32 %v4337, %v4437
    %v4439 = vand.u32 %v4438, 4294901760
    %v4440 = vsub.f32 %v4438, %v4439
    %v4441 = vand.u32 %v4440, 4294901760
    %4442 = vmatpush1.msra.mxu0 %v4441
    %4443 = vmatprep.subr.mxu0 0.0
    %v4444 = vand.u32 %v4336, 4294901760
    %v4445 = vsub.f32 %v4336, %v4444
    %v4446 = vand.u32 %v4445, 4294901760
    %v4447 = vsub.f32 %v4445, %v4446
    %v4448 = vand.u32 %v4447, 4294901760
    %4449 = vmatpush1.msra.mxu0 %v4448
    %4450 = vmatprep.subr.mxu0 0.0
    %v4451 = vand.u32 %v4335, 4294901760
    %v4452 = vsub.f32 %v4335, %v4451
    %v4453 = vand.u32 %v4452, 4294901760
    %v4454 = vsub.f32 %v4452, %v4453
    %v4455 = vand.u32 %v4454, 4294901760
    %4456 = vmatpush1.msra.mxu0 %v4455
    %4457 = vmatprep.subr.mxu0 0.0
    %v4458 = vand.u32 %v4334, 4294901760
    %v4459 = vsub.f32 %v4334, %v4458
    %v4460 = vand.u32 %v4459, 4294901760
    %v4461 = vsub.f32 %v4459, %v4460
    %v4462 = vand.u32 %v4461, 4294901760
    %4463 = vmatpush1.msra.mxu0 %v4462
    %4464 = vmatprep.subr.mxu0 0.0
    %v4465 = vand.u32 %v4333, 4294901760
    %v4466 = vsub.f32 %v4333, %v4465
    %v4467 = vand.u32 %v4466, 4294901760
    %v4468 = vsub.f32 %v4466, %v4467
    %v4469 = vand.u32 %v4468, 4294901760
    %4470 = vmatpush1.msra.mxu0 %v4469
    %4471 = vmatprep.subr.mxu0 0.0
    %v4472 = vand.u32 %v4332, 4294901760
    %v4473 = vsub.f32 %v4332, %v4472
    %v4474 = vand.u32 %v4473, 4294901760
    %v4475 = vsub.f32 %v4473, %v4474
    %v4476 = vand.u32 %v4475, 4294901760
    %4477 = vmatpush1.msra.mxu0 %v4476
    %4478 = vmatprep.subr.mxu0 0.0
    %v4479 = vand.u32 %v4331, 4294901760
    %v4480 = vsub.f32 %v4331, %v4479
    %v4481 = vand.u32 %v4480, 4294901760
    %v4482 = vsub.f32 %v4480, %v4481
    %v4483 = vand.u32 %v4482, 4294901760
    %4484 = vmatpush1.msra.mxu0 %v4483
    %4485 = vmatprep.subr.mxu0 0.0
    %v4486 = vand.u32 %v4330, 4294901760
    %v4487 = vsub.f32 %v4330, %v4486
    %v4488 = vand.u32 %v4487, 4294901760
    %v4489 = vsub.f32 %v4487, %v4488
    %v4490 = vand.u32 %v4489, 4294901760
    %4491 = vmatpush1.msra.mxu0 %v4490
    %4492 = vmatprep.subr.mxu0 0.0
    %v4493 = vand.u32 %v4329, 4294901760
    %v4494 = vsub.f32 %v4329, %v4493
    %v4495 = vand.u32 %v4494, 4294901760
    %v4496 = vsub.f32 %v4494, %v4495
    %v4497 = vand.u32 %v4496, 4294901760
    %4498 = vmatpush1.msra.mxu0 %v4497
    %4499 = vmatprep.subr.mxu0 0.0
    %v4500 = vand.u32 %v4328, 4294901760
    %v4501 = vsub.f32 %v4328, %v4500
    %v4502 = vand.u32 %v4501, 4294901760
    %v4503 = vsub.f32 %v4501, %v4502
    %v4504 = vand.u32 %v4503, 4294901760
    %4505 = vmatpush1.msra.mxu0 %v4504
    %4506 = vmatprep.subr.mxu0 0.0
    %v4507 = vand.u32 %v4327, 4294901760
    %v4508 = vsub.f32 %v4327, %v4507
    %v4509 = vand.u32 %v4508, 4294901760
    %v4510 = vsub.f32 %v4508, %v4509
    %v4511 = vand.u32 %v4510, 4294901760
    %4512 = vmatpush1.msra.mxu0 %v4511
    %4513 = vmatprep.subr.mxu0 0.0
    %v4514 = vand.u32 %v4326, 4294901760
    %v4515 = vsub.f32 %v4326, %v4514
    %v4516 = vand.u32 %v4515, 4294901760
    %v4517 = vsub.f32 %v4515, %v4516
    %v4518 = vand.u32 %v4517, 4294901760
    %4519 = vmatpush1.msra.mxu0 %v4518
    %4520 = vmatprep.subr.mxu0 0.0
    %v4521 = vand.u32 %v4325, 4294901760
    %v4522 = vsub.f32 %v4325, %v4521
    %v4523 = vand.u32 %v4522, 4294901760
    %v4524 = vsub.f32 %v4522, %v4523
    %v4525 = vand.u32 %v4524, 4294901760
    %4526 = vmatpush1.msra.mxu0 %v4525
    %4527 = vmatprep.subr.mxu0 0.0
    %v4528 = vand.u32 %v4324, 4294901760
    %v4529 = vsub.f32 %v4324, %v4528
    %v4530 = vand.u32 %v4529, 4294901760
    %v4531 = vsub.f32 %v4529, %v4530
    %v4532 = vand.u32 %v4531, 4294901760
    %4533 = vmatpush1.msra.mxu0 %v4532
    %4534 = vmatprep.subr.mxu0 0.0
    %v4535 = vand.u32 %v4323, 4294901760
    %v4536 = vsub.f32 %v4323, %v4535
    %v4537 = vand.u32 %v4536, 4294901760
    %v4538 = vsub.f32 %v4536, %v4537
    %v4539 = vand.u32 %v4538, 4294901760
    %4540 = vmatpush1.msra.mxu0 %v4539
    %4541 = vmatprep.subr.mxu0 0.0
    %v4542 = vand.u32 %v4322, 4294901760
    %v4543 = vsub.f32 %v4322, %v4542
    %v4544 = vand.u32 %v4543, 4294901760
    %v4545 = vsub.f32 %v4543, %v4544
    %v4546 = vand.u32 %v4545, 4294901760
    %4547 = vmatpush1.msra.mxu0 %v4546
    %4548 = vmatprep.subr.mxu0 0.0
    %4549 = vmatpush2.msra.mxu0 0.0
    %4550 = vmatprep.subr.mxu0 0.0
    %4551 = vmatpush2.msra.mxu0 0.0
    %4552 = vmatprep.subr.mxu0 0.0
    %4553 = vmatpush2.msra.mxu0 0.0
    %4554 = vmatprep.subr.mxu0 0.0
    %4555 = vmatpush2.msra.mxu0 0.0
    %4556 = vmatprep.subr.mxu0 0.0
    %4557 = vmatpush2.msra.mxu0 0.0
    %4558 = vmatprep.subr.mxu0 0.0
    %4559 = vmatpush2.msra.mxu0 0.0
    %4560 = vmatprep.subr.mxu0 0.0
    %4561 = vmatpush2.msra.mxu0 0.0
    %4562 = vmatprep.subr.mxu0 0.0
    %4563 = vmatpush2.msra.mxu0 0.0
    %4564 = vmatprep.subr.mxu0 0.0
    %4565 = vmatpush2.msra.mxu0 0.0
    %4566 = vmatprep.subr.mxu0 0.0
    %4567 = vmatpush2.msra.mxu0 0.0
    %4568 = vmatprep.subr.mxu0 0.0
    %4569 = vmatpush2.msra.mxu0 0.0
    %4570 = vmatprep.subr.mxu0 0.0
    %4571 = vmatpush2.msra.mxu0 0.0
    %4572 = vmatprep.subr.mxu0 0.0
    %4573 = vmatpush2.msra.mxu0 0.0
    %4574 = vmatprep.subr.mxu0 0.0
    %4575 = vmatpush2.msra.mxu0 0.0
    %4576 = vmatprep.subr.mxu0 0.0
    %4577 = vmatpush2.msra.mxu0 0.0
    %4578 = vmatprep.subr.mxu0 0.0
    %4579 = vmatpush2.msra.mxu0 0.0
    %4580 = vmatprep.mubr.f32.mxu0 0.0
    %v4581 = vand.u32 %v4321, 4294901760
    %4582 = vmatmul.mubr.f32.gmra.mxu0 %v4581
    %v4583 = vpop.f32.mrf.mxu0
    %v4584 = vadd.f32 %v4433, %v4583
    %v4585 = vpop.f32.mrf.mxu0
    %4586 = vdwg.mxu0
    %4587 = vmatprep.subr.mxu0 0.0
    %v4588 = vand.u32 %v4337, 4294901760
    %v4589 = vsub.f32 %v4337, %v4588
    %4590 = vmatpush1.msra.mxu0 %v4589
    %4591 = vmatprep.subr.mxu0 0.0
    %v4592 = vand.u32 %v4336, 4294901760
    %v4593 = vsub.f32 %v4336, %v4592
    %4594 = vmatpush1.msra.mxu0 %v4593
    %4595 = vmatprep.subr.mxu0 0.0
    %v4596 = vand.u32 %v4335, 4294901760
    %v4597 = vsub.f32 %v4335, %v4596
    %4598 = vmatpush1.msra.mxu0 %v4597
    %4599 = vmatprep.subr.mxu0 0.0
    %v4600 = vand.u32 %v4334, 4294901760
    %v4601 = vsub.f32 %v4334, %v4600
    %4602 = vmatpush1.msra.mxu0 %v4601
    %4603 = vmatprep.subr.mxu0 0.0
    %v4604 = vand.u32 %v4333, 4294901760
    %v4605 = vsub.f32 %v4333, %v4604
    %4606 = vmatpush1.msra.mxu0 %v4605
    %4607 = vmatprep.subr.mxu0 0.0
    %v4608 = vand.u32 %v4332, 4294901760
    %v4609 = vsub.f32 %v4332, %v4608
    %4610 = vmatpush1.msra.mxu0 %v4609
    %4611 = vmatprep.subr.mxu0 0.0
    %v4612 = vand.u32 %v4331, 4294901760
    %v4613 = vsub.f32 %v4331, %v4612
    %4614 = vmatpush1.msra.mxu0 %v4613
    %4615 = vmatprep.subr.mxu0 0.0
    %v4616 = vand.u32 %v4330, 4294901760
    %v4617 = vsub.f32 %v4330, %v4616
    %4618 = vmatpush1.msra.mxu0 %v4617
    %4619 = vmatprep.subr.mxu0 0.0
    %v4620 = vand.u32 %v4329, 4294901760
    %v4621 = vsub.f32 %v4329, %v4620
    %4622 = vmatpush1.msra.mxu0 %v4621
    %4623 = vmatprep.subr.mxu0 0.0
    %v4624 = vand.u32 %v4328, 4294901760
    %v4625 = vsub.f32 %v4328, %v4624
    %4626 = vmatpush1.msra.mxu0 %v4625
    %4627 = vmatprep.subr.mxu0 0.0
    %v4628 = vand.u32 %v4327, 4294901760
    %v4629 = vsub.f32 %v4327, %v4628
    %4630 = vmatpush1.msra.mxu0 %v4629
    %4631 = vmatprep.subr.mxu0 0.0
    %v4632 = vand.u32 %v4326, 4294901760
    %v4633 = vsub.f32 %v4326, %v4632
    %4634 = vmatpush1.msra.mxu0 %v4633
    %4635 = vmatprep.subr.mxu0 0.0
    %v4636 = vand.u32 %v4325, 4294901760
    %v4637 = vsub.f32 %v4325, %v4636
    %4638 = vmatpush1.msra.mxu0 %v4637
    %4639 = vmatprep.subr.mxu0 0.0
    %v4640 = vand.u32 %v4324, 4294901760
    %v4641 = vsub.f32 %v4324, %v4640
    %4642 = vmatpush1.msra.mxu0 %v4641
    %4643 = vmatprep.subr.mxu0 0.0
    %v4644 = vand.u32 %v4323, 4294901760
    %v4645 = vsub.f32 %v4323, %v4644
    %4646 = vmatpush1.msra.mxu0 %v4645
    %4647 = vmatprep.subr.mxu0 0.0
    %v4648 = vand.u32 %v4322, 4294901760
    %v4649 = vsub.f32 %v4322, %v4648
    %4650 = vmatpush1.msra.mxu0 %v4649
    %4651 = vmatprep.subr.mxu0 0.0
    %4652 = vmatpush2.msra.mxu0 0.0
    %4653 = vmatprep.subr.mxu0 0.0
    %4654 = vmatpush2.msra.mxu0 0.0
    %4655 = vmatprep.subr.mxu0 0.0
    %4656 = vmatpush2.msra.mxu0 0.0
    %4657 = vmatprep.subr.mxu0 0.0
    %4658 = vmatpush2.msra.mxu0 0.0
    %4659 = vmatprep.subr.mxu0 0.0
    %4660 = vmatpush2.msra.mxu0 0.0
    %4661 = vmatprep.subr.mxu0 0.0
    %4662 = vmatpush2.msra.mxu0 0.0
    %4663 = vmatprep.subr.mxu0 0.0
    %4664 = vmatpush2.msra.mxu0 0.0
    %4665 = vmatprep.subr.mxu0 0.0
    %4666 = vmatpush2.msra.mxu0 0.0
    %4667 = vmatprep.subr.mxu0 0.0
    %4668 = vmatpush2.msra.mxu0 0.0
    %4669 = vmatprep.subr.mxu0 0.0
    %4670 = vmatpush2.msra.mxu0 0.0
    %4671 = vmatprep.subr.mxu0 0.0
    %4672 = vmatpush2.msra.mxu0 0.0
    %4673 = vmatprep.subr.mxu0 0.0
    %4674 = vmatpush2.msra.mxu0 0.0
    %4675 = vmatprep.subr.mxu0 0.0
    %4676 = vmatpush2.msra.mxu0 0.0
    %4677 = vmatprep.subr.mxu0 0.0
    %4678 = vmatpush2.msra.mxu0 0.0
    %4679 = vmatprep.subr.mxu0 0.0
    %4680 = vmatpush2.msra.mxu0 0.0
    %4681 = vmatprep.subr.mxu0 0.0
    %4682 = vmatpush2.msra.mxu0 0.0
    %4683 = vmatprep.mubr.f32.mxu0 0.0
    %v4684 = vand.u32 %v4321, 4294901760
    %v4685 = vsub.f32 %v4321, %v4684
    %4686 = vmatmul.mubr.f32.gmra.mxu0 %v4685
    %v4687 = vpop.f32.mrf.mxu0
    %v4688 = vadd.f32 %v4584, %v4687
    %v4689 = vpop.f32.mrf.mxu0
    %4690 = vdwg.mxu0
    %4691 = vmatprep.subr.mxu0 0.0
    %v4692 = vand.u32 %v4337, 4294901760
    %4693 = vmatpush1.msra.mxu0 %v4692
    %4694 = vmatprep.subr.mxu0 0.0
    %v4695 = vand.u32 %v4336, 4294901760
    %4696 = vmatpush1.msra.mxu0 %v4695
    %4697 = vmatprep.subr.mxu0 0.0
    %v4698 = vand.u32 %v4335, 4294901760
    %4699 = vmatpush1.msra.mxu0 %v4698
    %4700 = vmatprep.subr.mxu0 0.0
    %v4701 = vand.u32 %v4334, 4294901760
    %4702 = vmatpush1.msra.mxu0 %v4701
    %4703 = vmatprep.subr.mxu0 0.0
    %v4704 = vand.u32 %v4333, 4294901760
    %4705 = vmatpush1.msra.mxu0 %v4704
    %4706 = vmatprep.subr.mxu0 0.0
    %v4707 = vand.u32 %v4332, 4294901760
    %4708 = vmatpush1.msra.mxu0 %v4707
    %4709 = vmatprep.subr.mxu0 0.0
    %v4710 = vand.u32 %v4331, 4294901760
    %4711 = vmatpush1.msra.mxu0 %v4710
    %4712 = vmatprep.subr.mxu0 0.0
    %v4713 = vand.u32 %v4330, 4294901760
    %4714 = vmatpush1.msra.mxu0 %v4713
    %4715 = vmatprep.subr.mxu0 0.0
    %v4716 = vand.u32 %v4329, 4294901760
    %4717 = vmatpush1.msra.mxu0 %v4716
    %4718 = vmatprep.subr.mxu0 0.0
    %v4719 = vand.u32 %v4328, 4294901760
    %4720 = vmatpush1.msra.mxu0 %v4719
    %4721 = vmatprep.subr.mxu0 0.0
    %v4722 = vand.u32 %v4327, 4294901760
    %4723 = vmatpush1.msra.mxu0 %v4722
    %4724 = vmatprep.subr.mxu0 0.0
    %v4725 = vand.u32 %v4326, 4294901760
    %4726 = vmatpush1.msra.mxu0 %v4725
    %4727 = vmatprep.subr.mxu0 0.0
    %v4728 = vand.u32 %v4325, 4294901760
    %4729 = vmatpush1.msra.mxu0 %v4728
    %4730 = vmatprep.subr.mxu0 0.0
    %v4731 = vand.u32 %v4324, 4294901760
    %4732 = vmatpush1.msra.mxu0 %v4731
    %4733 = vmatprep.subr.mxu0 0.0
    %v4734 = vand.u32 %v4323, 4294901760
    %4735 = vmatpush1.msra.mxu0 %v4734
    %4736 = vmatprep.subr.mxu0 0.0
    %v4737 = vand.u32 %v4322, 4294901760
    %4738 = vmatpush1.msra.mxu0 %v4737
    %4739 = vmatprep.subr.mxu0 0.0
    %4740 = vmatpush2.msra.mxu0 0.0
    %4741 = vmatprep.subr.mxu0 0.0
    %4742 = vmatpush2.msra.mxu0 0.0
    %4743 = vmatprep.subr.mxu0 0.0
    %4744 = vmatpush2.msra.mxu0 0.0
    %4745 = vmatprep.subr.mxu0 0.0
    %4746 = vmatpush2.msra.mxu0 0.0
    %4747 = vmatprep.subr.mxu0 0.0
    %4748 = vmatpush2.msra.mxu0 0.0
    %4749 = vmatprep.subr.mxu0 0.0
    %4750 = vmatpush2.msra.mxu0 0.0
    %4751 = vmatprep.subr.mxu0 0.0
    %4752 = vmatpush2.msra.mxu0 0.0
    %4753 = vmatprep.subr.mxu0 0.0
    %4754 = vmatpush2.msra.mxu0 0.0
    %4755 = vmatprep.subr.mxu0 0.0
    %4756 = vmatpush2.msra.mxu0 0.0
    %4757 = vmatprep.subr.mxu0 0.0
    %4758 = vmatpush2.msra.mxu0 0.0
    %4759 = vmatprep.subr.mxu0 0.0
    %4760 = vmatpush2.msra.mxu0 0.0
    %4761 = vmatprep.subr.mxu0 0.0
    %4762 = vmatpush2.msra.mxu0 0.0
    %4763 = vmatprep.subr.mxu0 0.0
    %4764 = vmatpush2.msra.mxu0 0.0
    %4765 = vmatprep.subr.mxu0 0.0
    %4766 = vmatpush2.msra.mxu0 0.0
    %4767 = vmatprep.subr.mxu0 0.0
    %4768 = vmatpush2.msra.mxu0 0.0
    %4769 = vmatprep.subr.mxu0 0.0
    %4770 = vmatpush2.msra.mxu0 0.0
    %4771 = vmatprep.mubr.f32.mxu0 0.0
    %v4772 = vand.u32 %v4321, 4294901760
    %v4773 = vsub.f32 %v4321, %v4772
    %v4774 = vand.u32 %v4773, 4294901760
    %4775 = vmatmul.mubr.f32.gmra.mxu0 %v4774
    %v4776 = vpop.f32.mrf.mxu0
    %v4777 = vadd.f32 %v4688, %v4776
    %v4778 = vpop.f32.mrf.mxu0
    %4779 = vdwg.mxu0
    %4780 = vmatprep.subr.mxu0 0.0
    %v4781 = vand.u32 %v4337, 4294901760
    %v4782 = vsub.f32 %v4337, %v4781
    %v4783 = vand.u32 %v4782, 4294901760
    %4784 = vmatpush1.msra.mxu0 %v4783
    %4785 = vmatprep.subr.mxu0 0.0
    %v4786 = vand.u32 %v4336, 4294901760
    %v4787 = vsub.f32 %v4336, %v4786
    %v4788 = vand.u32 %v4787, 4294901760
    %4789 = vmatpush1.msra.mxu0 %v4788
    %4790 = vmatprep.subr.mxu0 0.0
    %v4791 = vand.u32 %v4335, 4294901760
    %v4792 = vsub.f32 %v4335, %v4791
    %v4793 = vand.u32 %v4792, 4294901760
    %4794 = vmatpush1.msra.mxu0 %v4793
    %4795 = vmatprep.subr.mxu0 0.0
    %v4796 = vand.u32 %v4334, 4294901760
    %v4797 = vsub.f32 %v4334, %v4796
    %v4798 = vand.u32 %v4797, 4294901760
    %4799 = vmatpush1.msra.mxu0 %v4798
    %4800 = vmatprep.subr.mxu0 0.0
    %v4801 = vand.u32 %v4333, 4294901760
    %v4802 = vsub.f32 %v4333, %v4801
    %v4803 = vand.u32 %v4802, 4294901760
    %4804 = vmatpush1.msra.mxu0 %v4803
    %4805 = vmatprep.subr.mxu0 0.0
    %v4806 = vand.u32 %v4332, 4294901760
    %v4807 = vsub.f32 %v4332, %v4806
    %v4808 = vand.u32 %v4807, 4294901760
    %4809 = vmatpush1.msra.mxu0 %v4808
    %4810 = vmatprep.subr.mxu0 0.0
    %v4811 = vand.u32 %v4331, 4294901760
    %v4812 = vsub.f32 %v4331, %v4811
    %v4813 = vand.u32 %v4812, 4294901760
    %4814 = vmatpush1.msra.mxu0 %v4813
    %4815 = vmatprep.subr.mxu0 0.0
    %v4816 = vand.u32 %v4330, 4294901760
    %v4817 = vsub.f32 %v4330, %v4816
    %v4818 = vand.u32 %v4817, 4294901760
    %4819 = vmatpush1.msra.mxu0 %v4818
    %4820 = vmatprep.subr.mxu0 0.0
    %v4821 = vand.u32 %v4329, 4294901760
    %v4822 = vsub.f32 %v4329, %v4821
    %v4823 = vand.u32 %v4822, 4294901760
    %4824 = vmatpush1.msra.mxu0 %v4823
    %4825 = vmatprep.subr.mxu0 0.0
    %v4826 = vand.u32 %v4328, 4294901760
    %v4827 = vsub.f32 %v4328, %v4826
    %v4828 = vand.u32 %v4827, 4294901760
    %4829 = vmatpush1.msra.mxu0 %v4828
    %4830 = vmatprep.subr.mxu0 0.0
    %v4831 = vand.u32 %v4327, 4294901760
    %v4832 = vsub.f32 %v4327, %v4831
    %v4833 = vand.u32 %v4832, 4294901760
    %4834 = vmatpush1.msra.mxu0 %v4833
    %4835 = vmatprep.subr.mxu0 0.0
    %v4836 = vand.u32 %v4326, 4294901760
    %v4837 = vsub.f32 %v4326, %v4836
    %v4838 = vand.u32 %v4837, 4294901760
    %4839 = vmatpush1.msra.mxu0 %v4838
    %4840 = vmatprep.subr.mxu0 0.0
    %v4841 = vand.u32 %v4325, 4294901760
    %v4842 = vsub.f32 %v4325, %v4841
    %v4843 = vand.u32 %v4842, 4294901760
    %4844 = vmatpush1.msra.mxu0 %v4843
    %4845 = vmatprep.subr.mxu0 0.0
    %v4846 = vand.u32 %v4324, 4294901760
    %v4847 = vsub.f32 %v4324, %v4846
    %v4848 = vand.u32 %v4847, 4294901760
    %4849 = vmatpush1.msra.mxu0 %v4848
    %4850 = vmatprep.subr.mxu0 0.0
    %v4851 = vand.u32 %v4323, 4294901760
    %v4852 = vsub.f32 %v4323, %v4851
    %v4853 = vand.u32 %v4852, 4294901760
    %4854 = vmatpush1.msra.mxu0 %v4853
    %4855 = vmatprep.subr.mxu0 0.0
    %v4856 = vand.u32 %v4322, 4294901760
    %v4857 = vsub.f32 %v4322, %v4856
    %v4858 = vand.u32 %v4857, 4294901760
    %4859 = vmatpush1.msra.mxu0 %v4858
    %4860 = vmatprep.subr.mxu0 0.0
    %4861 = vmatpush2.msra.mxu0 0.0
    %4862 = vmatprep.subr.mxu0 0.0
    %4863 = vmatpush2.msra.mxu0 0.0
    %4864 = vmatprep.subr.mxu0 0.0
    %4865 = vmatpush2.msra.mxu0 0.0
    %4866 = vmatprep.subr.mxu0 0.0
    %4867 = vmatpush2.msra.mxu0 0.0
    %4868 = vmatprep.subr.mxu0 0.0
    %4869 = vmatpush2.msra.mxu0 0.0
    %4870 = vmatprep.subr.mxu0 0.0
    %4871 = vmatpush2.msra.mxu0 0.0
    %4872 = vmatprep.subr.mxu0 0.0
    %4873 = vmatpush2.msra.mxu0 0.0
    %4874 = vmatprep.subr.mxu0 0.0
    %4875 = vmatpush2.msra.mxu0 0.0
    %4876 = vmatprep.subr.mxu0 0.0
    %4877 = vmatpush2.msra.mxu0 0.0
    %4878 = vmatprep.subr.mxu0 0.0
    %4879 = vmatpush2.msra.mxu0 0.0
    %4880 = vmatprep.subr.mxu0 0.0
    %4881 = vmatpush2.msra.mxu0 0.0
    %4882 = vmatprep.subr.mxu0 0.0
    %4883 = vmatpush2.msra.mxu0 0.0
    %4884 = vmatprep.subr.mxu0 0.0
    %4885 = vmatpush2.msra.mxu0 0.0
    %4886 = vmatprep.subr.mxu0 0.0
    %4887 = vmatpush2.msra.mxu0 0.0
    %4888 = vmatprep.subr.mxu0 0.0
    %4889 = vmatpush2.msra.mxu0 0.0
    %4890 = vmatprep.subr.mxu0 0.0
    %4891 = vmatpush2.msra.mxu0 0.0
    %4892 = vmatprep.mubr.f32.mxu0 0.0
    %v4893 = vand.u32 %v4321, 4294901760
    %4894 = vmatmul.mubr.f32.gmra.mxu0 %v4893
    %v4895 = vpop.f32.mrf.mxu0
    %v4896 = vadd.f32 %v4777, %v4895
    %v4897 = vpop.f32.mrf.mxu0
    %4898 = vdwg.mxu0
    %4899 = vmatprep.subr.mxu0 0.0
    %v4900 = vand.u32 %v4337, 4294901760
    %4901 = vmatpush1.msra.mxu0 %v4900
    %4902 = vmatprep.subr.mxu0 0.0
    %v4903 = vand.u32 %v4336, 4294901760
    %4904 = vmatpush1.msra.mxu0 %v4903
    %4905 = vmatprep.subr.mxu0 0.0
    %v4906 = vand.u32 %v4335, 4294901760
    %4907 = vmatpush1.msra.mxu0 %v4906
    %4908 = vmatprep.subr.mxu0 0.0
    %v4909 = vand.u32 %v4334, 4294901760
    %4910 = vmatpush1.msra.mxu0 %v4909
    %4911 = vmatprep.subr.mxu0 0.0
    %v4912 = vand.u32 %v4333, 4294901760
    %4913 = vmatpush1.msra.mxu0 %v4912
    %4914 = vmatprep.subr.mxu0 0.0
    %v4915 = vand.u32 %v4332, 4294901760
    %4916 = vmatpush1.msra.mxu0 %v4915
    %4917 = vmatprep.subr.mxu0 0.0
    %v4918 = vand.u32 %v4331, 4294901760
    %4919 = vmatpush1.msra.mxu0 %v4918
    %4920 = vmatprep.subr.mxu0 0.0
    %v4921 = vand.u32 %v4330, 4294901760
    %4922 = vmatpush1.msra.mxu0 %v4921
    %4923 = vmatprep.subr.mxu0 0.0
    %v4924 = vand.u32 %v4329, 4294901760
    %4925 = vmatpush1.msra.mxu0 %v4924
    %4926 = vmatprep.subr.mxu0 0.0
    %v4927 = vand.u32 %v4328, 4294901760
    %4928 = vmatpush1.msra.mxu0 %v4927
    %4929 = vmatprep.subr.mxu0 0.0
    %v4930 = vand.u32 %v4327, 4294901760
    %4931 = vmatpush1.msra.mxu0 %v4930
    %4932 = vmatprep.subr.mxu0 0.0
    %v4933 = vand.u32 %v4326, 4294901760
    %4934 = vmatpush1.msra.mxu0 %v4933
    %4935 = vmatprep.subr.mxu0 0.0
    %v4936 = vand.u32 %v4325, 4294901760
    %4937 = vmatpush1.msra.mxu0 %v4936
    %4938 = vmatprep.subr.mxu0 0.0
    %v4939 = vand.u32 %v4324, 4294901760
    %4940 = vmatpush1.msra.mxu0 %v4939
    %4941 = vmatprep.subr.mxu0 0.0
    %v4942 = vand.u32 %v4323, 4294901760
    %4943 = vmatpush1.msra.mxu0 %v4942
    %4944 = vmatprep.subr.mxu0 0.0
    %v4945 = vand.u32 %v4322, 4294901760
    %4946 = vmatpush1.msra.mxu0 %v4945
    %4947 = vmatprep.subr.mxu0 0.0
    %4948 = vmatpush2.msra.mxu0 0.0
    %4949 = vmatprep.subr.mxu0 0.0
    %4950 = vmatpush2.msra.mxu0 0.0
    %4951 = vmatprep.subr.mxu0 0.0
    %4952 = vmatpush2.msra.mxu0 0.0
    %4953 = vmatprep.subr.mxu0 0.0
    %4954 = vmatpush2.msra.mxu0 0.0
    %4955 = vmatprep.subr.mxu0 0.0
    %4956 = vmatpush2.msra.mxu0 0.0
    %4957 = vmatprep.subr.mxu0 0.0
    %4958 = vmatpush2.msra.mxu0 0.0
    %4959 = vmatprep.subr.mxu0 0.0
    %4960 = vmatpush2.msra.mxu0 0.0
    %4961 = vmatprep.subr.mxu0 0.0
    %4962 = vmatpush2.msra.mxu0 0.0
    %4963 = vmatprep.subr.mxu0 0.0
    %4964 = vmatpush2.msra.mxu0 0.0
    %4965 = vmatprep.subr.mxu0 0.0
    %4966 = vmatpush2.msra.mxu0 0.0
    %4967 = vmatprep.subr.mxu0 0.0
    %4968 = vmatpush2.msra.mxu0 0.0
    %4969 = vmatprep.subr.mxu0 0.0
    %4970 = vmatpush2.msra.mxu0 0.0
    %4971 = vmatprep.subr.mxu0 0.0
    %4972 = vmatpush2.msra.mxu0 0.0
    %4973 = vmatprep.subr.mxu0 0.0
    %4974 = vmatpush2.msra.mxu0 0.0
    %4975 = vmatprep.subr.mxu0 0.0
    %4976 = vmatpush2.msra.mxu0 0.0
    %4977 = vmatprep.subr.mxu0 0.0
    %4978 = vmatpush2.msra.mxu0 0.0
    %4979 = vmatprep.mubr.f32.mxu0 0.0
    %v4980 = vand.u32 %v4321, 4294901760
    %4981 = vmatmul.mubr.f32.gmra.mxu0 %v4980
    %v4982 = vpop.f32.mrf.mxu0
    %v4983 = vadd.f32 %v4896, %v4982
    %v4984 = vpop.f32.mrf.mxu0
    %4985 = vdwg.mxu0
    %v4986 = vlaneseq
    %v4987 = vand.u32 %v4986, 127
    %vm4988 = vcmp.lt.s32.totalorder %v4987, 10
    %v4989 = vsel %vm4988, %v4983, -1e+30
    %vm4990 = vcmask 1041408
    %v4991 = vsel %vm4990, %v4989, -inf
    %4992 = vmax.xlane.f32.xlu0 %v4991
    %v4993 = vpop.xlane.xlu0 %4992
    %v4994 = vsub.f32 %v4989, %v4993
    %v4995 = vmul.f32 %v4994, 1.442695
    %v4996 = vpow.pop %v4995
    %v4997 = vsel %vm4988, %v4996, 0.0
    %v4998 = vsel %vm4990, %v4997, 0.0
    %4999 = vadd.xlane.f32.xlu0 %v4998
    %v5000 = vpop.xlane.xlu0 %4999
    %v5001 = vlog2.pop %v5000
    %v5002 = vmul.f32 %v5001, 0.6931472
    %v5003 = vsub.f32 %v4994, %v5002
    %5004 = vst [vmem:[#allocation2] sm:$0x3] %v5003
    // Predicated region
    $region30: #{lenet5_forward.3} parent=1 // pred_check
      _
    $region31: #{lenet5_forward.3} parent=1 // pred_check_branch
      %5006 = sbr.rel (0) target = $region33
    $region32: #{lenet5_forward.3} parent=1 // pred_region
      %s5008 = ssub.s32 32, 32
      %5009 = vsyncadd [#allocation3], %s5008
      %s5011 = sshll.u32 [#allocation2], 4
      %s5012 = int_to_ptr.vmem [resolvable:$true] %s5011
      %5014 = dma.vmem_to_hbm [thread:$0]  %s5012, 32, %s7, [#allocation3]
    $region33: #{lenet5_forward.3} parent=1 // pred_fallthru
      _
    // Predicated region
    $region34: #{lenet5_forward.3} parent=1 // pred_check
      _
    $region35: #{lenet5_forward.3} parent=1 // pred_check_branch
      %5016 = sbr.rel (0) target = $region37
    $region36: #{lenet5_forward.3} parent=1 // pred_region
      %5017 = dma.done [#allocation3], 32
    $region37: #{lenet5_forward.3} parent=1 // pred_fallthru
      _
    %5018 = vsyncpa [#allocation3], 1

</llo_original>
